<compile_context>
chip_gen: v7x
topology: tpu7x:2x2x1
jax: 0.10.0
libtpu: 0.0.40
codegen_flags: <defaults>
</compile_context>

<pallas_src>
import math

import jax
import jax.numpy as jnp
from jax import lax
from jax.experimental import pallas as pl
from jax.experimental.pallas import tpu as pltpu


def _layer_norm_f32(x, gamma, beta, eps=1e-5):
    # x: (T, D) f32; gamma/beta: (1, D). PyTorch LayerNorm uses biased variance.
    mean = jnp.mean(x, axis=-1, keepdims=True)
    var = jnp.mean((x - mean) ** 2, axis=-1, keepdims=True)
    inv = lax.rsqrt(var + eps)
    return (x - mean) * inv * gamma + beta


def transformer_block_kernel(
    xq_ref,                      # (TQ, D)        f32   query-row tile (also residual path)
    k_ref, v_ref,                # (heads, S, kd) bf16  precomputed per-batch K / V
    wq_ref,                      # (heads, D, kd) bf16
    wo_ref,                      # (heads, kd, D) bf16
    g1_ref, bln1_ref,            # (1, D)  f32   LayerNorm 1
    w1_ref, bb1_ref,             # (D, Hff) bf16, (1, Hff) f32
    w2_ref, bb2_ref,             # (Hff, D) bf16, (1, D)  f32
    g2_ref, bln2_ref,            # (1, D)  f32   LayerNorm 2
    o_ref,                       # (TQ, D)
):
    heads, _, kd = k_ref.shape
    scale = 1.0 / math.sqrt(kd)

    xq_f32 = xq_ref[...]                       # f32 residual path
    xq_b = xq_f32.astype(jnp.bfloat16)         # MXU operand

    # ---- Multi-head attention; output projection fused per head (no concat) ----
    # fori_loop (not a static unroll) bounds the live (TQ, S) intermediates to one head.
    def head_body(h, attn):
        # Q projection for this head only; fold the 1/sqrt(kd) scale into the (TQ, kd) q.
        qh = jnp.dot(xq_b, wq_ref[h], preferred_element_type=jnp.float32)     # (TQ, kd)
        qh = (qh * scale).astype(jnp.bfloat16)
        kh = k_ref[h]                                                         # (S, kd) bf16
        vh = v_ref[h]                                                         # (S, kd) bf16

        # scores = qh @ kh^T with the transpose fused into the contraction (no vxpose).
        s = lax.dot_general(qh, kh, (((1,), (1,)), ((), ())),
                            preferred_element_type=jnp.float32)               # (TQ, S)

        # Online-style softmax with DEFERRED normalization: exp(s - m) <= 1 is bf16-safe;
        # normalize the (TQ, kd) head output instead of the (TQ, S) probabilities.
        m = jnp.max(s, axis=-1, keepdims=True)
        e = jnp.exp(s - m)
        l = jnp.sum(e, axis=-1, keepdims=True)
        oh = jnp.dot(e.astype(jnp.bfloat16), vh,
                     preferred_element_type=jnp.float32)                      # (TQ, kd)
        oh = oh * pl.reciprocal(l, approx=True)   # EUP slot, frees VALU

        # Fused output projection: attn += oh @ Wo[h]
        return attn + jnp.dot(oh.astype(jnp.bfloat16), wo_ref[h],
                              preferred_element_type=jnp.float32)             # (TQ, D)

    attn = lax.fori_loop(0, heads, head_body, jnp.zeros_like(xq_f32))

    # ---- Residual + LayerNorm 1 (f32) ----
    y = _layer_norm_f32(xq_f32 + attn, g1_ref[...], bln1_ref[...])

    # ---- FFN: Linear -> ReLU -> Dropout(eval=identity) -> Linear ----
    # TODO(synk): training-mode dropout would need pltpu.prng_seed / prng_random_bits here.
    h1 = jnp.dot(y.astype(jnp.bfloat16), w1_ref[...],
                 preferred_element_type=jnp.float32) + bb1_ref[...]           # (TQ, Hff)
    h1 = jnp.maximum(h1, 0.0)
    h2 = jnp.dot(h1.astype(jnp.bfloat16), w2_ref[...],
                 preferred_element_type=jnp.float32) + bb2_ref[...]           # (TQ, D)

    # ---- Residual + LayerNorm 2 (f32) ----
    out = _layer_norm_f32(y + h2, g2_ref[...], bln2_ref[...])
    o_ref[...] = out.astype(o_ref.dtype)


def _tpu_defaults():
    """Per-generation (TQ, vmem_limit_bytes) defaults."""
    try:
        kind = jax.devices()[0].device_kind.lower()
    except Exception:
        kind = ""
    if "v7" in kind:
        return 128, 56 * 1024 * 1024    # 64 MiB physical per TC: leave headroom
    if "v6" in kind:
        return 256, 100 * 1024 * 1024   # 256-wide MXU: fill M; 128 MiB VMEM available
    if "v5" in kind:
        return 128, 96 * 1024 * 1024    # 128-wide MXU already saturated at TQ=128
    return 128, 64 * 1024 * 1024


def transformer_block(x, params, heads, *, tq=None, vmem_limit_bytes=None):
    """x: (B, S, D) float32. params: dict of weights (already transposed to (in, out))."""
    B, S, D = x.shape
    Hff = params["w1"].shape[1]
    assert D % heads == 0
    kd = D // heads
    # TODO(synk): if kd < 128, pack head pairs into one 128-lane slice so per-head q/k/v
    # and Wo tiles stay lane-dense and fill the MXU contraction dimension.

    default_tq, default_vmem = _tpu_defaults()
    TQ = min(tq if tq is not None else default_tq, S)
    vmem_bytes = vmem_limit_bytes if vmem_limit_bytes is not None else default_vmem
    # Ragged S: partial tail tile (rows independent -> padded rows only feed dropped outputs).
    n_q = pl.cdiv(S, TQ)

    # ---- bf16 weights (halve weight DMA/VMEM, hit MXU peak); biases/LN stay f32 ----
    x_b = x.astype(jnp.bfloat16)
    wq_b = params["wq"].astype(jnp.bfloat16)
    wk_b = params["wk"].astype(jnp.bfloat16)
    wv_b = params["wv"].astype(jnp.bfloat16)
    wo_b = params["wo"].astype(jnp.bfloat16)
    w1_b = params["w1"].astype(jnp.bfloat16)
    w2_b = params["w2"].astype(jnp.bfloat16)

    # ---- Hoist K/V projections out of the query-tile loop (one XLA matmul per batch) ----
    def project_per_head(w):
        y = jnp.matmul(x_b, w, preferred_element_type=jnp.float32)           # (B, S, D) f32
        return (y.reshape(B, S, heads, kd)
                 .transpose(0, 2, 1, 3)
                 .astype(jnp.bfloat16))                                       # (B, heads, S, kd)

    k_heads = project_per_head(wk_b)
    v_heads = project_per_head(wv_b)
    # TODO(synk): for long S (>~2-4K on v7x) add a KV grid axis ("arbitrary") with online
    # softmax m/l/acc scratch (flash-style) so VMEM is O(TQ*D + TKV*D) instead of O(S*D + TQ*S).

    # Per-head weight layouts so the kernel can index heads along the (cheap) first axis.
    wq_heads = wq_b.reshape(D, heads, kd).transpose(1, 0, 2)                  # (heads, D, kd)
    wo_heads = wo_b.reshape(heads, kd, D)                                     # (heads, kd, D)

    # ---- Cost estimate (kernel only; K/V projections are a separate XLA op) ----
    flops = 2 * B * S * (2 * D * D + 2 * S * D + 2 * D * Hff)
    kv_bytes = 2 * B * heads * S * kd * 2
    weight_bytes = (2 * D * D + 2 * D * Hff) * 2 + (Hff + 5 * D) * 4
    cost = pl.CostEstimate(
        flops=int(flops),
        transcendentals=int(B * heads * S * S),
        bytes_accessed=int(2 * B * S * D * 4 + kv_bytes + weight_bytes),
    )

    def run(single_buffer_weights: bool):
        def wspec(shape):
            nd = len(shape)
            idx = lambda b, qi: (0,) * nd
            if single_buffer_weights:
                # Constant block index across the whole grid -> one VMEM buffer is enough
                # (default double-buffering would allocate 2x the weight bytes).
                return pl.BlockSpec(shape, idx, pipeline_mode=pl.Buffered(1))
            return pl.BlockSpec(shape, idx)

        out = pl.pallas_call(
            transformer_block_kernel,
            out_shape=jax.ShapeDtypeStruct((B, S, D), x.dtype),
            grid_spec=pltpu.PrefetchScalarGridSpec(
                num_scalar_prefetch=0,
                grid=(B, n_q),
                in_specs=[
                    # Query-row tile of x (squeezed batch dim -> kernel sees (TQ, D), f32).
                    pl.BlockSpec((None, TQ, D), lambda b, qi: (b, qi, 0)),
                    # Per-batch precomputed K / V, bf16, constant over qi (fetched once per b).
                    pl.BlockSpec((None, heads, S, kd), lambda b, qi: (b, 0, 0, 0)),
                    pl.BlockSpec((None, heads, S, kd), lambda b, qi: (b, 0, 0, 0)),
                    wspec((heads, D, kd)),   # Wq per head (bf16)
                    wspec((heads, kd, D)),   # Wo per head (bf16)
                    wspec((1, D)),           # ln1 gamma
                    wspec((1, D)),           # ln1 beta
                    wspec((D, Hff)),         # W1^T (bf16)
                    wspec((1, Hff)),         # b1
                    wspec((Hff, D)),         # W2^T (bf16)
                    wspec((1, D)),           # b2
                    wspec((1, D)),           # ln2 gamma
                    wspec((1, D)),           # ln2 beta
                ],
                out_specs=pl.BlockSpec((None, TQ, D), lambda b, qi: (b, qi, 0)),
            ),
            compiler_params=pltpu.CompilerParams(
                dimension_semantics=("parallel", "parallel"),
                vmem_limit_bytes=vmem_bytes,
            ),
            cost_estimate=cost,
        )(
            x, k_heads, v_heads,
            wq_heads, wo_heads,
            params["ln1_g"], params["ln1_b"],
            w1_b, params["b1"], w2_b, params["b2"],
            params["ln2_g"], params["ln2_b"],
        )
        return jax.block_until_ready(out)

    try:
        return run(single_buffer_weights=True)
    except Exception:
        # TODO(synk): drop this fallback once pl.Buffered(1) single-buffering of
        # constant-index operands is confirmed on the installed jax/libtpu.
        return run(single_buffer_weights=False)


def init_params(key, dmodel, ffnn_hidden, dtype=jnp.float32):
    ks = jax.random.split(key, 6)
    scale = 0.02
    # PyTorch Linear stores (out, in); we store the transpose (in, out) for x @ W.
    return {
        "wq": scale * jax.random.normal(ks[0], (dmodel, dmodel), dtype),
        "wk": scale * jax.random.normal(ks[1], (dmodel, dmodel), dtype),
        "wv": scale * jax.random.normal(ks[2], (dmodel, dmodel), dtype),
        "wo": scale * jax.random.normal(ks[3], (dmodel, dmodel), dtype),
        "w1": scale * jax.random.normal(ks[4], (dmodel, ffnn_hidden), dtype),
        "b1": jnp.zeros((1, ffnn_hidden), dtype),
        "w2": scale * jax.random.normal(ks[5], (ffnn_hidden, dmodel), dtype),
        "b2": jnp.zeros((1, dmodel), dtype),
        # nn.LayerNorm default init: weight=1, bias=0
        "ln1_g": jnp.ones((1, dmodel), dtype),
        "ln1_b": jnp.zeros((1, dmodel), dtype),
        "ln2_g": jnp.ones((1, dmodel), dtype),
        "ln2_b": jnp.zeros((1, dmodel), dtype),
    }


def reference(x, p, heads):
    """Pure-JAX f32 reference of the PyTorch forward (eval mode)."""
    B, S, D = x.shape
    kd = D // heads

    def ln(v, g, b, eps=1e-5):
        m = jnp.mean(v, -1, keepdims=True)
        var = jnp.mean((v - m) ** 2, -1, keepdims=True)
        return (v - m) / jnp.sqrt(var + eps) * g + b

    q = (x @ p["wq"]).reshape(B, S, heads, kd).transpose(0, 2, 1, 3)
    k = (x @ p["wk"]).reshape(B, S, heads, kd).transpose(0, 2, 1, 3)
    v = (x @ p["wv"]).reshape(B, S, heads, kd).transpose(0, 2, 1, 3)
    s = jnp.einsum("bhqd,bhkd->bhqk", q, k) / math.sqrt(kd)
    a = jax.nn.softmax(s, axis=-1)
    o = jnp.einsum("bhqk,bhkd->bhqd", a, v).transpose(0, 2, 1, 3).reshape(B, S, D)
    o = o @ p["wo"]
    y = ln(x + o, p["ln1_g"], p["ln1_b"])
    h = jnp.maximum(y @ p["w1"] + p["b1"], 0.0)
    z = h @ p["w2"] + p["b2"]
    return ln(y + z, p["ln2_g"], p["ln2_b"])


if __name__ == "__main__":
    # Small but tile-friendly shapes: kd = D // heads = 128, S multiple of 128.
    B, S, D, Hff, heads = 2, 128, 256, 512, 2
    key = jax.random.PRNGKey(0)
    kx, kp = jax.random.split(key)
    x = jax.random.normal(kx, (B, S, D), jnp.float32)
    params = init_params(kp, D, Hff)

    out = transformer_block(x, params, heads)
    out = jax.block_until_ready(out)

    ref = reference(x, params, heads)
    assert out.shape == (B, S, D)
    # bf16 matmul operands (f32 accumulation) + approx softmax reciprocal loosen the
    # tolerance vs. a pure-f32 reference.
    max_err = jnp.max(jnp.abs(out - ref))
    assert jnp.allclose(out, ref, atol=2e-2, rtol=2e-2), f"max abs err {max_err}"
    print("KERNEL_OK")
</pallas_src>

<mosaic_0001>
module attributes {stable_mosaic.version = 11 : i64} {
  func.func @transformer_block_kernel(%arg0: i32, %arg1: i32, %arg2: memref<1x128x256xf32, #tpu.memory_space<vmem>>, %arg3: memref<1x2x128x128xbf16, #tpu.memory_space<vmem>>, %arg4: memref<1x2x128x128xbf16, #tpu.memory_space<vmem>>, %arg5: memref<2x256x128xbf16, #tpu.memory_space<vmem>>, %arg6: memref<2x128x256xbf16, #tpu.memory_space<vmem>>, %arg7: memref<1x256xf32, #tpu.memory_space<vmem>>, %arg8: memref<1x256xf32, #tpu.memory_space<vmem>>, %arg9: memref<256x512xbf16, #tpu.memory_space<vmem>>, %arg10: memref<1x512xf32, #tpu.memory_space<vmem>>, %arg11: memref<512x256xbf16, #tpu.memory_space<vmem>>, %arg12: memref<1x256xf32, #tpu.memory_space<vmem>>, %arg13: memref<1x256xf32, #tpu.memory_space<vmem>>, %arg14: memref<1x256xf32, #tpu.memory_space<vmem>>, %arg15: memref<1x128x256xf32, #tpu.memory_space<vmem>>) attributes {dimension_semantics = [#tpu.dimension_semantics<parallel>, #tpu.dimension_semantics<parallel>], iteration_bounds = array<i64: 2, 1>, scalar_prefetch = 0 : i64, scratch_operands = 0 : i64, tpu.core_type = #tpu.core_type<tc>, window_params = [{transform_indices = @transform_0, window_bounds = array<i64: 1, 128, 256>}, {transform_indices = @transform_1, window_bounds = array<i64: 1, 2, 128, 128>}, {transform_indices = @transform_2, window_bounds = array<i64: 1, 2, 128, 128>}, {pipeline_mode = #tpu.pipeline_mode<synchronous>, transform_indices = @transform_3, window_bounds = array<i64: 2, 256, 128>}, {pipeline_mode = #tpu.pipeline_mode<synchronous>, transform_indices = @transform_4, window_bounds = array<i64: 2, 128, 256>}, {pipeline_mode = #tpu.pipeline_mode<synchronous>, transform_indices = @transform_5, window_bounds = array<i64: 1, 256>}, {pipeline_mode = #tpu.pipeline_mode<synchronous>, transform_indices = @transform_6, window_bounds = array<i64: 1, 256>}, {pipeline_mode = #tpu.pipeline_mode<synchronous>, transform_indices = @transform_7, window_bounds = array<i64: 256, 512>}, {pipeline_mode = #tpu.pipeline_mode<synchronous>, transform_indices = @transform_8, window_bounds = array<i64: 1, 512>}, {pipeline_mode = #tpu.pipeline_mode<synchronous>, transform_indices = @transform_9, window_bounds = array<i64: 512, 256>}, {pipeline_mode = #tpu.pipeline_mode<synchronous>, transform_indices = @transform_10, window_bounds = array<i64: 1, 256>}, {pipeline_mode = #tpu.pipeline_mode<synchronous>, transform_indices = @transform_11, window_bounds = array<i64: 1, 256>}, {pipeline_mode = #tpu.pipeline_mode<synchronous>, transform_indices = @transform_12, window_bounds = array<i64: 1, 256>}, {transform_indices = @transform_13, window_bounds = array<i64: 1, 128, 256>}]} {
    %c0 = arith.constant 0 : index
    %c0_0 = arith.constant 0 : index
    %c0_1 = arith.constant 0 : index
    %0 = vector.load %arg2[%c0, %c0_0, %c0_1] : memref<1x128x256xf32, #tpu.memory_space<vmem>>, vector<1x128x256xf32>
    %1 = vector.shape_cast %0 : vector<1x128x256xf32> to vector<128x256xf32>
    %2 = arith.truncf %1 : vector<128x256xf32> to vector<128x256xbf16>
    %cst = arith.constant 0.000000e+00 : f32
    %3 = vector.broadcast %cst : f32 to vector<128x256xf32>
    %c0_i32 = arith.constant 0 : i32
    %c2_i32 = arith.constant 2 : i32
    %4 = arith.addi %c0_i32, %c2_i32 : i32
    %c1_i32 = arith.constant 1 : i32
    %5 = scf.for %arg16 = %c0_i32 to %4 step %c1_i32 iter_args(%arg17 = %3) -> (vector<128x256xf32>)  : i32 {
      %73 = arith.index_cast %arg16 : i32 to index
      %c0_35 = arith.constant 0 : index
      %c0_36 = arith.constant 0 : index
      %74 = vector.load %arg5[%73, %c0_35, %c0_36] : memref<2x256x128xbf16, #tpu.memory_space<vmem>>, vector<1x256x128xbf16>
      %75 = vector.shape_cast %74 : vector<1x256x128xbf16> to vector<256x128xbf16>
      %cst_37 = arith.constant dense<0.000000e+00> : vector<128x128xf32>
      %76 = tpu.matmul %2, %75, %cst_37 {dimension_numbers = #tpu.dot_dimension_numbers<[1], [0], [0], [1], [0, 0, 1, 1], [], []>} : vector<128x256xbf16>, vector<256x128xbf16>, vector<128x128xf32> -> vector<128x128xf32>
      %cst_38 = arith.constant 0.0883883461 : f32
      %77 = vector.broadcast %cst_38 : f32 to vector<128x128xf32>
      %78 = arith.mulf %76, %77 : vector<128x128xf32>
      %79 = arith.truncf %78 : vector<128x128xf32> to vector<128x128xbf16>
      %c0_39 = arith.constant 0 : index
      %80 = arith.index_cast %arg16 : i32 to index
      %c0_40 = arith.constant 0 : index
      %c0_41 = arith.constant 0 : index
      %81 = vector.load %arg3[%c0_39, %80, %c0_40, %c0_41] : memref<1x2x128x128xbf16, #tpu.memory_space<vmem>>, vector<1x1x128x128xbf16>
      %82 = vector.shape_cast %81 : vector<1x1x128x128xbf16> to vector<128x128xbf16>
      %c0_42 = arith.constant 0 : index
      %83 = arith.index_cast %arg16 : i32 to index
      %c0_43 = arith.constant 0 : index
      %c0_44 = arith.constant 0 : index
      %84 = vector.load %arg4[%c0_42, %83, %c0_43, %c0_44] : memref<1x2x128x128xbf16, #tpu.memory_space<vmem>>, vector<1x1x128x128xbf16>
      %85 = vector.shape_cast %84 : vector<1x1x128x128xbf16> to vector<128x128xbf16>
      %cst_45 = arith.constant dense<0.000000e+00> : vector<128x128xf32>
      %86 = tpu.matmul %79, %82, %cst_45 {dimension_numbers = #tpu.dot_dimension_numbers<[1], [1], [0], [0], [0, 0, 1, 0], [], []>} : vector<128x128xbf16>, vector<128x128xbf16>, vector<128x128xf32> -> vector<128x128xf32>
      %cst_46 = arith.constant dense<0xFF800000> : vector<128xf32>
      %87 = vector.multi_reduction <maximumf>, %86, %cst_46 [1] : vector<128x128xf32> to vector<128xf32>
      %88 = vector.shape_cast %87 : vector<128xf32> to vector<128x1xf32>
      %89 = vector.broadcast %88 : vector<128x1xf32> to vector<128x128xf32>
      %90 = arith.subf %86, %89 : vector<128x128xf32>
      %91 = math.exp %90 : vector<128x128xf32>
      %cst_47 = arith.constant dense<0.000000e+00> : vector<128xf32>
      %92 = vector.multi_reduction <add>, %91, %cst_47 [1] : vector<128x128xf32> to vector<128xf32>
      %93 = vector.shape_cast %92 : vector<128xf32> to vector<128x1xf32>
      %94 = arith.truncf %91 : vector<128x128xf32> to vector<128x128xbf16>
      %cst_48 = arith.constant dense<0.000000e+00> : vector<128x128xf32>
      %95 = tpu.matmul %94, %85, %cst_48 {dimension_numbers = #tpu.dot_dimension_numbers<[1], [0], [0], [1], [0, 0, 1, 1], [], []>} : vector<128x128xbf16>, vector<128x128xbf16>, vector<128x128xf32> -> vector<128x128xf32>
      %96 = tpu.reciprocal %93 {approx = true} : vector<128x1xf32> -> vector<128x1xf32>
      %97 = vector.broadcast %96 : vector<128x1xf32> to vector<128x128xf32>
      %98 = arith.mulf %95, %97 : vector<128x128xf32>
      %99 = arith.truncf %98 : vector<128x128xf32> to vector<128x128xbf16>
      %100 = arith.index_cast %arg16 : i32 to index
      %c0_49 = arith.constant 0 : index
      %c0_50 = arith.constant 0 : index
      %101 = vector.load %arg6[%100, %c0_49, %c0_50] : memref<2x128x256xbf16, #tpu.memory_space<vmem>>, vector<1x128x256xbf16>
      %102 = vector.shape_cast %101 : vector<1x128x256xbf16> to vector<128x256xbf16>
      %cst_51 = arith.constant dense<0.000000e+00> : vector<128x256xf32>
      %103 = tpu.matmul %99, %102, %cst_51 {dimension_numbers = #tpu.dot_dimension_numbers<[1], [0], [0], [1], [0, 0, 1, 1], [], []>} : vector<128x128xbf16>, vector<128x256xbf16>, vector<128x256xf32> -> vector<128x256xf32>
      %104 = arith.addf %arg17, %103 : vector<128x256xf32>
      scf.yield %104 : vector<128x256xf32>
    }
    %c2_i32_2 = arith.constant 2 : i32
    %6 = arith.addf %1, %5 : vector<128x256xf32>
    %c0_3 = arith.constant 0 : index
    %c0_4 = arith.constant 0 : index
    %7 = vector.load %arg7[%c0_3, %c0_4] : memref<1x256xf32, #tpu.memory_space<vmem>>, vector<1x256xf32>
    %c0_5 = arith.constant 0 : index
    %c0_6 = arith.constant 0 : index
    %8 = vector.load %arg8[%c0_5, %c0_6] : memref<1x256xf32, #tpu.memory_space<vmem>>, vector<1x256xf32>
    %cst_7 = arith.constant dense<0.000000e+00> : vector<128xf32>
    %9 = vector.multi_reduction <add>, %6, %cst_7 [1] : vector<128x256xf32> to vector<128xf32>
    %10 = vector.shape_cast %9 : vector<128xf32> to vector<128x1xf32>
    %cst_8 = arith.constant 2.560000e+02 : f32
    %11 = vector.broadcast %cst_8 : f32 to vector<128x1xf32>
    %12 = arith.divf %10, %11 : vector<128x1xf32>
    %13 = vector.broadcast %12 : vector<128x1xf32> to vector<128x256xf32>
    %14 = arith.subf %6, %13 : vector<128x256xf32>
    %15 = arith.mulf %14, %14 : vector<128x256xf32>
    %cst_9 = arith.constant dense<0.000000e+00> : vector<128xf32>
    %16 = vector.multi_reduction <add>, %15, %cst_9 [1] : vector<128x256xf32> to vector<128xf32>
    %17 = vector.shape_cast %16 : vector<128xf32> to vector<128x1xf32>
    %cst_10 = arith.constant 2.560000e+02 : f32
    %18 = vector.broadcast %cst_10 : f32 to vector<128x1xf32>
    %19 = arith.divf %17, %18 : vector<128x1xf32>
    %cst_11 = arith.constant 9.99999974E-6 : f32
    %20 = vector.broadcast %cst_11 : f32 to vector<128x1xf32>
    %21 = arith.addf %19, %20 : vector<128x1xf32>
    %22 = math.rsqrt %21 : vector<128x1xf32>
    %23 = vector.broadcast %12 : vector<128x1xf32> to vector<128x256xf32>
    %24 = arith.subf %6, %23 : vector<128x256xf32>
    %25 = vector.broadcast %22 : vector<128x1xf32> to vector<128x256xf32>
    %26 = arith.mulf %24, %25 : vector<128x256xf32>
    %27 = vector.broadcast %7 : vector<1x256xf32> to vector<128x256xf32>
    %28 = arith.mulf %26, %27 : vector<128x256xf32>
    %29 = vector.broadcast %8 : vector<1x256xf32> to vector<128x256xf32>
    %30 = arith.addf %28, %29 : vector<128x256xf32>
    %31 = arith.truncf %30 : vector<128x256xf32> to vector<128x256xbf16>
    %c0_12 = arith.constant 0 : index
    %c0_13 = arith.constant 0 : index
    %32 = vector.load %arg9[%c0_12, %c0_13] : memref<256x512xbf16, #tpu.memory_space<vmem>>, vector<256x512xbf16>
    %cst_14 = arith.constant dense<0.000000e+00> : vector<128x512xf32>
    %33 = tpu.matmul %31, %32, %cst_14 {dimension_numbers = #tpu.dot_dimension_numbers<[1], [0], [0], [1], [0, 0, 1, 1], [], []>} : vector<128x256xbf16>, vector<256x512xbf16>, vector<128x512xf32> -> vector<128x512xf32>
    %c0_15 = arith.constant 0 : index
    %c0_16 = arith.constant 0 : index
    %34 = vector.load %arg10[%c0_15, %c0_16] : memref<1x512xf32, #tpu.memory_space<vmem>>, vector<1x512xf32>
    %35 = vector.broadcast %34 : vector<1x512xf32> to vector<128x512xf32>
    %36 = arith.addf %33, %35 : vector<128x512xf32>
    %cst_17 = arith.constant 0.000000e+00 : f32
    %37 = vector.broadcast %cst_17 : f32 to vector<128x512xf32>
    %38 = arith.maximumf %36, %37 : vector<128x512xf32>
    %39 = arith.truncf %38 : vector<128x512xf32> to vector<128x512xbf16>
    %c0_18 = arith.constant 0 : index
    %c0_19 = arith.constant 0 : index
    %40 = vector.load %arg11[%c0_18, %c0_19] : memref<512x256xbf16, #tpu.memory_space<vmem>>, vector<512x256xbf16>
    %cst_20 = arith.constant dense<0.000000e+00> : vector<128x256xf32>
    %41 = tpu.matmul %39, %40, %cst_20 {dimension_numbers = #tpu.dot_dimension_numbers<[1], [0], [0], [1], [0, 0, 1, 1], [], []>} : vector<128x512xbf16>, vector<512x256xbf16>, vector<128x256xf32> -> vector<128x256xf32>
    %c0_21 = arith.constant 0 : index
    %c0_22 = arith.constant 0 : index
    %42 = vector.load %arg12[%c0_21, %c0_22] : memref<1x256xf32, #tpu.memory_space<vmem>>, vector<1x256xf32>
    %43 = vector.broadcast %42 : vector<1x256xf32> to vector<128x256xf32>
    %44 = arith.addf %41, %43 : vector<128x256xf32>
    %45 = arith.addf %30, %44 : vector<128x256xf32>
    %c0_23 = arith.constant 0 : index
    %c0_24 = arith.constant 0 : index
    %46 = vector.load %arg13[%c0_23, %c0_24] : memref<1x256xf32, #tpu.memory_space<vmem>>, vector<1x256xf32>
    %c0_25 = arith.constant 0 : index
    %c0_26 = arith.constant 0 : index
    %47 = vector.load %arg14[%c0_25, %c0_26] : memref<1x256xf32, #tpu.memory_space<vmem>>, vector<1x256xf32>
    %cst_27 = arith.constant dense<0.000000e+00> : vector<128xf32>
    %48 = vector.multi_reduction <add>, %45, %cst_27 [1] : vector<128x256xf32> to vector<128xf32>
    %49 = vector.shape_cast %48 : vector<128xf32> to vector<128x1xf32>
    %cst_28 = arith.constant 2.560000e+02 : f32
    %50 = vector.broadcast %cst_28 : f32 to vector<128x1xf32>
    %51 = arith.divf %49, %50 : vector<128x1xf32>
    %52 = vector.broadcast %51 : vector<128x1xf32> to vector<128x256xf32>
    %53 = arith.subf %45, %52 : vector<128x256xf32>
    %54 = arith.mulf %53, %53 : vector<128x256xf32>
    %cst_29 = arith.constant dense<0.000000e+00> : vector<128xf32>
    %55 = vector.multi_reduction <add>, %54, %cst_29 [1] : vector<128x256xf32> to vector<128xf32>
    %56 = vector.shape_cast %55 : vector<128xf32> to vector<128x1xf32>
    %cst_30 = arith.constant 2.560000e+02 : f32
    %57 = vector.broadcast %cst_30 : f32 to vector<128x1xf32>
    %58 = arith.divf %56, %57 : vector<128x1xf32>
    %cst_31 = arith.constant 9.99999974E-6 : f32
    %59 = vector.broadcast %cst_31 : f32 to vector<128x1xf32>
    %60 = arith.addf %58, %59 : vector<128x1xf32>
    %61 = math.rsqrt %60 : vector<128x1xf32>
    %62 = vector.broadcast %51 : vector<128x1xf32> to vector<128x256xf32>
    %63 = arith.subf %45, %62 : vector<128x256xf32>
    %64 = vector.broadcast %61 : vector<128x1xf32> to vector<128x256xf32>
    %65 = arith.mulf %63, %64 : vector<128x256xf32>
    %66 = vector.broadcast %46 : vector<1x256xf32> to vector<128x256xf32>
    %67 = arith.mulf %65, %66 : vector<128x256xf32>
    %68 = vector.broadcast %47 : vector<1x256xf32> to vector<128x256xf32>
    %69 = arith.addf %67, %68 : vector<128x256xf32>
    %c0_32 = arith.constant 0 : index
    %c0_33 = arith.constant 0 : index
    %c0_34 = arith.constant 0 : index
    %70 = vector.load %arg15[%c0_32, %c0_33, %c0_34] : memref<1x128x256xf32, #tpu.memory_space<vmem>>, vector<1x128x256xf32>
    %71 = vector.shape_cast %70 : vector<1x128x256xf32> to vector<128x256xf32>
    %72 = vector.shape_cast %69 : vector<128x256xf32> to vector<1x128x256xf32>
    tpu.vector_store %arg15[%c0_32, %c0_33, %c0_34], %72 {strides = array<i32>} : memref<1x128x256xf32, #tpu.memory_space<vmem>>, vector<1x128x256xf32>,
    return
  }
  func.func @transform_0(%arg0: i32, %arg1: i32) -> (i32, i32, i32) {
    %c0_i32 = arith.constant 0 : i32
    %c0_i32_0 = arith.constant 0 : i32
    return %arg0, %arg1, %c0_i32 : i32, i32, i32
  }
  func.func @transform_1(%arg0: i32, %arg1: i32) -> (i32, i32, i32, i32) {
    %c0_i32 = arith.constant 0 : i32
    %c0_i32_0 = arith.constant 0 : i32
    %c0_i32_1 = arith.constant 0 : i32
    %c0_i32_2 = arith.constant 0 : i32
    return %arg0, %c0_i32, %c0_i32_0, %c0_i32_1 : i32, i32, i32, i32
  }
  func.func @transform_2(%arg0: i32, %arg1: i32) -> (i32, i32, i32, i32) {
    %c0_i32 = arith.constant 0 : i32
    %c0_i32_0 = arith.constant 0 : i32
    %c0_i32_1 = arith.constant 0 : i32
    %c0_i32_2 = arith.constant 0 : i32
    return %arg0, %c0_i32, %c0_i32_0, %c0_i32_1 : i32, i32, i32, i32
  }
  func.func @transform_3(%arg0: i32, %arg1: i32) -> (i32, i32, i32) {
    %c0_i32 = arith.constant 0 : i32
    %c0_i32_0 = arith.constant 0 : i32
    %c0_i32_1 = arith.constant 0 : i32
    %c0_i32_2 = arith.constant 0 : i32
    return %c0_i32, %c0_i32_0, %c0_i32_1 : i32, i32, i32
  }
  func.func @transform_4(%arg0: i32, %arg1: i32) -> (i32, i32, i32) {
    %c0_i32 = arith.constant 0 : i32
    %c0_i32_0 = arith.constant 0 : i32
    %c0_i32_1 = arith.constant 0 : i32
    %c0_i32_2 = arith.constant 0 : i32
    return %c0_i32, %c0_i32_0, %c0_i32_1 : i32, i32, i32
  }
  func.func @transform_5(%arg0: i32, %arg1: i32) -> (i32, i32) {
    %c0_i32 = arith.constant 0 : i32
    %c0_i32_0 = arith.constant 0 : i32
    %c0_i32_1 = arith.constant 0 : i32
    return %c0_i32, %c0_i32_0 : i32, i32
  }
  func.func @transform_6(%arg0: i32, %arg1: i32) -> (i32, i32) {
    %c0_i32 = arith.constant 0 : i32
    %c0_i32_0 = arith.constant 0 : i32
    %c0_i32_1 = arith.constant 0 : i32
    return %c0_i32, %c0_i32_0 : i32, i32
  }
  func.func @transform_7(%arg0: i32, %arg1: i32) -> (i32, i32) {
    %c0_i32 = arith.constant 0 : i32
    %c0_i32_0 = arith.constant 0 : i32
    %c0_i32_1 = arith.constant 0 : i32
    return %c0_i32, %c0_i32_0 : i32, i32
  }
  func.func @transform_8(%arg0: i32, %arg1: i32) -> (i32, i32) {
    %c0_i32 = arith.constant 0 : i32
    %c0_i32_0 = arith.constant 0 : i32
    %c0_i32_1 = arith.constant 0 : i32
    return %c0_i32, %c0_i32_0 : i32, i32
  }
  func.func @transform_9(%arg0: i32, %arg1: i32) -> (i32, i32) {
    %c0_i32 = arith.constant 0 : i32
    %c0_i32_0 = arith.constant 0 : i32
    %c0_i32_1 = arith.constant 0 : i32
    return %c0_i32, %c0_i32_0 : i32, i32
  }
  func.func @transform_10(%arg0: i32, %arg1: i32) -> (i32, i32) {
    %c0_i32 = arith.constant 0 : i32
    %c0_i32_0 = arith.constant 0 : i32
    %c0_i32_1 = arith.constant 0 : i32
    return %c0_i32, %c0_i32_0 : i32, i32
  }
  func.func @transform_11(%arg0: i32, %arg1: i32) -> (i32, i32) {
    %c0_i32 = arith.constant 0 : i32
    %c0_i32_0 = arith.constant 0 : i32
    %c0_i32_1 = arith.constant 0 : i32
    return %c0_i32, %c0_i32_0 : i32, i32
  }
  func.func @transform_12(%arg0: i32, %arg1: i32) -> (i32, i32) {
    %c0_i32 = arith.constant 0 : i32
    %c0_i32_0 = arith.constant 0 : i32
    %c0_i32_1 = arith.constant 0 : i32
    return %c0_i32, %c0_i32_0 : i32, i32
  }
  func.func @transform_13(%arg0: i32, %arg1: i32) -> (i32, i32, i32) {
    %c0_i32 = arith.constant 0 : i32
    %c0_i32_0 = arith.constant 0 : i32
    return %arg0, %arg1, %c0_i32 : i32, i32, i32
  }
}

module attributes {stable_mosaic.version = 11 : i64} {
  func.func @transformer_block_kernel(%arg0: i32, %arg1: i32, %arg2: memref<1x128x256xf32, #tpu.memory_space<vmem>>, %arg3: memref<1x2x128x128xbf16, #tpu.memory_space<vmem>>, %arg4: memref<1x2x128x128xbf16, #tpu.memory_space<vmem>>, %arg5: memref<2x256x128xbf16, #tpu.memory_space<vmem>>, %arg6: memref<2x128x256xbf16, #tpu.memory_space<vmem>>, %arg7: memref<1x256xf32, #tpu.memory_space<vmem>>, %arg8: memref<1x256xf32, #tpu.memory_space<vmem>>, %arg9: memref<256x512xbf16, #tpu.memory_space<vmem>>, %arg10: memref<1x512xf32, #tpu.memory_space<vmem>>, %arg11: memref<512x256xbf16, #tpu.memory_space<vmem>>, %arg12: memref<1x256xf32, #tpu.memory_space<vmem>>, %arg13: memref<1x256xf32, #tpu.memory_space<vmem>>, %arg14: memref<1x256xf32, #tpu.memory_space<vmem>>, %arg15: memref<1x128x256xf32, #tpu.memory_space<vmem>>) attributes {dimension_semantics = [#tpu.dimension_semantics<parallel>, #tpu.dimension_semantics<parallel>], iteration_bounds = array<i64: 2, 1>, scalar_prefetch = 0 : i64, scratch_operands = 0 : i64, tpu.core_type = #tpu.core_type<tc>, window_params = [{transform_indices = @transform_0, window_bounds = array<i64: 1, 128, 256>}, {transform_indices = @transform_1, window_bounds = array<i64: 1, 2, 128, 128>}, {transform_indices = @transform_2, window_bounds = array<i64: 1, 2, 128, 128>}, {pipeline_mode = #tpu.pipeline_mode<synchronous>, transform_indices = @transform_3, window_bounds = array<i64: 2, 256, 128>}, {pipeline_mode = #tpu.pipeline_mode<synchronous>, transform_indices = @transform_4, window_bounds = array<i64: 2, 128, 256>}, {pipeline_mode = #tpu.pipeline_mode<synchronous>, transform_indices = @transform_5, window_bounds = array<i64: 1, 256>}, {pipeline_mode = #tpu.pipeline_mode<synchronous>, transform_indices = @transform_6, window_bounds = array<i64: 1, 256>}, {pipeline_mode = #tpu.pipeline_mode<synchronous>, transform_indices = @transform_7, window_bounds = array<i64: 256, 512>}, {pipeline_mode = #tpu.pipeline_mode<synchronous>, transform_indices = @transform_8, window_bounds = array<i64: 1, 512>}, {pipeline_mode = #tpu.pipeline_mode<synchronous>, transform_indices = @transform_9, window_bounds = array<i64: 512, 256>}, {pipeline_mode = #tpu.pipeline_mode<synchronous>, transform_indices = @transform_10, window_bounds = array<i64: 1, 256>}, {pipeline_mode = #tpu.pipeline_mode<synchronous>, transform_indices = @transform_11, window_bounds = array<i64: 1, 256>}, {pipeline_mode = #tpu.pipeline_mode<synchronous>, transform_indices = @transform_12, window_bounds = array<i64: 1, 256>}, {transform_indices = @transform_13, window_bounds = array<i64: 1, 128, 256>}]} {
    %c0 = arith.constant 0 : index
    %c0_0 = arith.constant 0 : index
    %c0_1 = arith.constant 0 : index
    %0 = vector.load %arg2[%c0, %c0_0, %c0_1] : memref<1x128x256xf32, #tpu.memory_space<vmem>>, vector<1x128x256xf32>
    %1 = vector.shape_cast %0 : vector<1x128x256xf32> to vector<128x256xf32>
    %2 = arith.truncf %1 : vector<128x256xf32> to vector<128x256xbf16>
    %cst = arith.constant 0.000000e+00 : f32
    %3 = vector.broadcast %cst : f32 to vector<128x256xf32>
    %c0_i32 = arith.constant 0 : i32
    %c2_i32 = arith.constant 2 : i32
    %4 = arith.addi %c0_i32, %c2_i32 : i32
    %c1_i32 = arith.constant 1 : i32
    %5 = scf.for %arg16 = %c0_i32 to %4 step %c1_i32 iter_args(%arg17 = %3) -> (vector<128x256xf32>)  : i32 {
      %73 = arith.index_cast %arg16 : i32 to index
      %c0_35 = arith.constant 0 : index
      %c0_36 = arith.constant 0 : index
      %74 = vector.load %arg5[%73, %c0_35, %c0_36] : memref<2x256x128xbf16, #tpu.memory_space<vmem>>, vector<1x256x128xbf16>
      %75 = vector.shape_cast %74 : vector<1x256x128xbf16> to vector<256x128xbf16>
      %cst_37 = arith.constant dense<0.000000e+00> : vector<128x128xf32>
      %76 = tpu.matmul %2, %75, %cst_37 {dimension_numbers = #tpu.dot_dimension_numbers<[1], [0], [0], [1], [0, 0, 1, 1], [], []>} : vector<128x256xbf16>, vector<256x128xbf16>, vector<128x128xf32> -> vector<128x128xf32>
      %cst_38 = arith.constant 0.0883883461 : f32
      %77 = vector.broadcast %cst_38 : f32 to vector<128x128xf32>
      %78 = arith.mulf %76, %77 : vector<128x128xf32>
      %79 = arith.truncf %78 : vector<128x128xf32> to vector<128x128xbf16>
      %c0_39 = arith.constant 0 : index
      %80 = arith.index_cast %arg16 : i32 to index
      %c0_40 = arith.constant 0 : index
      %c0_41 = arith.constant 0 : index
      %81 = vector.load %arg3[%c0_39, %80, %c0_40, %c0_41] : memref<1x2x128x128xbf16, #tpu.memory_space<vmem>>, vector<1x1x128x128xbf16>
      %82 = vector.shape_cast %81 : vector<1x1x128x128xbf16> to vector<128x128xbf16>
      %c0_42 = arith.constant 0 : index
      %83 = arith.index_cast %arg16 : i32 to index
      %c0_43 = arith.constant 0 : index
      %c0_44 = arith.constant 0 : index
      %84 = vector.load %arg4[%c0_42, %83, %c0_43, %c0_44] : memref<1x2x128x128xbf16, #tpu.memory_space<vmem>>, vector<1x1x128x128xbf16>
      %85 = vector.shape_cast %84 : vector<1x1x128x128xbf16> to vector<128x128xbf16>
      %cst_45 = arith.constant dense<0.000000e+00> : vector<128x128xf32>
      %86 = tpu.matmul %79, %82, %cst_45 {dimension_numbers = #tpu.dot_dimension_numbers<[1], [1], [0], [0], [0, 0, 1, 0], [], []>} : vector<128x128xbf16>, vector<128x128xbf16>, vector<128x128xf32> -> vector<128x128xf32>
      %cst_46 = arith.constant dense<0xFF800000> : vector<128xf32>
      %87 = vector.multi_reduction <maximumf>, %86, %cst_46 [1] : vector<128x128xf32> to vector<128xf32>
      %88 = vector.shape_cast %87 : vector<128xf32> to vector<128x1xf32>
      %89 = vector.broadcast %88 : vector<128x1xf32> to vector<128x128xf32>
      %90 = arith.subf %86, %89 : vector<128x128xf32>
      %91 = math.exp %90 : vector<128x128xf32>
      %cst_47 = arith.constant dense<0.000000e+00> : vector<128xf32>
      %92 = vector.multi_reduction <add>, %91, %cst_47 [1] : vector<128x128xf32> to vector<128xf32>
      %93 = vector.shape_cast %92 : vector<128xf32> to vector<128x1xf32>
      %94 = arith.truncf %91 : vector<128x128xf32> to vector<128x128xbf16>
      %cst_48 = arith.constant dense<0.000000e+00> : vector<128x128xf32>
      %95 = tpu.matmul %94, %85, %cst_48 {dimension_numbers = #tpu.dot_dimension_numbers<[1], [0], [0], [1], [0, 0, 1, 1], [], []>} : vector<128x128xbf16>, vector<128x128xbf16>, vector<128x128xf32> -> vector<128x128xf32>
      %96 = tpu.reciprocal %93 {approx = true} : vector<128x1xf32> -> vector<128x1xf32>
      %97 = vector.broadcast %96 : vector<128x1xf32> to vector<128x128xf32>
      %98 = arith.mulf %95, %97 : vector<128x128xf32>
      %99 = arith.truncf %98 : vector<128x128xf32> to vector<128x128xbf16>
      %100 = arith.index_cast %arg16 : i32 to index
      %c0_49 = arith.constant 0 : index
      %c0_50 = arith.constant 0 : index
      %101 = vector.load %arg6[%100, %c0_49, %c0_50] : memref<2x128x256xbf16, #tpu.memory_space<vmem>>, vector<1x128x256xbf16>
      %102 = vector.shape_cast %101 : vector<1x128x256xbf16> to vector<128x256xbf16>
      %cst_51 = arith.constant dense<0.000000e+00> : vector<128x256xf32>
      %103 = tpu.matmul %99, %102, %cst_51 {dimension_numbers = #tpu.dot_dimension_numbers<[1], [0], [0], [1], [0, 0, 1, 1], [], []>} : vector<128x128xbf16>, vector<128x256xbf16>, vector<128x256xf32> -> vector<128x256xf32>
      %104 = arith.addf %arg17, %103 : vector<128x256xf32>
      scf.yield %104 : vector<128x256xf32>
    }
    %c2_i32_2 = arith.constant 2 : i32
    %6 = arith.addf %1, %5 : vector<128x256xf32>
    %c0_3 = arith.constant 0 : index
    %c0_4 = arith.constant 0 : index
    %7 = vector.load %arg7[%c0_3, %c0_4] : memref<1x256xf32, #tpu.memory_space<vmem>>, vector<1x256xf32>
    %c0_5 = arith.constant 0 : index
    %c0_6 = arith.constant 0 : index
    %8 = vector.load %arg8[%c0_5, %c0_6] : memref<1x256xf32, #tpu.memory_space<vmem>>, vector<1x256xf32>
    %cst_7 = arith.constant dense<0.000000e+00> : vector<128xf32>
    %9 = vector.multi_reduction <add>, %6, %cst_7 [1] : vector<128x256xf32> to vector<128xf32>
    %10 = vector.shape_cast %9 : vector<128xf32> to vector<128x1xf32>
    %cst_8 = arith.constant 2.560000e+02 : f32
    %11 = vector.broadcast %cst_8 : f32 to vector<128x1xf32>
    %12 = arith.divf %10, %11 : vector<128x1xf32>
    %13 = vector.broadcast %12 : vector<128x1xf32> to vector<128x256xf32>
    %14 = arith.subf %6, %13 : vector<128x256xf32>
    %15 = arith.mulf %14, %14 : vector<128x256xf32>
    %cst_9 = arith.constant dense<0.000000e+00> : vector<128xf32>
    %16 = vector.multi_reduction <add>, %15, %cst_9 [1] : vector<128x256xf32> to vector<128xf32>
    %17 = vector.shape_cast %16 : vector<128xf32> to vector<128x1xf32>
    %cst_10 = arith.constant 2.560000e+02 : f32
    %18 = vector.broadcast %cst_10 : f32 to vector<128x1xf32>
    %19 = arith.divf %17, %18 : vector<128x1xf32>
    %cst_11 = arith.constant 9.99999974E-6 : f32
    %20 = vector.broadcast %cst_11 : f32 to vector<128x1xf32>
    %21 = arith.addf %19, %20 : vector<128x1xf32>
    %22 = math.rsqrt %21 : vector<128x1xf32>
    %23 = vector.broadcast %12 : vector<128x1xf32> to vector<128x256xf32>
    %24 = arith.subf %6, %23 : vector<128x256xf32>
    %25 = vector.broadcast %22 : vector<128x1xf32> to vector<128x256xf32>
    %26 = arith.mulf %24, %25 : vector<128x256xf32>
    %27 = vector.broadcast %7 : vector<1x256xf32> to vector<128x256xf32>
    %28 = arith.mulf %26, %27 : vector<128x256xf32>
    %29 = vector.broadcast %8 : vector<1x256xf32> to vector<128x256xf32>
    %30 = arith.addf %28, %29 : vector<128x256xf32>
    %31 = arith.truncf %30 : vector<128x256xf32> to vector<128x256xbf16>
    %c0_12 = arith.constant 0 : index
    %c0_13 = arith.constant 0 : index
    %32 = vector.load %arg9[%c0_12, %c0_13] : memref<256x512xbf16, #tpu.memory_space<vmem>>, vector<256x512xbf16>
    %cst_14 = arith.constant dense<0.000000e+00> : vector<128x512xf32>
    %33 = tpu.matmul %31, %32, %cst_14 {dimension_numbers = #tpu.dot_dimension_numbers<[1], [0], [0], [1], [0, 0, 1, 1], [], []>} : vector<128x256xbf16>, vector<256x512xbf16>, vector<128x512xf32> -> vector<128x512xf32>
    %c0_15 = arith.constant 0 : index
    %c0_16 = arith.constant 0 : index
    %34 = vector.load %arg10[%c0_15, %c0_16] : memref<1x512xf32, #tpu.memory_space<vmem>>, vector<1x512xf32>
    %35 = vector.broadcast %34 : vector<1x512xf32> to vector<128x512xf32>
    %36 = arith.addf %33, %35 : vector<128x512xf32>
    %cst_17 = arith.constant 0.000000e+00 : f32
    %37 = vector.broadcast %cst_17 : f32 to vector<128x512xf32>
    %38 = arith.maximumf %36, %37 : vector<128x512xf32>
    %39 = arith.truncf %38 : vector<128x512xf32> to vector<128x512xbf16>
    %c0_18 = arith.constant 0 : index
    %c0_19 = arith.constant 0 : index
    %40 = vector.load %arg11[%c0_18, %c0_19] : memref<512x256xbf16, #tpu.memory_space<vmem>>, vector<512x256xbf16>
    %cst_20 = arith.constant dense<0.000000e+00> : vector<128x256xf32>
    %41 = tpu.matmul %39, %40, %cst_20 {dimension_numbers = #tpu.dot_dimension_numbers<[1], [0], [0], [1], [0, 0, 1, 1], [], []>} : vector<128x512xbf16>, vector<512x256xbf16>, vector<128x256xf32> -> vector<128x256xf32>
    %c0_21 = arith.constant 0 : index
    %c0_22 = arith.constant 0 : index
    %42 = vector.load %arg12[%c0_21, %c0_22] : memref<1x256xf32, #tpu.memory_space<vmem>>, vector<1x256xf32>
    %43 = vector.broadcast %42 : vector<1x256xf32> to vector<128x256xf32>
    %44 = arith.addf %41, %43 : vector<128x256xf32>
    %45 = arith.addf %30, %44 : vector<128x256xf32>
    %c0_23 = arith.constant 0 : index
    %c0_24 = arith.constant 0 : index
    %46 = vector.load %arg13[%c0_23, %c0_24] : memref<1x256xf32, #tpu.memory_space<vmem>>, vector<1x256xf32>
    %c0_25 = arith.constant 0 : index
    %c0_26 = arith.constant 0 : index
    %47 = vector.load %arg14[%c0_25, %c0_26] : memref<1x256xf32, #tpu.memory_space<vmem>>, vector<1x256xf32>
    %cst_27 = arith.constant dense<0.000000e+00> : vector<128xf32>
    %48 = vector.multi_reduction <add>, %45, %cst_27 [1] : vector<128x256xf32> to vector<128xf32>
    %49 = vector.shape_cast %48 : vector<128xf32> to vector<128x1xf32>
    %cst_28 = arith.constant 2.560000e+02 : f32
    %50 = vector.broadcast %cst_28 : f32 to vector<128x1xf32>
    %51 = arith.divf %49, %50 : vector<128x1xf32>
    %52 = vector.broadcast %51 : vector<128x1xf32> to vector<128x256xf32>
    %53 = arith.subf %45, %52 : vector<128x256xf32>
    %54 = arith.mulf %53, %53 : vector<128x256xf32>
    %cst_29 = arith.constant dense<0.000000e+00> : vector<128xf32>
    %55 = vector.multi_reduction <add>, %54, %cst_29 [1] : vector<128x256xf32> to vector<128xf32>
    %56 = vector.shape_cast %55 : vector<128xf32> to vector<128x1xf32>
    %cst_30 = arith.constant 2.560000e+02 : f32
    %57 = vector.broadcast %cst_30 : f32 to vector<128x1xf32>
    %58 = arith.divf %56, %57 : vector<128x1xf32>
    %cst_31 = arith.constant 9.99999974E-6 : f32
    %59 = vector.broadcast %cst_31 : f32 to vector<128x1xf32>
    %60 = arith.addf %58, %59 : vector<128x1xf32>
    %61 = math.rsqrt %60 : vector<128x1xf32>
    %62 = vector.broadcast %51 : vector<128x1xf32> to vector<128x256xf32>
    %63 = arith.subf %45, %62 : vector<128x256xf32>
    %64 = vector.broadcast %61 : vector<128x1xf32> to vector<128x256xf32>
    %65 = arith.mulf %63, %64 : vector<128x256xf32>
    %66 = vector.broadcast %46 : vector<1x256xf32> to vector<128x256xf32>
    %67 = arith.mulf %65, %66 : vector<128x256xf32>
    %68 = vector.broadcast %47 : vector<1x256xf32> to vector<128x256xf32>
    %69 = arith.addf %67, %68 : vector<128x256xf32>
    %c0_32 = arith.constant 0 : index
    %c0_33 = arith.constant 0 : index
    %c0_34 = arith.constant 0 : index
    %70 = vector.load %arg15[%c0_32, %c0_33, %c0_34] : memref<1x128x256xf32, #tpu.memory_space<vmem>>, vector<1x128x256xf32>
    %71 = vector.shape_cast %70 : vector<1x128x256xf32> to vector<128x256xf32>
    %72 = vector.shape_cast %69 : vector<128x256xf32> to vector<1x128x256xf32>
    tpu.vector_store %arg15[%c0_32, %c0_33, %c0_34], %72 {strides = array<i32>} : memref<1x128x256xf32, #tpu.memory_space<vmem>>, vector<1x128x256xf32>,
    return
  }
  func.func @transform_0(%arg0: i32, %arg1: i32) -> (i32, i32, i32) {
    %c0_i32 = arith.constant 0 : i32
    %c0_i32_0 = arith.constant 0 : i32
    return %arg0, %arg1, %c0_i32 : i32, i32, i32
  }
  func.func @transform_1(%arg0: i32, %arg1: i32) -> (i32, i32, i32, i32) {
    %c0_i32 = arith.constant 0 : i32
    %c0_i32_0 = arith.constant 0 : i32
    %c0_i32_1 = arith.constant 0 : i32
    %c0_i32_2 = arith.constant 0 : i32
    return %arg0, %c0_i32, %c0_i32_0, %c0_i32_1 : i32, i32, i32, i32
  }
  func.func @transform_2(%arg0: i32, %arg1: i32) -> (i32, i32, i32, i32) {
    %c0_i32 = arith.constant 0 : i32
    %c0_i32_0 = arith.constant 0 : i32
    %c0_i32_1 = arith.constant 0 : i32
    %c0_i32_2 = arith.constant 0 : i32
    return %arg0, %c0_i32, %c0_i32_0, %c0_i32_1 : i32, i32, i32, i32
  }
  func.func @transform_3(%arg0: i32, %arg1: i32) -> (i32, i32, i32) {
    %c0_i32 = arith.constant 0 : i32
    %c0_i32_0 = arith.constant 0 : i32
    %c0_i32_1 = arith.constant 0 : i32
    %c0_i32_2 = arith.constant 0 : i32
    return %c0_i32, %c0_i32_0, %c0_i32_1 : i32, i32, i32
  }
  func.func @transform_4(%arg0: i32, %arg1: i32) -> (i32, i32, i32) {
    %c0_i32 = arith.constant 0 : i32
    %c0_i32_0 = arith.constant 0 : i32
    %c0_i32_1 = arith.constant 0 : i32
    %c0_i32_2 = arith.constant 0 : i32
    return %c0_i32, %c0_i32_0, %c0_i32_1 : i32, i32, i32
  }
  func.func @transform_5(%arg0: i32, %arg1: i32) -> (i32, i32) {
    %c0_i32 = arith.constant 0 : i32
    %c0_i32_0 = arith.constant 0 : i32
    %c0_i32_1 = arith.constant 0 : i32
    return %c0_i32, %c0_i32_0 : i32, i32
  }
  func.func @transform_6(%arg0: i32, %arg1: i32) -> (i32, i32) {
    %c0_i32 = arith.constant 0 : i32
    %c0_i32_0 = arith.constant 0 : i32
    %c0_i32_1 = arith.constant 0 : i32
    return %c0_i32, %c0_i32_0 : i32, i32
  }
  func.func @transform_7(%arg0: i32, %arg1: i32) -> (i32, i32) {
    %c0_i32 = arith.constant 0 : i32
    %c0_i32_0 = arith.constant 0 : i32
    %c0_i32_1 = arith.constant 0 : i32
    return %c0_i32, %c0_i32_0 : i32, i32
  }
  func.func @transform_8(%arg0: i32, %arg1: i32) -> (i32, i32) {
    %c0_i32 = arith.constant 0 : i32
    %c0_i32_0 = arith.constant 0 : i32
    %c0_i32_1 = arith.constant 0 : i32
    return %c0_i32, %c0_i32_0 : i32, i32
  }
  func.func @transform_9(%arg0: i32, %arg1: i32) -> (i32, i32) {
    %c0_i32 = arith.constant 0 : i32
    %c0_i32_0 = arith.constant 0 : i32
    %c0_i32_1 = arith.constant 0 : i32
    return %c0_i32, %c0_i32_0 : i32, i32
  }
  func.func @transform_10(%arg0: i32, %arg1: i32) -> (i32, i32) {
    %c0_i32 = arith.constant 0 : i32
    %c0_i32_0 = arith.constant 0 : i32
    %c0_i32_1 = arith.constant 0 : i32
    return %c0_i32, %c0_i32_0 : i32, i32
  }
  func.func @transform_11(%arg0: i32, %arg1: i32) -> (i32, i32) {
    %c0_i32 = arith.constant 0 : i32
    %c0_i32_0 = arith.constant 0 : i32
    %c0_i32_1 = arith.constant 0 : i32
    return %c0_i32, %c0_i32_0 : i32, i32
  }
  func.func @transform_12(%arg0: i32, %arg1: i32) -> (i32, i32) {
    %c0_i32 = arith.constant 0 : i32
    %c0_i32_0 = arith.constant 0 : i32
    %c0_i32_1 = arith.constant 0 : i32
    return %c0_i32, %c0_i32_0 : i32, i32
  }
  func.func @transform_13(%arg0: i32, %arg1: i32) -> (i32, i32, i32) {
    %c0_i32 = arith.constant 0 : i32
    %c0_i32_0 = arith.constant 0 : i32
    return %arg0, %arg1, %c0_i32 : i32, i32, i32
  }
}

</mosaic_0001>

<llo_original>
// kernel: tpu_custom_call.1
$region0: #{tpu_custom_call.1}
  #allocation0 [shape = 'u32[]', space=smem, size = 0x4, offset = 0x4, fixed_abs, tag = 'smem constant byte address 0x4 - core index']
  #allocation1 [shape = 'u32[144,128]{1,0:T(1,128)}', space=vmem, size = 0x12000, scoped, tag = 'internal scratch']
  %s0 = inlined_call_operand.hbm [shape: f32[2,128,256], index: 0, kind: input, shape index: {}]
  %s1 = inlined_call_operand.hbm [shape: bf16[2,2,128,128], index: 1, kind: input, shape index: {}]
  %s2 = inlined_call_operand.hbm [shape: bf16[2,2,128,128], index: 2, kind: input, shape index: {}]
  %s3 = inlined_call_operand.hbm [shape: bf16[2,256,128], index: 3, kind: input, shape index: {}]
  %s4 = inlined_call_operand.hbm [shape: bf16[2,128,256], index: 4, kind: input, shape index: {}]
  %s5 = inlined_call_operand.hbm [shape: f32[1,256], index: 5, kind: input, shape index: {}]
  %s6 = inlined_call_operand.hbm [shape: f32[1,256], index: 6, kind: input, shape index: {}]
  %s7 = inlined_call_operand.hbm [shape: bf16[256,512], index: 7, kind: input, shape index: {}]
  %s8 = inlined_call_operand.hbm [shape: f32[1,512], index: 8, kind: input, shape index: {}]
  %s9 = inlined_call_operand.hbm [shape: bf16[512,256], index: 9, kind: input, shape index: {}]
  %s10 = inlined_call_operand.hbm [shape: f32[1,256], index: 10, kind: input, shape index: {}]
  %s11 = inlined_call_operand.hbm [shape: f32[1,256], index: 11, kind: input, shape index: {}]
  %s12 = inlined_call_operand.hbm [shape: f32[1,256], index: 12, kind: input, shape index: {}]
  %s13 = inlined_call_operand.hbm [shape: f32[2,128,256], index: 13, kind: output, shape index: {}]
  %s14 = sld [smem:[#allocation0]]
  $region144: #{tpu_custom_call.1} parent=0
    _
  %s16 = ssub.s32 1, %s14
  %s17 = scalar_select 0, %s16, %s14
  $region1: #{tpu_custom_call.1} parent=0
    #allocation2 [shape = 'u8[262144]{0}', space=vmem, size = 0x40000, scoped, tag = 'input window, operand 0']
    #allocation3 [shape = 's32[2]{0}', space=sflag, size = 0x8, scoped, tag = 'scoped memory for tpu_custom_call.1']
    #allocation4 [shape = 's32[2]{0}', space=sflag, size = 0x8, scoped, tag = 'scoped memory for tpu_custom_call.1']
    #allocation5 [shape = 'u8[131072]{0}', space=vmem, size = 0x20000, scoped, tag = 'input window, operand 1']
    #allocation6 [shape = 's32[2]{0}', space=sflag, size = 0x8, scoped, tag = 'scoped memory for tpu_custom_call.1']
    #allocation7 [shape = 'u8[131072]{0}', space=vmem, size = 0x20000, scoped, tag = 'input window, operand 2']
    #allocation8 [shape = 'u8[131072]{0}', space=vmem, size = 0x20000, scoped, tag = 'input window, operand 3, single buffered']
    #allocation9 [shape = 's32[1]{0}', space=sflag, size = 0x4, scoped, tag = 'scoped memory for tpu_custom_call.1']
    #allocation10 [shape = 'u8[131072]{0}', space=vmem, size = 0x20000, scoped, tag = 'input window, operand 4, single buffered']
    #allocation11 [shape = 'u8[1024]{0}', space=vmem, size = 0x400, scoped, tag = 'input window, operand 5, single buffered']
    #allocation12 [shape = 's32[1]{0}', space=sflag, size = 0x4, scoped, tag = 'scoped memory for tpu_custom_call.1']
    #allocation13 [shape = 'u8[1024]{0}', space=vmem, size = 0x400, scoped, tag = 'input window, operand 6, single buffered']
    #allocation14 [shape = 'u8[262144]{0}', space=vmem, size = 0x40000, scoped, tag = 'input window, operand 7, single buffered']
    #allocation15 [shape = 's32[1]{0}', space=sflag, size = 0x4, scoped, tag = 'scoped memory for tpu_custom_call.1']
    #allocation16 [shape = 'u8[2048]{0}', space=vmem, size = 0x800, scoped, tag = 'input window, operand 8, single buffered']
    #allocation17 [shape = 'u8[262144]{0}', space=vmem, size = 0x40000, scoped, tag = 'input window, operand 9, single buffered']
    #allocation18 [shape = 's32[1]{0}', space=sflag, size = 0x4, scoped, tag = 'scoped memory for tpu_custom_call.1']
    #allocation19 [shape = 'u8[1024]{0}', space=vmem, size = 0x400, scoped, tag = 'input window, operand 10, single buffered']
    #allocation20 [shape = 'u8[1024]{0}', space=vmem, size = 0x400, scoped, tag = 'input window, operand 11, single buffered']
    #allocation21 [shape = 's32[1]{0}', space=sflag, size = 0x4, scoped, tag = 'scoped memory for tpu_custom_call.1']
    #allocation22 [shape = 'u8[1024]{0}', space=vmem, size = 0x400, scoped, tag = 'input window, operand 12, single buffered']
    #allocation23 [shape = 'u8[262144]{0}', space=vmem, size = 0x40000, scoped, tag = 'output window, operand 0']
    %18 = vsyncpa [#allocation3], 0
    %s19 = scalar_lea.sflag [#allocation3], 1
    %20 = vsyncpa %s19, 0
    %21 = vsyncpa [#allocation6], 0
    %s22 = scalar_lea.sflag [#allocation6], 1
    %23 = vsyncpa %s22, 0
    %24 = vsyncpa [#allocation9], 0
    %25 = vsyncpa [#allocation12], 0
    %26 = vsyncpa [#allocation15], 0
    %27 = vsyncpa [#allocation18], 0
    %28 = vsyncpa [#allocation21], 0
    %29 = vsyncpa [#allocation4], 0
    %s30 = scalar_lea.sflag [#allocation4], 1
    %31 = vsyncpa %s30, 0
    loop: start=0, step=1, limit=4
    $region2: #{tpu_custom_call.1} parent=1 // loop_pre_header
      _
    $region3: #{tpu_custom_call.1} parent=1 // loop_header
      %s33 = sphi 0, %s37
      %p34 = scmp.ge.s32.totalorder %s33, 4
      %s40 = sphi 0, %s52
      %s41 = sphi 0, %s48
      %s42 = sphi 0, %s40
      %s43 = sphi 0, %s41
      %s44 = sphi 0, %s42
      %s45 = sphi 0, %s43
      %s57 = sphi 0, %s59
      %s60 = sphi 0, %s57
      %s61 = sphi 0, %s60
      %s77 = sphi 0, %s61
      %s83 = sphi 0, %s85
      %s86 = sphi 0, %s83
      %s87 = sphi 0, %s86
      %s103 = sphi 0, %s87
      %s109 = sphi 0, %s111
      %s112 = sphi 0, %s109
      %s113 = sphi 0, %s112
      %s129 = sphi 0, %s113
      %s133 = sphi 0, %s133
      %s135 = sphi 0, %s133
      %s136 = sphi 0, %s135
      %s150 = sphi 0, %s136
      %s154 = sphi 0, %s154
      %s156 = sphi 0, %s154
      %s157 = sphi 0, %s156
      %s171 = sphi 0, %s157
      %s175 = sphi 0, %s175
      %s177 = sphi 0, %s175
      %s178 = sphi 0, %s177
      %s192 = sphi 0, %s178
      %s196 = sphi 0, %s196
      %s198 = sphi 0, %s196
      %s199 = sphi 0, %s198
      %s213 = sphi 0, %s199
      %s217 = sphi 0, %s217
      %s219 = sphi 0, %s217
      %s220 = sphi 0, %s219
      %s234 = sphi 0, %s220
      %s238 = sphi 0, %s238
      %s240 = sphi 0, %s238
      %s241 = sphi 0, %s240
      %s255 = sphi 0, %s241
      %s259 = sphi 0, %s259
      %s261 = sphi 0, %s259
      %s262 = sphi 0, %s261
      %s276 = sphi 0, %s262
      %s280 = sphi 0, %s280
      %s282 = sphi 0, %s280
      %s283 = sphi 0, %s282
      %s297 = sphi 0, %s283
      %s301 = sphi 0, %s301
      %s303 = sphi 0, %s301
      %s304 = sphi 0, %s303
      %s318 = sphi 0, %s304
      %s322 = sphi 0, %s322
      %s324 = sphi 0, %s322
      %s325 = sphi 0, %s324
      %s339 = sphi 0, %s325
      %s347 = sphi 0, %s349
      %s350 = sphi 0, %s347
      %s351 = sphi 0, %s350
      %s367 = sphi 0, %s351
    $region4: #{tpu_custom_call.1} parent=1 // loop_header_branch
      %36 = sbr.rel (%p34) target = $region8
    $region5: #{tpu_custom_call.1} parent=1 // loop_body
      %s38 = ssub.s32 %s33, 1
      %s39 = ssub.s32 %s33, 2
      %s46 = sadd.s32 1, %s41
      %p47 = scmp.ge.s32.totalorder %s46, 1
      %s48 = scalar_select %p47, 0, %s46
      %s49 = sadd.s32 1, %s40
      %s50 = scalar_select %p47, %s49, %s40
      %p51 = scmp.ge.s32.totalorder %s50, 2
      %s52 = scalar_select %p51, 0, %s50
      %s53 = ssub.s32 %s40, %s52
      %s54 = ssub.s32 %s41, %s48
      %s55 = sor.u32 %s53, %s54
      %p56 = scmp.eq.s32.totalorder %s55, 0
      %s58 = sadd.s32 %s57, 1
      %s59 = scalar_select %p56, %s57, %s58
      %p62 = pneg %p56
      %p63 = scmp.eq.s32.totalorder %s33, 1
      %p64 = por %p62, %p63
      %p65 = scmp.ne.s32.totalorder %s57, %s60
      %p66 = scmp.eq.s32.totalorder %s33, 0
      %p67 = por %p65, %p66
      %p68 = scmp.ne.s32.totalorder %s57, %s60
      %p69 = scmp.eq.s32.totalorder %s38, 1
      %p70 = por %p68, %p69
      %p71 = scmp.ne.s32.totalorder %s60, %s61
      %p72 = scmp.eq.s32.totalorder %s38, 0
      %p73 = por %p71, %p72
      %p74 = scmp.ne.s32.totalorder %s60, %s61
      %p75 = scmp.eq.s32.totalorder %s39, 1
      %p76 = por %p74, %p75
      %p78 = scmp.ne.s32.totalorder %s61, %s77
      %p79 = scmp.eq.s32.totalorder %s39, 0
      %p80 = por %p78, %p79
      %s81 = ssub.s32 %s40, %s52
      %p82 = scmp.eq.s32.totalorder %s81, 0
      %s84 = sadd.s32 %s83, 1
      %s85 = scalar_select %p82, %s83, %s84
      %p88 = pneg %p82
      %p89 = scmp.eq.s32.totalorder %s33, 1
      %p90 = por %p88, %p89
      %p91 = scmp.ne.s32.totalorder %s83, %s86
      %p92 = scmp.eq.s32.totalorder %s33, 0
      %p93 = por %p91, %p92
      %p94 = scmp.ne.s32.totalorder %s83, %s86
      %p95 = scmp.eq.s32.totalorder %s38, 1
      %p96 = por %p94, %p95
      %p97 = scmp.ne.s32.totalorder %s86, %s87
      %p98 = scmp.eq.s32.totalorder %s38, 0
      %p99 = por %p97, %p98
      %p100 = scmp.ne.s32.totalorder %s86, %s87
      %p101 = scmp.eq.s32.totalorder %s39, 1
      %p102 = por %p100, %p101
      %p104 = scmp.ne.s32.totalorder %s87, %s103
      %p105 = scmp.eq.s32.totalorder %s39, 0
      %p106 = por %p104, %p105
      %s107 = ssub.s32 %s40, %s52
      %p108 = scmp.eq.s32.totalorder %s107, 0
      %s110 = sadd.s32 %s109, 1
      %s111 = scalar_select %p108, %s109, %s110
      %p114 = pneg %p108
      %p115 = scmp.eq.s32.totalorder %s33, 1
      %p116 = por %p114, %p115
      %p117 = scmp.ne.s32.totalorder %s109, %s112
      %p118 = scmp.eq.s32.totalorder %s33, 0
      %p119 = por %p117, %p118
      %p120 = scmp.ne.s32.totalorder %s109, %s112
      %p121 = scmp.eq.s32.totalorder %s38, 1
      %p122 = por %p120, %p121
      %p123 = scmp.ne.s32.totalorder %s112, %s113
      %p124 = scmp.eq.s32.totalorder %s38, 0
      %p125 = por %p123, %p124
      %p126 = scmp.ne.s32.totalorder %s112, %s113
      %p127 = scmp.eq.s32.totalorder %s39, 1
      %p128 = por %p126, %p127
      %p130 = scmp.ne.s32.totalorder %s113, %s129
      %p131 = scmp.eq.s32.totalorder %s39, 0
      %p132 = por %p130, %p131
      %s134 = sadd.s32 %s133, 1
      %p137 = scmp.eq.s32.totalorder %s33, 1
      %p138 = scmp.ne.s32.totalorder %s133, %s135
      %p139 = scmp.eq.s32.totalorder %s33, 0
      %p140 = por %p138, %p139
      %p141 = scmp.ne.s32.totalorder %s133, %s135
      %p142 = scmp.eq.s32.totalorder %s38, 1
      %p143 = por %p141, %p142
      %p144 = scmp.ne.s32.totalorder %s135, %s136
      %p145 = scmp.eq.s32.totalorder %s38, 0
      %p146 = por %p144, %p145
      %p147 = scmp.ne.s32.totalorder %s135, %s136
      %p148 = scmp.eq.s32.totalorder %s39, 1
      %p149 = por %p147, %p148
      %p151 = scmp.ne.s32.totalorder %s136, %s150
      %p152 = scmp.eq.s32.totalorder %s39, 0
      %p153 = por %p151, %p152
      %s155 = sadd.s32 %s154, 1
      %p158 = scmp.eq.s32.totalorder %s33, 1
      %p159 = scmp.ne.s32.totalorder %s154, %s156
      %p160 = scmp.eq.s32.totalorder %s33, 0
      %p161 = por %p159, %p160
      %p162 = scmp.ne.s32.totalorder %s154, %s156
      %p163 = scmp.eq.s32.totalorder %s38, 1
      %p164 = por %p162, %p163
      %p165 = scmp.ne.s32.totalorder %s156, %s157
      %p166 = scmp.eq.s32.totalorder %s38, 0
      %p167 = por %p165, %p166
      %p168 = scmp.ne.s32.totalorder %s156, %s157
      %p169 = scmp.eq.s32.totalorder %s39, 1
      %p170 = por %p168, %p169
      %p172 = scmp.ne.s32.totalorder %s157, %s171
      %p173 = scmp.eq.s32.totalorder %s39, 0
      %p174 = por %p172, %p173
      %s176 = sadd.s32 %s175, 1
      %p179 = scmp.eq.s32.totalorder %s33, 1
      %p180 = scmp.ne.s32.totalorder %s175, %s177
      %p181 = scmp.eq.s32.totalorder %s33, 0
      %p182 = por %p180, %p181
      %p183 = scmp.ne.s32.totalorder %s175, %s177
      %p184 = scmp.eq.s32.totalorder %s38, 1
      %p185 = por %p183, %p184
      %p186 = scmp.ne.s32.totalorder %s177, %s178
      %p187 = scmp.eq.s32.totalorder %s38, 0
      %p188 = por %p186, %p187
      %p189 = scmp.ne.s32.totalorder %s177, %s178
      %p190 = scmp.eq.s32.totalorder %s39, 1
      %p191 = por %p189, %p190
      %p193 = scmp.ne.s32.totalorder %s178, %s192
      %p194 = scmp.eq.s32.totalorder %s39, 0
      %p195 = por %p193, %p194
      %s197 = sadd.s32 %s196, 1
      %p200 = scmp.eq.s32.totalorder %s33, 1
      %p201 = scmp.ne.s32.totalorder %s196, %s198
      %p202 = scmp.eq.s32.totalorder %s33, 0
      %p203 = por %p201, %p202
      %p204 = scmp.ne.s32.totalorder %s196, %s198
      %p205 = scmp.eq.s32.totalorder %s38, 1
      %p206 = por %p204, %p205
      %p207 = scmp.ne.s32.totalorder %s198, %s199
      %p208 = scmp.eq.s32.totalorder %s38, 0
      %p209 = por %p207, %p208
      %p210 = scmp.ne.s32.totalorder %s198, %s199
      %p211 = scmp.eq.s32.totalorder %s39, 1
      %p212 = por %p210, %p211
      %p214 = scmp.ne.s32.totalorder %s199, %s213
      %p215 = scmp.eq.s32.totalorder %s39, 0
      %p216 = por %p214, %p215
      %s218 = sadd.s32 %s217, 1
      %p221 = scmp.eq.s32.totalorder %s33, 1
      %p222 = scmp.ne.s32.totalorder %s217, %s219
      %p223 = scmp.eq.s32.totalorder %s33, 0
      %p224 = por %p222, %p223
      %p225 = scmp.ne.s32.totalorder %s217, %s219
      %p226 = scmp.eq.s32.totalorder %s38, 1
      %p227 = por %p225, %p226
      %p228 = scmp.ne.s32.totalorder %s219, %s220
      %p229 = scmp.eq.s32.totalorder %s38, 0
      %p230 = por %p228, %p229
      %p231 = scmp.ne.s32.totalorder %s219, %s220
      %p232 = scmp.eq.s32.totalorder %s39, 1
      %p233 = por %p231, %p232
      %p235 = scmp.ne.s32.totalorder %s220, %s234
      %p236 = scmp.eq.s32.totalorder %s39, 0
      %p237 = por %p235, %p236
      %s239 = sadd.s32 %s238, 1
      %p242 = scmp.eq.s32.totalorder %s33, 1
      %p243 = scmp.ne.s32.totalorder %s238, %s240
      %p244 = scmp.eq.s32.totalorder %s33, 0
      %p245 = por %p243, %p244
      %p246 = scmp.ne.s32.totalorder %s238, %s240
      %p247 = scmp.eq.s32.totalorder %s38, 1
      %p248 = por %p246, %p247
      %p249 = scmp.ne.s32.totalorder %s240, %s241
      %p250 = scmp.eq.s32.totalorder %s38, 0
      %p251 = por %p249, %p250
      %p252 = scmp.ne.s32.totalorder %s240, %s241
      %p253 = scmp.eq.s32.totalorder %s39, 1
      %p254 = por %p252, %p253
      %p256 = scmp.ne.s32.totalorder %s241, %s255
      %p257 = scmp.eq.s32.totalorder %s39, 0
      %p258 = por %p256, %p257
      %s260 = sadd.s32 %s259, 1
      %p263 = scmp.eq.s32.totalorder %s33, 1
      %p264 = scmp.ne.s32.totalorder %s259, %s261
      %p265 = scmp.eq.s32.totalorder %s33, 0
      %p266 = por %p264, %p265
      %p267 = scmp.ne.s32.totalorder %s259, %s261
      %p268 = scmp.eq.s32.totalorder %s38, 1
      %p269 = por %p267, %p268
      %p270 = scmp.ne.s32.totalorder %s261, %s262
      %p271 = scmp.eq.s32.totalorder %s38, 0
      %p272 = por %p270, %p271
      %p273 = scmp.ne.s32.totalorder %s261, %s262
      %p274 = scmp.eq.s32.totalorder %s39, 1
      %p275 = por %p273, %p274
      %p277 = scmp.ne.s32.totalorder %s262, %s276
      %p278 = scmp.eq.s32.totalorder %s39, 0
      %p279 = por %p277, %p278
      %s281 = sadd.s32 %s280, 1
      %p284 = scmp.eq.s32.totalorder %s33, 1
      %p285 = scmp.ne.s32.totalorder %s280, %s282
      %p286 = scmp.eq.s32.totalorder %s33, 0
      %p287 = por %p285, %p286
      %p288 = scmp.ne.s32.totalorder %s280, %s282
      %p289 = scmp.eq.s32.totalorder %s38, 1
      %p290 = por %p288, %p289
      %p291 = scmp.ne.s32.totalorder %s282, %s283
      %p292 = scmp.eq.s32.totalorder %s38, 0
      %p293 = por %p291, %p292
      %p294 = scmp.ne.s32.totalorder %s282, %s283
      %p295 = scmp.eq.s32.totalorder %s39, 1
      %p296 = por %p294, %p295
      %p298 = scmp.ne.s32.totalorder %s283, %s297
      %p299 = scmp.eq.s32.totalorder %s39, 0
      %p300 = por %p298, %p299
      %s302 = sadd.s32 %s301, 1
      %p305 = scmp.eq.s32.totalorder %s33, 1
      %p306 = scmp.ne.s32.totalorder %s301, %s303
      %p307 = scmp.eq.s32.totalorder %s33, 0
      %p308 = por %p306, %p307
      %p309 = scmp.ne.s32.totalorder %s301, %s303
      %p310 = scmp.eq.s32.totalorder %s38, 1
      %p311 = por %p309, %p310
      %p312 = scmp.ne.s32.totalorder %s303, %s304
      %p313 = scmp.eq.s32.totalorder %s38, 0
      %p314 = por %p312, %p313
      %p315 = scmp.ne.s32.totalorder %s303, %s304
      %p316 = scmp.eq.s32.totalorder %s39, 1
      %p317 = por %p315, %p316
      %p319 = scmp.ne.s32.totalorder %s304, %s318
      %p320 = scmp.eq.s32.totalorder %s39, 0
      %p321 = por %p319, %p320
      %s323 = sadd.s32 %s322, 1
      %p326 = scmp.eq.s32.totalorder %s33, 1
      %p327 = scmp.ne.s32.totalorder %s322, %s324
      %p328 = scmp.eq.s32.totalorder %s33, 0
      %p329 = por %p327, %p328
      %p330 = scmp.ne.s32.totalorder %s322, %s324
      %p331 = scmp.eq.s32.totalorder %s38, 1
      %p332 = por %p330, %p331
      %p333 = scmp.ne.s32.totalorder %s324, %s325
      %p334 = scmp.eq.s32.totalorder %s38, 0
      %p335 = por %p333, %p334
      %p336 = scmp.ne.s32.totalorder %s324, %s325
      %p337 = scmp.eq.s32.totalorder %s39, 1
      %p338 = por %p336, %p337
      %p340 = scmp.ne.s32.totalorder %s325, %s339
      %p341 = scmp.eq.s32.totalorder %s39, 0
      %p342 = por %p340, %p341
      %s343 = ssub.s32 %s40, %s52
      %s344 = ssub.s32 %s41, %s48
      %s345 = sor.u32 %s343, %s344
      %p346 = scmp.eq.s32.totalorder %s345, 0
      %s348 = sadd.s32 %s347, 1
      %s349 = scalar_select %p346, %s347, %s348
      %p352 = pneg %p346
      %p353 = scmp.eq.s32.totalorder %s33, 1
      %p354 = por %p352, %p353
      %p355 = scmp.ne.s32.totalorder %s347, %s350
      %p356 = scmp.eq.s32.totalorder %s33, 0
      %p357 = por %p355, %p356
      %p358 = scmp.ne.s32.totalorder %s347, %s350
      %p359 = scmp.eq.s32.totalorder %s38, 1
      %p360 = por %p358, %p359
      %p361 = scmp.ne.s32.totalorder %s350, %s351
      %p362 = scmp.eq.s32.totalorder %s38, 0
      %p363 = por %p361, %p362
      %p364 = scmp.ne.s32.totalorder %s350, %s351
      %p365 = scmp.eq.s32.totalorder %s39, 1
      %p366 = por %p364, %p365
      %p368 = scmp.ne.s32.totalorder %s351, %s367
      %p369 = scmp.eq.s32.totalorder %s39, 0
      %p370 = por %p368, %p369
      %p371 = scmp.le.s32.totalorder 1, %s33
      %p372 = scmp.lt.s32.totalorder %s33, 3
      %p373 = pnand %p371, %p372
      %p374 = pneg %p373
      // Predicated region
      $region9: #{tpu_custom_call.1} parent=5 // pred_check
        _
      $region10: #{tpu_custom_call.1} parent=5 // pred_check_branch
        %376 = sbr.rel (%p373) target = $region12
      $region11: #{tpu_custom_call.1} parent=5 // pred_region
        %s377 = ssub.s32 %s33, 1
        // Predicated region
        $region13: #{tpu_custom_call.1} parent=11 // pred_check
          %p378 = pneg %p146
        $region14: #{tpu_custom_call.1} parent=11 // pred_check_branch
          %380 = sbr.rel (%p378) target = $region16
        $region15: #{tpu_custom_call.1} parent=11 // pred_region
          %s382 = ssub.s32 4096, 4096
          %383 = vsyncadd [#allocation9], %s382
          %s384 = sshll.u32 [#allocation8], 4
          %s385 = int_to_ptr.vmem [resolvable:$true] %s384
          %390 = dma.hbm_to_vmem [thread:$0]  %s3, 4096, %s385, [#allocation9], 64, 64, 4
        $region16: #{tpu_custom_call.1} parent=11 // pred_fallthru
          _
        // Predicated region
        $region17: #{tpu_custom_call.1} parent=11 // pred_check
          %p391 = pneg %p167
        $region18: #{tpu_custom_call.1} parent=11 // pred_check_branch
          %393 = sbr.rel (%p391) target = $region20
        $region19: #{tpu_custom_call.1} parent=11 // pred_region
          %s395 = ssub.s32 4096, 4096
          %396 = vsyncadd [#allocation9], %s395
          %s397 = sshll.u32 [#allocation10], 4
          %s398 = int_to_ptr.vmem [resolvable:$true] %s397
          %403 = dma.hbm_to_vmem [thread:$0]  %s4, 4096, %s398, [#allocation9], 128, 128, 8
        $region20: #{tpu_custom_call.1} parent=11 // pred_fallthru
          _
        // Predicated region
        $region21: #{tpu_custom_call.1} parent=11 // pred_check
          %p404 = pneg %p188
        $region22: #{tpu_custom_call.1} parent=11 // pred_check_branch
          %406 = sbr.rel (%p404) target = $region24
        $region23: #{tpu_custom_call.1} parent=11 // pred_region
          %s408 = ssub.s32 32, 32
          %409 = vsyncadd [#allocation12], %s408
          %s411 = sshll.u32 [#allocation11], 4
          %s412 = int_to_ptr.vmem [resolvable:$true] %s411
          %414 = dma.hbm_to_vmem [thread:$0]  %s5, 32, %s412, [#allocation12]
        $region24: #{tpu_custom_call.1} parent=11 // pred_fallthru
          _
        // Predicated region
        $region25: #{tpu_custom_call.1} parent=11 // pred_check
          %p415 = pneg %p209
        $region26: #{tpu_custom_call.1} parent=11 // pred_check_branch
          %417 = sbr.rel (%p415) target = $region28
        $region27: #{tpu_custom_call.1} parent=11 // pred_region
          %s419 = ssub.s32 32, 32
          %420 = vsyncadd [#allocation12], %s419
          %s422 = sshll.u32 [#allocation13], 4
          %s423 = int_to_ptr.vmem [resolvable:$true] %s422
          %425 = dma.hbm_to_vmem [thread:$0]  %s6, 32, %s423, [#allocation12]
        $region28: #{tpu_custom_call.1} parent=11 // pred_fallthru
          _
        // Predicated region
        $region29: #{tpu_custom_call.1} parent=11 // pred_check
          %p426 = pneg %p230
        $region30: #{tpu_custom_call.1} parent=11 // pred_check_branch
          %428 = sbr.rel (%p426) target = $region32
        $region31: #{tpu_custom_call.1} parent=11 // pred_region
          %s430 = ssub.s32 8192, 8192
          %431 = vsyncadd [#allocation15], %s430
          %s432 = sshll.u32 [#allocation14], 4
          %s433 = int_to_ptr.vmem [resolvable:$true] %s432
          %438 = dma.hbm_to_vmem [thread:$0]  %s7, 8192, %s433, [#allocation15], 256, 256, 16
        $region32: #{tpu_custom_call.1} parent=11 // pred_fallthru
          _
        // Predicated region
        $region33: #{tpu_custom_call.1} parent=11 // pred_check
          %p439 = pneg %p251
        $region34: #{tpu_custom_call.1} parent=11 // pred_check_branch
          %441 = sbr.rel (%p439) target = $region36
        $region35: #{tpu_custom_call.1} parent=11 // pred_region
          %s443 = ssub.s32 64, 64
          %444 = vsyncadd [#allocation15], %s443
          %s446 = sshll.u32 [#allocation16], 4
          %s447 = int_to_ptr.vmem [resolvable:$true] %s446
          %449 = dma.hbm_to_vmem [thread:$0]  %s8, 64, %s447, [#allocation15]
        $region36: #{tpu_custom_call.1} parent=11 // pred_fallthru
          _
        // Predicated region
        $region37: #{tpu_custom_call.1} parent=11 // pred_check
          %p450 = pneg %p272
        $region38: #{tpu_custom_call.1} parent=11 // pred_check_branch
          %452 = sbr.rel (%p450) target = $region40
        $region39: #{tpu_custom_call.1} parent=11 // pred_region
          %s454 = ssub.s32 8192, 8192
          %455 = vsyncadd [#allocation18], %s454
          %s456 = sshll.u32 [#allocation17], 4
          %s457 = int_to_ptr.vmem [resolvable:$true] %s456
          %462 = dma.hbm_to_vmem [thread:$0]  %s9, 8192, %s457, [#allocation18], 128, 128, 8
        $region40: #{tpu_custom_call.1} parent=11 // pred_fallthru
          _
        // Predicated region
        $region41: #{tpu_custom_call.1} parent=11 // pred_check
          %p463 = pneg %p293
        $region42: #{tpu_custom_call.1} parent=11 // pred_check_branch
          %465 = sbr.rel (%p463) target = $region44
        $region43: #{tpu_custom_call.1} parent=11 // pred_region
          %s467 = ssub.s32 32, 32
          %468 = vsyncadd [#allocation18], %s467
          %s470 = sshll.u32 [#allocation19], 4
          %s471 = int_to_ptr.vmem [resolvable:$true] %s470
          %473 = dma.hbm_to_vmem [thread:$0]  %s10, 32, %s471, [#allocation18]
        $region44: #{tpu_custom_call.1} parent=11 // pred_fallthru
          _
        // Predicated region
        $region45: #{tpu_custom_call.1} parent=11 // pred_check
          %p474 = pneg %p314
        $region46: #{tpu_custom_call.1} parent=11 // pred_check_branch
          %476 = sbr.rel (%p474) target = $region48
        $region47: #{tpu_custom_call.1} parent=11 // pred_region
          %s478 = ssub.s32 32, 32
          %479 = vsyncadd [#allocation21], %s478
          %s481 = sshll.u32 [#allocation20], 4
          %s482 = int_to_ptr.vmem [resolvable:$true] %s481
          %484 = dma.hbm_to_vmem [thread:$0]  %s11, 32, %s482, [#allocation21]
        $region48: #{tpu_custom_call.1} parent=11 // pred_fallthru
          _
        // Predicated region
        $region49: #{tpu_custom_call.1} parent=11 // pred_check
          %p485 = pneg %p335
        $region50: #{tpu_custom_call.1} parent=11 // pred_check_branch
          %487 = sbr.rel (%p485) target = $region52
        $region51: #{tpu_custom_call.1} parent=11 // pred_region
          %s489 = ssub.s32 32, 32
          %490 = vsyncadd [#allocation21], %s489
          %s492 = sshll.u32 [#allocation22], 4
          %s493 = int_to_ptr.vmem [resolvable:$true] %s492
          %495 = dma.hbm_to_vmem [thread:$0]  %s12, 32, %s493, [#allocation21]
        $region52: #{tpu_custom_call.1} parent=11 // pred_fallthru
          _
      $region12: #{tpu_custom_call.1} parent=5 // pred_fallthru
        _
      %p496 = scmp.lt.s32.totalorder %s33, 2
      // Predicated region
      $region53: #{tpu_custom_call.1} parent=5 // pred_check
        %p497 = pneg %p496
      $region54: #{tpu_custom_call.1} parent=5 // pred_check_branch
        %499 = sbr.rel (%p497) target = $region56
      $region55: #{tpu_custom_call.1} parent=5 // pred_region
        // Predicated region
        $region57: #{tpu_custom_call.1} parent=55 // pred_check
          %p500 = pneg %p67
        $region58: #{tpu_custom_call.1} parent=55 // pred_check_branch
          %502 = sbr.rel (%p500) target = $region60
        $region59: #{tpu_custom_call.1} parent=55 // pred_region
          %s503 = sand.u32 %s57, 1
          %s504 = scalar_lea.sflag [#allocation3], %s503
          %s505 = sand.u32 %s57, 1
          %s506 = smul.addr %s505, 256
          %s507 = scalar_lea.vmem [#allocation2], %s506
          %s508 = smul.u32 16, %s41
          %s510 = ssub.s32 4096, 4096
          %511 = vsyncadd %s504, %s510
          %s512 = smul.addr %s508, 2
          %s513 = smul.addr %s40, 32
          %s514 = sadd.s32 %s512, %s513
          %s515 = smul.addr %s514, 128
          %s516 = scalar_lea.hbm %s0, %s515
          %s517 = sshll.u32 %s507, 4
          %s518 = int_to_ptr.vmem [resolvable:$true] %s517
          %523 = dma.hbm_to_vmem [thread:$0]  %s516, 4096, %s518, %s504, 256, 256, 16
        $region60: #{tpu_custom_call.1} parent=55 // pred_fallthru
          _
        // Predicated region
        $region61: #{tpu_custom_call.1} parent=55 // pred_check
          %p524 = pneg %p93
        $region62: #{tpu_custom_call.1} parent=55 // pred_check_branch
          %526 = sbr.rel (%p524) target = $region64
        $region63: #{tpu_custom_call.1} parent=55 // pred_region
          %s527 = sand.u32 %s33, 1
          %s528 = scalar_lea.sflag [#allocation6], %s527
          %s529 = sand.u32 %s83, 1
          %s530 = smul.addr %s529, 128
          %s531 = scalar_lea.vmem [#allocation5], %s530
          %s533 = ssub.s32 2048, 2048
          %534 = vsyncadd %s528, %s533
          %s535 = smul.addr %s40, 32
          %s536 = smul.addr %s535, 64
          %s537 = scalar_lea.hbm %s1, %s536
          %s538 = sshll.u32 %s531, 4
          %s539 = int_to_ptr.vmem [resolvable:$true] %s538
          %544 = dma.hbm_to_vmem [thread:$0]  %s537, 2048, %s539, %s528, 64, 64, 4
        $region64: #{tpu_custom_call.1} parent=55 // pred_fallthru
          _
        // Predicated region
        $region65: #{tpu_custom_call.1} parent=55 // pred_check
          %p545 = pneg %p119
        $region66: #{tpu_custom_call.1} parent=55 // pred_check_branch
          %547 = sbr.rel (%p545) target = $region68
        $region67: #{tpu_custom_call.1} parent=55 // pred_region
          %s548 = sand.u32 %s33, 1
          %s549 = scalar_lea.sflag [#allocation6], %s548
          %s550 = sand.u32 %s109, 1
          %s551 = smul.addr %s550, 128
          %s552 = scalar_lea.vmem [#allocation7], %s551
          %s554 = ssub.s32 2048, 2048
          %555 = vsyncadd %s549, %s554
          %s556 = smul.addr %s40, 32
          %s557 = smul.addr %s556, 64
          %s558 = scalar_lea.hbm %s2, %s557
          %s559 = sshll.u32 %s552, 4
          %s560 = int_to_ptr.vmem [resolvable:$true] %s559
          %565 = dma.hbm_to_vmem [thread:$0]  %s558, 2048, %s560, %s549, 64, 64, 4
        $region68: #{tpu_custom_call.1} parent=55 // pred_fallthru
          _
      $region56: #{tpu_custom_call.1} parent=5 // pred_fallthru
        _
      %p566 = scmp.le.s32.totalorder 1, %s33
      %p567 = scmp.lt.s32.totalorder %s33, 3
      %p568 = pnand %p566, %p567
      %p569 = pneg %p568
      // Predicated region
      $region69: #{tpu_custom_call.1} parent=5 // pred_check
        _
      $region70: #{tpu_custom_call.1} parent=5 // pred_check_branch
        %571 = sbr.rel (%p568) target = $region72
      $region71: #{tpu_custom_call.1} parent=5 // pred_region
        %s572 = ssub.s32 %s33, 1
        %s573 = sand.u32 %s60, 1
        %s574 = scalar_lea.sflag [#allocation3], %s573
        %s575 = sand.u32 %s60, 1
        %s576 = smul.addr %s575, 256
        %s577 = scalar_lea.vmem [#allocation2], %s576
        // Predicated region
        $region73: #{tpu_custom_call.1} parent=71 // pred_check
          %p578 = pneg %p73
        $region74: #{tpu_custom_call.1} parent=71 // pred_check_branch
          %580 = sbr.rel (%p578) target = $region76
        $region75: #{tpu_custom_call.1} parent=71 // pred_region
          %581 = dma.done %s574, 4096
        $region76: #{tpu_custom_call.1} parent=71 // pred_fallthru
          _
        %s582 = sand.u32 %s38, 1
        %s583 = scalar_lea.sflag [#allocation6], %s582
        %s584 = sand.u32 %s86, 1
        %s585 = smul.addr %s584, 128
        %s586 = scalar_lea.vmem [#allocation5], %s585
        // Predicated region
        $region77: #{tpu_custom_call.1} parent=71 // pred_check
          %p587 = pneg %p99
        $region78: #{tpu_custom_call.1} parent=71 // pred_check_branch
          %589 = sbr.rel (%p587) target = $region80
        $region79: #{tpu_custom_call.1} parent=71 // pred_region
          %590 = dma.done %s583, 2048
        $region80: #{tpu_custom_call.1} parent=71 // pred_fallthru
          _
        %s591 = sand.u32 %s38, 1
        %s592 = scalar_lea.sflag [#allocation6], %s591
        %s593 = sand.u32 %s112, 1
        %s594 = smul.addr %s593, 128
        %s595 = scalar_lea.vmem [#allocation7], %s594
        // Predicated region
        $region81: #{tpu_custom_call.1} parent=71 // pred_check
          %p596 = pneg %p125
        $region82: #{tpu_custom_call.1} parent=71 // pred_check_branch
          %598 = sbr.rel (%p596) target = $region84
        $region83: #{tpu_custom_call.1} parent=71 // pred_region
          %599 = dma.done %s592, 2048
        $region84: #{tpu_custom_call.1} parent=71 // pred_fallthru
          _
        // Predicated region
        $region85: #{tpu_custom_call.1} parent=71 // pred_check
          %p600 = pneg %p146
        $region86: #{tpu_custom_call.1} parent=71 // pred_check_branch
          %602 = sbr.rel (%p600) target = $region88
        $region87: #{tpu_custom_call.1} parent=71 // pred_region
          %603 = dma.done [#allocation9], 4096
        $region88: #{tpu_custom_call.1} parent=71 // pred_fallthru
          _
        // Predicated region
        $region89: #{tpu_custom_call.1} parent=71 // pred_check
          %p604 = pneg %p167
        $region90: #{tpu_custom_call.1} parent=71 // pred_check_branch
          %606 = sbr.rel (%p604) target = $region92
        $region91: #{tpu_custom_call.1} parent=71 // pred_region
          %607 = dma.done [#allocation9], 4096
        $region92: #{tpu_custom_call.1} parent=71 // pred_fallthru
          _
        // Predicated region
        $region93: #{tpu_custom_call.1} parent=71 // pred_check
          %p608 = pneg %p188
        $region94: #{tpu_custom_call.1} parent=71 // pred_check_branch
          %610 = sbr.rel (%p608) target = $region96
        $region95: #{tpu_custom_call.1} parent=71 // pred_region
          %611 = dma.done [#allocation12], 32
        $region96: #{tpu_custom_call.1} parent=71 // pred_fallthru
          _
        // Predicated region
        $region97: #{tpu_custom_call.1} parent=71 // pred_check
          %p612 = pneg %p209
        $region98: #{tpu_custom_call.1} parent=71 // pred_check_branch
          %614 = sbr.rel (%p612) target = $region100
        $region99: #{tpu_custom_call.1} parent=71 // pred_region
          %615 = dma.done [#allocation12], 32
        $region100: #{tpu_custom_call.1} parent=71 // pred_fallthru
          _
        // Predicated region
        $region101: #{tpu_custom_call.1} parent=71 // pred_check
          %p616 = pneg %p230
        $region102: #{tpu_custom_call.1} parent=71 // pred_check_branch
          %618 = sbr.rel (%p616) target = $region104
        $region103: #{tpu_custom_call.1} parent=71 // pred_region
          %619 = dma.done [#allocation15], 8192
        $region104: #{tpu_custom_call.1} parent=71 // pred_fallthru
          _
        // Predicated region
        $region105: #{tpu_custom_call.1} parent=71 // pred_check
          %p620 = pneg %p251
        $region106: #{tpu_custom_call.1} parent=71 // pred_check_branch
          %622 = sbr.rel (%p620) target = $region108
        $region107: #{tpu_custom_call.1} parent=71 // pred_region
          %623 = dma.done [#allocation15], 64
        $region108: #{tpu_custom_call.1} parent=71 // pred_fallthru
          _
        // Predicated region
        $region109: #{tpu_custom_call.1} parent=71 // pred_check
          %p624 = pneg %p272
        $region110: #{tpu_custom_call.1} parent=71 // pred_check_branch
          %626 = sbr.rel (%p624) target = $region112
        $region111: #{tpu_custom_call.1} parent=71 // pred_region
          %627 = dma.done [#allocation18], 8192
        $region112: #{tpu_custom_call.1} parent=71 // pred_fallthru
          _
        // Predicated region
        $region113: #{tpu_custom_call.1} parent=71 // pred_check
          %p628 = pneg %p293
        $region114: #{tpu_custom_call.1} parent=71 // pred_check_branch
          %630 = sbr.rel (%p628) target = $region116
        $region115: #{tpu_custom_call.1} parent=71 // pred_region
          %631 = dma.done [#allocation18], 32
        $region116: #{tpu_custom_call.1} parent=71 // pred_fallthru
          _
        // Predicated region
        $region117: #{tpu_custom_call.1} parent=71 // pred_check
          %p632 = pneg %p314
        $region118: #{tpu_custom_call.1} parent=71 // pred_check_branch
          %634 = sbr.rel (%p632) target = $region120
        $region119: #{tpu_custom_call.1} parent=71 // pred_region
          %635 = dma.done [#allocation21], 32
        $region120: #{tpu_custom_call.1} parent=71 // pred_fallthru
          _
        // Predicated region
        $region121: #{tpu_custom_call.1} parent=71 // pred_check
          %p636 = pneg %p335
        $region122: #{tpu_custom_call.1} parent=71 // pred_check_branch
          %638 = sbr.rel (%p636) target = $region124
        $region123: #{tpu_custom_call.1} parent=71 // pred_region
          %639 = dma.done [#allocation21], 32
        $region124: #{tpu_custom_call.1} parent=71 // pred_fallthru
          _
        %s640 = sand.u32 %s60, 1
        %s641 = scalar_lea.sflag [#allocation3], %s640
        %s642 = sand.u32 %s60, 1
        %s643 = smul.addr %s642, 256
        %s644 = scalar_lea.vmem [#allocation2], %s643
        %p645 = pneg %p73
        %p646 = pneg %p70
        %s647 = sand.u32 %s38, 1
        %s648 = scalar_lea.sflag [#allocation6], %s647
        %s649 = sand.u32 %s86, 1
        %s650 = smul.addr %s649, 128
        %s651 = scalar_lea.vmem [#allocation5], %s650
        %p652 = pneg %p99
        %p653 = pneg %p96
        %s654 = sand.u32 %s38, 1
        %s655 = scalar_lea.sflag [#allocation6], %s654
        %s656 = sand.u32 %s112, 1
        %s657 = smul.addr %s656, 128
        %s658 = scalar_lea.vmem [#allocation7], %s657
        %p659 = pneg %p125
        %p660 = pneg %p122
        %p661 = pneg %p146
        %p662 = pneg %p143
        %p663 = pneg %p167
        %p664 = pneg %p164
        %p665 = pneg %p188
        %p666 = pneg %p185
        %p667 = pneg %p209
        %p668 = pneg %p206
        %p669 = pneg %p230
        %p670 = pneg %p227
        %p671 = pneg %p251
        %p672 = pneg %p248
        %p673 = pneg %p272
        %p674 = pneg %p269
        %p675 = pneg %p293
        %p676 = pneg %p290
        %p677 = pneg %p314
        %p678 = pneg %p311
        %p679 = pneg %p335
        %p680 = pneg %p332
        %p681 = pneg %p363
        %p682 = pneg %p360
        %s683 = sand.u32 %s350, 1
        %s684 = scalar_lea.sflag [#allocation4], %s683
        %s685 = sand.u32 %s350, 1
        %s686 = smul.addr %s685, 256
        %s687 = scalar_lea.vmem [#allocation23], %s686
        %s688 = smul.u32 16, %s43
        %s689 = smul.u32 16, %s43
        %v691 = vld [vmem:[%s577] sm:$0xff]
        %v692 = vld [vmem:[%s577 + $0x8] sm:$0xff]
        %v693 = vld [vmem:[%s577 + $0x10] sm:$0xff]
        %v694 = vld [vmem:[%s577 + $0x18] sm:$0xff]
        %v695 = vld [vmem:[%s577 + $0x20] sm:$0xff]
        %v696 = vld [vmem:[%s577 + $0x28] sm:$0xff]
        %v697 = vld [vmem:[%s577 + $0x30] sm:$0xff]
        %v698 = vld [vmem:[%s577 + $0x38] sm:$0xff]
        %v699 = vld [vmem:[%s577 + $0x40] sm:$0xff]
        %v700 = vld [vmem:[%s577 + $0x48] sm:$0xff]
        %v701 = vld [vmem:[%s577 + $0x50] sm:$0xff]
        %v702 = vld [vmem:[%s577 + $0x58] sm:$0xff]
        %v703 = vld [vmem:[%s577 + $0x60] sm:$0xff]
        %v704 = vld [vmem:[%s577 + $0x68] sm:$0xff]
        %v705 = vld [vmem:[%s577 + $0x70] sm:$0xff]
        %v706 = vld [vmem:[%s577 + $0x78] sm:$0xff]
        %v707 = vld [vmem:[%s577 + $0x80] sm:$0xff]
        %v708 = vld [vmem:[%s577 + $0x88] sm:$0xff]
        %v709 = vld [vmem:[%s577 + $0x90] sm:$0xff]
        %v710 = vld [vmem:[%s577 + $0x98] sm:$0xff]
        %v711 = vld [vmem:[%s577 + $0xa0] sm:$0xff]
        %v712 = vld [vmem:[%s577 + $0xa8] sm:$0xff]
        %v713 = vld [vmem:[%s577 + $0xb0] sm:$0xff]
        %v714 = vld [vmem:[%s577 + $0xb8] sm:$0xff]
        %v715 = vld [vmem:[%s577 + $0xc0] sm:$0xff]
        %v716 = vld [vmem:[%s577 + $0xc8] sm:$0xff]
        %v717 = vld [vmem:[%s577 + $0xd0] sm:$0xff]
        %v718 = vld [vmem:[%s577 + $0xd8] sm:$0xff]
        %v719 = vld [vmem:[%s577 + $0xe0] sm:$0xff]
        %v720 = vld [vmem:[%s577 + $0xe8] sm:$0xff]
        %v721 = vld [vmem:[%s577 + $0xf0] sm:$0xff]
        %v722 = vld [vmem:[%s577 + $0xf8] sm:$0xff]
        %v723 = vpack.c.bf16 %v693, %v691
        %v724 = vpack.c.bf16 %v694, %v692
        %v725 = vpack.c.bf16 %v697, %v695
        %v726 = vpack.c.bf16 %v698, %v696
        %v727 = vpack.c.bf16 %v701, %v699
        %v728 = vpack.c.bf16 %v702, %v700
        %v729 = vpack.c.bf16 %v705, %v703
        %v730 = vpack.c.bf16 %v706, %v704
        %v731 = vpack.c.bf16 %v709, %v707
        %v732 = vpack.c.bf16 %v710, %v708
        %v733 = vpack.c.bf16 %v713, %v711
        %v734 = vpack.c.bf16 %v714, %v712
        %v735 = vpack.c.bf16 %v717, %v715
        %v736 = vpack.c.bf16 %v718, %v716
        %v737 = vpack.c.bf16 %v721, %v719
        %v738 = vpack.c.bf16 %v722, %v720
        loop: start=0, step=1, limit=2
        $region125: #{tpu_custom_call.1} parent=71 // loop_pre_header
          _
        $region126: #{tpu_custom_call.1} parent=71 // loop_header
          %s740 = sphi 0, %s744
          %p741 = scmp.ge.s32.totalorder %s740, 2
          %v745 = vphi 0.0, %v1727
          %v746 = vphi 0.0, %v1728
          %v747 = vphi 0.0, %v1729
          %v748 = vphi 0.0, %v1730
          %v749 = vphi 0.0, %v1731
          %v750 = vphi 0.0, %v1732
          %v751 = vphi 0.0, %v1733
          %v752 = vphi 0.0, %v1734
          %v753 = vphi 0.0, %v1735
          %v754 = vphi 0.0, %v1736
          %v755 = vphi 0.0, %v1737
          %v756 = vphi 0.0, %v1738
          %v757 = vphi 0.0, %v1739
          %v758 = vphi 0.0, %v1740
          %v759 = vphi 0.0, %v1741
          %v760 = vphi 0.0, %v1742
          %v761 = vphi 0.0, %v1743
          %v762 = vphi 0.0, %v1744
          %v763 = vphi 0.0, %v1745
          %v764 = vphi 0.0, %v1746
          %v765 = vphi 0.0, %v1747
          %v766 = vphi 0.0, %v1748
          %v767 = vphi 0.0, %v1749
          %v768 = vphi 0.0, %v1750
          %v769 = vphi 0.0, %v1751
          %v770 = vphi 0.0, %v1752
          %v771 = vphi 0.0, %v1753
          %v772 = vphi 0.0, %v1754
          %v773 = vphi 0.0, %v1755
          %v774 = vphi 0.0, %v1756
          %v775 = vphi 0.0, %v1757
          %v776 = vphi 0.0, %v1758
        $region127: #{tpu_custom_call.1} parent=71 // loop_header_branch
          %743 = sbr.rel (%p741) target = $region131
        $region128: #{tpu_custom_call.1} parent=71 // loop_body
          %s777 = smul.u32 %s740, 32
          %s778 = smul.addr %s777, 4
          %s779 = scalar_lea.vmem [#allocation8], %s778
          %v780 = vld [vmem:[%s779] sm:$0xf]
          %v781 = vld [vmem:[%s779 + $0x4] sm:$0xf]
          %v782 = vld [vmem:[%s779 + $0x8] sm:$0xf]
          %v783 = vld [vmem:[%s779 + $0xc] sm:$0xf]
          %v784 = vld [vmem:[%s779 + $0x10] sm:$0xf]
          %v785 = vld [vmem:[%s779 + $0x14] sm:$0xf]
          %v786 = vld [vmem:[%s779 + $0x18] sm:$0xf]
          %v787 = vld [vmem:[%s779 + $0x1c] sm:$0xf]
          %v788 = vld [vmem:[%s779 + $0x20] sm:$0xf]
          %v789 = vld [vmem:[%s779 + $0x24] sm:$0xf]
          %v790 = vld [vmem:[%s779 + $0x28] sm:$0xf]
          %v791 = vld [vmem:[%s779 + $0x2c] sm:$0xf]
          %v792 = vld [vmem:[%s779 + $0x30] sm:$0xf]
          %v793 = vld [vmem:[%s779 + $0x34] sm:$0xf]
          %v794 = vld [vmem:[%s779 + $0x38] sm:$0xf]
          %v795 = vld [vmem:[%s779 + $0x3c] sm:$0xf]
          %v796 = vld [vmem:[%s779 + $0x40] sm:$0xf]
          %v797 = vld [vmem:[%s779 + $0x44] sm:$0xf]
          %v798 = vld [vmem:[%s779 + $0x48] sm:$0xf]
          %v799 = vld [vmem:[%s779 + $0x4c] sm:$0xf]
          %v800 = vld [vmem:[%s779 + $0x50] sm:$0xf]
          %v801 = vld [vmem:[%s779 + $0x54] sm:$0xf]
          %v802 = vld [vmem:[%s779 + $0x58] sm:$0xf]
          %v803 = vld [vmem:[%s779 + $0x5c] sm:$0xf]
          %v804 = vld [vmem:[%s779 + $0x60] sm:$0xf]
          %v805 = vld [vmem:[%s779 + $0x64] sm:$0xf]
          %v806 = vld [vmem:[%s779 + $0x68] sm:$0xf]
          %v807 = vld [vmem:[%s779 + $0x6c] sm:$0xf]
          %v808 = vld [vmem:[%s779 + $0x70] sm:$0xf]
          %v809 = vld [vmem:[%s779 + $0x74] sm:$0xf]
          %v810 = vld [vmem:[%s779 + $0x78] sm:$0xf]
          %v811 = vld [vmem:[%s779 + $0x7c] sm:$0xf]
          %v844 = vunpack.c.l.b16 %v780
          %v845 = vunpack.c.l.b16 %v781
          %v846 = vunpack.c.l.b16 %v782
          %v847 = vunpack.c.l.b16 %v783
          %v848 = vunpack.c.l.b16 %v784
          %v849 = vunpack.c.l.b16 %v785
          %v850 = vunpack.c.l.b16 %v786
          %v851 = vunpack.c.l.b16 %v787
          %v852 = vunpack.c.l.b16 %v788
          %v853 = vunpack.c.l.b16 %v789
          %v854 = vunpack.c.l.b16 %v790
          %v855 = vunpack.c.l.b16 %v791
          %v856 = vunpack.c.l.b16 %v792
          %v857 = vunpack.c.l.b16 %v793
          %v858 = vunpack.c.l.b16 %v794
          %v859 = vunpack.c.l.b16 %v795
          %v860 = vunpack.c.l.b16 %v796
          %v861 = vunpack.c.l.b16 %v797
          %v862 = vunpack.c.l.b16 %v798
          %v863 = vunpack.c.l.b16 %v799
          %v864 = vunpack.c.l.b16 %v800
          %v865 = vunpack.c.l.b16 %v801
          %v866 = vunpack.c.l.b16 %v802
          %v867 = vunpack.c.l.b16 %v803
          %v868 = vunpack.c.l.b16 %v804
          %v869 = vunpack.c.l.b16 %v805
          %v870 = vunpack.c.l.b16 %v806
          %v871 = vunpack.c.l.b16 %v807
          %v872 = vunpack.c.l.b16 %v808
          %v873 = vunpack.c.l.b16 %v809
          %v874 = vunpack.c.l.b16 %v810
          %v875 = vunpack.c.l.b16 %v811
          %v876 = vpack.c.b16 %v845, %v844
          %v877 = vpack.c.b16 %v847, %v846
          %v878 = vpack.c.b16 %v849, %v848
          %v879 = vpack.c.b16 %v851, %v850
          %v880 = vpack.c.b16 %v853, %v852
          %v881 = vpack.c.b16 %v855, %v854
          %v882 = vpack.c.b16 %v857, %v856
          %v883 = vpack.c.b16 %v859, %v858
          %v884 = vpack.c.b16 %v861, %v860
          %v885 = vpack.c.b16 %v863, %v862
          %v886 = vpack.c.b16 %v865, %v864
          %v887 = vpack.c.b16 %v867, %v866
          %v888 = vpack.c.b16 %v869, %v868
          %v889 = vpack.c.b16 %v871, %v870
          %v890 = vpack.c.b16 %v873, %v872
          %v891 = vpack.c.b16 %v875, %v874
          %908 = vmatprep.subr.bf16.mxu0 0
          %909 = vmatpush1.bf16.msra.mxu0 %v876
          %910 = vmatprep.subr.bf16.mxu0 0
          %911 = vmatpush1.bf16.msra.mxu0 %v877
          %912 = vmatprep.subr.bf16.mxu0 0
          %913 = vmatpush1.bf16.msra.mxu0 %v878
          %914 = vmatprep.subr.bf16.mxu0 0
          %915 = vmatpush1.bf16.msra.mxu0 %v879
          %916 = vmatprep.subr.bf16.mxu0 0
          %917 = vmatpush1.bf16.msra.mxu0 %v880
          %918 = vmatprep.subr.bf16.mxu0 0
          %919 = vmatpush1.bf16.msra.mxu0 %v881
          %920 = vmatprep.subr.bf16.mxu0 0
          %921 = vmatpush1.bf16.msra.mxu0 %v882
          %922 = vmatprep.subr.bf16.mxu0 0
          %923 = vmatpush1.bf16.msra.mxu0 %v883
          %924 = vmatprep.subr.bf16.mxu0 0
          %925 = vmatpush1.bf16.msra.mxu0 %v884
          %926 = vmatprep.subr.bf16.mxu0 0
          %927 = vmatpush1.bf16.msra.mxu0 %v885
          %928 = vmatprep.subr.bf16.mxu0 0
          %929 = vmatpush1.bf16.msra.mxu0 %v886
          %930 = vmatprep.subr.bf16.mxu0 0
          %931 = vmatpush1.bf16.msra.mxu0 %v887
          %932 = vmatprep.subr.bf16.mxu0 0
          %933 = vmatpush1.bf16.msra.mxu0 %v888
          %934 = vmatprep.subr.bf16.mxu0 0
          %935 = vmatpush1.bf16.msra.mxu0 %v889
          %936 = vmatprep.subr.bf16.mxu0 0
          %937 = vmatpush1.bf16.msra.mxu0 %v890
          %938 = vmatprep.subr.bf16.mxu0 0
          %939 = vmatpush1.bf16.msra.mxu0 %v891
          %940 = vmatprep.mubr.bf16.mxu0 %v724
          %941 = vmatmul.mubr.bf16.gmra.mrb[0].mxu0 %v723
          %v942 = vpop.f32.mrb[0].mxu0
          %v943 = vadd.f32 0.0, %v942
          %v944 = vpop.f32.mrb[0].mxu0
          %v945 = vpop.f32.mrb[0].mxu0
          %v946 = vadd.f32 0.0, %v945
          %v947 = vpop.f32.mrb[0].mxu0
          %948 = vmatprep.mubr.bf16.mxu0 %v726
          %949 = vmatmul.mubr.bf16.gmra.mrb[0].mxu0 %v725
          %v950 = vpop.f32.mrb[0].mxu0
          %v951 = vadd.f32 0.0, %v950
          %v952 = vpop.f32.mrb[0].mxu0
          %v953 = vpop.f32.mrb[0].mxu0
          %v954 = vadd.f32 0.0, %v953
          %v955 = vpop.f32.mrb[0].mxu0
          %956 = vmatprep.mubr.bf16.mxu0 %v728
          %957 = vmatmul.mubr.bf16.gmra.mrb[0].mxu0 %v727
          %v958 = vpop.f32.mrb[0].mxu0
          %v959 = vadd.f32 0.0, %v958
          %v960 = vpop.f32.mrb[0].mxu0
          %v961 = vpop.f32.mrb[0].mxu0
          %v962 = vadd.f32 0.0, %v961
          %v963 = vpop.f32.mrb[0].mxu0
          %964 = vmatprep.mubr.bf16.mxu0 %v730
          %965 = vmatmul.mubr.bf16.gmra.mrb[0].mxu0 %v729
          %v966 = vpop.f32.mrb[0].mxu0
          %v967 = vadd.f32 0.0, %v966
          %v968 = vpop.f32.mrb[0].mxu0
          %v969 = vpop.f32.mrb[0].mxu0
          %v970 = vadd.f32 0.0, %v969
          %v971 = vpop.f32.mrb[0].mxu0
          %972 = vmatprep.mubr.bf16.mxu0 %v732
          %973 = vmatmul.mubr.bf16.gmra.mrb[0].mxu0 %v731
          %v974 = vpop.f32.mrb[0].mxu0
          %v975 = vadd.f32 0.0, %v974
          %v976 = vpop.f32.mrb[0].mxu0
          %v977 = vpop.f32.mrb[0].mxu0
          %v978 = vadd.f32 0.0, %v977
          %v979 = vpop.f32.mrb[0].mxu0
          %980 = vmatprep.mubr.bf16.mxu0 %v734
          %981 = vmatmul.mubr.bf16.gmra.mrb[0].mxu0 %v733
          %v982 = vpop.f32.mrb[0].mxu0
          %v983 = vadd.f32 0.0, %v982
          %v984 = vpop.f32.mrb[0].mxu0
          %v985 = vpop.f32.mrb[0].mxu0
          %v986 = vadd.f32 0.0, %v985
          %v987 = vpop.f32.mrb[0].mxu0
          %988 = vmatprep.mubr.bf16.mxu0 %v736
          %989 = vmatmul.mubr.bf16.gmra.mrb[0].mxu0 %v735
          %v990 = vpop.f32.mrb[0].mxu0
          %v991 = vadd.f32 0.0, %v990
          %v992 = vpop.f32.mrb[0].mxu0
          %v993 = vpop.f32.mrb[0].mxu0
          %v994 = vadd.f32 0.0, %v993
          %v995 = vpop.f32.mrb[0].mxu0
          %996 = vmatprep.mubr.bf16.mxu0 %v738
          %997 = vmatmul.mubr.bf16.gmra.mrb[0].mxu0 %v737
          %v998 = vpop.f32.mrb[0].mxu0
          %v999 = vadd.f32 0.0, %v998
          %v1000 = vpop.f32.mrb[0].mxu0
          %v1001 = vpop.f32.mrb[0].mxu0
          %v1002 = vadd.f32 0.0, %v1001
          %v1003 = vpop.f32.mrb[0].mxu0
          %1004 = vdwg.mxu0
          %v1005 = vmul.f32 %v943, 0.088388346
          %v1006 = vmul.f32 %v946, 0.088388346
          %v1007 = vmul.f32 %v951, 0.088388346
          %v1008 = vmul.f32 %v954, 0.088388346
          %v1009 = vmul.f32 %v959, 0.088388346
          %v1010 = vmul.f32 %v962, 0.088388346
          %v1011 = vmul.f32 %v967, 0.088388346
          %v1012 = vmul.f32 %v970, 0.088388346
          %v1013 = vmul.f32 %v975, 0.088388346
          %v1014 = vmul.f32 %v978, 0.088388346
          %v1015 = vmul.f32 %v983, 0.088388346
          %v1016 = vmul.f32 %v986, 0.088388346
          %v1017 = vmul.f32 %v991, 0.088388346
          %v1018 = vmul.f32 %v994, 0.088388346
          %v1019 = vmul.f32 %v999, 0.088388346
          %v1020 = vmul.f32 %v1002, 0.088388346
          %v1021 = vpack.c.bf16 %v1006, %v1005
          %v1022 = vpack.c.bf16 %v1008, %v1007
          %v1023 = vpack.c.bf16 %v1010, %v1009
          %v1024 = vpack.c.bf16 %v1012, %v1011
          %v1025 = vpack.c.bf16 %v1014, %v1013
          %v1026 = vpack.c.bf16 %v1016, %v1015
          %v1027 = vpack.c.bf16 %v1018, %v1017
          %v1028 = vpack.c.bf16 %v1020, %v1019
          %s1029 = smul.u32 %s740, 16
          %s1030 = smul.addr %s1029, 4
          %s1031 = scalar_lea.vmem %s586, %s1030 [#allocation5]
          %v1032 = vld [vmem:[%s1031] sm:$0xf]
          %v1033 = vld [vmem:[%s1031 + $0x4] sm:$0xf]
          %v1034 = vld [vmem:[%s1031 + $0x8] sm:$0xf]
          %v1035 = vld [vmem:[%s1031 + $0xc] sm:$0xf]
          %v1036 = vld [vmem:[%s1031 + $0x10] sm:$0xf]
          %v1037 = vld [vmem:[%s1031 + $0x14] sm:$0xf]
          %v1038 = vld [vmem:[%s1031 + $0x18] sm:$0xf]
          %v1039 = vld [vmem:[%s1031 + $0x1c] sm:$0xf]
          %v1040 = vld [vmem:[%s1031 + $0x20] sm:$0xf]
          %v1041 = vld [vmem:[%s1031 + $0x24] sm:$0xf]
          %v1042 = vld [vmem:[%s1031 + $0x28] sm:$0xf]
          %v1043 = vld [vmem:[%s1031 + $0x2c] sm:$0xf]
          %v1044 = vld [vmem:[%s1031 + $0x30] sm:$0xf]
          %v1045 = vld [vmem:[%s1031 + $0x34] sm:$0xf]
          %v1046 = vld [vmem:[%s1031 + $0x38] sm:$0xf]
          %v1047 = vld [vmem:[%s1031 + $0x3c] sm:$0xf]
          %s1048 = smul.addr %s1029, 4
          %s1049 = scalar_lea.vmem %s595, %s1048 [#allocation7]
          %v1050 = vld [vmem:[%s1049] sm:$0xf]
          %v1051 = vld [vmem:[%s1049 + $0x4] sm:$0xf]
          %v1052 = vld [vmem:[%s1049 + $0x8] sm:$0xf]
          %v1053 = vld [vmem:[%s1049 + $0xc] sm:$0xf]
          %v1054 = vld [vmem:[%s1049 + $0x10] sm:$0xf]
          %v1055 = vld [vmem:[%s1049 + $0x14] sm:$0xf]
          %v1056 = vld [vmem:[%s1049 + $0x18] sm:$0xf]
          %v1057 = vld [vmem:[%s1049 + $0x1c] sm:$0xf]
          %v1058 = vld [vmem:[%s1049 + $0x20] sm:$0xf]
          %v1059 = vld [vmem:[%s1049 + $0x24] sm:$0xf]
          %v1060 = vld [vmem:[%s1049 + $0x28] sm:$0xf]
          %v1061 = vld [vmem:[%s1049 + $0x2c] sm:$0xf]
          %v1062 = vld [vmem:[%s1049 + $0x30] sm:$0xf]
          %v1063 = vld [vmem:[%s1049 + $0x34] sm:$0xf]
          %v1064 = vld [vmem:[%s1049 + $0x38] sm:$0xf]
          %v1065 = vld [vmem:[%s1049 + $0x3c] sm:$0xf]
          %v1082 = vunpack.c.l.b16 %v1032
          %v1083 = vunpack.c.l.b16 %v1033
          %v1084 = vunpack.c.l.b16 %v1034
          %v1085 = vunpack.c.l.b16 %v1035
          %v1086 = vunpack.c.l.b16 %v1036
          %v1087 = vunpack.c.l.b16 %v1037
          %v1088 = vunpack.c.l.b16 %v1038
          %v1089 = vunpack.c.l.b16 %v1039
          %v1090 = vunpack.c.l.b16 %v1040
          %v1091 = vunpack.c.l.b16 %v1041
          %v1092 = vunpack.c.l.b16 %v1042
          %v1093 = vunpack.c.l.b16 %v1043
          %v1094 = vunpack.c.l.b16 %v1044
          %v1095 = vunpack.c.l.b16 %v1045
          %v1096 = vunpack.c.l.b16 %v1046
          %v1097 = vunpack.c.l.b16 %v1047
          %v1098 = vpack.c.b16 %v1083, %v1082
          %v1099 = vpack.c.b16 %v1085, %v1084
          %v1100 = vpack.c.b16 %v1087, %v1086
          %v1101 = vpack.c.b16 %v1089, %v1088
          %v1102 = vpack.c.b16 %v1091, %v1090
          %v1103 = vpack.c.b16 %v1093, %v1092
          %v1104 = vpack.c.b16 %v1095, %v1094
          %v1105 = vpack.c.b16 %v1097, %v1096
          %1114 = vmatprep.subr.bf16.mxu0 0
          %1115 = vmatpush1.bf16.xpose.msra.mxu0 %v1098
          %1116 = vmatprep.subr.bf16.mxu0 0
          %1117 = vmatpush1.bf16.xpose.msra.mxu0 %v1099
          %1118 = vmatprep.subr.bf16.mxu0 0
          %1119 = vmatpush1.bf16.xpose.msra.mxu0 %v1100
          %1120 = vmatprep.subr.bf16.mxu0 0
          %1121 = vmatpush1.bf16.xpose.msra.mxu0 %v1101
          %1122 = vmatprep.subr.bf16.mxu0 0
          %1123 = vmatpush1.bf16.xpose.msra.mxu0 %v1102
          %1124 = vmatprep.subr.bf16.mxu0 0
          %1125 = vmatpush1.bf16.xpose.msra.mxu0 %v1103
          %1126 = vmatprep.subr.bf16.mxu0 0
          %1127 = vmatpush1.bf16.xpose.msra.mxu0 %v1104
          %1128 = vmatprep.subr.bf16.mxu0 0
          %1129 = vmatpush1.bf16.xpose.msra.mxu0 %v1105
          %1130 = vmatprep.subr.bf16.mxu0 0
          %1131 = vmatpush1.bf16.xpose.msra.mxu0 0
          %1132 = vmatprep.subr.bf16.mxu0 0
          %1133 = vmatpush1.bf16.xpose.msra.mxu0 0
          %1134 = vmatprep.subr.bf16.mxu0 0
          %1135 = vmatpush1.bf16.xpose.msra.mxu0 0
          %1136 = vmatprep.subr.bf16.mxu0 0
          %1137 = vmatpush1.bf16.xpose.msra.mxu0 0
          %1138 = vmatprep.subr.bf16.mxu0 0
          %1139 = vmatpush1.bf16.xpose.msra.mxu0 0
          %1140 = vmatprep.subr.bf16.mxu0 0
          %1141 = vmatpush1.bf16.xpose.msra.mxu0 0
          %1142 = vmatprep.subr.bf16.mxu0 0
          %1143 = vmatpush1.bf16.xpose.msra.mxu0 0
          %1144 = vmatprep.subr.bf16.mxu0 0
          %1145 = vmatpush1.bf16.xpose.msra.mxu0 0
          %1146 = vmatprep.mubr.bf16.mxu0 0
          %1147 = vmatmul.mubr.bf16.gmra.mrb[0].mxu0 %v1021
          %v1148 = vpop.f32.mrb[0].mxu0
          %v1149 = vadd.f32 0.0, %v1148
          %v1150 = vpop.f32.mrb[0].mxu0
          %v1151 = vpop.f32.mrb[0].mxu0
          %v1152 = vadd.f32 0.0, %v1151
          %v1153 = vpop.f32.mrb[0].mxu0
          %1154 = vmatprep.mubr.bf16.mxu0 0
          %1155 = vmatmul.mubr.bf16.gmra.mrb[0].mxu0 %v1022
          %v1156 = vpop.f32.mrb[0].mxu0
          %v1157 = vadd.f32 0.0, %v1156
          %v1158 = vpop.f32.mrb[0].mxu0
          %v1159 = vpop.f32.mrb[0].mxu0
          %v1160 = vadd.f32 0.0, %v1159
          %v1161 = vpop.f32.mrb[0].mxu0
          %1162 = vmatprep.mubr.bf16.mxu0 0
          %1163 = vmatmul.mubr.bf16.gmra.mrb[0].mxu0 %v1023
          %v1164 = vpop.f32.mrb[0].mxu0
          %v1165 = vadd.f32 0.0, %v1164
          %v1166 = vpop.f32.mrb[0].mxu0
          %v1167 = vpop.f32.mrb[0].mxu0
          %v1168 = vadd.f32 0.0, %v1167
          %v1169 = vpop.f32.mrb[0].mxu0
          %1170 = vmatprep.mubr.bf16.mxu0 0
          %1171 = vmatmul.mubr.bf16.gmra.mrb[0].mxu0 %v1024
          %v1172 = vpop.f32.mrb[0].mxu0
          %v1173 = vadd.f32 0.0, %v1172
          %v1174 = vpop.f32.mrb[0].mxu0
          %v1175 = vpop.f32.mrb[0].mxu0
          %v1176 = vadd.f32 0.0, %v1175
          %v1177 = vpop.f32.mrb[0].mxu0
          %1178 = vmatprep.mubr.bf16.mxu0 0
          %1179 = vmatmul.mubr.bf16.gmra.mrb[0].mxu0 %v1025
          %v1180 = vpop.f32.mrb[0].mxu0
          %v1181 = vadd.f32 0.0, %v1180
          %v1182 = vpop.f32.mrb[0].mxu0
          %v1183 = vpop.f32.mrb[0].mxu0
          %v1184 = vadd.f32 0.0, %v1183
          %v1185 = vpop.f32.mrb[0].mxu0
          %1186 = vmatprep.mubr.bf16.mxu0 0
          %1187 = vmatmul.mubr.bf16.gmra.mrb[0].mxu0 %v1026
          %v1188 = vpop.f32.mrb[0].mxu0
          %v1189 = vadd.f32 0.0, %v1188
          %v1190 = vpop.f32.mrb[0].mxu0
          %v1191 = vpop.f32.mrb[0].mxu0
          %v1192 = vadd.f32 0.0, %v1191
          %v1193 = vpop.f32.mrb[0].mxu0
          %1194 = vmatprep.mubr.bf16.mxu0 0
          %1195 = vmatmul.mubr.bf16.gmra.mrb[0].mxu0 %v1027
          %v1196 = vpop.f32.mrb[0].mxu0
          %v1197 = vadd.f32 0.0, %v1196
          %v1198 = vpop.f32.mrb[0].mxu0
          %v1199 = vpop.f32.mrb[0].mxu0
          %v1200 = vadd.f32 0.0, %v1199
          %v1201 = vpop.f32.mrb[0].mxu0
          %1202 = vmatprep.mubr.bf16.mxu0 0
          %1203 = vmatmul.mubr.bf16.gmra.mrb[0].mxu0 %v1028
          %v1204 = vpop.f32.mrb[0].mxu0
          %v1205 = vadd.f32 0.0, %v1204
          %v1206 = vpop.f32.mrb[0].mxu0
          %v1207 = vpop.f32.mrb[0].mxu0
          %v1208 = vadd.f32 0.0, %v1207
          %v1209 = vpop.f32.mrb[0].mxu0
          %1210 = vdwg.mxu0
          %1211 = vmax.xlane.f32.xlu0 %v1149
          %v1212 = vpop.xlane.xlu0 %1211
          %1213 = vmax.xlane.f32.xlu0 %v1152
          %v1214 = vpop.xlane.xlu0 %1213
          %1215 = vmax.xlane.f32.xlu0 %v1157
          %v1216 = vpop.xlane.xlu0 %1215
          %1217 = vmax.xlane.f32.xlu0 %v1160
          %v1218 = vpop.xlane.xlu0 %1217
          %1219 = vmax.xlane.f32.xlu0 %v1165
          %v1220 = vpop.xlane.xlu0 %1219
          %1221 = vmax.xlane.f32.xlu0 %v1168
          %v1222 = vpop.xlane.xlu0 %1221
          %1223 = vmax.xlane.f32.xlu0 %v1173
          %v1224 = vpop.xlane.xlu0 %1223
          %1225 = vmax.xlane.f32.xlu0 %v1176
          %v1226 = vpop.xlane.xlu0 %1225
          %1227 = vmax.xlane.f32.xlu0 %v1181
          %v1228 = vpop.xlane.xlu0 %1227
          %1229 = vmax.xlane.f32.xlu0 %v1184
          %v1230 = vpop.xlane.xlu0 %1229
          %1231 = vmax.xlane.f32.xlu0 %v1189
          %v1232 = vpop.xlane.xlu0 %1231
          %1233 = vmax.xlane.f32.xlu0 %v1192
          %v1234 = vpop.xlane.xlu0 %1233
          %1235 = vmax.xlane.f32.xlu0 %v1197
          %v1236 = vpop.xlane.xlu0 %1235
          %1237 = vmax.xlane.f32.xlu0 %v1200
          %v1238 = vpop.xlane.xlu0 %1237
          %1239 = vmax.xlane.f32.xlu0 %v1205
          %v1240 = vpop.xlane.xlu0 %1239
          %1241 = vmax.xlane.f32.xlu0 %v1208
          %v1242 = vpop.xlane.xlu0 %1241
          %v1243 = vsub.f32 %v1149, %v1212
          %v1244 = vsub.f32 %v1152, %v1214
          %v1245 = vsub.f32 %v1157, %v1216
          %v1246 = vsub.f32 %v1160, %v1218
          %v1247 = vsub.f32 %v1165, %v1220
          %v1248 = vsub.f32 %v1168, %v1222
          %v1249 = vsub.f32 %v1173, %v1224
          %v1250 = vsub.f32 %v1176, %v1226
          %v1251 = vsub.f32 %v1181, %v1228
          %v1252 = vsub.f32 %v1184, %v1230
          %v1253 = vsub.f32 %v1189, %v1232
          %v1254 = vsub.f32 %v1192, %v1234
          %v1255 = vsub.f32 %v1197, %v1236
          %v1256 = vsub.f32 %v1200, %v1238
          %v1257 = vsub.f32 %v1205, %v1240
          %v1258 = vsub.f32 %v1208, %v1242
          %v1259 = vmul.f32 %v1243, 1.442695
          %v1260 = vpow.pop %v1259
          %v1261 = vmul.f32 %v1244, 1.442695
          %v1262 = vpow.pop %v1261
          %v1263 = vmul.f32 %v1245, 1.442695
          %v1264 = vpow.pop %v1263
          %v1265 = vmul.f32 %v1246, 1.442695
          %v1266 = vpow.pop %v1265
          %v1267 = vmul.f32 %v1247, 1.442695
          %v1268 = vpow.pop %v1267
          %v1269 = vmul.f32 %v1248, 1.442695
          %v1270 = vpow.pop %v1269
          %v1271 = vmul.f32 %v1249, 1.442695
          %v1272 = vpow.pop %v1271
          %v1273 = vmul.f32 %v1250, 1.442695
          %v1274 = vpow.pop %v1273
          %v1275 = vmul.f32 %v1251, 1.442695
          %v1276 = vpow.pop %v1275
          %v1277 = vmul.f32 %v1252, 1.442695
          %v1278 = vpow.pop %v1277
          %v1279 = vmul.f32 %v1253, 1.442695
          %v1280 = vpow.pop %v1279
          %v1281 = vmul.f32 %v1254, 1.442695
          %v1282 = vpow.pop %v1281
          %v1283 = vmul.f32 %v1255, 1.442695
          %v1284 = vpow.pop %v1283
          %v1285 = vmul.f32 %v1256, 1.442695
          %v1286 = vpow.pop %v1285
          %v1287 = vmul.f32 %v1257, 1.442695
          %v1288 = vpow.pop %v1287
          %v1289 = vmul.f32 %v1258, 1.442695
          %v1290 = vpow.pop %v1289
          %1291 = vadd.xlane.f32.xlu0 %v1260
          %v1292 = vpop.xlane.xlu0 %1291
          %1293 = vadd.xlane.f32.xlu0 %v1262
          %v1294 = vpop.xlane.xlu0 %1293
          %1295 = vadd.xlane.f32.xlu0 %v1264
          %v1296 = vpop.xlane.xlu0 %1295
          %1297 = vadd.xlane.f32.xlu0 %v1266
          %v1298 = vpop.xlane.xlu0 %1297
          %1299 = vadd.xlane.f32.xlu0 %v1268
          %v1300 = vpop.xlane.xlu0 %1299
          %1301 = vadd.xlane.f32.xlu0 %v1270
          %v1302 = vpop.xlane.xlu0 %1301
          %1303 = vadd.xlane.f32.xlu0 %v1272
          %v1304 = vpop.xlane.xlu0 %1303
          %1305 = vadd.xlane.f32.xlu0 %v1274
          %v1306 = vpop.xlane.xlu0 %1305
          %1307 = vadd.xlane.f32.xlu0 %v1276
          %v1308 = vpop.xlane.xlu0 %1307
          %1309 = vadd.xlane.f32.xlu0 %v1278
          %v1310 = vpop.xlane.xlu0 %1309
          %1311 = vadd.xlane.f32.xlu0 %v1280
          %v1312 = vpop.xlane.xlu0 %1311
          %1313 = vadd.xlane.f32.xlu0 %v1282
          %v1314 = vpop.xlane.xlu0 %1313
          %1315 = vadd.xlane.f32.xlu0 %v1284
          %v1316 = vpop.xlane.xlu0 %1315
          %1317 = vadd.xlane.f32.xlu0 %v1286
          %v1318 = vpop.xlane.xlu0 %1317
          %1319 = vadd.xlane.f32.xlu0 %v1288
          %v1320 = vpop.xlane.xlu0 %1319
          %1321 = vadd.xlane.f32.xlu0 %v1290
          %v1322 = vpop.xlane.xlu0 %1321
          %v1323 = vpack.c.bf16 %v1262, %v1260
          %v1324 = vpack.c.bf16 %v1266, %v1264
          %v1325 = vpack.c.bf16 %v1270, %v1268
          %v1326 = vpack.c.bf16 %v1274, %v1272
          %v1327 = vpack.c.bf16 %v1278, %v1276
          %v1328 = vpack.c.bf16 %v1282, %v1280
          %v1329 = vpack.c.bf16 %v1286, %v1284
          %v1330 = vpack.c.bf16 %v1290, %v1288
          %v1347 = vunpack.c.l.b16 %v1050
          %v1348 = vunpack.c.l.b16 %v1051
          %v1349 = vunpack.c.l.b16 %v1052
          %v1350 = vunpack.c.l.b16 %v1053
          %v1351 = vunpack.c.l.b16 %v1054
          %v1352 = vunpack.c.l.b16 %v1055
          %v1353 = vunpack.c.l.b16 %v1056
          %v1354 = vunpack.c.l.b16 %v1057
          %v1355 = vunpack.c.l.b16 %v1058
          %v1356 = vunpack.c.l.b16 %v1059
          %v1357 = vunpack.c.l.b16 %v1060
          %v1358 = vunpack.c.l.b16 %v1061
          %v1359 = vunpack.c.l.b16 %v1062
          %v1360 = vunpack.c.l.b16 %v1063
          %v1361 = vunpack.c.l.b16 %v1064
          %v1362 = vunpack.c.l.b16 %v1065
          %v1363 = vpack.c.b16 %v1348, %v1347
          %v1364 = vpack.c.b16 %v1350, %v1349
          %v1365 = vpack.c.b16 %v1352, %v1351
          %v1366 = vpack.c.b16 %v1354, %v1353
          %v1367 = vpack.c.b16 %v1356, %v1355
          %v1368 = vpack.c.b16 %v1358, %v1357
          %v1369 = vpack.c.b16 %v1360, %v1359
          %v1370 = vpack.c.b16 %v1362, %v1361
          %1379 = vmatprep.subr.bf16.mxu0 0
          %1380 = vmatpush1.bf16.msra.mxu0 %v1363
          %1381 = vmatprep.subr.bf16.mxu0 0
          %1382 = vmatpush1.bf16.msra.mxu0 %v1364
          %1383 = vmatprep.subr.bf16.mxu0 0
          %1384 = vmatpush1.bf16.msra.mxu0 %v1365
          %1385 = vmatprep.subr.bf16.mxu0 0
          %1386 = vmatpush1.bf16.msra.mxu0 %v1366
          %1387 = vmatprep.subr.bf16.mxu0 0
          %1388 = vmatpush1.bf16.msra.mxu0 %v1367
          %1389 = vmatprep.subr.bf16.mxu0 0
          %1390 = vmatpush1.bf16.msra.mxu0 %v1368
          %1391 = vmatprep.subr.bf16.mxu0 0
          %1392 = vmatpush1.bf16.msra.mxu0 %v1369
          %1393 = vmatprep.subr.bf16.mxu0 0
          %1394 = vmatpush1.bf16.msra.mxu0 %v1370
          %1395 = vmatprep.subr.bf16.mxu0 0
          %1396 = vmatpush1.bf16.msra.mxu0 0
          %1397 = vmatprep.subr.bf16.mxu0 0
          %1398 = vmatpush1.bf16.msra.mxu0 0
          %1399 = vmatprep.subr.bf16.mxu0 0
          %1400 = vmatpush1.bf16.msra.mxu0 0
          %1401 = vmatprep.subr.bf16.mxu0 0
          %1402 = vmatpush1.bf16.msra.mxu0 0
          %1403 = vmatprep.subr.bf16.mxu0 0
          %1404 = vmatpush1.bf16.msra.mxu0 0
          %1405 = vmatprep.subr.bf16.mxu0 0
          %1406 = vmatpush1.bf16.msra.mxu0 0
          %1407 = vmatprep.subr.bf16.mxu0 0
          %1408 = vmatpush1.bf16.msra.mxu0 0
          %1409 = vmatprep.subr.bf16.mxu0 0
          %1410 = vmatpush1.bf16.msra.mxu0 0
          %1411 = vmatprep.mubr.bf16.mxu0 0
          %1412 = vmatmul.mubr.bf16.gmra.mrb[0].mxu0 %v1323
          %v1413 = vpop.f32.mrb[0].mxu0
          %v1414 = vadd.f32 0.0, %v1413
          %v1415 = vpop.f32.mrb[0].mxu0
          %v1416 = vpop.f32.mrb[0].mxu0
          %v1417 = vadd.f32 0.0, %v1416
          %v1418 = vpop.f32.mrb[0].mxu0
          %1419 = vmatprep.mubr.bf16.mxu0 0
          %1420 = vmatmul.mubr.bf16.gmra.mrb[0].mxu0 %v1324
          %v1421 = vpop.f32.mrb[0].mxu0
          %v1422 = vadd.f32 0.0, %v1421
          %v1423 = vpop.f32.mrb[0].mxu0
          %v1424 = vpop.f32.mrb[0].mxu0
          %v1425 = vadd.f32 0.0, %v1424
          %v1426 = vpop.f32.mrb[0].mxu0
          %1427 = vmatprep.mubr.bf16.mxu0 0
          %1428 = vmatmul.mubr.bf16.gmra.mrb[0].mxu0 %v1325
          %v1429 = vpop.f32.mrb[0].mxu0
          %v1430 = vadd.f32 0.0, %v1429
          %v1431 = vpop.f32.mrb[0].mxu0
          %v1432 = vpop.f32.mrb[0].mxu0
          %v1433 = vadd.f32 0.0, %v1432
          %v1434 = vpop.f32.mrb[0].mxu0
          %1435 = vmatprep.mubr.bf16.mxu0 0
          %1436 = vmatmul.mubr.bf16.gmra.mrb[0].mxu0 %v1326
          %v1437 = vpop.f32.mrb[0].mxu0
          %v1438 = vadd.f32 0.0, %v1437
          %v1439 = vpop.f32.mrb[0].mxu0
          %v1440 = vpop.f32.mrb[0].mxu0
          %v1441 = vadd.f32 0.0, %v1440
          %v1442 = vpop.f32.mrb[0].mxu0
          %1443 = vmatprep.mubr.bf16.mxu0 0
          %1444 = vmatmul.mubr.bf16.gmra.mrb[0].mxu0 %v1327
          %v1445 = vpop.f32.mrb[0].mxu0
          %v1446 = vadd.f32 0.0, %v1445
          %v1447 = vpop.f32.mrb[0].mxu0
          %v1448 = vpop.f32.mrb[0].mxu0
          %v1449 = vadd.f32 0.0, %v1448
          %v1450 = vpop.f32.mrb[0].mxu0
          %1451 = vmatprep.mubr.bf16.mxu0 0
          %1452 = vmatmul.mubr.bf16.gmra.mrb[0].mxu0 %v1328
          %v1453 = vpop.f32.mrb[0].mxu0
          %v1454 = vadd.f32 0.0, %v1453
          %v1455 = vpop.f32.mrb[0].mxu0
          %v1456 = vpop.f32.mrb[0].mxu0
          %v1457 = vadd.f32 0.0, %v1456
          %v1458 = vpop.f32.mrb[0].mxu0
          %1459 = vmatprep.mubr.bf16.mxu0 0
          %1460 = vmatmul.mubr.bf16.gmra.mrb[0].mxu0 %v1329
          %v1461 = vpop.f32.mrb[0].mxu0
          %v1462 = vadd.f32 0.0, %v1461
          %v1463 = vpop.f32.mrb[0].mxu0
          %v1464 = vpop.f32.mrb[0].mxu0
          %v1465 = vadd.f32 0.0, %v1464
          %v1466 = vpop.f32.mrb[0].mxu0
          %1467 = vmatprep.mubr.bf16.mxu0 0
          %1468 = vmatmul.mubr.bf16.gmra.mrb[0].mxu0 %v1330
          %v1469 = vpop.f32.mrb[0].mxu0
          %v1470 = vadd.f32 0.0, %v1469
          %v1471 = vpop.f32.mrb[0].mxu0
          %v1472 = vpop.f32.mrb[0].mxu0
          %v1473 = vadd.f32 0.0, %v1472
          %v1474 = vpop.f32.mrb[0].mxu0
          %1475 = vdwg.mxu0
          %v1476 = vrcp.pop %v1292
          %v1477 = vrcp.pop %v1294
          %v1478 = vrcp.pop %v1296
          %v1479 = vrcp.pop %v1298
          %v1480 = vrcp.pop %v1300
          %v1481 = vrcp.pop %v1302
          %v1482 = vrcp.pop %v1304
          %v1483 = vrcp.pop %v1306
          %v1484 = vrcp.pop %v1308
          %v1485 = vrcp.pop %v1310
          %v1486 = vrcp.pop %v1312
          %v1487 = vrcp.pop %v1314
          %v1488 = vrcp.pop %v1316
          %v1489 = vrcp.pop %v1318
          %v1490 = vrcp.pop %v1320
          %v1491 = vrcp.pop %v1322
          %v1492 = vmul.f32 %v1414, %v1476
          %v1493 = vmul.f32 %v1417, %v1477
          %v1494 = vmul.f32 %v1422, %v1478
          %v1495 = vmul.f32 %v1425, %v1479
          %v1496 = vmul.f32 %v1430, %v1480
          %v1497 = vmul.f32 %v1433, %v1481
          %v1498 = vmul.f32 %v1438, %v1482
          %v1499 = vmul.f32 %v1441, %v1483
          %v1500 = vmul.f32 %v1446, %v1484
          %v1501 = vmul.f32 %v1449, %v1485
          %v1502 = vmul.f32 %v1454, %v1486
          %v1503 = vmul.f32 %v1457, %v1487
          %v1504 = vmul.f32 %v1462, %v1488
          %v1505 = vmul.f32 %v1465, %v1489
          %v1506 = vmul.f32 %v1470, %v1490
          %v1507 = vmul.f32 %v1473, %v1491
          %v1508 = vpack.c.bf16 %v1493, %v1492
          %v1509 = vpack.c.bf16 %v1495, %v1494
          %v1510 = vpack.c.bf16 %v1497, %v1496
          %v1511 = vpack.c.bf16 %v1499, %v1498
          %v1512 = vpack.c.bf16 %v1501, %v1500
          %v1513 = vpack.c.bf16 %v1503, %v1502
          %v1514 = vpack.c.bf16 %v1505, %v1504
          %v1515 = vpack.c.bf16 %v1507, %v1506
          %s1516 = smul.addr %s777, 4
          %s1517 = scalar_lea.vmem [#allocation10], %s1516
          %v1518 = vld [vmem:[%s1517] sm:$0xff]
          %v1519 = vld [vmem:[%s1517 + $0x8] sm:$0xff]
          %v1520 = vld [vmem:[%s1517 + $0x10] sm:$0xff]
          %v1521 = vld [vmem:[%s1517 + $0x18] sm:$0xff]
          %v1522 = vld [vmem:[%s1517 + $0x20] sm:$0xff]
          %v1523 = vld [vmem:[%s1517 + $0x28] sm:$0xff]
          %v1524 = vld [vmem:[%s1517 + $0x30] sm:$0xff]
          %v1525 = vld [vmem:[%s1517 + $0x38] sm:$0xff]
          %v1526 = vld [vmem:[%s1517 + $0x40] sm:$0xff]
          %v1527 = vld [vmem:[%s1517 + $0x48] sm:$0xff]
          %v1528 = vld [vmem:[%s1517 + $0x50] sm:$0xff]
          %v1529 = vld [vmem:[%s1517 + $0x58] sm:$0xff]
          %v1530 = vld [vmem:[%s1517 + $0x60] sm:$0xff]
          %v1531 = vld [vmem:[%s1517 + $0x68] sm:$0xff]
          %v1532 = vld [vmem:[%s1517 + $0x70] sm:$0xff]
          %v1533 = vld [vmem:[%s1517 + $0x78] sm:$0xff]
          %v1550 = vunpack.c.l.b16 %v1518
          %v1551 = vunpack.c.h.b16 %v1518
          %v1552 = vunpack.c.l.b16 %v1519
          %v1553 = vunpack.c.h.b16 %v1519
          %v1554 = vunpack.c.l.b16 %v1520
          %v1555 = vunpack.c.h.b16 %v1520
          %v1556 = vunpack.c.l.b16 %v1521
          %v1557 = vunpack.c.h.b16 %v1521
          %v1558 = vunpack.c.l.b16 %v1522
          %v1559 = vunpack.c.h.b16 %v1522
          %v1560 = vunpack.c.l.b16 %v1523
          %v1561 = vunpack.c.h.b16 %v1523
          %v1562 = vunpack.c.l.b16 %v1524
          %v1563 = vunpack.c.h.b16 %v1524
          %v1564 = vunpack.c.l.b16 %v1525
          %v1565 = vunpack.c.h.b16 %v1525
          %v1566 = vunpack.c.l.b16 %v1526
          %v1567 = vunpack.c.h.b16 %v1526
          %v1568 = vunpack.c.l.b16 %v1527
          %v1569 = vunpack.c.h.b16 %v1527
          %v1570 = vunpack.c.l.b16 %v1528
          %v1571 = vunpack.c.h.b16 %v1528
          %v1572 = vunpack.c.l.b16 %v1529
          %v1573 = vunpack.c.h.b16 %v1529
          %v1574 = vunpack.c.l.b16 %v1530
          %v1575 = vunpack.c.h.b16 %v1530
          %v1576 = vunpack.c.l.b16 %v1531
          %v1577 = vunpack.c.h.b16 %v1531
          %v1578 = vunpack.c.l.b16 %v1532
          %v1579 = vunpack.c.h.b16 %v1532
          %v1580 = vunpack.c.l.b16 %v1533
          %v1581 = vunpack.c.h.b16 %v1533
          %v1582 = vpack.c.b16 %v1552, %v1550
          %v1583 = vpack.c.b16 %v1553, %v1551
          %v1584 = vpack.c.b16 %v1556, %v1554
          %v1585 = vpack.c.b16 %v1557, %v1555
          %v1586 = vpack.c.b16 %v1560, %v1558
          %v1587 = vpack.c.b16 %v1561, %v1559
          %v1588 = vpack.c.b16 %v1564, %v1562
          %v1589 = vpack.c.b16 %v1565, %v1563
          %v1590 = vpack.c.b16 %v1568, %v1566
          %v1591 = vpack.c.b16 %v1569, %v1567
          %v1592 = vpack.c.b16 %v1572, %v1570
          %v1593 = vpack.c.b16 %v1573, %v1571
          %v1594 = vpack.c.b16 %v1576, %v1574
          %v1595 = vpack.c.b16 %v1577, %v1575
          %v1596 = vpack.c.b16 %v1580, %v1578
          %v1597 = vpack.c.b16 %v1581, %v1579
          %1614 = vmatprep.subr.bf16.mxu0 %v1583
          %1615 = vmatpush1.bf16.msra.mxu0 %v1582
          %1616 = vmatprep.subr.bf16.mxu0 %v1585
          %1617 = vmatpush1.bf16.msra.mxu0 %v1584
          %1618 = vmatprep.subr.bf16.mxu0 %v1587
          %1619 = vmatpush1.bf16.msra.mxu0 %v1586
          %1620 = vmatprep.subr.bf16.mxu0 %v1589
          %1621 = vmatpush1.bf16.msra.mxu0 %v1588
          %1622 = vmatprep.subr.bf16.mxu0 %v1591
          %1623 = vmatpush1.bf16.msra.mxu0 %v1590
          %1624 = vmatprep.subr.bf16.mxu0 %v1593
          %1625 = vmatpush1.bf16.msra.mxu0 %v1592
          %1626 = vmatprep.subr.bf16.mxu0 %v1595
          %1627 = vmatpush1.bf16.msra.mxu0 %v1594
          %1628 = vmatprep.subr.bf16.mxu0 %v1597
          %1629 = vmatpush1.bf16.msra.mxu0 %v1596
          %1630 = vmatprep.subr.bf16.mxu0 0
          %1631 = vmatpush1.bf16.msra.mxu0 0
          %1632 = vmatprep.subr.bf16.mxu0 0
          %1633 = vmatpush1.bf16.msra.mxu0 0
          %1634 = vmatprep.subr.bf16.mxu0 0
          %1635 = vmatpush1.bf16.msra.mxu0 0
          %1636 = vmatprep.subr.bf16.mxu0 0
          %1637 = vmatpush1.bf16.msra.mxu0 0
          %1638 = vmatprep.subr.bf16.mxu0 0
          %1639 = vmatpush1.bf16.msra.mxu0 0
          %1640 = vmatprep.subr.bf16.mxu0 0
          %1641 = vmatpush1.bf16.msra.mxu0 0
          %1642 = vmatprep.subr.bf16.mxu0 0
          %1643 = vmatpush1.bf16.msra.mxu0 0
          %1644 = vmatprep.subr.bf16.mxu0 0
          %1645 = vmatpush1.bf16.msra.mxu0 0
          %1646 = vmatprep.mubr.bf16.mxu0 0
          %1647 = vmatmul.mubr.bf16.gmra.mrb[0].mxu0 %v1508
          %v1648 = vpop.f32.mrb[0].mxu0
          %v1649 = vadd.f32 0.0, %v1648
          %v1650 = vpop.f32.mrb[0].mxu0
          %v1651 = vadd.f32 0.0, %v1650
          %v1652 = vpop.f32.mrb[0].mxu0
          %v1653 = vadd.f32 0.0, %v1652
          %v1654 = vpop.f32.mrb[0].mxu0
          %v1655 = vadd.f32 0.0, %v1654
          %1656 = vmatprep.mubr.bf16.mxu0 0
          %1657 = vmatmul.mubr.bf16.gmra.mrb[0].mxu0 %v1509
          %v1658 = vpop.f32.mrb[0].mxu0
          %v1659 = vadd.f32 0.0, %v1658
          %v1660 = vpop.f32.mrb[0].mxu0
          %v1661 = vadd.f32 0.0, %v1660
          %v1662 = vpop.f32.mrb[0].mxu0
          %v1663 = vadd.f32 0.0, %v1662
          %v1664 = vpop.f32.mrb[0].mxu0
          %v1665 = vadd.f32 0.0, %v1664
          %1666 = vmatprep.mubr.bf16.mxu0 0
          %1667 = vmatmul.mubr.bf16.gmra.mrb[0].mxu0 %v1510
          %v1668 = vpop.f32.mrb[0].mxu0
          %v1669 = vadd.f32 0.0, %v1668
          %v1670 = vpop.f32.mrb[0].mxu0
          %v1671 = vadd.f32 0.0, %v1670
          %v1672 = vpop.f32.mrb[0].mxu0
          %v1673 = vadd.f32 0.0, %v1672
          %v1674 = vpop.f32.mrb[0].mxu0
          %v1675 = vadd.f32 0.0, %v1674
          %1676 = vmatprep.mubr.bf16.mxu0 0
          %1677 = vmatmul.mubr.bf16.gmra.mrb[0].mxu0 %v1511
          %v1678 = vpop.f32.mrb[0].mxu0
          %v1679 = vadd.f32 0.0, %v1678
          %v1680 = vpop.f32.mrb[0].mxu0
          %v1681 = vadd.f32 0.0, %v1680
          %v1682 = vpop.f32.mrb[0].mxu0
          %v1683 = vadd.f32 0.0, %v1682
          %v1684 = vpop.f32.mrb[0].mxu0
          %v1685 = vadd.f32 0.0, %v1684
          %1686 = vmatprep.mubr.bf16.mxu0 0
          %1687 = vmatmul.mubr.bf16.gmra.mrb[0].mxu0 %v1512
          %v1688 = vpop.f32.mrb[0].mxu0
          %v1689 = vadd.f32 0.0, %v1688
          %v1690 = vpop.f32.mrb[0].mxu0
          %v1691 = vadd.f32 0.0, %v1690
          %v1692 = vpop.f32.mrb[0].mxu0
          %v1693 = vadd.f32 0.0, %v1692
          %v1694 = vpop.f32.mrb[0].mxu0
          %v1695 = vadd.f32 0.0, %v1694
          %1696 = vmatprep.mubr.bf16.mxu0 0
          %1697 = vmatmul.mubr.bf16.gmra.mrb[0].mxu0 %v1513
          %v1698 = vpop.f32.mrb[0].mxu0
          %v1699 = vadd.f32 0.0, %v1698
          %v1700 = vpop.f32.mrb[0].mxu0
          %v1701 = vadd.f32 0.0, %v1700
          %v1702 = vpop.f32.mrb[0].mxu0
          %v1703 = vadd.f32 0.0, %v1702
          %v1704 = vpop.f32.mrb[0].mxu0
          %v1705 = vadd.f32 0.0, %v1704
          %1706 = vmatprep.mubr.bf16.mxu0 0
          %1707 = vmatmul.mubr.bf16.gmra.mrb[0].mxu0 %v1514
          %v1708 = vpop.f32.mrb[0].mxu0
          %v1709 = vadd.f32 0.0, %v1708
          %v1710 = vpop.f32.mrb[0].mxu0
          %v1711 = vadd.f32 0.0, %v1710
          %v1712 = vpop.f32.mrb[0].mxu0
          %v1713 = vadd.f32 0.0, %v1712
          %v1714 = vpop.f32.mrb[0].mxu0
          %v1715 = vadd.f32 0.0, %v1714
          %1716 = vmatprep.mubr.bf16.mxu0 0
          %1717 = vmatmul.mubr.bf16.gmra.mrb[0].mxu0 %v1515
          %v1718 = vpop.f32.mrb[0].mxu0
          %v1719 = vadd.f32 0.0, %v1718
          %v1720 = vpop.f32.mrb[0].mxu0
          %v1721 = vadd.f32 0.0, %v1720
          %v1722 = vpop.f32.mrb[0].mxu0
          %v1723 = vadd.f32 0.0, %v1722
          %v1724 = vpop.f32.mrb[0].mxu0
          %v1725 = vadd.f32 0.0, %v1724
          %1726 = vdwg.mxu0
          %v1727 = vadd.f32 %v745, %v1649
          %v1728 = vadd.f32 %v746, %v1651
          %v1729 = vadd.f32 %v747, %v1653
          %v1730 = vadd.f32 %v748, %v1655
          %v1731 = vadd.f32 %v749, %v1659
          %v1732 = vadd.f32 %v750, %v1661
          %v1733 = vadd.f32 %v751, %v1663
          %v1734 = vadd.f32 %v752, %v1665
          %v1735 = vadd.f32 %v753, %v1669
          %v1736 = vadd.f32 %v754, %v1671
          %v1737 = vadd.f32 %v755, %v1673
          %v1738 = vadd.f32 %v756, %v1675
          %v1739 = vadd.f32 %v757, %v1679
          %v1740 = vadd.f32 %v758, %v1681
          %v1741 = vadd.f32 %v759, %v1683
          %v1742 = vadd.f32 %v760, %v1685
          %v1743 = vadd.f32 %v761, %v1689
          %v1744 = vadd.f32 %v762, %v1691
          %v1745 = vadd.f32 %v763, %v1693
          %v1746 = vadd.f32 %v764, %v1695
          %v1747 = vadd.f32 %v765, %v1699
          %v1748 = vadd.f32 %v766, %v1701
          %v1749 = vadd.f32 %v767, %v1703
          %v1750 = vadd.f32 %v768, %v1705
          %v1751 = vadd.f32 %v769, %v1709
          %v1752 = vadd.f32 %v770, %v1711
          %v1753 = vadd.f32 %v771, %v1713
          %v1754 = vadd.f32 %v772, %v1715
          %v1755 = vadd.f32 %v773, %v1719
          %v1756 = vadd.f32 %v774, %v1721
          %v1757 = vadd.f32 %v775, %v1723
          %v1758 = vadd.f32 %v776, %v1725
        $region129: #{tpu_custom_call.1} parent=71 // loop_footer
          %s744 = sadd.s32 1, %s740
        $region130: #{tpu_custom_call.1} parent=71 // loop_footer_branch
          %739 = sbr.rel target = $region126
        $region131: #{tpu_custom_call.1} parent=71 // loop_exit
          _
        %v1759 = vadd.f32 %v691, %v745
        %v1760 = vadd.f32 %v692, %v746
        %v1761 = vadd.f32 %v693, %v747
        %v1762 = vadd.f32 %v694, %v748
        %v1763 = vadd.f32 %v695, %v749
        %v1764 = vadd.f32 %v696, %v750
        %v1765 = vadd.f32 %v697, %v751
        %v1766 = vadd.f32 %v698, %v752
        %v1767 = vadd.f32 %v699, %v753
        %v1768 = vadd.f32 %v700, %v754
        %v1769 = vadd.f32 %v701, %v755
        %v1770 = vadd.f32 %v702, %v756
        %v1771 = vadd.f32 %v703, %v757
        %v1772 = vadd.f32 %v704, %v758
        %v1773 = vadd.f32 %v705, %v759
        %v1774 = vadd.f32 %v706, %v760
        %v1775 = vadd.f32 %v707, %v761
        %v1776 = vadd.f32 %v708, %v762
        %v1777 = vadd.f32 %v709, %v763
        %v1778 = vadd.f32 %v710, %v764
        %v1779 = vadd.f32 %v711, %v765
        %v1780 = vadd.f32 %v712, %v766
        %v1781 = vadd.f32 %v713, %v767
        %v1782 = vadd.f32 %v714, %v768
        %v1783 = vadd.f32 %v715, %v769
        %v1784 = vadd.f32 %v716, %v770
        %v1785 = vadd.f32 %v717, %v771
        %v1786 = vadd.f32 %v718, %v772
        %v1787 = vadd.f32 %v719, %v773
        %v1788 = vadd.f32 %v720, %v774
        %v1789 = vadd.f32 %v721, %v775
        %v1790 = vadd.f32 %v722, %v776
        %v1791 = vld [vmem:[#allocation11] sm:$0x3]
        %v1792 = vld [vmem:[#allocation13] sm:$0x3]
        %v1793 = vadd.f32 %v1759, %v1760
        %1794 = vadd.xlane.f32.xlu0 %v1793
        %v1795 = vpop.xlane.xlu0 %1794
        %v1796 = vadd.f32 %v1761, %v1762
        %1797 = vadd.xlane.f32.xlu0 %v1796
        %v1798 = vpop.xlane.xlu0 %1797
        %v1799 = vadd.f32 %v1763, %v1764
        %1800 = vadd.xlane.f32.xlu0 %v1799
        %v1801 = vpop.xlane.xlu0 %1800
        %v1802 = vadd.f32 %v1765, %v1766
        %1803 = vadd.xlane.f32.xlu0 %v1802
        %v1804 = vpop.xlane.xlu0 %1803
        %v1805 = vadd.f32 %v1767, %v1768
        %1806 = vadd.xlane.f32.xlu0 %v1805
        %v1807 = vpop.xlane.xlu0 %1806
        %v1808 = vadd.f32 %v1769, %v1770
        %1809 = vadd.xlane.f32.xlu0 %v1808
        %v1810 = vpop.xlane.xlu0 %1809
        %v1811 = vadd.f32 %v1771, %v1772
        %1812 = vadd.xlane.f32.xlu0 %v1811
        %v1813 = vpop.xlane.xlu0 %1812
        %v1814 = vadd.f32 %v1773, %v1774
        %1815 = vadd.xlane.f32.xlu0 %v1814
        %v1816 = vpop.xlane.xlu0 %1815
        %v1817 = vadd.f32 %v1775, %v1776
        %1818 = vadd.xlane.f32.xlu0 %v1817
        %v1819 = vpop.xlane.xlu0 %1818
        %v1820 = vadd.f32 %v1777, %v1778
        %1821 = vadd.xlane.f32.xlu0 %v1820
        %v1822 = vpop.xlane.xlu0 %1821
        %v1823 = vadd.f32 %v1779, %v1780
        %1824 = vadd.xlane.f32.xlu0 %v1823
        %v1825 = vpop.xlane.xlu0 %1824
        %v1826 = vadd.f32 %v1781, %v1782
        %1827 = vadd.xlane.f32.xlu0 %v1826
        %v1828 = vpop.xlane.xlu0 %1827
        %v1829 = vadd.f32 %v1783, %v1784
        %1830 = vadd.xlane.f32.xlu0 %v1829
        %v1831 = vpop.xlane.xlu0 %1830
        %v1832 = vadd.f32 %v1785, %v1786
        %1833 = vadd.xlane.f32.xlu0 %v1832
        %v1834 = vpop.xlane.xlu0 %1833
        %v1835 = vadd.f32 %v1787, %v1788
        %1836 = vadd.xlane.f32.xlu0 %v1835
        %v1837 = vpop.xlane.xlu0 %1836
        %v1838 = vadd.f32 %v1789, %v1790
        %1839 = vadd.xlane.f32.xlu0 %v1838
        %v1840 = vpop.xlane.xlu0 %1839
        %v1841 = vrcp.pop 256.0
        %v1842 = vmul.f32 %v1795, %v1841
        %v1843 = vmul.f32 %v1798, %v1841
        %v1844 = vmul.f32 %v1801, %v1841
        %v1845 = vmul.f32 %v1804, %v1841
        %v1846 = vmul.f32 %v1807, %v1841
        %v1847 = vmul.f32 %v1810, %v1841
        %v1848 = vmul.f32 %v1813, %v1841
        %v1849 = vmul.f32 %v1816, %v1841
        %v1850 = vmul.f32 %v1819, %v1841
        %v1851 = vmul.f32 %v1822, %v1841
        %v1852 = vmul.f32 %v1825, %v1841
        %v1853 = vmul.f32 %v1828, %v1841
        %v1854 = vmul.f32 %v1831, %v1841
        %v1855 = vmul.f32 %v1834, %v1841
        %v1856 = vmul.f32 %v1837, %v1841
        %v1857 = vmul.f32 %v1840, %v1841
        %v1858 = vsub.f32 %v1759, %v1842
        %v1859 = vsub.f32 %v1760, %v1842
        %v1860 = vsub.f32 %v1761, %v1843
        %v1861 = vsub.f32 %v1762, %v1843
        %v1862 = vsub.f32 %v1763, %v1844
        %v1863 = vsub.f32 %v1764, %v1844
        %v1864 = vsub.f32 %v1765, %v1845
        %v1865 = vsub.f32 %v1766, %v1845
        %v1866 = vsub.f32 %v1767, %v1846
        %v1867 = vsub.f32 %v1768, %v1846
        %v1868 = vsub.f32 %v1769, %v1847
        %v1869 = vsub.f32 %v1770, %v1847
        %v1870 = vsub.f32 %v1771, %v1848
        %v1871 = vsub.f32 %v1772, %v1848
        %v1872 = vsub.f32 %v1773, %v1849
        %v1873 = vsub.f32 %v1774, %v1849
        %v1874 = vsub.f32 %v1775, %v1850
        %v1875 = vsub.f32 %v1776, %v1850
        %v1876 = vsub.f32 %v1777, %v1851
        %v1877 = vsub.f32 %v1778, %v1851
        %v1878 = vsub.f32 %v1779, %v1852
        %v1879 = vsub.f32 %v1780, %v1852
        %v1880 = vsub.f32 %v1781, %v1853
        %v1881 = vsub.f32 %v1782, %v1853
        %v1882 = vsub.f32 %v1783, %v1854
        %v1883 = vsub.f32 %v1784, %v1854
        %v1884 = vsub.f32 %v1785, %v1855
        %v1885 = vsub.f32 %v1786, %v1855
        %v1886 = vsub.f32 %v1787, %v1856
        %v1887 = vsub.f32 %v1788, %v1856
        %v1888 = vsub.f32 %v1789, %v1857
        %v1889 = vsub.f32 %v1790, %v1857
        %v1890 = vmul.f32 %v1858, %v1858
        %v1891 = vmul.f32 %v1859, %v1859
        %v1892 = vmul.f32 %v1860, %v1860
        %v1893 = vmul.f32 %v1861, %v1861
        %v1894 = vmul.f32 %v1862, %v1862
        %v1895 = vmul.f32 %v1863, %v1863
        %v1896 = vmul.f32 %v1864, %v1864
        %v1897 = vmul.f32 %v1865, %v1865
        %v1898 = vmul.f32 %v1866, %v1866
        %v1899 = vmul.f32 %v1867, %v1867
        %v1900 = vmul.f32 %v1868, %v1868
        %v1901 = vmul.f32 %v1869, %v1869
        %v1902 = vmul.f32 %v1870, %v1870
        %v1903 = vmul.f32 %v1871, %v1871
        %v1904 = vmul.f32 %v1872, %v1872
        %v1905 = vmul.f32 %v1873, %v1873
        %v1906 = vmul.f32 %v1874, %v1874
        %v1907 = vmul.f32 %v1875, %v1875
        %v1908 = vmul.f32 %v1876, %v1876
        %v1909 = vmul.f32 %v1877, %v1877
        %v1910 = vmul.f32 %v1878, %v1878
        %v1911 = vmul.f32 %v1879, %v1879
        %v1912 = vmul.f32 %v1880, %v1880
        %v1913 = vmul.f32 %v1881, %v1881
        %v1914 = vmul.f32 %v1882, %v1882
        %v1915 = vmul.f32 %v1883, %v1883
        %v1916 = vmul.f32 %v1884, %v1884
        %v1917 = vmul.f32 %v1885, %v1885
        %v1918 = vmul.f32 %v1886, %v1886
        %v1919 = vmul.f32 %v1887, %v1887
        %v1920 = vmul.f32 %v1888, %v1888
        %v1921 = vmul.f32 %v1889, %v1889
        %v1922 = vadd.f32 %v1890, %v1891
        %1923 = vadd.xlane.f32.xlu0 %v1922
        %v1924 = vpop.xlane.xlu0 %1923
        %v1925 = vadd.f32 %v1892, %v1893
        %1926 = vadd.xlane.f32.xlu0 %v1925
        %v1927 = vpop.xlane.xlu0 %1926
        %v1928 = vadd.f32 %v1894, %v1895
        %1929 = vadd.xlane.f32.xlu0 %v1928
        %v1930 = vpop.xlane.xlu0 %1929
        %v1931 = vadd.f32 %v1896, %v1897
        %1932 = vadd.xlane.f32.xlu0 %v1931
        %v1933 = vpop.xlane.xlu0 %1932
        %v1934 = vadd.f32 %v1898, %v1899
        %1935 = vadd.xlane.f32.xlu0 %v1934
        %v1936 = vpop.xlane.xlu0 %1935
        %v1937 = vadd.f32 %v1900, %v1901
        %1938 = vadd.xlane.f32.xlu0 %v1937
        %v1939 = vpop.xlane.xlu0 %1938
        %v1940 = vadd.f32 %v1902, %v1903
        %1941 = vadd.xlane.f32.xlu0 %v1940
        %v1942 = vpop.xlane.xlu0 %1941
        %v1943 = vadd.f32 %v1904, %v1905
        %1944 = vadd.xlane.f32.xlu0 %v1943
        %v1945 = vpop.xlane.xlu0 %1944
        %v1946 = vadd.f32 %v1906, %v1907
        %1947 = vadd.xlane.f32.xlu0 %v1946
        %v1948 = vpop.xlane.xlu0 %1947
        %v1949 = vadd.f32 %v1908, %v1909
        %1950 = vadd.xlane.f32.xlu0 %v1949
        %v1951 = vpop.xlane.xlu0 %1950
        %v1952 = vadd.f32 %v1910, %v1911
        %1953 = vadd.xlane.f32.xlu0 %v1952
        %v1954 = vpop.xlane.xlu0 %1953
        %v1955 = vadd.f32 %v1912, %v1913
        %1956 = vadd.xlane.f32.xlu0 %v1955
        %v1957 = vpop.xlane.xlu0 %1956
        %v1958 = vadd.f32 %v1914, %v1915
        %1959 = vadd.xlane.f32.xlu0 %v1958
        %v1960 = vpop.xlane.xlu0 %1959
        %v1961 = vadd.f32 %v1916, %v1917
        %1962 = vadd.xlane.f32.xlu0 %v1961
        %v1963 = vpop.xlane.xlu0 %1962
        %v1964 = vadd.f32 %v1918, %v1919
        %1965 = vadd.xlane.f32.xlu0 %v1964
        %v1966 = vpop.xlane.xlu0 %1965
        %v1967 = vadd.f32 %v1920, %v1921
        %1968 = vadd.xlane.f32.xlu0 %v1967
        %v1969 = vpop.xlane.xlu0 %1968
        %v1970 = vmul.f32 %v1924, %v1841
        %v1971 = vmul.f32 %v1927, %v1841
        %v1972 = vmul.f32 %v1930, %v1841
        %v1973 = vmul.f32 %v1933, %v1841
        %v1974 = vmul.f32 %v1936, %v1841
        %v1975 = vmul.f32 %v1939, %v1841
        %v1976 = vmul.f32 %v1942, %v1841
        %v1977 = vmul.f32 %v1945, %v1841
        %v1978 = vmul.f32 %v1948, %v1841
        %v1979 = vmul.f32 %v1951, %v1841
        %v1980 = vmul.f32 %v1954, %v1841
        %v1981 = vmul.f32 %v1957, %v1841
        %v1982 = vmul.f32 %v1960, %v1841
        %v1983 = vmul.f32 %v1963, %v1841
        %v1984 = vmul.f32 %v1966, %v1841
        %v1985 = vmul.f32 %v1969, %v1841
        %v1986 = vadd.f32 %v1970, 1e-05
        %v1987 = vadd.f32 %v1971, 1e-05
        %v1988 = vadd.f32 %v1972, 1e-05
        %v1989 = vadd.f32 %v1973, 1e-05
        %v1990 = vadd.f32 %v1974, 1e-05
        %v1991 = vadd.f32 %v1975, 1e-05
        %v1992 = vadd.f32 %v1976, 1e-05
        %v1993 = vadd.f32 %v1977, 1e-05
        %v1994 = vadd.f32 %v1978, 1e-05
        %v1995 = vadd.f32 %v1979, 1e-05
        %v1996 = vadd.f32 %v1980, 1e-05
        %v1997 = vadd.f32 %v1981, 1e-05
        %v1998 = vadd.f32 %v1982, 1e-05
        %v1999 = vadd.f32 %v1983, 1e-05
        %v2000 = vadd.f32 %v1984, 1e-05
        %v2001 = vadd.f32 %v1985, 1e-05
        %v2002 = vrsqrt.pop %v1986
        %v2003 = vrsqrt.pop %v1987
        %v2004 = vrsqrt.pop %v1988
        %v2005 = vrsqrt.pop %v1989
        %v2006 = vrsqrt.pop %v1990
        %v2007 = vrsqrt.pop %v1991
        %v2008 = vrsqrt.pop %v1992
        %v2009 = vrsqrt.pop %v1993
        %v2010 = vrsqrt.pop %v1994
        %v2011 = vrsqrt.pop %v1995
        %v2012 = vrsqrt.pop %v1996
        %v2013 = vrsqrt.pop %v1997
        %v2014 = vrsqrt.pop %v1998
        %v2015 = vrsqrt.pop %v1999
        %v2016 = vrsqrt.pop %v2000
        %v2017 = vrsqrt.pop %v2001
        %v2018 = vmul.f32 %v1858, %v2002
        %v2019 = vmul.f32 %v1859, %v2002
        %v2020 = vmul.f32 %v1860, %v2003
        %v2021 = vmul.f32 %v1861, %v2003
        %v2022 = vmul.f32 %v1862, %v2004
        %v2023 = vmul.f32 %v1863, %v2004
        %v2024 = vmul.f32 %v1864, %v2005
        %v2025 = vmul.f32 %v1865, %v2005
        %v2026 = vmul.f32 %v1866, %v2006
        %v2027 = vmul.f32 %v1867, %v2006
        %v2028 = vmul.f32 %v1868, %v2007
        %v2029 = vmul.f32 %v1869, %v2007
        %v2030 = vmul.f32 %v1870, %v2008
        %v2031 = vmul.f32 %v1871, %v2008
        %v2032 = vmul.f32 %v1872, %v2009
        %v2033 = vmul.f32 %v1873, %v2009
        %v2034 = vmul.f32 %v1874, %v2010
        %v2035 = vmul.f32 %v1875, %v2010
        %v2036 = vmul.f32 %v1876, %v2011
        %v2037 = vmul.f32 %v1877, %v2011
        %v2038 = vmul.f32 %v1878, %v2012
        %v2039 = vmul.f32 %v1879, %v2012
        %v2040 = vmul.f32 %v1880, %v2013
        %v2041 = vmul.f32 %v1881, %v2013
        %v2042 = vmul.f32 %v1882, %v2014
        %v2043 = vmul.f32 %v1883, %v2014
        %v2044 = vmul.f32 %v1884, %v2015
        %v2045 = vmul.f32 %v1885, %v2015
        %v2046 = vmul.f32 %v1886, %v2016
        %v2047 = vmul.f32 %v1887, %v2016
        %v2048 = vmul.f32 %v1888, %v2017
        %v2049 = vmul.f32 %v1889, %v2017
        %v2051 = vlaneseq
        %v2052 = vshrl.u32 %v2051, 7
        %v2053 = vsub.s32 0, %v2052
        %v2054 = vrot.slane %v1791, %v2053
        %v2055 = vlaneseq
        %v2056 = vshrl.u32 %v2055, 7
        %v2057 = vsub.s32 1, %v2056
        %v2058 = vrot.slane %v1791, %v2057
        %v2061 = vmul.f32 %v2018, %v2054
        %v2062 = vmul.f32 %v2019, %v2058
        %v2063 = vmul.f32 %v2020, %v2054
        %v2064 = vmul.f32 %v2021, %v2058
        %v2065 = vmul.f32 %v2022, %v2054
        %v2066 = vmul.f32 %v2023, %v2058
        %v2067 = vmul.f32 %v2024, %v2054
        %v2068 = vmul.f32 %v2025, %v2058
        %v2069 = vmul.f32 %v2026, %v2054
        %v2070 = vmul.f32 %v2027, %v2058
        %v2071 = vmul.f32 %v2028, %v2054
        %v2072 = vmul.f32 %v2029, %v2058
        %v2073 = vmul.f32 %v2030, %v2054
        %v2074 = vmul.f32 %v2031, %v2058
        %v2075 = vmul.f32 %v2032, %v2054
        %v2076 = vmul.f32 %v2033, %v2058
        %v2077 = vmul.f32 %v2034, %v2054
        %v2078 = vmul.f32 %v2035, %v2058
        %v2079 = vmul.f32 %v2036, %v2054
        %v2080 = vmul.f32 %v2037, %v2058
        %v2081 = vmul.f32 %v2038, %v2054
        %v2082 = vmul.f32 %v2039, %v2058
        %v2083 = vmul.f32 %v2040, %v2054
        %v2084 = vmul.f32 %v2041, %v2058
        %v2085 = vmul.f32 %v2042, %v2054
        %v2086 = vmul.f32 %v2043, %v2058
        %v2087 = vmul.f32 %v2044, %v2054
        %v2088 = vmul.f32 %v2045, %v2058
        %v2089 = vmul.f32 %v2046, %v2054
        %v2090 = vmul.f32 %v2047, %v2058
        %v2091 = vmul.f32 %v2048, %v2054
        %v2092 = vmul.f32 %v2049, %v2058
        %v2094 = vlaneseq
        %v2095 = vshrl.u32 %v2094, 7
        %v2096 = vsub.s32 0, %v2095
        %v2097 = vrot.slane %v1792, %v2096
        %v2098 = vlaneseq
        %v2099 = vshrl.u32 %v2098, 7
        %v2100 = vsub.s32 1, %v2099
        %v2101 = vrot.slane %v1792, %v2100
        %v2104 = vadd.f32 %v2061, %v2097
        %v2105 = vadd.f32 %v2062, %v2101
        %v2106 = vadd.f32 %v2063, %v2097
        %v2107 = vadd.f32 %v2064, %v2101
        %v2108 = vadd.f32 %v2065, %v2097
        %v2109 = vadd.f32 %v2066, %v2101
        %v2110 = vadd.f32 %v2067, %v2097
        %v2111 = vadd.f32 %v2068, %v2101
        %v2112 = vadd.f32 %v2069, %v2097
        %v2113 = vadd.f32 %v2070, %v2101
        %v2114 = vadd.f32 %v2071, %v2097
        %v2115 = vadd.f32 %v2072, %v2101
        %v2116 = vadd.f32 %v2073, %v2097
        %v2117 = vadd.f32 %v2074, %v2101
        %v2118 = vadd.f32 %v2075, %v2097
        %v2119 = vadd.f32 %v2076, %v2101
        %v2120 = vadd.f32 %v2077, %v2097
        %v2121 = vadd.f32 %v2078, %v2101
        %v2122 = vadd.f32 %v2079, %v2097
        %v2123 = vadd.f32 %v2080, %v2101
        %v2124 = vadd.f32 %v2081, %v2097
        %v2125 = vadd.f32 %v2082, %v2101
        %v2126 = vadd.f32 %v2083, %v2097
        %v2127 = vadd.f32 %v2084, %v2101
        %v2128 = vadd.f32 %v2085, %v2097
        %v2129 = vadd.f32 %v2086, %v2101
        %v2130 = vadd.f32 %v2087, %v2097
        %v2131 = vadd.f32 %v2088, %v2101
        %v2132 = vadd.f32 %v2089, %v2097
        %v2133 = vadd.f32 %v2090, %v2101
        %v2134 = vadd.f32 %v2091, %v2097
        %v2135 = vadd.f32 %v2092, %v2101
        %v2136 = vpack.c.bf16 %v2106, %v2104
        %v2137 = vpack.c.bf16 %v2107, %v2105
        %v2138 = vpack.c.bf16 %v2110, %v2108
        %v2139 = vpack.c.bf16 %v2111, %v2109
        %v2140 = vpack.c.bf16 %v2114, %v2112
        %v2141 = vpack.c.bf16 %v2115, %v2113
        %v2142 = vpack.c.bf16 %v2118, %v2116
        %v2143 = vpack.c.bf16 %v2119, %v2117
        %v2144 = vpack.c.bf16 %v2122, %v2120
        %v2145 = vpack.c.bf16 %v2123, %v2121
        %v2146 = vpack.c.bf16 %v2126, %v2124
        %v2147 = vpack.c.bf16 %v2127, %v2125
        %v2148 = vpack.c.bf16 %v2130, %v2128
        %v2149 = vpack.c.bf16 %v2131, %v2129
        %v2150 = vpack.c.bf16 %v2134, %v2132
        %v2151 = vpack.c.bf16 %v2135, %v2133
        %v2152 = vld [vmem:[#allocation14] sm:$0xff]
        %v2153 = vld [vmem:[#allocation14 + $0x8] sm:$0xff]
        %v2154 = vld [vmem:[#allocation14 + $0x10] sm:$0xff]
        %v2155 = vld [vmem:[#allocation14 + $0x18] sm:$0xff]
        %v2156 = vld [vmem:[#allocation14 + $0x20] sm:$0xff]
        %v2157 = vld [vmem:[#allocation14 + $0x28] sm:$0xff]
        %v2158 = vld [vmem:[#allocation14 + $0x30] sm:$0xff]
        %v2159 = vld [vmem:[#allocation14 + $0x38] sm:$0xff]
        %v2160 = vld [vmem:[#allocation14 + $0x40] sm:$0xff]
        %v2161 = vld [vmem:[#allocation14 + $0x48] sm:$0xff]
        %v2162 = vld [vmem:[#allocation14 + $0x50] sm:$0xff]
        %v2163 = vld [vmem:[#allocation14 + $0x58] sm:$0xff]
        %v2164 = vld [vmem:[#allocation14 + $0x60] sm:$0xff]
        %v2165 = vld [vmem:[#allocation14 + $0x68] sm:$0xff]
        %v2166 = vld [vmem:[#allocation14 + $0x70] sm:$0xff]
        %v2167 = vld [vmem:[#allocation14 + $0x78] sm:$0xff]
        %v2168 = vld [vmem:[#allocation14 + $0x80] sm:$0xff]
        %v2169 = vld [vmem:[#allocation14 + $0x88] sm:$0xff]
        %v2170 = vld [vmem:[#allocation14 + $0x90] sm:$0xff]
        %v2171 = vld [vmem:[#allocation14 + $0x98] sm:$0xff]
        %v2172 = vld [vmem:[#allocation14 + $0xa0] sm:$0xff]
        %v2173 = vld [vmem:[#allocation14 + $0xa8] sm:$0xff]
        %v2174 = vld [vmem:[#allocation14 + $0xb0] sm:$0xff]
        %v2175 = vld [vmem:[#allocation14 + $0xb8] sm:$0xff]
        %v2176 = vld [vmem:[#allocation14 + $0xc0] sm:$0xff]
        %v2177 = vld [vmem:[#allocation14 + $0xc8] sm:$0xff]
        %v2178 = vld [vmem:[#allocation14 + $0xd0] sm:$0xff]
        %v2179 = vld [vmem:[#allocation14 + $0xd8] sm:$0xff]
        %v2180 = vld [vmem:[#allocation14 + $0xe0] sm:$0xff]
        %v2181 = vld [vmem:[#allocation14 + $0xe8] sm:$0xff]
        %v2182 = vld [vmem:[#allocation14 + $0xf0] sm:$0xff]
        %v2183 = vld [vmem:[#allocation14 + $0xf8] sm:$0xff]
        %v2184 = vld [vmem:[#allocation14 + $0x100] sm:$0xff]
        %v2185 = vld [vmem:[#allocation14 + $0x108] sm:$0xff]
        %v2186 = vld [vmem:[#allocation14 + $0x110] sm:$0xff]
        %v2187 = vld [vmem:[#allocation14 + $0x118] sm:$0xff]
        %v2188 = vld [vmem:[#allocation14 + $0x120] sm:$0xff]
        %v2189 = vld [vmem:[#allocation14 + $0x128] sm:$0xff]
        %v2190 = vld [vmem:[#allocation14 + $0x130] sm:$0xff]
        %v2191 = vld [vmem:[#allocation14 + $0x138] sm:$0xff]
        %v2192 = vld [vmem:[#allocation14 + $0x140] sm:$0xff]
        %v2193 = vld [vmem:[#allocation14 + $0x148] sm:$0xff]
        %v2194 = vld [vmem:[#allocation14 + $0x150] sm:$0xff]
        %v2195 = vld [vmem:[#allocation14 + $0x158] sm:$0xff]
        %v2196 = vld [vmem:[#allocation14 + $0x160] sm:$0xff]
        %v2197 = vld [vmem:[#allocation14 + $0x168] sm:$0xff]
        %v2198 = vld [vmem:[#allocation14 + $0x170] sm:$0xff]
        %v2199 = vld [vmem:[#allocation14 + $0x178] sm:$0xff]
        %v2200 = vld [vmem:[#allocation14 + $0x180] sm:$0xff]
        %v2201 = vld [vmem:[#allocation14 + $0x188] sm:$0xff]
        %v2202 = vld [vmem:[#allocation14 + $0x190] sm:$0xff]
        %v2203 = vld [vmem:[#allocation14 + $0x198] sm:$0xff]
        %v2204 = vld [vmem:[#allocation14 + $0x1a0] sm:$0xff]
        %v2205 = vld [vmem:[#allocation14 + $0x1a8] sm:$0xff]
        %v2206 = vld [vmem:[#allocation14 + $0x1b0] sm:$0xff]
        %v2207 = vld [vmem:[#allocation14 + $0x1b8] sm:$0xff]
        %v2208 = vld [vmem:[#allocation14 + $0x1c0] sm:$0xff]
        %v2209 = vld [vmem:[#allocation14 + $0x1c8] sm:$0xff]
        %v2210 = vld [vmem:[#allocation14 + $0x1d0] sm:$0xff]
        %v2211 = vld [vmem:[#allocation14 + $0x1d8] sm:$0xff]
        %v2212 = vld [vmem:[#allocation14 + $0x1e0] sm:$0xff]
        %v2213 = vld [vmem:[#allocation14 + $0x1e8] sm:$0xff]
        %v2214 = vld [vmem:[#allocation14 + $0x1f0] sm:$0xff]
        %v2215 = vld [vmem:[#allocation14 + $0x1f8] sm:$0xff]
        %v2216 = vld [vmem:[#allocation16] sm:$0xf]
        %v2218 = vlaneseq
        %v2219 = vshrl.u32 %v2218, 7
        %v2220 = vsub.s32 0, %v2219
        %v2221 = vrot.slane %v2216, %v2220
        %v2222 = vlaneseq
        %v2223 = vshrl.u32 %v2222, 7
        %v2224 = vsub.s32 1, %v2223
        %v2225 = vrot.slane %v2216, %v2224
        %v2226 = vlaneseq
        %v2227 = vshrl.u32 %v2226, 7
        %v2228 = vsub.s32 2, %v2227
        %v2229 = vrot.slane %v2216, %v2228
        %v2230 = vlaneseq
        %v2231 = vshrl.u32 %v2230, 7
        %v2232 = vsub.s32 3, %v2231
        %v2233 = vrot.slane %v2216, %v2232
        %v2302 = vunpack.c.l.b16 %v2152
        %v2303 = vunpack.c.h.b16 %v2152
        %v2304 = vunpack.c.l.b16 %v2153
        %v2305 = vunpack.c.h.b16 %v2153
        %v2306 = vunpack.c.l.b16 %v2154
        %v2307 = vunpack.c.h.b16 %v2154
        %v2308 = vunpack.c.l.b16 %v2155
        %v2309 = vunpack.c.h.b16 %v2155
        %v2310 = vunpack.c.l.b16 %v2156
        %v2311 = vunpack.c.h.b16 %v2156
        %v2312 = vunpack.c.l.b16 %v2157
        %v2313 = vunpack.c.h.b16 %v2157
        %v2314 = vunpack.c.l.b16 %v2158
        %v2315 = vunpack.c.h.b16 %v2158
        %v2316 = vunpack.c.l.b16 %v2159
        %v2317 = vunpack.c.h.b16 %v2159
        %v2318 = vunpack.c.l.b16 %v2160
        %v2319 = vunpack.c.h.b16 %v2160
        %v2320 = vunpack.c.l.b16 %v2161
        %v2321 = vunpack.c.h.b16 %v2161
        %v2322 = vunpack.c.l.b16 %v2162
        %v2323 = vunpack.c.h.b16 %v2162
        %v2324 = vunpack.c.l.b16 %v2163
        %v2325 = vunpack.c.h.b16 %v2163
        %v2326 = vunpack.c.l.b16 %v2164
        %v2327 = vunpack.c.h.b16 %v2164
        %v2328 = vunpack.c.l.b16 %v2165
        %v2329 = vunpack.c.h.b16 %v2165
        %v2330 = vunpack.c.l.b16 %v2166
        %v2331 = vunpack.c.h.b16 %v2166
        %v2332 = vunpack.c.l.b16 %v2167
        %v2333 = vunpack.c.h.b16 %v2167
        %v2334 = vunpack.c.l.b16 %v2168
        %v2335 = vunpack.c.h.b16 %v2168
        %v2336 = vunpack.c.l.b16 %v2169
        %v2337 = vunpack.c.h.b16 %v2169
        %v2338 = vunpack.c.l.b16 %v2170
        %v2339 = vunpack.c.h.b16 %v2170
        %v2340 = vunpack.c.l.b16 %v2171
        %v2341 = vunpack.c.h.b16 %v2171
        %v2342 = vunpack.c.l.b16 %v2172
        %v2343 = vunpack.c.h.b16 %v2172
        %v2344 = vunpack.c.l.b16 %v2173
        %v2345 = vunpack.c.h.b16 %v2173
        %v2346 = vunpack.c.l.b16 %v2174
        %v2347 = vunpack.c.h.b16 %v2174
        %v2348 = vunpack.c.l.b16 %v2175
        %v2349 = vunpack.c.h.b16 %v2175
        %v2350 = vunpack.c.l.b16 %v2176
        %v2351 = vunpack.c.h.b16 %v2176
        %v2352 = vunpack.c.l.b16 %v2177
        %v2353 = vunpack.c.h.b16 %v2177
        %v2354 = vunpack.c.l.b16 %v2178
        %v2355 = vunpack.c.h.b16 %v2178
        %v2356 = vunpack.c.l.b16 %v2179
        %v2357 = vunpack.c.h.b16 %v2179
        %v2358 = vunpack.c.l.b16 %v2180
        %v2359 = vunpack.c.h.b16 %v2180
        %v2360 = vunpack.c.l.b16 %v2181
        %v2361 = vunpack.c.h.b16 %v2181
        %v2362 = vunpack.c.l.b16 %v2182
        %v2363 = vunpack.c.h.b16 %v2182
        %v2364 = vunpack.c.l.b16 %v2183
        %v2365 = vunpack.c.h.b16 %v2183
        %v2366 = vunpack.c.l.b16 %v2184
        %v2367 = vunpack.c.h.b16 %v2184
        %v2368 = vunpack.c.l.b16 %v2185
        %v2369 = vunpack.c.h.b16 %v2185
        %v2370 = vunpack.c.l.b16 %v2186
        %v2371 = vunpack.c.h.b16 %v2186
        %v2372 = vunpack.c.l.b16 %v2187
        %v2373 = vunpack.c.h.b16 %v2187
        %v2374 = vunpack.c.l.b16 %v2188
        %v2375 = vunpack.c.h.b16 %v2188
        %v2376 = vunpack.c.l.b16 %v2189
        %v2377 = vunpack.c.h.b16 %v2189
        %v2378 = vunpack.c.l.b16 %v2190
        %v2379 = vunpack.c.h.b16 %v2190
        %v2380 = vunpack.c.l.b16 %v2191
        %v2381 = vunpack.c.h.b16 %v2191
        %v2382 = vunpack.c.l.b16 %v2192
        %v2383 = vunpack.c.h.b16 %v2192
        %v2384 = vunpack.c.l.b16 %v2193
        %v2385 = vunpack.c.h.b16 %v2193
        %v2386 = vunpack.c.l.b16 %v2194
        %v2387 = vunpack.c.h.b16 %v2194
        %v2388 = vunpack.c.l.b16 %v2195
        %v2389 = vunpack.c.h.b16 %v2195
        %v2390 = vunpack.c.l.b16 %v2196
        %v2391 = vunpack.c.h.b16 %v2196
        %v2392 = vunpack.c.l.b16 %v2197
        %v2393 = vunpack.c.h.b16 %v2197
        %v2394 = vunpack.c.l.b16 %v2198
        %v2395 = vunpack.c.h.b16 %v2198
        %v2396 = vunpack.c.l.b16 %v2199
        %v2397 = vunpack.c.h.b16 %v2199
        %v2398 = vunpack.c.l.b16 %v2200
        %v2399 = vunpack.c.h.b16 %v2200
        %v2400 = vunpack.c.l.b16 %v2201
        %v2401 = vunpack.c.h.b16 %v2201
        %v2402 = vunpack.c.l.b16 %v2202
        %v2403 = vunpack.c.h.b16 %v2202
        %v2404 = vunpack.c.l.b16 %v2203
        %v2405 = vunpack.c.h.b16 %v2203
        %v2406 = vunpack.c.l.b16 %v2204
        %v2407 = vunpack.c.h.b16 %v2204
        %v2408 = vunpack.c.l.b16 %v2205
        %v2409 = vunpack.c.h.b16 %v2205
        %v2410 = vunpack.c.l.b16 %v2206
        %v2411 = vunpack.c.h.b16 %v2206
        %v2412 = vunpack.c.l.b16 %v2207
        %v2413 = vunpack.c.h.b16 %v2207
        %v2414 = vunpack.c.l.b16 %v2208
        %v2415 = vunpack.c.h.b16 %v2208
        %v2416 = vunpack.c.l.b16 %v2209
        %v2417 = vunpack.c.h.b16 %v2209
        %v2418 = vunpack.c.l.b16 %v2210
        %v2419 = vunpack.c.h.b16 %v2210
        %v2420 = vunpack.c.l.b16 %v2211
        %v2421 = vunpack.c.h.b16 %v2211
        %v2422 = vunpack.c.l.b16 %v2212
        %v2423 = vunpack.c.h.b16 %v2212
        %v2424 = vunpack.c.l.b16 %v2213
        %v2425 = vunpack.c.h.b16 %v2213
        %v2426 = vunpack.c.l.b16 %v2214
        %v2427 = vunpack.c.h.b16 %v2214
        %v2428 = vunpack.c.l.b16 %v2215
        %v2429 = vunpack.c.h.b16 %v2215
        %v2430 = vpack.c.b16 %v2306, %v2302
        %v2431 = vpack.c.b16 %v2307, %v2303
        %v2432 = vpack.c.b16 %v2308, %v2304
        %v2433 = vpack.c.b16 %v2309, %v2305
        %v2434 = vpack.c.b16 %v2314, %v2310
        %v2435 = vpack.c.b16 %v2315, %v2311
        %v2436 = vpack.c.b16 %v2316, %v2312
        %v2437 = vpack.c.b16 %v2317, %v2313
        %v2438 = vpack.c.b16 %v2322, %v2318
        %v2439 = vpack.c.b16 %v2323, %v2319
        %v2440 = vpack.c.b16 %v2324, %v2320
        %v2441 = vpack.c.b16 %v2325, %v2321
        %v2442 = vpack.c.b16 %v2330, %v2326
        %v2443 = vpack.c.b16 %v2331, %v2327
        %v2444 = vpack.c.b16 %v2332, %v2328
        %v2445 = vpack.c.b16 %v2333, %v2329
        %v2446 = vpack.c.b16 %v2338, %v2334
        %v2447 = vpack.c.b16 %v2339, %v2335
        %v2448 = vpack.c.b16 %v2340, %v2336
        %v2449 = vpack.c.b16 %v2341, %v2337
        %v2450 = vpack.c.b16 %v2346, %v2342
        %v2451 = vpack.c.b16 %v2347, %v2343
        %v2452 = vpack.c.b16 %v2348, %v2344
        %v2453 = vpack.c.b16 %v2349, %v2345
        %v2454 = vpack.c.b16 %v2354, %v2350
        %v2455 = vpack.c.b16 %v2355, %v2351
        %v2456 = vpack.c.b16 %v2356, %v2352
        %v2457 = vpack.c.b16 %v2357, %v2353
        %v2458 = vpack.c.b16 %v2362, %v2358
        %v2459 = vpack.c.b16 %v2363, %v2359
        %v2460 = vpack.c.b16 %v2364, %v2360
        %v2461 = vpack.c.b16 %v2365, %v2361
        %v2462 = vpack.c.b16 %v2370, %v2366
        %v2463 = vpack.c.b16 %v2371, %v2367
        %v2464 = vpack.c.b16 %v2372, %v2368
        %v2465 = vpack.c.b16 %v2373, %v2369
        %v2466 = vpack.c.b16 %v2378, %v2374
        %v2467 = vpack.c.b16 %v2379, %v2375
        %v2468 = vpack.c.b16 %v2380, %v2376
        %v2469 = vpack.c.b16 %v2381, %v2377
        %v2470 = vpack.c.b16 %v2386, %v2382
        %v2471 = vpack.c.b16 %v2387, %v2383
        %v2472 = vpack.c.b16 %v2388, %v2384
        %v2473 = vpack.c.b16 %v2389, %v2385
        %v2474 = vpack.c.b16 %v2394, %v2390
        %v2475 = vpack.c.b16 %v2395, %v2391
        %v2476 = vpack.c.b16 %v2396, %v2392
        %v2477 = vpack.c.b16 %v2397, %v2393
        %v2478 = vpack.c.b16 %v2402, %v2398
        %v2479 = vpack.c.b16 %v2403, %v2399
        %v2480 = vpack.c.b16 %v2404, %v2400
        %v2481 = vpack.c.b16 %v2405, %v2401
        %v2482 = vpack.c.b16 %v2410, %v2406
        %v2483 = vpack.c.b16 %v2411, %v2407
        %v2484 = vpack.c.b16 %v2412, %v2408
        %v2485 = vpack.c.b16 %v2413, %v2409
        %v2486 = vpack.c.b16 %v2418, %v2414
        %v2487 = vpack.c.b16 %v2419, %v2415
        %v2488 = vpack.c.b16 %v2420, %v2416
        %v2489 = vpack.c.b16 %v2421, %v2417
        %v2490 = vpack.c.b16 %v2426, %v2422
        %v2491 = vpack.c.b16 %v2427, %v2423
        %v2492 = vpack.c.b16 %v2428, %v2424
        %v2493 = vpack.c.b16 %v2429, %v2425
        %2558 = vmatprep.subr.bf16.mxu0 %v2431
        %2559 = vmatpush1.bf16.msra.mxu0 %v2430
        %2560 = vmatprep.subr.bf16.mxu0 %v2435
        %2561 = vmatpush1.bf16.msra.mxu0 %v2434
        %2562 = vmatprep.subr.bf16.mxu0 %v2439
        %2563 = vmatpush1.bf16.msra.mxu0 %v2438
        %2564 = vmatprep.subr.bf16.mxu0 %v2443
        %2565 = vmatpush1.bf16.msra.mxu0 %v2442
        %2566 = vmatprep.subr.bf16.mxu0 %v2447
        %2567 = vmatpush1.bf16.msra.mxu0 %v2446
        %2568 = vmatprep.subr.bf16.mxu0 %v2451
        %2569 = vmatpush1.bf16.msra.mxu0 %v2450
        %2570 = vmatprep.subr.bf16.mxu0 %v2455
        %2571 = vmatpush1.bf16.msra.mxu0 %v2454
        %2572 = vmatprep.subr.bf16.mxu0 %v2459
        %2573 = vmatpush1.bf16.msra.mxu0 %v2458
        %2574 = vmatprep.subr.bf16.mxu0 %v2463
        %2575 = vmatpush1.bf16.msra.mxu0 %v2462
        %2576 = vmatprep.subr.bf16.mxu0 %v2467
        %2577 = vmatpush1.bf16.msra.mxu0 %v2466
        %2578 = vmatprep.subr.bf16.mxu0 %v2471
        %2579 = vmatpush1.bf16.msra.mxu0 %v2470
        %2580 = vmatprep.subr.bf16.mxu0 %v2475
        %2581 = vmatpush1.bf16.msra.mxu0 %v2474
        %2582 = vmatprep.subr.bf16.mxu0 %v2479
        %2583 = vmatpush1.bf16.msra.mxu0 %v2478
        %2584 = vmatprep.subr.bf16.mxu0 %v2483
        %2585 = vmatpush1.bf16.msra.mxu0 %v2482
        %2586 = vmatprep.subr.bf16.mxu0 %v2487
        %2587 = vmatpush1.bf16.msra.mxu0 %v2486
        %2588 = vmatprep.subr.bf16.mxu0 %v2491
        %2589 = vmatpush1.bf16.msra.mxu0 %v2490
        %2590 = vmatprep.mubr.bf16.mxu0 %v2137
        %2591 = vmatmul.mubr.bf16.gmra.mrb[0].mxu0 %v2136
        %v2592 = vpop.f32.mrb[0].mxu0
        %v2593 = vadd.f32 %v2221, %v2592
        %v2594 = vpop.f32.mrb[0].mxu0
        %v2595 = vadd.f32 %v2225, %v2594
        %v2596 = vpop.f32.mrb[0].mxu0
        %v2597 = vadd.f32 %v2221, %v2596
        %v2598 = vpop.f32.mrb[0].mxu0
        %v2599 = vadd.f32 %v2225, %v2598
        %2600 = vmatprep.mubr.bf16.mxu0 %v2139
        %2601 = vmatmul.mubr.bf16.gmra.mrb[0].mxu0 %v2138
        %v2602 = vpop.f32.mrb[0].mxu0
        %v2603 = vadd.f32 %v2221, %v2602
        %v2604 = vpop.f32.mrb[0].mxu0
        %v2605 = vadd.f32 %v2225, %v2604
        %v2606 = vpop.f32.mrb[0].mxu0
        %v2607 = vadd.f32 %v2221, %v2606
        %v2608 = vpop.f32.mrb[0].mxu0
        %v2609 = vadd.f32 %v2225, %v2608
        %2610 = vmatprep.mubr.bf16.mxu0 %v2141
        %2611 = vmatmul.mubr.bf16.gmra.mrb[0].mxu0 %v2140
        %v2612 = vpop.f32.mrb[0].mxu0
        %v2613 = vadd.f32 %v2221, %v2612
        %v2614 = vpop.f32.mrb[0].mxu0
        %v2615 = vadd.f32 %v2225, %v2614
        %v2616 = vpop.f32.mrb[0].mxu0
        %v2617 = vadd.f32 %v2221, %v2616
        %v2618 = vpop.f32.mrb[0].mxu0
        %v2619 = vadd.f32 %v2225, %v2618
        %2620 = vmatprep.mubr.bf16.mxu0 %v2143
        %2621 = vmatmul.mubr.bf16.gmra.mrb[0].mxu0 %v2142
        %v2622 = vpop.f32.mrb[0].mxu0
        %v2623 = vadd.f32 %v2221, %v2622
        %v2624 = vpop.f32.mrb[0].mxu0
        %v2625 = vadd.f32 %v2225, %v2624
        %v2626 = vpop.f32.mrb[0].mxu0
        %v2627 = vadd.f32 %v2221, %v2626
        %v2628 = vpop.f32.mrb[0].mxu0
        %v2629 = vadd.f32 %v2225, %v2628
        %2630 = vmatprep.mubr.bf16.mxu0 %v2145
        %2631 = vmatmul.mubr.bf16.gmra.mrb[0].mxu0 %v2144
        %v2632 = vpop.f32.mrb[0].mxu0
        %v2633 = vadd.f32 %v2221, %v2632
        %v2634 = vpop.f32.mrb[0].mxu0
        %v2635 = vadd.f32 %v2225, %v2634
        %v2636 = vpop.f32.mrb[0].mxu0
        %v2637 = vadd.f32 %v2221, %v2636
        %v2638 = vpop.f32.mrb[0].mxu0
        %v2639 = vadd.f32 %v2225, %v2638
        %2640 = vmatprep.mubr.bf16.mxu0 %v2147
        %2641 = vmatmul.mubr.bf16.gmra.mrb[0].mxu0 %v2146
        %v2642 = vpop.f32.mrb[0].mxu0
        %v2643 = vadd.f32 %v2221, %v2642
        %v2644 = vpop.f32.mrb[0].mxu0
        %v2645 = vadd.f32 %v2225, %v2644
        %v2646 = vpop.f32.mrb[0].mxu0
        %v2647 = vadd.f32 %v2221, %v2646
        %v2648 = vpop.f32.mrb[0].mxu0
        %v2649 = vadd.f32 %v2225, %v2648
        %2650 = vmatprep.mubr.bf16.mxu0 %v2149
        %2651 = vmatmul.mubr.bf16.gmra.mrb[0].mxu0 %v2148
        %v2652 = vpop.f32.mrb[0].mxu0
        %v2653 = vadd.f32 %v2221, %v2652
        %v2654 = vpop.f32.mrb[0].mxu0
        %v2655 = vadd.f32 %v2225, %v2654
        %v2656 = vpop.f32.mrb[0].mxu0
        %v2657 = vadd.f32 %v2221, %v2656
        %v2658 = vpop.f32.mrb[0].mxu0
        %v2659 = vadd.f32 %v2225, %v2658
        %2660 = vmatprep.mubr.bf16.mxu0 %v2151
        %2661 = vmatmul.mubr.bf16.gmra.mrb[0].mxu0 %v2150
        %v2662 = vpop.f32.mrb[0].mxu0
        %v2663 = vadd.f32 %v2221, %v2662
        %v2664 = vpop.f32.mrb[0].mxu0
        %v2665 = vadd.f32 %v2225, %v2664
        %v2666 = vpop.f32.mrb[0].mxu0
        %v2667 = vadd.f32 %v2221, %v2666
        %v2668 = vpop.f32.mrb[0].mxu0
        %v2669 = vadd.f32 %v2225, %v2668
        %2670 = vdwg.mxu0
        %2671 = vmatprep.subr.bf16.mxu0 %v2433
        %2672 = vmatpush1.bf16.msra.mxu0 %v2432
        %2673 = vmatprep.subr.bf16.mxu0 %v2437
        %2674 = vmatpush1.bf16.msra.mxu0 %v2436
        %2675 = vmatprep.subr.bf16.mxu0 %v2441
        %2676 = vmatpush1.bf16.msra.mxu0 %v2440
        %2677 = vmatprep.subr.bf16.mxu0 %v2445
        %2678 = vmatpush1.bf16.msra.mxu0 %v2444
        %2679 = vmatprep.subr.bf16.mxu0 %v2449
        %2680 = vmatpush1.bf16.msra.mxu0 %v2448
        %2681 = vmatprep.subr.bf16.mxu0 %v2453
        %2682 = vmatpush1.bf16.msra.mxu0 %v2452
        %2683 = vmatprep.subr.bf16.mxu0 %v2457
        %2684 = vmatpush1.bf16.msra.mxu0 %v2456
        %2685 = vmatprep.subr.bf16.mxu0 %v2461
        %2686 = vmatpush1.bf16.msra.mxu0 %v2460
        %2687 = vmatprep.subr.bf16.mxu0 %v2465
        %2688 = vmatpush1.bf16.msra.mxu0 %v2464
        %2689 = vmatprep.subr.bf16.mxu0 %v2469
        %2690 = vmatpush1.bf16.msra.mxu0 %v2468
        %2691 = vmatprep.subr.bf16.mxu0 %v2473
        %2692 = vmatpush1.bf16.msra.mxu0 %v2472
        %2693 = vmatprep.subr.bf16.mxu0 %v2477
        %2694 = vmatpush1.bf16.msra.mxu0 %v2476
        %2695 = vmatprep.subr.bf16.mxu0 %v2481
        %2696 = vmatpush1.bf16.msra.mxu0 %v2480
        %2697 = vmatprep.subr.bf16.mxu0 %v2485
        %2698 = vmatpush1.bf16.msra.mxu0 %v2484
        %2699 = vmatprep.subr.bf16.mxu0 %v2489
        %2700 = vmatpush1.bf16.msra.mxu0 %v2488
        %2701 = vmatprep.subr.bf16.mxu0 %v2493
        %2702 = vmatpush1.bf16.msra.mxu0 %v2492
        %2703 = vmatprep.mubr.bf16.mxu0 %v2137
        %2704 = vmatmul.mubr.bf16.gmra.mrb[0].mxu0 %v2136
        %v2705 = vpop.f32.mrb[0].mxu0
        %v2706 = vadd.f32 %v2229, %v2705
        %v2707 = vpop.f32.mrb[0].mxu0
        %v2708 = vadd.f32 %v2233, %v2707
        %v2709 = vpop.f32.mrb[0].mxu0
        %v2710 = vadd.f32 %v2229, %v2709
        %v2711 = vpop.f32.mrb[0].mxu0
        %v2712 = vadd.f32 %v2233, %v2711
        %2713 = vmatprep.mubr.bf16.mxu0 %v2139
        %2714 = vmatmul.mubr.bf16.gmra.mrb[0].mxu0 %v2138
        %v2715 = vpop.f32.mrb[0].mxu0
        %v2716 = vadd.f32 %v2229, %v2715
        %v2717 = vpop.f32.mrb[0].mxu0
        %v2718 = vadd.f32 %v2233, %v2717
        %v2719 = vpop.f32.mrb[0].mxu0
        %v2720 = vadd.f32 %v2229, %v2719
        %v2721 = vpop.f32.mrb[0].mxu0
        %v2722 = vadd.f32 %v2233, %v2721
        %2723 = vmatprep.mubr.bf16.mxu0 %v2141
        %2724 = vmatmul.mubr.bf16.gmra.mrb[0].mxu0 %v2140
        %v2725 = vpop.f32.mrb[0].mxu0
        %v2726 = vadd.f32 %v2229, %v2725
        %v2727 = vpop.f32.mrb[0].mxu0
        %v2728 = vadd.f32 %v2233, %v2727
        %v2729 = vpop.f32.mrb[0].mxu0
        %v2730 = vadd.f32 %v2229, %v2729
        %v2731 = vpop.f32.mrb[0].mxu0
        %v2732 = vadd.f32 %v2233, %v2731
        %2733 = vmatprep.mubr.bf16.mxu0 %v2143
        %2734 = vmatmul.mubr.bf16.gmra.mrb[0].mxu0 %v2142
        %v2735 = vpop.f32.mrb[0].mxu0
        %v2736 = vadd.f32 %v2229, %v2735
        %v2737 = vpop.f32.mrb[0].mxu0
        %v2738 = vadd.f32 %v2233, %v2737
        %v2739 = vpop.f32.mrb[0].mxu0
        %v2740 = vadd.f32 %v2229, %v2739
        %v2741 = vpop.f32.mrb[0].mxu0
        %v2742 = vadd.f32 %v2233, %v2741
        %2743 = vmatprep.mubr.bf16.mxu0 %v2145
        %2744 = vmatmul.mubr.bf16.gmra.mrb[0].mxu0 %v2144
        %v2745 = vpop.f32.mrb[0].mxu0
        %v2746 = vadd.f32 %v2229, %v2745
        %v2747 = vpop.f32.mrb[0].mxu0
        %v2748 = vadd.f32 %v2233, %v2747
        %v2749 = vpop.f32.mrb[0].mxu0
        %v2750 = vadd.f32 %v2229, %v2749
        %v2751 = vpop.f32.mrb[0].mxu0
        %v2752 = vadd.f32 %v2233, %v2751
        %2753 = vmatprep.mubr.bf16.mxu0 %v2147
        %2754 = vmatmul.mubr.bf16.gmra.mrb[0].mxu0 %v2146
        %v2755 = vpop.f32.mrb[0].mxu0
        %v2756 = vadd.f32 %v2229, %v2755
        %v2757 = vpop.f32.mrb[0].mxu0
        %v2758 = vadd.f32 %v2233, %v2757
        %v2759 = vpop.f32.mrb[0].mxu0
        %v2760 = vadd.f32 %v2229, %v2759
        %v2761 = vpop.f32.mrb[0].mxu0
        %v2762 = vadd.f32 %v2233, %v2761
        %2763 = vmatprep.mubr.bf16.mxu0 %v2149
        %2764 = vmatmul.mubr.bf16.gmra.mrb[0].mxu0 %v2148
        %v2765 = vpop.f32.mrb[0].mxu0
        %v2766 = vadd.f32 %v2229, %v2765
        %v2767 = vpop.f32.mrb[0].mxu0
        %v2768 = vadd.f32 %v2233, %v2767
        %v2769 = vpop.f32.mrb[0].mxu0
        %v2770 = vadd.f32 %v2229, %v2769
        %v2771 = vpop.f32.mrb[0].mxu0
        %v2772 = vadd.f32 %v2233, %v2771
        %2773 = vmatprep.mubr.bf16.mxu0 %v2151
        %2774 = vmatmul.mubr.bf16.gmra.mrb[0].mxu0 %v2150
        %v2775 = vpop.f32.mrb[0].mxu0
        %v2776 = vadd.f32 %v2229, %v2775
        %v2777 = vpop.f32.mrb[0].mxu0
        %v2778 = vadd.f32 %v2233, %v2777
        %v2779 = vpop.f32.mrb[0].mxu0
        %v2780 = vadd.f32 %v2229, %v2779
        %v2781 = vpop.f32.mrb[0].mxu0
        %v2782 = vadd.f32 %v2233, %v2781
        %2783 = vdwg.mxu0
        %v2784 = vmax.f32 %v2593, 0.0
        %v2785 = vmax.f32 %v2595, 0.0
        %v2786 = vmax.f32 %v2706, 0.0
        %v2787 = vmax.f32 %v2708, 0.0
        %v2788 = vmax.f32 %v2597, 0.0
        %v2789 = vmax.f32 %v2599, 0.0
        %v2790 = vmax.f32 %v2710, 0.0
        %v2791 = vmax.f32 %v2712, 0.0
        %v2792 = vmax.f32 %v2603, 0.0
        %v2793 = vmax.f32 %v2605, 0.0
        %v2794 = vmax.f32 %v2716, 0.0
        %v2795 = vmax.f32 %v2718, 0.0
        %v2796 = vmax.f32 %v2607, 0.0
        %v2797 = vmax.f32 %v2609, 0.0
        %v2798 = vmax.f32 %v2720, 0.0
        %v2799 = vmax.f32 %v2722, 0.0
        %v2800 = vmax.f32 %v2613, 0.0
        %v2801 = vmax.f32 %v2615, 0.0
        %v2802 = vmax.f32 %v2726, 0.0
        %v2803 = vmax.f32 %v2728, 0.0
        %v2804 = vmax.f32 %v2617, 0.0
        %v2805 = vmax.f32 %v2619, 0.0
        %v2806 = vmax.f32 %v2730, 0.0
        %v2807 = vmax.f32 %v2732, 0.0
        %v2808 = vmax.f32 %v2623, 0.0
        %v2809 = vmax.f32 %v2625, 0.0
        %v2810 = vmax.f32 %v2736, 0.0
        %v2811 = vmax.f32 %v2738, 0.0
        %v2812 = vmax.f32 %v2627, 0.0
        %v2813 = vmax.f32 %v2629, 0.0
        %v2814 = vmax.f32 %v2740, 0.0
        %v2815 = vmax.f32 %v2742, 0.0
        %v2816 = vmax.f32 %v2633, 0.0
        %v2817 = vmax.f32 %v2635, 0.0
        %v2818 = vmax.f32 %v2746, 0.0
        %v2819 = vmax.f32 %v2748, 0.0
        %v2820 = vmax.f32 %v2637, 0.0
        %v2821 = vmax.f32 %v2639, 0.0
        %v2822 = vmax.f32 %v2750, 0.0
        %v2823 = vmax.f32 %v2752, 0.0
        %v2824 = vmax.f32 %v2643, 0.0
        %v2825 = vmax.f32 %v2645, 0.0
        %v2826 = vmax.f32 %v2756, 0.0
        %v2827 = vmax.f32 %v2758, 0.0
        %v2828 = vmax.f32 %v2647, 0.0
        %v2829 = vmax.f32 %v2649, 0.0
        %v2830 = vmax.f32 %v2760, 0.0
        %v2831 = vmax.f32 %v2762, 0.0
        %v2832 = vmax.f32 %v2653, 0.0
        %v2833 = vmax.f32 %v2655, 0.0
        %v2834 = vmax.f32 %v2766, 0.0
        %v2835 = vmax.f32 %v2768, 0.0
        %v2836 = vmax.f32 %v2657, 0.0
        %v2837 = vmax.f32 %v2659, 0.0
        %v2838 = vmax.f32 %v2770, 0.0
        %v2839 = vmax.f32 %v2772, 0.0
        %v2840 = vmax.f32 %v2663, 0.0
        %v2841 = vmax.f32 %v2665, 0.0
        %v2842 = vmax.f32 %v2776, 0.0
        %v2843 = vmax.f32 %v2778, 0.0
        %v2844 = vmax.f32 %v2667, 0.0
        %v2845 = vmax.f32 %v2669, 0.0
        %v2846 = vmax.f32 %v2780, 0.0
        %v2847 = vmax.f32 %v2782, 0.0
        %v2848 = vpack.c.bf16 %v2788, %v2784
        %v2849 = vpack.c.bf16 %v2789, %v2785
        %v2850 = vpack.c.bf16 %v2790, %v2786
        %v2851 = vpack.c.bf16 %v2791, %v2787
        %v2852 = vpack.c.bf16 %v2796, %v2792
        %v2853 = vpack.c.bf16 %v2797, %v2793
        %v2854 = vpack.c.bf16 %v2798, %v2794
        %v2855 = vpack.c.bf16 %v2799, %v2795
        %v2856 = vpack.c.bf16 %v2804, %v2800
        %v2857 = vpack.c.bf16 %v2805, %v2801
        %v2858 = vpack.c.bf16 %v2806, %v2802
        %v2859 = vpack.c.bf16 %v2807, %v2803
        %v2860 = vpack.c.bf16 %v2812, %v2808
        %v2861 = vpack.c.bf16 %v2813, %v2809
        %v2862 = vpack.c.bf16 %v2814, %v2810
        %v2863 = vpack.c.bf16 %v2815, %v2811
        %v2864 = vpack.c.bf16 %v2820, %v2816
        %v2865 = vpack.c.bf16 %v2821, %v2817
        %v2866 = vpack.c.bf16 %v2822, %v2818
        %v2867 = vpack.c.bf16 %v2823, %v2819
        %v2868 = vpack.c.bf16 %v2828, %v2824
        %v2869 = vpack.c.bf16 %v2829, %v2825
        %v2870 = vpack.c.bf16 %v2830, %v2826
        %v2871 = vpack.c.bf16 %v2831, %v2827
        %v2872 = vpack.c.bf16 %v2836, %v2832
        %v2873 = vpack.c.bf16 %v2837, %v2833
        %v2874 = vpack.c.bf16 %v2838, %v2834
        %v2875 = vpack.c.bf16 %v2839, %v2835
        %v2876 = vpack.c.bf16 %v2844, %v2840
        %v2877 = vpack.c.bf16 %v2845, %v2841
        %v2878 = vpack.c.bf16 %v2846, %v2842
        %v2879 = vpack.c.bf16 %v2847, %v2843
        %v2880 = vld [vmem:[#allocation17] sm:$0xff]
        %v2881 = vld [vmem:[#allocation17 + $0x8] sm:$0xff]
        %v2882 = vld [vmem:[#allocation17 + $0x10] sm:$0xff]
        %v2883 = vld [vmem:[#allocation17 + $0x18] sm:$0xff]
        %v2884 = vld [vmem:[#allocation17 + $0x20] sm:$0xff]
        %v2885 = vld [vmem:[#allocation17 + $0x28] sm:$0xff]
        %v2886 = vld [vmem:[#allocation17 + $0x30] sm:$0xff]
        %v2887 = vld [vmem:[#allocation17 + $0x38] sm:$0xff]
        %v2888 = vld [vmem:[#allocation17 + $0x40] sm:$0xff]
        %v2889 = vld [vmem:[#allocation17 + $0x48] sm:$0xff]
        %v2890 = vld [vmem:[#allocation17 + $0x50] sm:$0xff]
        %v2891 = vld [vmem:[#allocation17 + $0x58] sm:$0xff]
        %v2892 = vld [vmem:[#allocation17 + $0x60] sm:$0xff]
        %v2893 = vld [vmem:[#allocation17 + $0x68] sm:$0xff]
        %v2894 = vld [vmem:[#allocation17 + $0x70] sm:$0xff]
        %v2895 = vld [vmem:[#allocation17 + $0x78] sm:$0xff]
        %v2896 = vld [vmem:[#allocation17 + $0x80] sm:$0xff]
        %v2897 = vld [vmem:[#allocation17 + $0x88] sm:$0xff]
        %v2898 = vld [vmem:[#allocation17 + $0x90] sm:$0xff]
        %v2899 = vld [vmem:[#allocation17 + $0x98] sm:$0xff]
        %v2900 = vld [vmem:[#allocation17 + $0xa0] sm:$0xff]
        %v2901 = vld [vmem:[#allocation17 + $0xa8] sm:$0xff]
        %v2902 = vld [vmem:[#allocation17 + $0xb0] sm:$0xff]
        %v2903 = vld [vmem:[#allocation17 + $0xb8] sm:$0xff]
        %v2904 = vld [vmem:[#allocation17 + $0xc0] sm:$0xff]
        %v2905 = vld [vmem:[#allocation17 + $0xc8] sm:$0xff]
        %v2906 = vld [vmem:[#allocation17 + $0xd0] sm:$0xff]
        %v2907 = vld [vmem:[#allocation17 + $0xd8] sm:$0xff]
        %v2908 = vld [vmem:[#allocation17 + $0xe0] sm:$0xff]
        %v2909 = vld [vmem:[#allocation17 + $0xe8] sm:$0xff]
        %v2910 = vld [vmem:[#allocation17 + $0xf0] sm:$0xff]
        %v2911 = vld [vmem:[#allocation17 + $0xf8] sm:$0xff]
        %v2912 = vld [vmem:[#allocation17 + $0x100] sm:$0xff]
        %v2913 = vld [vmem:[#allocation17 + $0x108] sm:$0xff]
        %v2914 = vld [vmem:[#allocation17 + $0x110] sm:$0xff]
        %v2915 = vld [vmem:[#allocation17 + $0x118] sm:$0xff]
        %v2916 = vld [vmem:[#allocation17 + $0x120] sm:$0xff]
        %v2917 = vld [vmem:[#allocation17 + $0x128] sm:$0xff]
        %v2918 = vld [vmem:[#allocation17 + $0x130] sm:$0xff]
        %v2919 = vld [vmem:[#allocation17 + $0x138] sm:$0xff]
        %v2920 = vld [vmem:[#allocation17 + $0x140] sm:$0xff]
        %v2921 = vld [vmem:[#allocation17 + $0x148] sm:$0xff]
        %v2922 = vld [vmem:[#allocation17 + $0x150] sm:$0xff]
        %v2923 = vld [vmem:[#allocation17 + $0x158] sm:$0xff]
        %v2924 = vld [vmem:[#allocation17 + $0x160] sm:$0xff]
        %v2925 = vld [vmem:[#allocation17 + $0x168] sm:$0xff]
        %v2926 = vld [vmem:[#allocation17 + $0x170] sm:$0xff]
        %v2927 = vld [vmem:[#allocation17 + $0x178] sm:$0xff]
        %v2928 = vld [vmem:[#allocation17 + $0x180] sm:$0xff]
        %v2929 = vld [vmem:[#allocation17 + $0x188] sm:$0xff]
        %v2930 = vld [vmem:[#allocation17 + $0x190] sm:$0xff]
        %v2931 = vld [vmem:[#allocation17 + $0x198] sm:$0xff]
        %v2932 = vld [vmem:[#allocation17 + $0x1a0] sm:$0xff]
        %v2933 = vld [vmem:[#allocation17 + $0x1a8] sm:$0xff]
        %v2934 = vld [vmem:[#allocation17 + $0x1b0] sm:$0xff]
        %v2935 = vld [vmem:[#allocation17 + $0x1b8] sm:$0xff]
        %v2936 = vld [vmem:[#allocation17 + $0x1c0] sm:$0xff]
        %v2937 = vld [vmem:[#allocation17 + $0x1c8] sm:$0xff]
        %v2938 = vld [vmem:[#allocation17 + $0x1d0] sm:$0xff]
        %v2939 = vld [vmem:[#allocation17 + $0x1d8] sm:$0xff]
        %v2940 = vld [vmem:[#allocation17 + $0x1e0] sm:$0xff]
        %v2941 = vld [vmem:[#allocation17 + $0x1e8] sm:$0xff]
        %v2942 = vld [vmem:[#allocation17 + $0x1f0] sm:$0xff]
        %v2943 = vld [vmem:[#allocation17 + $0x1f8] sm:$0xff]
        %v2944 = vld [vmem:[#allocation19] sm:$0x3]
        %v2946 = vlaneseq
        %v2947 = vshrl.u32 %v2946, 7
        %v2948 = vsub.s32 0, %v2947
        %v2949 = vrot.slane %v2944, %v2948
        %v2950 = vlaneseq
        %v2951 = vshrl.u32 %v2950, 7
        %v2952 = vsub.s32 1, %v2951
        %v2953 = vrot.slane %v2944, %v2952
        %v3020 = vunpack.c.l.b16 %v2880
        %v3021 = vunpack.c.h.b16 %v2880
        %v3022 = vunpack.c.l.b16 %v2881
        %v3023 = vunpack.c.h.b16 %v2881
        %v3024 = vunpack.c.l.b16 %v2882
        %v3025 = vunpack.c.h.b16 %v2882
        %v3026 = vunpack.c.l.b16 %v2883
        %v3027 = vunpack.c.h.b16 %v2883
        %v3028 = vunpack.c.l.b16 %v2884
        %v3029 = vunpack.c.h.b16 %v2884
        %v3030 = vunpack.c.l.b16 %v2885
        %v3031 = vunpack.c.h.b16 %v2885
        %v3032 = vunpack.c.l.b16 %v2886
        %v3033 = vunpack.c.h.b16 %v2886
        %v3034 = vunpack.c.l.b16 %v2887
        %v3035 = vunpack.c.h.b16 %v2887
        %v3036 = vunpack.c.l.b16 %v2888
        %v3037 = vunpack.c.h.b16 %v2888
        %v3038 = vunpack.c.l.b16 %v2889
        %v3039 = vunpack.c.h.b16 %v2889
        %v3040 = vunpack.c.l.b16 %v2890
        %v3041 = vunpack.c.h.b16 %v2890
        %v3042 = vunpack.c.l.b16 %v2891
        %v3043 = vunpack.c.h.b16 %v2891
        %v3044 = vunpack.c.l.b16 %v2892
        %v3045 = vunpack.c.h.b16 %v2892
        %v3046 = vunpack.c.l.b16 %v2893
        %v3047 = vunpack.c.h.b16 %v2893
        %v3048 = vunpack.c.l.b16 %v2894
        %v3049 = vunpack.c.h.b16 %v2894
        %v3050 = vunpack.c.l.b16 %v2895
        %v3051 = vunpack.c.h.b16 %v2895
        %v3052 = vunpack.c.l.b16 %v2896
        %v3053 = vunpack.c.h.b16 %v2896
        %v3054 = vunpack.c.l.b16 %v2897
        %v3055 = vunpack.c.h.b16 %v2897
        %v3056 = vunpack.c.l.b16 %v2898
        %v3057 = vunpack.c.h.b16 %v2898
        %v3058 = vunpack.c.l.b16 %v2899
        %v3059 = vunpack.c.h.b16 %v2899
        %v3060 = vunpack.c.l.b16 %v2900
        %v3061 = vunpack.c.h.b16 %v2900
        %v3062 = vunpack.c.l.b16 %v2901
        %v3063 = vunpack.c.h.b16 %v2901
        %v3064 = vunpack.c.l.b16 %v2902
        %v3065 = vunpack.c.h.b16 %v2902
        %v3066 = vunpack.c.l.b16 %v2903
        %v3067 = vunpack.c.h.b16 %v2903
        %v3068 = vunpack.c.l.b16 %v2904
        %v3069 = vunpack.c.h.b16 %v2904
        %v3070 = vunpack.c.l.b16 %v2905
        %v3071 = vunpack.c.h.b16 %v2905
        %v3072 = vunpack.c.l.b16 %v2906
        %v3073 = vunpack.c.h.b16 %v2906
        %v3074 = vunpack.c.l.b16 %v2907
        %v3075 = vunpack.c.h.b16 %v2907
        %v3076 = vunpack.c.l.b16 %v2908
        %v3077 = vunpack.c.h.b16 %v2908
        %v3078 = vunpack.c.l.b16 %v2909
        %v3079 = vunpack.c.h.b16 %v2909
        %v3080 = vunpack.c.l.b16 %v2910
        %v3081 = vunpack.c.h.b16 %v2910
        %v3082 = vunpack.c.l.b16 %v2911
        %v3083 = vunpack.c.h.b16 %v2911
        %v3084 = vunpack.c.l.b16 %v2912
        %v3085 = vunpack.c.h.b16 %v2912
        %v3086 = vunpack.c.l.b16 %v2913
        %v3087 = vunpack.c.h.b16 %v2913
        %v3088 = vunpack.c.l.b16 %v2914
        %v3089 = vunpack.c.h.b16 %v2914
        %v3090 = vunpack.c.l.b16 %v2915
        %v3091 = vunpack.c.h.b16 %v2915
        %v3092 = vunpack.c.l.b16 %v2916
        %v3093 = vunpack.c.h.b16 %v2916
        %v3094 = vunpack.c.l.b16 %v2917
        %v3095 = vunpack.c.h.b16 %v2917
        %v3096 = vunpack.c.l.b16 %v2918
        %v3097 = vunpack.c.h.b16 %v2918
        %v3098 = vunpack.c.l.b16 %v2919
        %v3099 = vunpack.c.h.b16 %v2919
        %v3100 = vunpack.c.l.b16 %v2920
        %v3101 = vunpack.c.h.b16 %v2920
        %v3102 = vunpack.c.l.b16 %v2921
        %v3103 = vunpack.c.h.b16 %v2921
        %v3104 = vunpack.c.l.b16 %v2922
        %v3105 = vunpack.c.h.b16 %v2922
        %v3106 = vunpack.c.l.b16 %v2923
        %v3107 = vunpack.c.h.b16 %v2923
        %v3108 = vunpack.c.l.b16 %v2924
        %v3109 = vunpack.c.h.b16 %v2924
        %v3110 = vunpack.c.l.b16 %v2925
        %v3111 = vunpack.c.h.b16 %v2925
        %v3112 = vunpack.c.l.b16 %v2926
        %v3113 = vunpack.c.h.b16 %v2926
        %v3114 = vunpack.c.l.b16 %v2927
        %v3115 = vunpack.c.h.b16 %v2927
        %v3116 = vunpack.c.l.b16 %v2928
        %v3117 = vunpack.c.h.b16 %v2928
        %v3118 = vunpack.c.l.b16 %v2929
        %v3119 = vunpack.c.h.b16 %v2929
        %v3120 = vunpack.c.l.b16 %v2930
        %v3121 = vunpack.c.h.b16 %v2930
        %v3122 = vunpack.c.l.b16 %v2931
        %v3123 = vunpack.c.h.b16 %v2931
        %v3124 = vunpack.c.l.b16 %v2932
        %v3125 = vunpack.c.h.b16 %v2932
        %v3126 = vunpack.c.l.b16 %v2933
        %v3127 = vunpack.c.h.b16 %v2933
        %v3128 = vunpack.c.l.b16 %v2934
        %v3129 = vunpack.c.h.b16 %v2934
        %v3130 = vunpack.c.l.b16 %v2935
        %v3131 = vunpack.c.h.b16 %v2935
        %v3132 = vunpack.c.l.b16 %v2936
        %v3133 = vunpack.c.h.b16 %v2936
        %v3134 = vunpack.c.l.b16 %v2937
        %v3135 = vunpack.c.h.b16 %v2937
        %v3136 = vunpack.c.l.b16 %v2938
        %v3137 = vunpack.c.h.b16 %v2938
        %v3138 = vunpack.c.l.b16 %v2939
        %v3139 = vunpack.c.h.b16 %v2939
        %v3140 = vunpack.c.l.b16 %v2940
        %v3141 = vunpack.c.h.b16 %v2940
        %v3142 = vunpack.c.l.b16 %v2941
        %v3143 = vunpack.c.h.b16 %v2941
        %v3144 = vunpack.c.l.b16 %v2942
        %v3145 = vunpack.c.h.b16 %v2942
        %v3146 = vunpack.c.l.b16 %v2943
        %v3147 = vunpack.c.h.b16 %v2943
        %v3148 = vpack.c.b16 %v3022, %v3020
        %v3149 = vpack.c.b16 %v3023, %v3021
        %v3150 = vpack.c.b16 %v3026, %v3024
        %v3151 = vpack.c.b16 %v3027, %v3025
        %v3152 = vpack.c.b16 %v3030, %v3028
        %v3153 = vpack.c.b16 %v3031, %v3029
        %v3154 = vpack.c.b16 %v3034, %v3032
        %v3155 = vpack.c.b16 %v3035, %v3033
        %v3156 = vpack.c.b16 %v3038, %v3036
        %v3157 = vpack.c.b16 %v3039, %v3037
        %v3158 = vpack.c.b16 %v3042, %v3040
        %v3159 = vpack.c.b16 %v3043, %v3041
        %v3160 = vpack.c.b16 %v3046, %v3044
        %v3161 = vpack.c.b16 %v3047, %v3045
        %v3162 = vpack.c.b16 %v3050, %v3048
        %v3163 = vpack.c.b16 %v3051, %v3049
        %v3164 = vpack.c.b16 %v3054, %v3052
        %v3165 = vpack.c.b16 %v3055, %v3053
        %v3166 = vpack.c.b16 %v3058, %v3056
        %v3167 = vpack.c.b16 %v3059, %v3057
        %v3168 = vpack.c.b16 %v3062, %v3060
        %v3169 = vpack.c.b16 %v3063, %v3061
        %v3170 = vpack.c.b16 %v3066, %v3064
        %v3171 = vpack.c.b16 %v3067, %v3065
        %v3172 = vpack.c.b16 %v3070, %v3068
        %v3173 = vpack.c.b16 %v3071, %v3069
        %v3174 = vpack.c.b16 %v3074, %v3072
        %v3175 = vpack.c.b16 %v3075, %v3073
        %v3176 = vpack.c.b16 %v3078, %v3076
        %v3177 = vpack.c.b16 %v3079, %v3077
        %v3178 = vpack.c.b16 %v3082, %v3080
        %v3179 = vpack.c.b16 %v3083, %v3081
        %v3180 = vpack.c.b16 %v3086, %v3084
        %v3181 = vpack.c.b16 %v3087, %v3085
        %v3182 = vpack.c.b16 %v3090, %v3088
        %v3183 = vpack.c.b16 %v3091, %v3089
        %v3184 = vpack.c.b16 %v3094, %v3092
        %v3185 = vpack.c.b16 %v3095, %v3093
        %v3186 = vpack.c.b16 %v3098, %v3096
        %v3187 = vpack.c.b16 %v3099, %v3097
        %v3188 = vpack.c.b16 %v3102, %v3100
        %v3189 = vpack.c.b16 %v3103, %v3101
        %v3190 = vpack.c.b16 %v3106, %v3104
        %v3191 = vpack.c.b16 %v3107, %v3105
        %v3192 = vpack.c.b16 %v3110, %v3108
        %v3193 = vpack.c.b16 %v3111, %v3109
        %v3194 = vpack.c.b16 %v3114, %v3112
        %v3195 = vpack.c.b16 %v3115, %v3113
        %v3196 = vpack.c.b16 %v3118, %v3116
        %v3197 = vpack.c.b16 %v3119, %v3117
        %v3198 = vpack.c.b16 %v3122, %v3120
        %v3199 = vpack.c.b16 %v3123, %v3121
        %v3200 = vpack.c.b16 %v3126, %v3124
        %v3201 = vpack.c.b16 %v3127, %v3125
        %v3202 = vpack.c.b16 %v3130, %v3128
        %v3203 = vpack.c.b16 %v3131, %v3129
        %v3204 = vpack.c.b16 %v3134, %v3132
        %v3205 = vpack.c.b16 %v3135, %v3133
        %v3206 = vpack.c.b16 %v3138, %v3136
        %v3207 = vpack.c.b16 %v3139, %v3137
        %v3208 = vpack.c.b16 %v3142, %v3140
        %v3209 = vpack.c.b16 %v3143, %v3141
        %v3210 = vpack.c.b16 %v3146, %v3144
        %v3211 = vpack.c.b16 %v3147, %v3145
        %3276 = vmatprep.subr.bf16.mxu0 %v3149
        %3277 = vmatpush1.bf16.msra.mxu0 %v3148
        %3278 = vmatprep.subr.bf16.mxu0 %v3151
        %3279 = vmatpush1.bf16.msra.mxu0 %v3150
        %3280 = vmatprep.subr.bf16.mxu0 %v3153
        %3281 = vmatpush1.bf16.msra.mxu0 %v3152
        %3282 = vmatprep.subr.bf16.mxu0 %v3155
        %3283 = vmatpush1.bf16.msra.mxu0 %v3154
        %3284 = vmatprep.subr.bf16.mxu0 %v3157
        %3285 = vmatpush1.bf16.msra.mxu0 %v3156
        %3286 = vmatprep.subr.bf16.mxu0 %v3159
        %3287 = vmatpush1.bf16.msra.mxu0 %v3158
        %3288 = vmatprep.subr.bf16.mxu0 %v3161
        %3289 = vmatpush1.bf16.msra.mxu0 %v3160
        %3290 = vmatprep.subr.bf16.mxu0 %v3163
        %3291 = vmatpush1.bf16.msra.mxu0 %v3162
        %3292 = vmatprep.subr.bf16.mxu0 %v3165
        %3293 = vmatpush1.bf16.msra.mxu0 %v3164
        %3294 = vmatprep.subr.bf16.mxu0 %v3167
        %3295 = vmatpush1.bf16.msra.mxu0 %v3166
        %3296 = vmatprep.subr.bf16.mxu0 %v3169
        %3297 = vmatpush1.bf16.msra.mxu0 %v3168
        %3298 = vmatprep.subr.bf16.mxu0 %v3171
        %3299 = vmatpush1.bf16.msra.mxu0 %v3170
        %3300 = vmatprep.subr.bf16.mxu0 %v3173
        %3301 = vmatpush1.bf16.msra.mxu0 %v3172
        %3302 = vmatprep.subr.bf16.mxu0 %v3175
        %3303 = vmatpush1.bf16.msra.mxu0 %v3174
        %3304 = vmatprep.subr.bf16.mxu0 %v3177
        %3305 = vmatpush1.bf16.msra.mxu0 %v3176
        %3306 = vmatprep.subr.bf16.mxu0 %v3179
        %3307 = vmatpush1.bf16.msra.mxu0 %v3178
        %3308 = vmatprep.mubr.bf16.mxu0 %v2849
        %3309 = vmatmul.mubr.bf16.gmra.mrb[0].mxu0 %v2848
        %v3310 = vpop.f32.mrb[0].mxu0
        %v3311 = vadd.f32 %v2949, %v3310
        %v3312 = vpop.f32.mrb[0].mxu0
        %v3313 = vadd.f32 %v2953, %v3312
        %v3314 = vpop.f32.mrb[0].mxu0
        %v3315 = vadd.f32 %v2949, %v3314
        %v3316 = vpop.f32.mrb[0].mxu0
        %v3317 = vadd.f32 %v2953, %v3316
        %3318 = vmatprep.mubr.bf16.mxu0 %v2853
        %3319 = vmatmul.mubr.bf16.gmra.mrb[0].mxu0 %v2852
        %v3320 = vpop.f32.mrb[0].mxu0
        %v3321 = vadd.f32 %v2949, %v3320
        %v3322 = vpop.f32.mrb[0].mxu0
        %v3323 = vadd.f32 %v2953, %v3322
        %v3324 = vpop.f32.mrb[0].mxu0
        %v3325 = vadd.f32 %v2949, %v3324
        %v3326 = vpop.f32.mrb[0].mxu0
        %v3327 = vadd.f32 %v2953, %v3326
        %3328 = vmatprep.mubr.bf16.mxu0 %v2857
        %3329 = vmatmul.mubr.bf16.gmra.mrb[0].mxu0 %v2856
        %v3330 = vpop.f32.mrb[0].mxu0
        %v3331 = vadd.f32 %v2949, %v3330
        %v3332 = vpop.f32.mrb[0].mxu0
        %v3333 = vadd.f32 %v2953, %v3332
        %v3334 = vpop.f32.mrb[0].mxu0
        %v3335 = vadd.f32 %v2949, %v3334
        %v3336 = vpop.f32.mrb[0].mxu0
        %v3337 = vadd.f32 %v2953, %v3336
        %3338 = vmatprep.mubr.bf16.mxu0 %v2861
        %3339 = vmatmul.mubr.bf16.gmra.mrb[0].mxu0 %v2860
        %v3340 = vpop.f32.mrb[0].mxu0
        %v3341 = vadd.f32 %v2949, %v3340
        %v3342 = vpop.f32.mrb[0].mxu0
        %v3343 = vadd.f32 %v2953, %v3342
        %v3344 = vpop.f32.mrb[0].mxu0
        %v3345 = vadd.f32 %v2949, %v3344
        %v3346 = vpop.f32.mrb[0].mxu0
        %v3347 = vadd.f32 %v2953, %v3346
        %3348 = vmatprep.mubr.bf16.mxu0 %v2865
        %3349 = vmatmul.mubr.bf16.gmra.mrb[0].mxu0 %v2864
        %v3350 = vpop.f32.mrb[0].mxu0
        %v3351 = vadd.f32 %v2949, %v3350
        %v3352 = vpop.f32.mrb[0].mxu0
        %v3353 = vadd.f32 %v2953, %v3352
        %v3354 = vpop.f32.mrb[0].mxu0
        %v3355 = vadd.f32 %v2949, %v3354
        %v3356 = vpop.f32.mrb[0].mxu0
        %v3357 = vadd.f32 %v2953, %v3356
        %3358 = vmatprep.mubr.bf16.mxu0 %v2869
        %3359 = vmatmul.mubr.bf16.gmra.mrb[0].mxu0 %v2868
        %v3360 = vpop.f32.mrb[0].mxu0
        %v3361 = vadd.f32 %v2949, %v3360
        %v3362 = vpop.f32.mrb[0].mxu0
        %v3363 = vadd.f32 %v2953, %v3362
        %v3364 = vpop.f32.mrb[0].mxu0
        %v3365 = vadd.f32 %v2949, %v3364
        %v3366 = vpop.f32.mrb[0].mxu0
        %v3367 = vadd.f32 %v2953, %v3366
        %3368 = vmatprep.mubr.bf16.mxu0 %v2873
        %3369 = vmatmul.mubr.bf16.gmra.mrb[0].mxu0 %v2872
        %v3370 = vpop.f32.mrb[0].mxu0
        %v3371 = vadd.f32 %v2949, %v3370
        %v3372 = vpop.f32.mrb[0].mxu0
        %v3373 = vadd.f32 %v2953, %v3372
        %v3374 = vpop.f32.mrb[0].mxu0
        %v3375 = vadd.f32 %v2949, %v3374
        %v3376 = vpop.f32.mrb[0].mxu0
        %v3377 = vadd.f32 %v2953, %v3376
        %3378 = vmatprep.mubr.bf16.mxu0 %v2877
        %3379 = vmatmul.mubr.bf16.gmra.mrb[0].mxu0 %v2876
        %v3380 = vpop.f32.mrb[0].mxu0
        %v3381 = vadd.f32 %v2949, %v3380
        %v3382 = vpop.f32.mrb[0].mxu0
        %v3383 = vadd.f32 %v2953, %v3382
        %v3384 = vpop.f32.mrb[0].mxu0
        %v3385 = vadd.f32 %v2949, %v3384
        %v3386 = vpop.f32.mrb[0].mxu0
        %v3387 = vadd.f32 %v2953, %v3386
        %3388 = vdwg.mxu0
        %3389 = vmatprep.subr.bf16.mxu0 %v3181
        %3390 = vmatpush1.bf16.msra.mxu0 %v3180
        %3391 = vmatprep.subr.bf16.mxu0 %v3183
        %3392 = vmatpush1.bf16.msra.mxu0 %v3182
        %3393 = vmatprep.subr.bf16.mxu0 %v3185
        %3394 = vmatpush1.bf16.msra.mxu0 %v3184
        %3395 = vmatprep.subr.bf16.mxu0 %v3187
        %3396 = vmatpush1.bf16.msra.mxu0 %v3186
        %3397 = vmatprep.subr.bf16.mxu0 %v3189
        %3398 = vmatpush1.bf16.msra.mxu0 %v3188
        %3399 = vmatprep.subr.bf16.mxu0 %v3191
        %3400 = vmatpush1.bf16.msra.mxu0 %v3190
        %3401 = vmatprep.subr.bf16.mxu0 %v3193
        %3402 = vmatpush1.bf16.msra.mxu0 %v3192
        %3403 = vmatprep.subr.bf16.mxu0 %v3195
        %3404 = vmatpush1.bf16.msra.mxu0 %v3194
        %3405 = vmatprep.subr.bf16.mxu0 %v3197
        %3406 = vmatpush1.bf16.msra.mxu0 %v3196
        %3407 = vmatprep.subr.bf16.mxu0 %v3199
        %3408 = vmatpush1.bf16.msra.mxu0 %v3198
        %3409 = vmatprep.subr.bf16.mxu0 %v3201
        %3410 = vmatpush1.bf16.msra.mxu0 %v3200
        %3411 = vmatprep.subr.bf16.mxu0 %v3203
        %3412 = vmatpush1.bf16.msra.mxu0 %v3202
        %3413 = vmatprep.subr.bf16.mxu0 %v3205
        %3414 = vmatpush1.bf16.msra.mxu0 %v3204
        %3415 = vmatprep.subr.bf16.mxu0 %v3207
        %3416 = vmatpush1.bf16.msra.mxu0 %v3206
        %3417 = vmatprep.subr.bf16.mxu0 %v3209
        %3418 = vmatpush1.bf16.msra.mxu0 %v3208
        %3419 = vmatprep.subr.bf16.mxu0 %v3211
        %3420 = vmatpush1.bf16.msra.mxu0 %v3210
        %3421 = vmatprep.mubr.bf16.mxu0 %v2851
        %3422 = vmatmul.mubr.bf16.gmra.mrb[0].mxu0 %v2850
        %v3423 = vpop.f32.mrb[0].mxu0
        %v3424 = vadd.f32 %v3311, %v3423
        %v3425 = vpop.f32.mrb[0].mxu0
        %v3426 = vadd.f32 %v3313, %v3425
        %v3427 = vpop.f32.mrb[0].mxu0
        %v3428 = vadd.f32 %v3315, %v3427
        %v3429 = vpop.f32.mrb[0].mxu0
        %v3430 = vadd.f32 %v3317, %v3429
        %3431 = vmatprep.mubr.bf16.mxu0 %v2855
        %3432 = vmatmul.mubr.bf16.gmra.mrb[0].mxu0 %v2854
        %v3433 = vpop.f32.mrb[0].mxu0
        %v3434 = vadd.f32 %v3321, %v3433
        %v3435 = vpop.f32.mrb[0].mxu0
        %v3436 = vadd.f32 %v3323, %v3435
        %v3437 = vpop.f32.mrb[0].mxu0
        %v3438 = vadd.f32 %v3325, %v3437
        %v3439 = vpop.f32.mrb[0].mxu0
        %v3440 = vadd.f32 %v3327, %v3439
        %3441 = vmatprep.mubr.bf16.mxu0 %v2859
        %3442 = vmatmul.mubr.bf16.gmra.mrb[0].mxu0 %v2858
        %v3443 = vpop.f32.mrb[0].mxu0
        %v3444 = vadd.f32 %v3331, %v3443
        %v3445 = vpop.f32.mrb[0].mxu0
        %v3446 = vadd.f32 %v3333, %v3445
        %v3447 = vpop.f32.mrb[0].mxu0
        %v3448 = vadd.f32 %v3335, %v3447
        %v3449 = vpop.f32.mrb[0].mxu0
        %v3450 = vadd.f32 %v3337, %v3449
        %3451 = vmatprep.mubr.bf16.mxu0 %v2863
        %3452 = vmatmul.mubr.bf16.gmra.mrb[0].mxu0 %v2862
        %v3453 = vpop.f32.mrb[0].mxu0
        %v3454 = vadd.f32 %v3341, %v3453
        %v3455 = vpop.f32.mrb[0].mxu0
        %v3456 = vadd.f32 %v3343, %v3455
        %v3457 = vpop.f32.mrb[0].mxu0
        %v3458 = vadd.f32 %v3345, %v3457
        %v3459 = vpop.f32.mrb[0].mxu0
        %v3460 = vadd.f32 %v3347, %v3459
        %3461 = vmatprep.mubr.bf16.mxu0 %v2867
        %3462 = vmatmul.mubr.bf16.gmra.mrb[0].mxu0 %v2866
        %v3463 = vpop.f32.mrb[0].mxu0
        %v3464 = vadd.f32 %v3351, %v3463
        %v3465 = vpop.f32.mrb[0].mxu0
        %v3466 = vadd.f32 %v3353, %v3465
        %v3467 = vpop.f32.mrb[0].mxu0
        %v3468 = vadd.f32 %v3355, %v3467
        %v3469 = vpop.f32.mrb[0].mxu0
        %v3470 = vadd.f32 %v3357, %v3469
        %3471 = vmatprep.mubr.bf16.mxu0 %v2871
        %3472 = vmatmul.mubr.bf16.gmra.mrb[0].mxu0 %v2870
        %v3473 = vpop.f32.mrb[0].mxu0
        %v3474 = vadd.f32 %v3361, %v3473
        %v3475 = vpop.f32.mrb[0].mxu0
        %v3476 = vadd.f32 %v3363, %v3475
        %v3477 = vpop.f32.mrb[0].mxu0
        %v3478 = vadd.f32 %v3365, %v3477
        %v3479 = vpop.f32.mrb[0].mxu0
        %v3480 = vadd.f32 %v3367, %v3479
        %3481 = vmatprep.mubr.bf16.mxu0 %v2875
        %3482 = vmatmul.mubr.bf16.gmra.mrb[0].mxu0 %v2874
        %v3483 = vpop.f32.mrb[0].mxu0
        %v3484 = vadd.f32 %v3371, %v3483
        %v3485 = vpop.f32.mrb[0].mxu0
        %v3486 = vadd.f32 %v3373, %v3485
        %v3487 = vpop.f32.mrb[0].mxu0
        %v3488 = vadd.f32 %v3375, %v3487
        %v3489 = vpop.f32.mrb[0].mxu0
        %v3490 = vadd.f32 %v3377, %v3489
        %3491 = vmatprep.mubr.bf16.mxu0 %v2879
        %3492 = vmatmul.mubr.bf16.gmra.mrb[0].mxu0 %v2878
        %v3493 = vpop.f32.mrb[0].mxu0
        %v3494 = vadd.f32 %v3381, %v3493
        %v3495 = vpop.f32.mrb[0].mxu0
        %v3496 = vadd.f32 %v3383, %v3495
        %v3497 = vpop.f32.mrb[0].mxu0
        %v3498 = vadd.f32 %v3385, %v3497
        %v3499 = vpop.f32.mrb[0].mxu0
        %v3500 = vadd.f32 %v3387, %v3499
        %3501 = vdwg.mxu0
        %v3502 = vadd.f32 %v2104, %v3424
        %v3503 = vadd.f32 %v2105, %v3426
        %v3504 = vadd.f32 %v2106, %v3428
        %v3505 = vadd.f32 %v2107, %v3430
        %v3506 = vadd.f32 %v2108, %v3434
        %v3507 = vadd.f32 %v2109, %v3436
        %v3508 = vadd.f32 %v2110, %v3438
        %v3509 = vadd.f32 %v2111, %v3440
        %v3510 = vadd.f32 %v2112, %v3444
        %v3511 = vadd.f32 %v2113, %v3446
        %v3512 = vadd.f32 %v2114, %v3448
        %v3513 = vadd.f32 %v2115, %v3450
        %v3514 = vadd.f32 %v2116, %v3454
        %v3515 = vadd.f32 %v2117, %v3456
        %v3516 = vadd.f32 %v2118, %v3458
        %v3517 = vadd.f32 %v2119, %v3460
        %v3518 = vadd.f32 %v2120, %v3464
        %v3519 = vadd.f32 %v2121, %v3466
        %v3520 = vadd.f32 %v2122, %v3468
        %v3521 = vadd.f32 %v2123, %v3470
        %v3522 = vadd.f32 %v2124, %v3474
        %v3523 = vadd.f32 %v2125, %v3476
        %v3524 = vadd.f32 %v2126, %v3478
        %v3525 = vadd.f32 %v2127, %v3480
        %v3526 = vadd.f32 %v2128, %v3484
        %v3527 = vadd.f32 %v2129, %v3486
        %v3528 = vadd.f32 %v2130, %v3488
        %v3529 = vadd.f32 %v2131, %v3490
        %v3530 = vadd.f32 %v2132, %v3494
        %v3531 = vadd.f32 %v2133, %v3496
        %v3532 = vadd.f32 %v2134, %v3498
        %v3533 = vadd.f32 %v2135, %v3500
        %v3534 = vld [vmem:[#allocation20] sm:$0x3]
        %v3535 = vld [vmem:[#allocation22] sm:$0x3]
        %v3536 = vadd.f32 %v3502, %v3503
        %3537 = vadd.xlane.f32.xlu0 %v3536
        %v3538 = vpop.xlane.xlu0 %3537
        %v3539 = vadd.f32 %v3504, %v3505
        %3540 = vadd.xlane.f32.xlu0 %v3539
        %v3541 = vpop.xlane.xlu0 %3540
        %v3542 = vadd.f32 %v3506, %v3507
        %3543 = vadd.xlane.f32.xlu0 %v3542
        %v3544 = vpop.xlane.xlu0 %3543
        %v3545 = vadd.f32 %v3508, %v3509
        %3546 = vadd.xlane.f32.xlu0 %v3545
        %v3547 = vpop.xlane.xlu0 %3546
        %v3548 = vadd.f32 %v3510, %v3511
        %3549 = vadd.xlane.f32.xlu0 %v3548
        %v3550 = vpop.xlane.xlu0 %3549
        %v3551 = vadd.f32 %v3512, %v3513
        %3552 = vadd.xlane.f32.xlu0 %v3551
        %v3553 = vpop.xlane.xlu0 %3552
        %v3554 = vadd.f32 %v3514, %v3515
        %3555 = vadd.xlane.f32.xlu0 %v3554
        %v3556 = vpop.xlane.xlu0 %3555
        %v3557 = vadd.f32 %v3516, %v3517
        %3558 = vadd.xlane.f32.xlu0 %v3557
        %v3559 = vpop.xlane.xlu0 %3558
        %v3560 = vadd.f32 %v3518, %v3519
        %3561 = vadd.xlane.f32.xlu0 %v3560
        %v3562 = vpop.xlane.xlu0 %3561
        %v3563 = vadd.f32 %v3520, %v3521
        %3564 = vadd.xlane.f32.xlu0 %v3563
        %v3565 = vpop.xlane.xlu0 %3564
        %v3566 = vadd.f32 %v3522, %v3523
        %3567 = vadd.xlane.f32.xlu0 %v3566
        %v3568 = vpop.xlane.xlu0 %3567
        %v3569 = vadd.f32 %v3524, %v3525
        %3570 = vadd.xlane.f32.xlu0 %v3569
        %v3571 = vpop.xlane.xlu0 %3570
        %v3572 = vadd.f32 %v3526, %v3527
        %3573 = vadd.xlane.f32.xlu0 %v3572
        %v3574 = vpop.xlane.xlu0 %3573
        %v3575 = vadd.f32 %v3528, %v3529
        %3576 = vadd.xlane.f32.xlu0 %v3575
        %v3577 = vpop.xlane.xlu0 %3576
        %v3578 = vadd.f32 %v3530, %v3531
        %3579 = vadd.xlane.f32.xlu0 %v3578
        %v3580 = vpop.xlane.xlu0 %3579
        %v3581 = vadd.f32 %v3532, %v3533
        %3582 = vadd.xlane.f32.xlu0 %v3581
        %v3583 = vpop.xlane.xlu0 %3582
        %v3584 = vmul.f32 %v3538, %v1841
        %v3585 = vmul.f32 %v3541, %v1841
        %v3586 = vmul.f32 %v3544, %v1841
        %v3587 = vmul.f32 %v3547, %v1841
        %v3588 = vmul.f32 %v3550, %v1841
        %v3589 = vmul.f32 %v3553, %v1841
        %v3590 = vmul.f32 %v3556, %v1841
        %v3591 = vmul.f32 %v3559, %v1841
        %v3592 = vmul.f32 %v3562, %v1841
        %v3593 = vmul.f32 %v3565, %v1841
        %v3594 = vmul.f32 %v3568, %v1841
        %v3595 = vmul.f32 %v3571, %v1841
        %v3596 = vmul.f32 %v3574, %v1841
        %v3597 = vmul.f32 %v3577, %v1841
        %v3598 = vmul.f32 %v3580, %v1841
        %v3599 = vmul.f32 %v3583, %v1841
        %v3600 = vsub.f32 %v3502, %v3584
        %v3601 = vsub.f32 %v3503, %v3584
        %v3602 = vsub.f32 %v3504, %v3585
        %v3603 = vsub.f32 %v3505, %v3585
        %v3604 = vsub.f32 %v3506, %v3586
        %v3605 = vsub.f32 %v3507, %v3586
        %v3606 = vsub.f32 %v3508, %v3587
        %v3607 = vsub.f32 %v3509, %v3587
        %v3608 = vsub.f32 %v3510, %v3588
        %v3609 = vsub.f32 %v3511, %v3588
        %v3610 = vsub.f32 %v3512, %v3589
        %v3611 = vsub.f32 %v3513, %v3589
        %v3612 = vsub.f32 %v3514, %v3590
        %v3613 = vsub.f32 %v3515, %v3590
        %v3614 = vsub.f32 %v3516, %v3591
        %v3615 = vsub.f32 %v3517, %v3591
        %v3616 = vsub.f32 %v3518, %v3592
        %v3617 = vsub.f32 %v3519, %v3592
        %v3618 = vsub.f32 %v3520, %v3593
        %v3619 = vsub.f32 %v3521, %v3593
        %v3620 = vsub.f32 %v3522, %v3594
        %v3621 = vsub.f32 %v3523, %v3594
        %v3622 = vsub.f32 %v3524, %v3595
        %v3623 = vsub.f32 %v3525, %v3595
        %v3624 = vsub.f32 %v3526, %v3596
        %v3625 = vsub.f32 %v3527, %v3596
        %v3626 = vsub.f32 %v3528, %v3597
        %v3627 = vsub.f32 %v3529, %v3597
        %v3628 = vsub.f32 %v3530, %v3598
        %v3629 = vsub.f32 %v3531, %v3598
        %v3630 = vsub.f32 %v3532, %v3599
        %v3631 = vsub.f32 %v3533, %v3599
        %v3632 = vmul.f32 %v3600, %v3600
        %v3633 = vmul.f32 %v3601, %v3601
        %v3634 = vmul.f32 %v3602, %v3602
        %v3635 = vmul.f32 %v3603, %v3603
        %v3636 = vmul.f32 %v3604, %v3604
        %v3637 = vmul.f32 %v3605, %v3605
        %v3638 = vmul.f32 %v3606, %v3606
        %v3639 = vmul.f32 %v3607, %v3607
        %v3640 = vmul.f32 %v3608, %v3608
        %v3641 = vmul.f32 %v3609, %v3609
        %v3642 = vmul.f32 %v3610, %v3610
        %v3643 = vmul.f32 %v3611, %v3611
        %v3644 = vmul.f32 %v3612, %v3612
        %v3645 = vmul.f32 %v3613, %v3613
        %v3646 = vmul.f32 %v3614, %v3614
        %v3647 = vmul.f32 %v3615, %v3615
        %v3648 = vmul.f32 %v3616, %v3616
        %v3649 = vmul.f32 %v3617, %v3617
        %v3650 = vmul.f32 %v3618, %v3618
        %v3651 = vmul.f32 %v3619, %v3619
        %v3652 = vmul.f32 %v3620, %v3620
        %v3653 = vmul.f32 %v3621, %v3621
        %v3654 = vmul.f32 %v3622, %v3622
        %v3655 = vmul.f32 %v3623, %v3623
        %v3656 = vmul.f32 %v3624, %v3624
        %v3657 = vmul.f32 %v3625, %v3625
        %v3658 = vmul.f32 %v3626, %v3626
        %v3659 = vmul.f32 %v3627, %v3627
        %v3660 = vmul.f32 %v3628, %v3628
        %v3661 = vmul.f32 %v3629, %v3629
        %v3662 = vmul.f32 %v3630, %v3630
        %v3663 = vmul.f32 %v3631, %v3631
        %v3664 = vadd.f32 %v3632, %v3633
        %3665 = vadd.xlane.f32.xlu0 %v3664
        %v3666 = vpop.xlane.xlu0 %3665
        %v3667 = vadd.f32 %v3634, %v3635
        %3668 = vadd.xlane.f32.xlu0 %v3667
        %v3669 = vpop.xlane.xlu0 %3668
        %v3670 = vadd.f32 %v3636, %v3637
        %3671 = vadd.xlane.f32.xlu0 %v3670
        %v3672 = vpop.xlane.xlu0 %3671
        %v3673 = vadd.f32 %v3638, %v3639
        %3674 = vadd.xlane.f32.xlu0 %v3673
        %v3675 = vpop.xlane.xlu0 %3674
        %v3676 = vadd.f32 %v3640, %v3641
        %3677 = vadd.xlane.f32.xlu0 %v3676
        %v3678 = vpop.xlane.xlu0 %3677
        %v3679 = vadd.f32 %v3642, %v3643
        %3680 = vadd.xlane.f32.xlu0 %v3679
        %v3681 = vpop.xlane.xlu0 %3680
        %v3682 = vadd.f32 %v3644, %v3645
        %3683 = vadd.xlane.f32.xlu0 %v3682
        %v3684 = vpop.xlane.xlu0 %3683
        %v3685 = vadd.f32 %v3646, %v3647
        %3686 = vadd.xlane.f32.xlu0 %v3685
        %v3687 = vpop.xlane.xlu0 %3686
        %v3688 = vadd.f32 %v3648, %v3649
        %3689 = vadd.xlane.f32.xlu0 %v3688
        %v3690 = vpop.xlane.xlu0 %3689
        %v3691 = vadd.f32 %v3650, %v3651
        %3692 = vadd.xlane.f32.xlu0 %v3691
        %v3693 = vpop.xlane.xlu0 %3692
        %v3694 = vadd.f32 %v3652, %v3653
        %3695 = vadd.xlane.f32.xlu0 %v3694
        %v3696 = vpop.xlane.xlu0 %3695
        %v3697 = vadd.f32 %v3654, %v3655
        %3698 = vadd.xlane.f32.xlu0 %v3697
        %v3699 = vpop.xlane.xlu0 %3698
        %v3700 = vadd.f32 %v3656, %v3657
        %3701 = vadd.xlane.f32.xlu0 %v3700
        %v3702 = vpop.xlane.xlu0 %3701
        %v3703 = vadd.f32 %v3658, %v3659
        %3704 = vadd.xlane.f32.xlu0 %v3703
        %v3705 = vpop.xlane.xlu0 %3704
        %v3706 = vadd.f32 %v3660, %v3661
        %3707 = vadd.xlane.f32.xlu0 %v3706
        %v3708 = vpop.xlane.xlu0 %3707
        %v3709 = vadd.f32 %v3662, %v3663
        %3710 = vadd.xlane.f32.xlu0 %v3709
        %v3711 = vpop.xlane.xlu0 %3710
        %v3712 = vmul.f32 %v3666, %v1841
        %v3713 = vmul.f32 %v3669, %v1841
        %v3714 = vmul.f32 %v3672, %v1841
        %v3715 = vmul.f32 %v3675, %v1841
        %v3716 = vmul.f32 %v3678, %v1841
        %v3717 = vmul.f32 %v3681, %v1841
        %v3718 = vmul.f32 %v3684, %v1841
        %v3719 = vmul.f32 %v3687, %v1841
        %v3720 = vmul.f32 %v3690, %v1841
        %v3721 = vmul.f32 %v3693, %v1841
        %v3722 = vmul.f32 %v3696, %v1841
        %v3723 = vmul.f32 %v3699, %v1841
        %v3724 = vmul.f32 %v3702, %v1841
        %v3725 = vmul.f32 %v3705, %v1841
        %v3726 = vmul.f32 %v3708, %v1841
        %v3727 = vmul.f32 %v3711, %v1841
        %v3728 = vadd.f32 %v3712, 1e-05
        %v3729 = vadd.f32 %v3713, 1e-05
        %v3730 = vadd.f32 %v3714, 1e-05
        %v3731 = vadd.f32 %v3715, 1e-05
        %v3732 = vadd.f32 %v3716, 1e-05
        %v3733 = vadd.f32 %v3717, 1e-05
        %v3734 = vadd.f32 %v3718, 1e-05
        %v3735 = vadd.f32 %v3719, 1e-05
        %v3736 = vadd.f32 %v3720, 1e-05
        %v3737 = vadd.f32 %v3721, 1e-05
        %v3738 = vadd.f32 %v3722, 1e-05
        %v3739 = vadd.f32 %v3723, 1e-05
        %v3740 = vadd.f32 %v3724, 1e-05
        %v3741 = vadd.f32 %v3725, 1e-05
        %v3742 = vadd.f32 %v3726, 1e-05
        %v3743 = vadd.f32 %v3727, 1e-05
        %v3744 = vrsqrt.pop %v3728
        %v3745 = vrsqrt.pop %v3729
        %v3746 = vrsqrt.pop %v3730
        %v3747 = vrsqrt.pop %v3731
        %v3748 = vrsqrt.pop %v3732
        %v3749 = vrsqrt.pop %v3733
        %v3750 = vrsqrt.pop %v3734
        %v3751 = vrsqrt.pop %v3735
        %v3752 = vrsqrt.pop %v3736
        %v3753 = vrsqrt.pop %v3737
        %v3754 = vrsqrt.pop %v3738
        %v3755 = vrsqrt.pop %v3739
        %v3756 = vrsqrt.pop %v3740
        %v3757 = vrsqrt.pop %v3741
        %v3758 = vrsqrt.pop %v3742
        %v3759 = vrsqrt.pop %v3743
        %v3760 = vmul.f32 %v3600, %v3744
        %v3761 = vmul.f32 %v3601, %v3744
        %v3762 = vmul.f32 %v3602, %v3745
        %v3763 = vmul.f32 %v3603, %v3745
        %v3764 = vmul.f32 %v3604, %v3746
        %v3765 = vmul.f32 %v3605, %v3746
        %v3766 = vmul.f32 %v3606, %v3747
        %v3767 = vmul.f32 %v3607, %v3747
        %v3768 = vmul.f32 %v3608, %v3748
        %v3769 = vmul.f32 %v3609, %v3748
        %v3770 = vmul.f32 %v3610, %v3749
        %v3771 = vmul.f32 %v3611, %v3749
        %v3772 = vmul.f32 %v3612, %v3750
        %v3773 = vmul.f32 %v3613, %v3750
        %v3774 = vmul.f32 %v3614, %v3751
        %v3775 = vmul.f32 %v3615, %v3751
        %v3776 = vmul.f32 %v3616, %v3752
        %v3777 = vmul.f32 %v3617, %v3752
        %v3778 = vmul.f32 %v3618, %v3753
        %v3779 = vmul.f32 %v3619, %v3753
        %v3780 = vmul.f32 %v3620, %v3754
        %v3781 = vmul.f32 %v3621, %v3754
        %v3782 = vmul.f32 %v3622, %v3755
        %v3783 = vmul.f32 %v3623, %v3755
        %v3784 = vmul.f32 %v3624, %v3756
        %v3785 = vmul.f32 %v3625, %v3756
        %v3786 = vmul.f32 %v3626, %v3757
        %v3787 = vmul.f32 %v3627, %v3757
        %v3788 = vmul.f32 %v3628, %v3758
        %v3789 = vmul.f32 %v3629, %v3758
        %v3790 = vmul.f32 %v3630, %v3759
        %v3791 = vmul.f32 %v3631, %v3759
        %v3793 = vlaneseq
        %v3794 = vshrl.u32 %v3793, 7
        %v3795 = vsub.s32 0, %v3794
        %v3796 = vrot.slane %v3534, %v3795
        %v3797 = vlaneseq
        %v3798 = vshrl.u32 %v3797, 7
        %v3799 = vsub.s32 1, %v3798
        %v3800 = vrot.slane %v3534, %v3799
        %v3803 = vmul.f32 %v3760, %v3796
        %v3804 = vmul.f32 %v3761, %v3800
        %v3805 = vmul.f32 %v3762, %v3796
        %v3806 = vmul.f32 %v3763, %v3800
        %v3807 = vmul.f32 %v3764, %v3796
        %v3808 = vmul.f32 %v3765, %v3800
        %v3809 = vmul.f32 %v3766, %v3796
        %v3810 = vmul.f32 %v3767, %v3800
        %v3811 = vmul.f32 %v3768, %v3796
        %v3812 = vmul.f32 %v3769, %v3800
        %v3813 = vmul.f32 %v3770, %v3796
        %v3814 = vmul.f32 %v3771, %v3800
        %v3815 = vmul.f32 %v3772, %v3796
        %v3816 = vmul.f32 %v3773, %v3800
        %v3817 = vmul.f32 %v3774, %v3796
        %v3818 = vmul.f32 %v3775, %v3800
        %v3819 = vmul.f32 %v3776, %v3796
        %v3820 = vmul.f32 %v3777, %v3800
        %v3821 = vmul.f32 %v3778, %v3796
        %v3822 = vmul.f32 %v3779, %v3800
        %v3823 = vmul.f32 %v3780, %v3796
        %v3824 = vmul.f32 %v3781, %v3800
        %v3825 = vmul.f32 %v3782, %v3796
        %v3826 = vmul.f32 %v3783, %v3800
        %v3827 = vmul.f32 %v3784, %v3796
        %v3828 = vmul.f32 %v3785, %v3800
        %v3829 = vmul.f32 %v3786, %v3796
        %v3830 = vmul.f32 %v3787, %v3800
        %v3831 = vmul.f32 %v3788, %v3796
        %v3832 = vmul.f32 %v3789, %v3800
        %v3833 = vmul.f32 %v3790, %v3796
        %v3834 = vmul.f32 %v3791, %v3800
        %v3836 = vlaneseq
        %v3837 = vshrl.u32 %v3836, 7
        %v3838 = vsub.s32 0, %v3837
        %v3839 = vrot.slane %v3535, %v3838
        %v3840 = vlaneseq
        %v3841 = vshrl.u32 %v3840, 7
        %v3842 = vsub.s32 1, %v3841
        %v3843 = vrot.slane %v3535, %v3842
        %v3846 = vadd.f32 %v3803, %v3839
        %v3847 = vadd.f32 %v3804, %v3843
        %v3848 = vadd.f32 %v3805, %v3839
        %v3849 = vadd.f32 %v3806, %v3843
        %v3850 = vadd.f32 %v3807, %v3839
        %v3851 = vadd.f32 %v3808, %v3843
        %v3852 = vadd.f32 %v3809, %v3839
        %v3853 = vadd.f32 %v3810, %v3843
        %v3854 = vadd.f32 %v3811, %v3839
        %v3855 = vadd.f32 %v3812, %v3843
        %v3856 = vadd.f32 %v3813, %v3839
        %v3857 = vadd.f32 %v3814, %v3843
        %v3858 = vadd.f32 %v3815, %v3839
        %v3859 = vadd.f32 %v3816, %v3843
        %v3860 = vadd.f32 %v3817, %v3839
        %v3861 = vadd.f32 %v3818, %v3843
        %v3862 = vadd.f32 %v3819, %v3839
        %v3863 = vadd.f32 %v3820, %v3843
        %v3864 = vadd.f32 %v3821, %v3839
        %v3865 = vadd.f32 %v3822, %v3843
        %v3866 = vadd.f32 %v3823, %v3839
        %v3867 = vadd.f32 %v3824, %v3843
        %v3868 = vadd.f32 %v3825, %v3839
        %v3869 = vadd.f32 %v3826, %v3843
        %v3870 = vadd.f32 %v3827, %v3839
        %v3871 = vadd.f32 %v3828, %v3843
        %v3872 = vadd.f32 %v3829, %v3839
        %v3873 = vadd.f32 %v3830, %v3843
        %v3874 = vadd.f32 %v3831, %v3839
        %v3875 = vadd.f32 %v3832, %v3843
        %v3876 = vadd.f32 %v3833, %v3839
        %v3877 = vadd.f32 %v3834, %v3843
        %3878 = vst [vmem:[%s687] sm:$0xff] %v3846
        %3879 = vst [vmem:[%s687 + $0x8] sm:$0xff] %v3847
        %3880 = vst [vmem:[%s687 + $0x10] sm:$0xff] %v3848
        %3881 = vst [vmem:[%s687 + $0x18] sm:$0xff] %v3849
        %3882 = vst [vmem:[%s687 + $0x20] sm:$0xff] %v3850
        %3883 = vst [vmem:[%s687 + $0x28] sm:$0xff] %v3851
        %3884 = vst [vmem:[%s687 + $0x30] sm:$0xff] %v3852
        %3885 = vst [vmem:[%s687 + $0x38] sm:$0xff] %v3853
        %3886 = vst [vmem:[%s687 + $0x40] sm:$0xff] %v3854
        %3887 = vst [vmem:[%s687 + $0x48] sm:$0xff] %v3855
        %3888 = vst [vmem:[%s687 + $0x50] sm:$0xff] %v3856
        %3889 = vst [vmem:[%s687 + $0x58] sm:$0xff] %v3857
        %3890 = vst [vmem:[%s687 + $0x60] sm:$0xff] %v3858
        %3891 = vst [vmem:[%s687 + $0x68] sm:$0xff] %v3859
        %3892 = vst [vmem:[%s687 + $0x70] sm:$0xff] %v3860
        %3893 = vst [vmem:[%s687 + $0x78] sm:$0xff] %v3861
        %3894 = vst [vmem:[%s687 + $0x80] sm:$0xff] %v3862
        %3895 = vst [vmem:[%s687 + $0x88] sm:$0xff] %v3863
        %3896 = vst [vmem:[%s687 + $0x90] sm:$0xff] %v3864
        %3897 = vst [vmem:[%s687 + $0x98] sm:$0xff] %v3865
        %3898 = vst [vmem:[%s687 + $0xa0] sm:$0xff] %v3866
        %3899 = vst [vmem:[%s687 + $0xa8] sm:$0xff] %v3867
        %3900 = vst [vmem:[%s687 + $0xb0] sm:$0xff] %v3868
        %3901 = vst [vmem:[%s687 + $0xb8] sm:$0xff] %v3869
        %3902 = vst [vmem:[%s687 + $0xc0] sm:$0xff] %v3870
        %3903 = vst [vmem:[%s687 + $0xc8] sm:$0xff] %v3871
        %3904 = vst [vmem:[%s687 + $0xd0] sm:$0xff] %v3872
        %3905 = vst [vmem:[%s687 + $0xd8] sm:$0xff] %v3873
        %3906 = vst [vmem:[%s687 + $0xe0] sm:$0xff] %v3874
        %3907 = vst [vmem:[%s687 + $0xe8] sm:$0xff] %v3875
        %3908 = vst [vmem:[%s687 + $0xf0] sm:$0xff] %v3876
        %3909 = vst [vmem:[%s687 + $0xf8] sm:$0xff] %v3877
        %s3910 = sand.u32 %s350, 1
        %s3911 = scalar_lea.sflag [#allocation4], %s3910
        %s3912 = sand.u32 %s350, 1
        %s3913 = smul.addr %s3912, 256
        %s3914 = scalar_lea.vmem [#allocation23], %s3913
        // Predicated region
        $region132: #{tpu_custom_call.1} parent=71 // pred_check
          %p3915 = pneg %p360
        $region133: #{tpu_custom_call.1} parent=71 // pred_check_branch
          %3917 = sbr.rel (%p3915) target = $region135
        $region134: #{tpu_custom_call.1} parent=71 // pred_region
          %s3918 = smul.u32 16, %s43
          %s3920 = ssub.s32 4096, 4096
          %3921 = vsyncadd %s3911, %s3920
          %s3922 = smul.addr %s3918, 2
          %s3923 = smul.addr %s42, 32
          %s3924 = sadd.s32 %s3922, %s3923
          %s3925 = smul.addr %s3924, 128
          %s3926 = scalar_lea.hbm %s13, %s3925
          %s3927 = sshll.u32 %s3914, 4
          %s3928 = int_to_ptr.vmem [resolvable:$true] %s3927
          %3933 = dma.vmem_to_hbm [thread:$0]  %s3928, 4096, %s3926, %s3911, 256, 256, 16
        $region135: #{tpu_custom_call.1} parent=71 // pred_fallthru
          _
      $region72: #{tpu_custom_call.1} parent=5 // pred_fallthru
        _
      %p3934 = scmp.le.s32.totalorder 2, %s33
      // Predicated region
      $region136: #{tpu_custom_call.1} parent=5 // pred_check
        %p3935 = pneg %p3934
      $region137: #{tpu_custom_call.1} parent=5 // pred_check_branch
        %3937 = sbr.rel (%p3935) target = $region139
      $region138: #{tpu_custom_call.1} parent=5 // pred_region
        %s3938 = ssub.s32 %s33, 2
        // Predicated region
        $region140: #{tpu_custom_call.1} parent=138 // pred_check
          %p3939 = pneg %p366
        $region141: #{tpu_custom_call.1} parent=138 // pred_check_branch
          %3941 = sbr.rel (%p3939) target = $region143
        $region142: #{tpu_custom_call.1} parent=138 // pred_region
          %s3942 = sand.u32 %s351, 1
          %s3943 = scalar_lea.sflag [#allocation4], %s3942
          %s3944 = sand.u32 %s351, 1
          %s3945 = smul.addr %s3944, 256
          %s3946 = scalar_lea.vmem [#allocation23], %s3945
          %3947 = dma.done %s3943, 4096
        $region143: #{tpu_custom_call.1} parent=138 // pred_fallthru
          _
      $region139: #{tpu_custom_call.1} parent=5 // pred_fallthru
        _
    $region6: #{tpu_custom_call.1} parent=1 // loop_footer
      %s37 = sadd.s32 1, %s33
    $region7: #{tpu_custom_call.1} parent=1 // loop_footer_branch
      %32 = sbr.rel target = $region3
    $region8: #{tpu_custom_call.1} parent=1 // loop_exit
      _
    %3948 = vsyncpa [#allocation3], 1
    %s3949 = scalar_lea.sflag [#allocation3], 1
    %3950 = vsyncpa %s3949, 1
    %3951 = vsyncpa [#allocation6], 1
    %s3952 = scalar_lea.sflag [#allocation6], 1
    %3953 = vsyncpa %s3952, 1
    %3954 = vsyncpa [#allocation9], 1
    %3955 = vsyncpa [#allocation12], 1
    %3956 = vsyncpa [#allocation15], 1
    %3957 = vsyncpa [#allocation18], 1
    %3958 = vsyncpa [#allocation21], 1
    %3959 = vsyncpa [#allocation4], 1
    %s3960 = scalar_lea.sflag [#allocation4], 1
    %3961 = vsyncpa %s3960, 1

// kernel: tpu_custom_call.1
$region0: #{tpu_custom_call.1}
  #allocation0 [shape = 'u32[]', space=smem, size = 0x4, offset = 0x4, fixed_abs, tag = 'smem constant byte address 0x4 - core index']
  #allocation1 [shape = 'u32[144,128]{1,0:T(1,128)}', space=vmem, size = 0x12000, scoped, tag = 'internal scratch']
  %s0 = inlined_call_operand.hbm [shape: f32[2,128,256], index: 0, kind: input, shape index: {}]
  %s1 = inlined_call_operand.hbm [shape: bf16[2,2,128,128], index: 1, kind: input, shape index: {}]
  %s2 = inlined_call_operand.hbm [shape: bf16[2,2,128,128], index: 2, kind: input, shape index: {}]
  %s3 = inlined_call_operand.hbm [shape: bf16[2,256,128], index: 3, kind: input, shape index: {}]
  %s4 = inlined_call_operand.hbm [shape: bf16[2,128,256], index: 4, kind: input, shape index: {}]
  %s5 = inlined_call_operand.hbm [shape: f32[1,256], index: 5, kind: input, shape index: {}]
  %s6 = inlined_call_operand.hbm [shape: f32[1,256], index: 6, kind: input, shape index: {}]
  %s7 = inlined_call_operand.hbm [shape: bf16[256,512], index: 7, kind: input, shape index: {}]
  %s8 = inlined_call_operand.hbm [shape: f32[1,512], index: 8, kind: input, shape index: {}]
  %s9 = inlined_call_operand.hbm [shape: bf16[512,256], index: 9, kind: input, shape index: {}]
  %s10 = inlined_call_operand.hbm [shape: f32[1,256], index: 10, kind: input, shape index: {}]
  %s11 = inlined_call_operand.hbm [shape: f32[1,256], index: 11, kind: input, shape index: {}]
  %s12 = inlined_call_operand.hbm [shape: f32[1,256], index: 12, kind: input, shape index: {}]
  %s13 = inlined_call_operand.hbm [shape: f32[2,128,256], index: 13, kind: output, shape index: {}]
  %s14 = sld [smem:[#allocation0]]
  $region144: #{tpu_custom_call.1} parent=0
    _
  %s16 = ssub.s32 1, %s14
  %s17 = scalar_select 0, %s16, %s14
  $region1: #{tpu_custom_call.1} parent=0
    #allocation2 [shape = 'u8[262144]{0}', space=vmem, size = 0x40000, scoped, tag = 'input window, operand 0']
    #allocation3 [shape = 's32[2]{0}', space=sflag, size = 0x8, scoped, tag = 'scoped memory for tpu_custom_call.1']
    #allocation4 [shape = 's32[2]{0}', space=sflag, size = 0x8, scoped, tag = 'scoped memory for tpu_custom_call.1']
    #allocation5 [shape = 'u8[131072]{0}', space=vmem, size = 0x20000, scoped, tag = 'input window, operand 1']
    #allocation6 [shape = 's32[2]{0}', space=sflag, size = 0x8, scoped, tag = 'scoped memory for tpu_custom_call.1']
    #allocation7 [shape = 'u8[131072]{0}', space=vmem, size = 0x20000, scoped, tag = 'input window, operand 2']
    #allocation8 [shape = 'u8[131072]{0}', space=vmem, size = 0x20000, scoped, tag = 'input window, operand 3, single buffered']
    #allocation9 [shape = 's32[1]{0}', space=sflag, size = 0x4, scoped, tag = 'scoped memory for tpu_custom_call.1']
    #allocation10 [shape = 'u8[131072]{0}', space=vmem, size = 0x20000, scoped, tag = 'input window, operand 4, single buffered']
    #allocation11 [shape = 'u8[1024]{0}', space=vmem, size = 0x400, scoped, tag = 'input window, operand 5, single buffered']
    #allocation12 [shape = 's32[1]{0}', space=sflag, size = 0x4, scoped, tag = 'scoped memory for tpu_custom_call.1']
    #allocation13 [shape = 'u8[1024]{0}', space=vmem, size = 0x400, scoped, tag = 'input window, operand 6, single buffered']
    #allocation14 [shape = 'u8[262144]{0}', space=vmem, size = 0x40000, scoped, tag = 'input window, operand 7, single buffered']
    #allocation15 [shape = 's32[1]{0}', space=sflag, size = 0x4, scoped, tag = 'scoped memory for tpu_custom_call.1']
    #allocation16 [shape = 'u8[2048]{0}', space=vmem, size = 0x800, scoped, tag = 'input window, operand 8, single buffered']
    #allocation17 [shape = 'u8[262144]{0}', space=vmem, size = 0x40000, scoped, tag = 'input window, operand 9, single buffered']
    #allocation18 [shape = 's32[1]{0}', space=sflag, size = 0x4, scoped, tag = 'scoped memory for tpu_custom_call.1']
    #allocation19 [shape = 'u8[1024]{0}', space=vmem, size = 0x400, scoped, tag = 'input window, operand 10, single buffered']
    #allocation20 [shape = 'u8[1024]{0}', space=vmem, size = 0x400, scoped, tag = 'input window, operand 11, single buffered']
    #allocation21 [shape = 's32[1]{0}', space=sflag, size = 0x4, scoped, tag = 'scoped memory for tpu_custom_call.1']
    #allocation22 [shape = 'u8[1024]{0}', space=vmem, size = 0x400, scoped, tag = 'input window, operand 12, single buffered']
    #allocation23 [shape = 'u8[262144]{0}', space=vmem, size = 0x40000, scoped, tag = 'output window, operand 0']
    %18 = vsyncpa [#allocation3], 0
    %s19 = scalar_lea.sflag [#allocation3], 1
    %20 = vsyncpa %s19, 0
    %21 = vsyncpa [#allocation6], 0
    %s22 = scalar_lea.sflag [#allocation6], 1
    %23 = vsyncpa %s22, 0
    %24 = vsyncpa [#allocation9], 0
    %25 = vsyncpa [#allocation12], 0
    %26 = vsyncpa [#allocation15], 0
    %27 = vsyncpa [#allocation18], 0
    %28 = vsyncpa [#allocation21], 0
    %29 = vsyncpa [#allocation4], 0
    %s30 = scalar_lea.sflag [#allocation4], 1
    %31 = vsyncpa %s30, 0
    loop: start=0, step=1, limit=4
    $region2: #{tpu_custom_call.1} parent=1 // loop_pre_header
      _
    $region3: #{tpu_custom_call.1} parent=1 // loop_header
      %s33 = sphi 0, %s37
      %p34 = scmp.ge.s32.totalorder %s33, 4
      %s40 = sphi 0, %s52
      %s41 = sphi 0, %s48
      %s42 = sphi 0, %s40
      %s43 = sphi 0, %s41
      %s44 = sphi 0, %s42
      %s45 = sphi 0, %s43
      %s57 = sphi 0, %s59
      %s60 = sphi 0, %s57
      %s61 = sphi 0, %s60
      %s77 = sphi 0, %s61
      %s83 = sphi 0, %s85
      %s86 = sphi 0, %s83
      %s87 = sphi 0, %s86
      %s103 = sphi 0, %s87
      %s109 = sphi 0, %s111
      %s112 = sphi 0, %s109
      %s113 = sphi 0, %s112
      %s129 = sphi 0, %s113
      %s133 = sphi 0, %s133
      %s135 = sphi 0, %s133
      %s136 = sphi 0, %s135
      %s150 = sphi 0, %s136
      %s154 = sphi 0, %s154
      %s156 = sphi 0, %s154
      %s157 = sphi 0, %s156
      %s171 = sphi 0, %s157
      %s175 = sphi 0, %s175
      %s177 = sphi 0, %s175
      %s178 = sphi 0, %s177
      %s192 = sphi 0, %s178
      %s196 = sphi 0, %s196
      %s198 = sphi 0, %s196
      %s199 = sphi 0, %s198
      %s213 = sphi 0, %s199
      %s217 = sphi 0, %s217
      %s219 = sphi 0, %s217
      %s220 = sphi 0, %s219
      %s234 = sphi 0, %s220
      %s238 = sphi 0, %s238
      %s240 = sphi 0, %s238
      %s241 = sphi 0, %s240
      %s255 = sphi 0, %s241
      %s259 = sphi 0, %s259
      %s261 = sphi 0, %s259
      %s262 = sphi 0, %s261
      %s276 = sphi 0, %s262
      %s280 = sphi 0, %s280
      %s282 = sphi 0, %s280
      %s283 = sphi 0, %s282
      %s297 = sphi 0, %s283
      %s301 = sphi 0, %s301
      %s303 = sphi 0, %s301
      %s304 = sphi 0, %s303
      %s318 = sphi 0, %s304
      %s322 = sphi 0, %s322
      %s324 = sphi 0, %s322
      %s325 = sphi 0, %s324
      %s339 = sphi 0, %s325
      %s347 = sphi 0, %s349
      %s350 = sphi 0, %s347
      %s351 = sphi 0, %s350
      %s367 = sphi 0, %s351
    $region4: #{tpu_custom_call.1} parent=1 // loop_header_branch
      %36 = sbr.rel (%p34) target = $region8
    $region5: #{tpu_custom_call.1} parent=1 // loop_body
      %s38 = ssub.s32 %s33, 1
      %s39 = ssub.s32 %s33, 2
      %s46 = sadd.s32 1, %s41
      %p47 = scmp.ge.s32.totalorder %s46, 1
      %s48 = scalar_select %p47, 0, %s46
      %s49 = sadd.s32 1, %s40
      %s50 = scalar_select %p47, %s49, %s40
      %p51 = scmp.ge.s32.totalorder %s50, 2
      %s52 = scalar_select %p51, 0, %s50
      %s53 = ssub.s32 %s40, %s52
      %s54 = ssub.s32 %s41, %s48
      %s55 = sor.u32 %s53, %s54
      %p56 = scmp.eq.s32.totalorder %s55, 0
      %s58 = sadd.s32 %s57, 1
      %s59 = scalar_select %p56, %s57, %s58
      %p62 = pneg %p56
      %p63 = scmp.eq.s32.totalorder %s33, 1
      %p64 = por %p62, %p63
      %p65 = scmp.ne.s32.totalorder %s57, %s60
      %p66 = scmp.eq.s32.totalorder %s33, 0
      %p67 = por %p65, %p66
      %p68 = scmp.ne.s32.totalorder %s57, %s60
      %p69 = scmp.eq.s32.totalorder %s38, 1
      %p70 = por %p68, %p69
      %p71 = scmp.ne.s32.totalorder %s60, %s61
      %p72 = scmp.eq.s32.totalorder %s38, 0
      %p73 = por %p71, %p72
      %p74 = scmp.ne.s32.totalorder %s60, %s61
      %p75 = scmp.eq.s32.totalorder %s39, 1
      %p76 = por %p74, %p75
      %p78 = scmp.ne.s32.totalorder %s61, %s77
      %p79 = scmp.eq.s32.totalorder %s39, 0
      %p80 = por %p78, %p79
      %s81 = ssub.s32 %s40, %s52
      %p82 = scmp.eq.s32.totalorder %s81, 0
      %s84 = sadd.s32 %s83, 1
      %s85 = scalar_select %p82, %s83, %s84
      %p88 = pneg %p82
      %p89 = scmp.eq.s32.totalorder %s33, 1
      %p90 = por %p88, %p89
      %p91 = scmp.ne.s32.totalorder %s83, %s86
      %p92 = scmp.eq.s32.totalorder %s33, 0
      %p93 = por %p91, %p92
      %p94 = scmp.ne.s32.totalorder %s83, %s86
      %p95 = scmp.eq.s32.totalorder %s38, 1
      %p96 = por %p94, %p95
      %p97 = scmp.ne.s32.totalorder %s86, %s87
      %p98 = scmp.eq.s32.totalorder %s38, 0
      %p99 = por %p97, %p98
      %p100 = scmp.ne.s32.totalorder %s86, %s87
      %p101 = scmp.eq.s32.totalorder %s39, 1
      %p102 = por %p100, %p101
      %p104 = scmp.ne.s32.totalorder %s87, %s103
      %p105 = scmp.eq.s32.totalorder %s39, 0
      %p106 = por %p104, %p105
      %s107 = ssub.s32 %s40, %s52
      %p108 = scmp.eq.s32.totalorder %s107, 0
      %s110 = sadd.s32 %s109, 1
      %s111 = scalar_select %p108, %s109, %s110
      %p114 = pneg %p108
      %p115 = scmp.eq.s32.totalorder %s33, 1
      %p116 = por %p114, %p115
      %p117 = scmp.ne.s32.totalorder %s109, %s112
      %p118 = scmp.eq.s32.totalorder %s33, 0
      %p119 = por %p117, %p118
      %p120 = scmp.ne.s32.totalorder %s109, %s112
      %p121 = scmp.eq.s32.totalorder %s38, 1
      %p122 = por %p120, %p121
      %p123 = scmp.ne.s32.totalorder %s112, %s113
      %p124 = scmp.eq.s32.totalorder %s38, 0
      %p125 = por %p123, %p124
      %p126 = scmp.ne.s32.totalorder %s112, %s113
      %p127 = scmp.eq.s32.totalorder %s39, 1
      %p128 = por %p126, %p127
      %p130 = scmp.ne.s32.totalorder %s113, %s129
      %p131 = scmp.eq.s32.totalorder %s39, 0
      %p132 = por %p130, %p131
      %s134 = sadd.s32 %s133, 1
      %p137 = scmp.eq.s32.totalorder %s33, 1
      %p138 = scmp.ne.s32.totalorder %s133, %s135
      %p139 = scmp.eq.s32.totalorder %s33, 0
      %p140 = por %p138, %p139
      %p141 = scmp.ne.s32.totalorder %s133, %s135
      %p142 = scmp.eq.s32.totalorder %s38, 1
      %p143 = por %p141, %p142
      %p144 = scmp.ne.s32.totalorder %s135, %s136
      %p145 = scmp.eq.s32.totalorder %s38, 0
      %p146 = por %p144, %p145
      %p147 = scmp.ne.s32.totalorder %s135, %s136
      %p148 = scmp.eq.s32.totalorder %s39, 1
      %p149 = por %p147, %p148
      %p151 = scmp.ne.s32.totalorder %s136, %s150
      %p152 = scmp.eq.s32.totalorder %s39, 0
      %p153 = por %p151, %p152
      %s155 = sadd.s32 %s154, 1
      %p158 = scmp.eq.s32.totalorder %s33, 1
      %p159 = scmp.ne.s32.totalorder %s154, %s156
      %p160 = scmp.eq.s32.totalorder %s33, 0
      %p161 = por %p159, %p160
      %p162 = scmp.ne.s32.totalorder %s154, %s156
      %p163 = scmp.eq.s32.totalorder %s38, 1
      %p164 = por %p162, %p163
      %p165 = scmp.ne.s32.totalorder %s156, %s157
      %p166 = scmp.eq.s32.totalorder %s38, 0
      %p167 = por %p165, %p166
      %p168 = scmp.ne.s32.totalorder %s156, %s157
      %p169 = scmp.eq.s32.totalorder %s39, 1
      %p170 = por %p168, %p169
      %p172 = scmp.ne.s32.totalorder %s157, %s171
      %p173 = scmp.eq.s32.totalorder %s39, 0
      %p174 = por %p172, %p173
      %s176 = sadd.s32 %s175, 1
      %p179 = scmp.eq.s32.totalorder %s33, 1
      %p180 = scmp.ne.s32.totalorder %s175, %s177
      %p181 = scmp.eq.s32.totalorder %s33, 0
      %p182 = por %p180, %p181
      %p183 = scmp.ne.s32.totalorder %s175, %s177
      %p184 = scmp.eq.s32.totalorder %s38, 1
      %p185 = por %p183, %p184
      %p186 = scmp.ne.s32.totalorder %s177, %s178
      %p187 = scmp.eq.s32.totalorder %s38, 0
      %p188 = por %p186, %p187
      %p189 = scmp.ne.s32.totalorder %s177, %s178
      %p190 = scmp.eq.s32.totalorder %s39, 1
      %p191 = por %p189, %p190
      %p193 = scmp.ne.s32.totalorder %s178, %s192
      %p194 = scmp.eq.s32.totalorder %s39, 0
      %p195 = por %p193, %p194
      %s197 = sadd.s32 %s196, 1
      %p200 = scmp.eq.s32.totalorder %s33, 1
      %p201 = scmp.ne.s32.totalorder %s196, %s198
      %p202 = scmp.eq.s32.totalorder %s33, 0
      %p203 = por %p201, %p202
      %p204 = scmp.ne.s32.totalorder %s196, %s198
      %p205 = scmp.eq.s32.totalorder %s38, 1
      %p206 = por %p204, %p205
      %p207 = scmp.ne.s32.totalorder %s198, %s199
      %p208 = scmp.eq.s32.totalorder %s38, 0
      %p209 = por %p207, %p208
      %p210 = scmp.ne.s32.totalorder %s198, %s199
      %p211 = scmp.eq.s32.totalorder %s39, 1
      %p212 = por %p210, %p211
      %p214 = scmp.ne.s32.totalorder %s199, %s213
      %p215 = scmp.eq.s32.totalorder %s39, 0
      %p216 = por %p214, %p215
      %s218 = sadd.s32 %s217, 1
      %p221 = scmp.eq.s32.totalorder %s33, 1
      %p222 = scmp.ne.s32.totalorder %s217, %s219
      %p223 = scmp.eq.s32.totalorder %s33, 0
      %p224 = por %p222, %p223
      %p225 = scmp.ne.s32.totalorder %s217, %s219
      %p226 = scmp.eq.s32.totalorder %s38, 1
      %p227 = por %p225, %p226
      %p228 = scmp.ne.s32.totalorder %s219, %s220
      %p229 = scmp.eq.s32.totalorder %s38, 0
      %p230 = por %p228, %p229
      %p231 = scmp.ne.s32.totalorder %s219, %s220
      %p232 = scmp.eq.s32.totalorder %s39, 1
      %p233 = por %p231, %p232
      %p235 = scmp.ne.s32.totalorder %s220, %s234
      %p236 = scmp.eq.s32.totalorder %s39, 0
      %p237 = por %p235, %p236
      %s239 = sadd.s32 %s238, 1
      %p242 = scmp.eq.s32.totalorder %s33, 1
      %p243 = scmp.ne.s32.totalorder %s238, %s240
      %p244 = scmp.eq.s32.totalorder %s33, 0
      %p245 = por %p243, %p244
      %p246 = scmp.ne.s32.totalorder %s238, %s240
      %p247 = scmp.eq.s32.totalorder %s38, 1
      %p248 = por %p246, %p247
      %p249 = scmp.ne.s32.totalorder %s240, %s241
      %p250 = scmp.eq.s32.totalorder %s38, 0
      %p251 = por %p249, %p250
      %p252 = scmp.ne.s32.totalorder %s240, %s241
      %p253 = scmp.eq.s32.totalorder %s39, 1
      %p254 = por %p252, %p253
      %p256 = scmp.ne.s32.totalorder %s241, %s255
      %p257 = scmp.eq.s32.totalorder %s39, 0
      %p258 = por %p256, %p257
      %s260 = sadd.s32 %s259, 1
      %p263 = scmp.eq.s32.totalorder %s33, 1
      %p264 = scmp.ne.s32.totalorder %s259, %s261
      %p265 = scmp.eq.s32.totalorder %s33, 0
      %p266 = por %p264, %p265
      %p267 = scmp.ne.s32.totalorder %s259, %s261
      %p268 = scmp.eq.s32.totalorder %s38, 1
      %p269 = por %p267, %p268
      %p270 = scmp.ne.s32.totalorder %s261, %s262
      %p271 = scmp.eq.s32.totalorder %s38, 0
      %p272 = por %p270, %p271
      %p273 = scmp.ne.s32.totalorder %s261, %s262
      %p274 = scmp.eq.s32.totalorder %s39, 1
      %p275 = por %p273, %p274
      %p277 = scmp.ne.s32.totalorder %s262, %s276
      %p278 = scmp.eq.s32.totalorder %s39, 0
      %p279 = por %p277, %p278
      %s281 = sadd.s32 %s280, 1
      %p284 = scmp.eq.s32.totalorder %s33, 1
      %p285 = scmp.ne.s32.totalorder %s280, %s282
      %p286 = scmp.eq.s32.totalorder %s33, 0
      %p287 = por %p285, %p286
      %p288 = scmp.ne.s32.totalorder %s280, %s282
      %p289 = scmp.eq.s32.totalorder %s38, 1
      %p290 = por %p288, %p289
      %p291 = scmp.ne.s32.totalorder %s282, %s283
      %p292 = scmp.eq.s32.totalorder %s38, 0
      %p293 = por %p291, %p292
      %p294 = scmp.ne.s32.totalorder %s282, %s283
      %p295 = scmp.eq.s32.totalorder %s39, 1
      %p296 = por %p294, %p295
      %p298 = scmp.ne.s32.totalorder %s283, %s297
      %p299 = scmp.eq.s32.totalorder %s39, 0
      %p300 = por %p298, %p299
      %s302 = sadd.s32 %s301, 1
      %p305 = scmp.eq.s32.totalorder %s33, 1
      %p306 = scmp.ne.s32.totalorder %s301, %s303
      %p307 = scmp.eq.s32.totalorder %s33, 0
      %p308 = por %p306, %p307
      %p309 = scmp.ne.s32.totalorder %s301, %s303
      %p310 = scmp.eq.s32.totalorder %s38, 1
      %p311 = por %p309, %p310
      %p312 = scmp.ne.s32.totalorder %s303, %s304
      %p313 = scmp.eq.s32.totalorder %s38, 0
      %p314 = por %p312, %p313
      %p315 = scmp.ne.s32.totalorder %s303, %s304
      %p316 = scmp.eq.s32.totalorder %s39, 1
      %p317 = por %p315, %p316
      %p319 = scmp.ne.s32.totalorder %s304, %s318
      %p320 = scmp.eq.s32.totalorder %s39, 0
      %p321 = por %p319, %p320
      %s323 = sadd.s32 %s322, 1
      %p326 = scmp.eq.s32.totalorder %s33, 1
      %p327 = scmp.ne.s32.totalorder %s322, %s324
      %p328 = scmp.eq.s32.totalorder %s33, 0
      %p329 = por %p327, %p328
      %p330 = scmp.ne.s32.totalorder %s322, %s324
      %p331 = scmp.eq.s32.totalorder %s38, 1
      %p332 = por %p330, %p331
      %p333 = scmp.ne.s32.totalorder %s324, %s325
      %p334 = scmp.eq.s32.totalorder %s38, 0
      %p335 = por %p333, %p334
      %p336 = scmp.ne.s32.totalorder %s324, %s325
      %p337 = scmp.eq.s32.totalorder %s39, 1
      %p338 = por %p336, %p337
      %p340 = scmp.ne.s32.totalorder %s325, %s339
      %p341 = scmp.eq.s32.totalorder %s39, 0
      %p342 = por %p340, %p341
      %s343 = ssub.s32 %s40, %s52
      %s344 = ssub.s32 %s41, %s48
      %s345 = sor.u32 %s343, %s344
      %p346 = scmp.eq.s32.totalorder %s345, 0
      %s348 = sadd.s32 %s347, 1
      %s349 = scalar_select %p346, %s347, %s348
      %p352 = pneg %p346
      %p353 = scmp.eq.s32.totalorder %s33, 1
      %p354 = por %p352, %p353
      %p355 = scmp.ne.s32.totalorder %s347, %s350
      %p356 = scmp.eq.s32.totalorder %s33, 0
      %p357 = por %p355, %p356
      %p358 = scmp.ne.s32.totalorder %s347, %s350
      %p359 = scmp.eq.s32.totalorder %s38, 1
      %p360 = por %p358, %p359
      %p361 = scmp.ne.s32.totalorder %s350, %s351
      %p362 = scmp.eq.s32.totalorder %s38, 0
      %p363 = por %p361, %p362
      %p364 = scmp.ne.s32.totalorder %s350, %s351
      %p365 = scmp.eq.s32.totalorder %s39, 1
      %p366 = por %p364, %p365
      %p368 = scmp.ne.s32.totalorder %s351, %s367
      %p369 = scmp.eq.s32.totalorder %s39, 0
      %p370 = por %p368, %p369
      %p371 = scmp.le.s32.totalorder 1, %s33
      %p372 = scmp.lt.s32.totalorder %s33, 3
      %p373 = pnand %p371, %p372
      %p374 = pneg %p373
      // Predicated region
      $region9: #{tpu_custom_call.1} parent=5 // pred_check
        _
      $region10: #{tpu_custom_call.1} parent=5 // pred_check_branch
        %376 = sbr.rel (%p373) target = $region12
      $region11: #{tpu_custom_call.1} parent=5 // pred_region
        %s377 = ssub.s32 %s33, 1
        // Predicated region
        $region13: #{tpu_custom_call.1} parent=11 // pred_check
          %p378 = pneg %p146
        $region14: #{tpu_custom_call.1} parent=11 // pred_check_branch
          %380 = sbr.rel (%p378) target = $region16
        $region15: #{tpu_custom_call.1} parent=11 // pred_region
          %s382 = ssub.s32 4096, 4096
          %383 = vsyncadd [#allocation9], %s382
          %s384 = sshll.u32 [#allocation8], 4
          %s385 = int_to_ptr.vmem [resolvable:$true] %s384
          %390 = dma.hbm_to_vmem [thread:$0]  %s3, 4096, %s385, [#allocation9], 64, 64, 4
        $region16: #{tpu_custom_call.1} parent=11 // pred_fallthru
          _
        // Predicated region
        $region17: #{tpu_custom_call.1} parent=11 // pred_check
          %p391 = pneg %p167
        $region18: #{tpu_custom_call.1} parent=11 // pred_check_branch
          %393 = sbr.rel (%p391) target = $region20
        $region19: #{tpu_custom_call.1} parent=11 // pred_region
          %s395 = ssub.s32 4096, 4096
          %396 = vsyncadd [#allocation9], %s395
          %s397 = sshll.u32 [#allocation10], 4
          %s398 = int_to_ptr.vmem [resolvable:$true] %s397
          %403 = dma.hbm_to_vmem [thread:$0]  %s4, 4096, %s398, [#allocation9], 128, 128, 8
        $region20: #{tpu_custom_call.1} parent=11 // pred_fallthru
          _
        // Predicated region
        $region21: #{tpu_custom_call.1} parent=11 // pred_check
          %p404 = pneg %p188
        $region22: #{tpu_custom_call.1} parent=11 // pred_check_branch
          %406 = sbr.rel (%p404) target = $region24
        $region23: #{tpu_custom_call.1} parent=11 // pred_region
          %s408 = ssub.s32 32, 32
          %409 = vsyncadd [#allocation12], %s408
          %s411 = sshll.u32 [#allocation11], 4
          %s412 = int_to_ptr.vmem [resolvable:$true] %s411
          %414 = dma.hbm_to_vmem [thread:$0]  %s5, 32, %s412, [#allocation12]
        $region24: #{tpu_custom_call.1} parent=11 // pred_fallthru
          _
        // Predicated region
        $region25: #{tpu_custom_call.1} parent=11 // pred_check
          %p415 = pneg %p209
        $region26: #{tpu_custom_call.1} parent=11 // pred_check_branch
          %417 = sbr.rel (%p415) target = $region28
        $region27: #{tpu_custom_call.1} parent=11 // pred_region
          %s419 = ssub.s32 32, 32
          %420 = vsyncadd [#allocation12], %s419
          %s422 = sshll.u32 [#allocation13], 4
          %s423 = int_to_ptr.vmem [resolvable:$true] %s422
          %425 = dma.hbm_to_vmem [thread:$0]  %s6, 32, %s423, [#allocation12]
        $region28: #{tpu_custom_call.1} parent=11 // pred_fallthru
          _
        // Predicated region
        $region29: #{tpu_custom_call.1} parent=11 // pred_check
          %p426 = pneg %p230
        $region30: #{tpu_custom_call.1} parent=11 // pred_check_branch
          %428 = sbr.rel (%p426) target = $region32
        $region31: #{tpu_custom_call.1} parent=11 // pred_region
          %s430 = ssub.s32 8192, 8192
          %431 = vsyncadd [#allocation15], %s430
          %s432 = sshll.u32 [#allocation14], 4
          %s433 = int_to_ptr.vmem [resolvable:$true] %s432
          %438 = dma.hbm_to_vmem [thread:$0]  %s7, 8192, %s433, [#allocation15], 256, 256, 16
        $region32: #{tpu_custom_call.1} parent=11 // pred_fallthru
          _
        // Predicated region
        $region33: #{tpu_custom_call.1} parent=11 // pred_check
          %p439 = pneg %p251
        $region34: #{tpu_custom_call.1} parent=11 // pred_check_branch
          %441 = sbr.rel (%p439) target = $region36
        $region35: #{tpu_custom_call.1} parent=11 // pred_region
          %s443 = ssub.s32 64, 64
          %444 = vsyncadd [#allocation15], %s443
          %s446 = sshll.u32 [#allocation16], 4
          %s447 = int_to_ptr.vmem [resolvable:$true] %s446
          %449 = dma.hbm_to_vmem [thread:$0]  %s8, 64, %s447, [#allocation15]
        $region36: #{tpu_custom_call.1} parent=11 // pred_fallthru
          _
        // Predicated region
        $region37: #{tpu_custom_call.1} parent=11 // pred_check
          %p450 = pneg %p272
        $region38: #{tpu_custom_call.1} parent=11 // pred_check_branch
          %452 = sbr.rel (%p450) target = $region40
        $region39: #{tpu_custom_call.1} parent=11 // pred_region
          %s454 = ssub.s32 8192, 8192
          %455 = vsyncadd [#allocation18], %s454
          %s456 = sshll.u32 [#allocation17], 4
          %s457 = int_to_ptr.vmem [resolvable:$true] %s456
          %462 = dma.hbm_to_vmem [thread:$0]  %s9, 8192, %s457, [#allocation18], 128, 128, 8
        $region40: #{tpu_custom_call.1} parent=11 // pred_fallthru
          _
        // Predicated region
        $region41: #{tpu_custom_call.1} parent=11 // pred_check
          %p463 = pneg %p293
        $region42: #{tpu_custom_call.1} parent=11 // pred_check_branch
          %465 = sbr.rel (%p463) target = $region44
        $region43: #{tpu_custom_call.1} parent=11 // pred_region
          %s467 = ssub.s32 32, 32
          %468 = vsyncadd [#allocation18], %s467
          %s470 = sshll.u32 [#allocation19], 4
          %s471 = int_to_ptr.vmem [resolvable:$true] %s470
          %473 = dma.hbm_to_vmem [thread:$0]  %s10, 32, %s471, [#allocation18]
        $region44: #{tpu_custom_call.1} parent=11 // pred_fallthru
          _
        // Predicated region
        $region45: #{tpu_custom_call.1} parent=11 // pred_check
          %p474 = pneg %p314
        $region46: #{tpu_custom_call.1} parent=11 // pred_check_branch
          %476 = sbr.rel (%p474) target = $region48
        $region47: #{tpu_custom_call.1} parent=11 // pred_region
          %s478 = ssub.s32 32, 32
          %479 = vsyncadd [#allocation21], %s478
          %s481 = sshll.u32 [#allocation20], 4
          %s482 = int_to_ptr.vmem [resolvable:$true] %s481
          %484 = dma.hbm_to_vmem [thread:$0]  %s11, 32, %s482, [#allocation21]
        $region48: #{tpu_custom_call.1} parent=11 // pred_fallthru
          _
        // Predicated region
        $region49: #{tpu_custom_call.1} parent=11 // pred_check
          %p485 = pneg %p335
        $region50: #{tpu_custom_call.1} parent=11 // pred_check_branch
          %487 = sbr.rel (%p485) target = $region52
        $region51: #{tpu_custom_call.1} parent=11 // pred_region
          %s489 = ssub.s32 32, 32
          %490 = vsyncadd [#allocation21], %s489
          %s492 = sshll.u32 [#allocation22], 4
          %s493 = int_to_ptr.vmem [resolvable:$true] %s492
          %495 = dma.hbm_to_vmem [thread:$0]  %s12, 32, %s493, [#allocation21]
        $region52: #{tpu_custom_call.1} parent=11 // pred_fallthru
          _
      $region12: #{tpu_custom_call.1} parent=5 // pred_fallthru
        _
      %p496 = scmp.lt.s32.totalorder %s33, 2
      // Predicated region
      $region53: #{tpu_custom_call.1} parent=5 // pred_check
        %p497 = pneg %p496
      $region54: #{tpu_custom_call.1} parent=5 // pred_check_branch
        %499 = sbr.rel (%p497) target = $region56
      $region55: #{tpu_custom_call.1} parent=5 // pred_region
        // Predicated region
        $region57: #{tpu_custom_call.1} parent=55 // pred_check
          %p500 = pneg %p67
        $region58: #{tpu_custom_call.1} parent=55 // pred_check_branch
          %502 = sbr.rel (%p500) target = $region60
        $region59: #{tpu_custom_call.1} parent=55 // pred_region
          %s503 = sand.u32 %s57, 1
          %s504 = scalar_lea.sflag [#allocation3], %s503
          %s505 = sand.u32 %s57, 1
          %s506 = smul.addr %s505, 256
          %s507 = scalar_lea.vmem [#allocation2], %s506
          %s508 = smul.u32 16, %s41
          %s510 = ssub.s32 4096, 4096
          %511 = vsyncadd %s504, %s510
          %s512 = smul.addr %s508, 2
          %s513 = smul.addr %s40, 32
          %s514 = sadd.s32 %s512, %s513
          %s515 = smul.addr %s514, 128
          %s516 = scalar_lea.hbm %s0, %s515
          %s517 = sshll.u32 %s507, 4
          %s518 = int_to_ptr.vmem [resolvable:$true] %s517
          %523 = dma.hbm_to_vmem [thread:$0]  %s516, 4096, %s518, %s504, 256, 256, 16
        $region60: #{tpu_custom_call.1} parent=55 // pred_fallthru
          _
        // Predicated region
        $region61: #{tpu_custom_call.1} parent=55 // pred_check
          %p524 = pneg %p93
        $region62: #{tpu_custom_call.1} parent=55 // pred_check_branch
          %526 = sbr.rel (%p524) target = $region64
        $region63: #{tpu_custom_call.1} parent=55 // pred_region
          %s527 = sand.u32 %s33, 1
          %s528 = scalar_lea.sflag [#allocation6], %s527
          %s529 = sand.u32 %s83, 1
          %s530 = smul.addr %s529, 128
          %s531 = scalar_lea.vmem [#allocation5], %s530
          %s533 = ssub.s32 2048, 2048
          %534 = vsyncadd %s528, %s533
          %s535 = smul.addr %s40, 32
          %s536 = smul.addr %s535, 64
          %s537 = scalar_lea.hbm %s1, %s536
          %s538 = sshll.u32 %s531, 4
          %s539 = int_to_ptr.vmem [resolvable:$true] %s538
          %544 = dma.hbm_to_vmem [thread:$0]  %s537, 2048, %s539, %s528, 64, 64, 4
        $region64: #{tpu_custom_call.1} parent=55 // pred_fallthru
          _
        // Predicated region
        $region65: #{tpu_custom_call.1} parent=55 // pred_check
          %p545 = pneg %p119
        $region66: #{tpu_custom_call.1} parent=55 // pred_check_branch
          %547 = sbr.rel (%p545) target = $region68
        $region67: #{tpu_custom_call.1} parent=55 // pred_region
          %s548 = sand.u32 %s33, 1
          %s549 = scalar_lea.sflag [#allocation6], %s548
          %s550 = sand.u32 %s109, 1
          %s551 = smul.addr %s550, 128
          %s552 = scalar_lea.vmem [#allocation7], %s551
          %s554 = ssub.s32 2048, 2048
          %555 = vsyncadd %s549, %s554
          %s556 = smul.addr %s40, 32
          %s557 = smul.addr %s556, 64
          %s558 = scalar_lea.hbm %s2, %s557
          %s559 = sshll.u32 %s552, 4
          %s560 = int_to_ptr.vmem [resolvable:$true] %s559
          %565 = dma.hbm_to_vmem [thread:$0]  %s558, 2048, %s560, %s549, 64, 64, 4
        $region68: #{tpu_custom_call.1} parent=55 // pred_fallthru
          _
      $region56: #{tpu_custom_call.1} parent=5 // pred_fallthru
        _
      %p566 = scmp.le.s32.totalorder 1, %s33
      %p567 = scmp.lt.s32.totalorder %s33, 3
      %p568 = pnand %p566, %p567
      %p569 = pneg %p568
      // Predicated region
      $region69: #{tpu_custom_call.1} parent=5 // pred_check
        _
      $region70: #{tpu_custom_call.1} parent=5 // pred_check_branch
        %571 = sbr.rel (%p568) target = $region72
      $region71: #{tpu_custom_call.1} parent=5 // pred_region
        %s572 = ssub.s32 %s33, 1
        %s573 = sand.u32 %s60, 1
        %s574 = scalar_lea.sflag [#allocation3], %s573
        %s575 = sand.u32 %s60, 1
        %s576 = smul.addr %s575, 256
        %s577 = scalar_lea.vmem [#allocation2], %s576
        // Predicated region
        $region73: #{tpu_custom_call.1} parent=71 // pred_check
          %p578 = pneg %p73
        $region74: #{tpu_custom_call.1} parent=71 // pred_check_branch
          %580 = sbr.rel (%p578) target = $region76
        $region75: #{tpu_custom_call.1} parent=71 // pred_region
          %581 = dma.done %s574, 4096
        $region76: #{tpu_custom_call.1} parent=71 // pred_fallthru
          _
        %s582 = sand.u32 %s38, 1
        %s583 = scalar_lea.sflag [#allocation6], %s582
        %s584 = sand.u32 %s86, 1
        %s585 = smul.addr %s584, 128
        %s586 = scalar_lea.vmem [#allocation5], %s585
        // Predicated region
        $region77: #{tpu_custom_call.1} parent=71 // pred_check
          %p587 = pneg %p99
        $region78: #{tpu_custom_call.1} parent=71 // pred_check_branch
          %589 = sbr.rel (%p587) target = $region80
        $region79: #{tpu_custom_call.1} parent=71 // pred_region
          %590 = dma.done %s583, 2048
        $region80: #{tpu_custom_call.1} parent=71 // pred_fallthru
          _
        %s591 = sand.u32 %s38, 1
        %s592 = scalar_lea.sflag [#allocation6], %s591
        %s593 = sand.u32 %s112, 1
        %s594 = smul.addr %s593, 128
        %s595 = scalar_lea.vmem [#allocation7], %s594
        // Predicated region
        $region81: #{tpu_custom_call.1} parent=71 // pred_check
          %p596 = pneg %p125
        $region82: #{tpu_custom_call.1} parent=71 // pred_check_branch
          %598 = sbr.rel (%p596) target = $region84
        $region83: #{tpu_custom_call.1} parent=71 // pred_region
          %599 = dma.done %s592, 2048
        $region84: #{tpu_custom_call.1} parent=71 // pred_fallthru
          _
        // Predicated region
        $region85: #{tpu_custom_call.1} parent=71 // pred_check
          %p600 = pneg %p146
        $region86: #{tpu_custom_call.1} parent=71 // pred_check_branch
          %602 = sbr.rel (%p600) target = $region88
        $region87: #{tpu_custom_call.1} parent=71 // pred_region
          %603 = dma.done [#allocation9], 4096
        $region88: #{tpu_custom_call.1} parent=71 // pred_fallthru
          _
        // Predicated region
        $region89: #{tpu_custom_call.1} parent=71 // pred_check
          %p604 = pneg %p167
        $region90: #{tpu_custom_call.1} parent=71 // pred_check_branch
          %606 = sbr.rel (%p604) target = $region92
        $region91: #{tpu_custom_call.1} parent=71 // pred_region
          %607 = dma.done [#allocation9], 4096
        $region92: #{tpu_custom_call.1} parent=71 // pred_fallthru
          _
        // Predicated region
        $region93: #{tpu_custom_call.1} parent=71 // pred_check
          %p608 = pneg %p188
        $region94: #{tpu_custom_call.1} parent=71 // pred_check_branch
          %610 = sbr.rel (%p608) target = $region96
        $region95: #{tpu_custom_call.1} parent=71 // pred_region
          %611 = dma.done [#allocation12], 32
        $region96: #{tpu_custom_call.1} parent=71 // pred_fallthru
          _
        // Predicated region
        $region97: #{tpu_custom_call.1} parent=71 // pred_check
          %p612 = pneg %p209
        $region98: #{tpu_custom_call.1} parent=71 // pred_check_branch
          %614 = sbr.rel (%p612) target = $region100
        $region99: #{tpu_custom_call.1} parent=71 // pred_region
          %615 = dma.done [#allocation12], 32
        $region100: #{tpu_custom_call.1} parent=71 // pred_fallthru
          _
        // Predicated region
        $region101: #{tpu_custom_call.1} parent=71 // pred_check
          %p616 = pneg %p230
        $region102: #{tpu_custom_call.1} parent=71 // pred_check_branch
          %618 = sbr.rel (%p616) target = $region104
        $region103: #{tpu_custom_call.1} parent=71 // pred_region
          %619 = dma.done [#allocation15], 8192
        $region104: #{tpu_custom_call.1} parent=71 // pred_fallthru
          _
        // Predicated region
        $region105: #{tpu_custom_call.1} parent=71 // pred_check
          %p620 = pneg %p251
        $region106: #{tpu_custom_call.1} parent=71 // pred_check_branch
          %622 = sbr.rel (%p620) target = $region108
        $region107: #{tpu_custom_call.1} parent=71 // pred_region
          %623 = dma.done [#allocation15], 64
        $region108: #{tpu_custom_call.1} parent=71 // pred_fallthru
          _
        // Predicated region
        $region109: #{tpu_custom_call.1} parent=71 // pred_check
          %p624 = pneg %p272
        $region110: #{tpu_custom_call.1} parent=71 // pred_check_branch
          %626 = sbr.rel (%p624) target = $region112
        $region111: #{tpu_custom_call.1} parent=71 // pred_region
          %627 = dma.done [#allocation18], 8192
        $region112: #{tpu_custom_call.1} parent=71 // pred_fallthru
          _
        // Predicated region
        $region113: #{tpu_custom_call.1} parent=71 // pred_check
          %p628 = pneg %p293
        $region114: #{tpu_custom_call.1} parent=71 // pred_check_branch
          %630 = sbr.rel (%p628) target = $region116
        $region115: #{tpu_custom_call.1} parent=71 // pred_region
          %631 = dma.done [#allocation18], 32
        $region116: #{tpu_custom_call.1} parent=71 // pred_fallthru
          _
        // Predicated region
        $region117: #{tpu_custom_call.1} parent=71 // pred_check
          %p632 = pneg %p314
        $region118: #{tpu_custom_call.1} parent=71 // pred_check_branch
          %634 = sbr.rel (%p632) target = $region120
        $region119: #{tpu_custom_call.1} parent=71 // pred_region
          %635 = dma.done [#allocation21], 32
        $region120: #{tpu_custom_call.1} parent=71 // pred_fallthru
          _
        // Predicated region
        $region121: #{tpu_custom_call.1} parent=71 // pred_check
          %p636 = pneg %p335
        $region122: #{tpu_custom_call.1} parent=71 // pred_check_branch
          %638 = sbr.rel (%p636) target = $region124
        $region123: #{tpu_custom_call.1} parent=71 // pred_region
          %639 = dma.done [#allocation21], 32
        $region124: #{tpu_custom_call.1} parent=71 // pred_fallthru
          _
        %s640 = sand.u32 %s60, 1
        %s641 = scalar_lea.sflag [#allocation3], %s640
        %s642 = sand.u32 %s60, 1
        %s643 = smul.addr %s642, 256
        %s644 = scalar_lea.vmem [#allocation2], %s643
        %p645 = pneg %p73
        %p646 = pneg %p70
        %s647 = sand.u32 %s38, 1
        %s648 = scalar_lea.sflag [#allocation6], %s647
        %s649 = sand.u32 %s86, 1
        %s650 = smul.addr %s649, 128
        %s651 = scalar_lea.vmem [#allocation5], %s650
        %p652 = pneg %p99
        %p653 = pneg %p96
        %s654 = sand.u32 %s38, 1
        %s655 = scalar_lea.sflag [#allocation6], %s654
        %s656 = sand.u32 %s112, 1
        %s657 = smul.addr %s656, 128
        %s658 = scalar_lea.vmem [#allocation7], %s657
        %p659 = pneg %p125
        %p660 = pneg %p122
        %p661 = pneg %p146
        %p662 = pneg %p143
        %p663 = pneg %p167
        %p664 = pneg %p164
        %p665 = pneg %p188
        %p666 = pneg %p185
        %p667 = pneg %p209
        %p668 = pneg %p206
        %p669 = pneg %p230
        %p670 = pneg %p227
        %p671 = pneg %p251
        %p672 = pneg %p248
        %p673 = pneg %p272
        %p674 = pneg %p269
        %p675 = pneg %p293
        %p676 = pneg %p290
        %p677 = pneg %p314
        %p678 = pneg %p311
        %p679 = pneg %p335
        %p680 = pneg %p332
        %p681 = pneg %p363
        %p682 = pneg %p360
        %s683 = sand.u32 %s350, 1
        %s684 = scalar_lea.sflag [#allocation4], %s683
        %s685 = sand.u32 %s350, 1
        %s686 = smul.addr %s685, 256
        %s687 = scalar_lea.vmem [#allocation23], %s686
        %s688 = smul.u32 16, %s43
        %s689 = smul.u32 16, %s43
        %v691 = vld [vmem:[%s577] sm:$0xff]
        %v692 = vld [vmem:[%s577 + $0x8] sm:$0xff]
        %v693 = vld [vmem:[%s577 + $0x10] sm:$0xff]
        %v694 = vld [vmem:[%s577 + $0x18] sm:$0xff]
        %v695 = vld [vmem:[%s577 + $0x20] sm:$0xff]
        %v696 = vld [vmem:[%s577 + $0x28] sm:$0xff]
        %v697 = vld [vmem:[%s577 + $0x30] sm:$0xff]
        %v698 = vld [vmem:[%s577 + $0x38] sm:$0xff]
        %v699 = vld [vmem:[%s577 + $0x40] sm:$0xff]
        %v700 = vld [vmem:[%s577 + $0x48] sm:$0xff]
        %v701 = vld [vmem:[%s577 + $0x50] sm:$0xff]
        %v702 = vld [vmem:[%s577 + $0x58] sm:$0xff]
        %v703 = vld [vmem:[%s577 + $0x60] sm:$0xff]
        %v704 = vld [vmem:[%s577 + $0x68] sm:$0xff]
        %v705 = vld [vmem:[%s577 + $0x70] sm:$0xff]
        %v706 = vld [vmem:[%s577 + $0x78] sm:$0xff]
        %v707 = vld [vmem:[%s577 + $0x80] sm:$0xff]
        %v708 = vld [vmem:[%s577 + $0x88] sm:$0xff]
        %v709 = vld [vmem:[%s577 + $0x90] sm:$0xff]
        %v710 = vld [vmem:[%s577 + $0x98] sm:$0xff]
        %v711 = vld [vmem:[%s577 + $0xa0] sm:$0xff]
        %v712 = vld [vmem:[%s577 + $0xa8] sm:$0xff]
        %v713 = vld [vmem:[%s577 + $0xb0] sm:$0xff]
        %v714 = vld [vmem:[%s577 + $0xb8] sm:$0xff]
        %v715 = vld [vmem:[%s577 + $0xc0] sm:$0xff]
        %v716 = vld [vmem:[%s577 + $0xc8] sm:$0xff]
        %v717 = vld [vmem:[%s577 + $0xd0] sm:$0xff]
        %v718 = vld [vmem:[%s577 + $0xd8] sm:$0xff]
        %v719 = vld [vmem:[%s577 + $0xe0] sm:$0xff]
        %v720 = vld [vmem:[%s577 + $0xe8] sm:$0xff]
        %v721 = vld [vmem:[%s577 + $0xf0] sm:$0xff]
        %v722 = vld [vmem:[%s577 + $0xf8] sm:$0xff]
        %v723 = vpack.c.bf16 %v693, %v691
        %v724 = vpack.c.bf16 %v694, %v692
        %v725 = vpack.c.bf16 %v697, %v695
        %v726 = vpack.c.bf16 %v698, %v696
        %v727 = vpack.c.bf16 %v701, %v699
        %v728 = vpack.c.bf16 %v702, %v700
        %v729 = vpack.c.bf16 %v705, %v703
        %v730 = vpack.c.bf16 %v706, %v704
        %v731 = vpack.c.bf16 %v709, %v707
        %v732 = vpack.c.bf16 %v710, %v708
        %v733 = vpack.c.bf16 %v713, %v711
        %v734 = vpack.c.bf16 %v714, %v712
        %v735 = vpack.c.bf16 %v717, %v715
        %v736 = vpack.c.bf16 %v718, %v716
        %v737 = vpack.c.bf16 %v721, %v719
        %v738 = vpack.c.bf16 %v722, %v720
        loop: start=0, step=1, limit=2
        $region125: #{tpu_custom_call.1} parent=71 // loop_pre_header
          _
        $region126: #{tpu_custom_call.1} parent=71 // loop_header
          %s740 = sphi 0, %s744
          %p741 = scmp.ge.s32.totalorder %s740, 2
          %v745 = vphi 0.0, %v1727
          %v746 = vphi 0.0, %v1728
          %v747 = vphi 0.0, %v1729
          %v748 = vphi 0.0, %v1730
          %v749 = vphi 0.0, %v1731
          %v750 = vphi 0.0, %v1732
          %v751 = vphi 0.0, %v1733
          %v752 = vphi 0.0, %v1734
          %v753 = vphi 0.0, %v1735
          %v754 = vphi 0.0, %v1736
          %v755 = vphi 0.0, %v1737
          %v756 = vphi 0.0, %v1738
          %v757 = vphi 0.0, %v1739
          %v758 = vphi 0.0, %v1740
          %v759 = vphi 0.0, %v1741
          %v760 = vphi 0.0, %v1742
          %v761 = vphi 0.0, %v1743
          %v762 = vphi 0.0, %v1744
          %v763 = vphi 0.0, %v1745
          %v764 = vphi 0.0, %v1746
          %v765 = vphi 0.0, %v1747
          %v766 = vphi 0.0, %v1748
          %v767 = vphi 0.0, %v1749
          %v768 = vphi 0.0, %v1750
          %v769 = vphi 0.0, %v1751
          %v770 = vphi 0.0, %v1752
          %v771 = vphi 0.0, %v1753
          %v772 = vphi 0.0, %v1754
          %v773 = vphi 0.0, %v1755
          %v774 = vphi 0.0, %v1756
          %v775 = vphi 0.0, %v1757
          %v776 = vphi 0.0, %v1758
        $region127: #{tpu_custom_call.1} parent=71 // loop_header_branch
          %743 = sbr.rel (%p741) target = $region131
        $region128: #{tpu_custom_call.1} parent=71 // loop_body
          %s777 = smul.u32 %s740, 32
          %s778 = smul.addr %s777, 4
          %s779 = scalar_lea.vmem [#allocation8], %s778
          %v780 = vld [vmem:[%s779] sm:$0xf]
          %v781 = vld [vmem:[%s779 + $0x4] sm:$0xf]
          %v782 = vld [vmem:[%s779 + $0x8] sm:$0xf]
          %v783 = vld [vmem:[%s779 + $0xc] sm:$0xf]
          %v784 = vld [vmem:[%s779 + $0x10] sm:$0xf]
          %v785 = vld [vmem:[%s779 + $0x14] sm:$0xf]
          %v786 = vld [vmem:[%s779 + $0x18] sm:$0xf]
          %v787 = vld [vmem:[%s779 + $0x1c] sm:$0xf]
          %v788 = vld [vmem:[%s779 + $0x20] sm:$0xf]
          %v789 = vld [vmem:[%s779 + $0x24] sm:$0xf]
          %v790 = vld [vmem:[%s779 + $0x28] sm:$0xf]
          %v791 = vld [vmem:[%s779 + $0x2c] sm:$0xf]
          %v792 = vld [vmem:[%s779 + $0x30] sm:$0xf]
          %v793 = vld [vmem:[%s779 + $0x34] sm:$0xf]
          %v794 = vld [vmem:[%s779 + $0x38] sm:$0xf]
          %v795 = vld [vmem:[%s779 + $0x3c] sm:$0xf]
          %v796 = vld [vmem:[%s779 + $0x40] sm:$0xf]
          %v797 = vld [vmem:[%s779 + $0x44] sm:$0xf]
          %v798 = vld [vmem:[%s779 + $0x48] sm:$0xf]
          %v799 = vld [vmem:[%s779 + $0x4c] sm:$0xf]
          %v800 = vld [vmem:[%s779 + $0x50] sm:$0xf]
          %v801 = vld [vmem:[%s779 + $0x54] sm:$0xf]
          %v802 = vld [vmem:[%s779 + $0x58] sm:$0xf]
          %v803 = vld [vmem:[%s779 + $0x5c] sm:$0xf]
          %v804 = vld [vmem:[%s779 + $0x60] sm:$0xf]
          %v805 = vld [vmem:[%s779 + $0x64] sm:$0xf]
          %v806 = vld [vmem:[%s779 + $0x68] sm:$0xf]
          %v807 = vld [vmem:[%s779 + $0x6c] sm:$0xf]
          %v808 = vld [vmem:[%s779 + $0x70] sm:$0xf]
          %v809 = vld [vmem:[%s779 + $0x74] sm:$0xf]
          %v810 = vld [vmem:[%s779 + $0x78] sm:$0xf]
          %v811 = vld [vmem:[%s779 + $0x7c] sm:$0xf]
          %v844 = vunpack.c.l.b16 %v780
          %v845 = vunpack.c.l.b16 %v781
          %v846 = vunpack.c.l.b16 %v782
          %v847 = vunpack.c.l.b16 %v783
          %v848 = vunpack.c.l.b16 %v784
          %v849 = vunpack.c.l.b16 %v785
          %v850 = vunpack.c.l.b16 %v786
          %v851 = vunpack.c.l.b16 %v787
          %v852 = vunpack.c.l.b16 %v788
          %v853 = vunpack.c.l.b16 %v789
          %v854 = vunpack.c.l.b16 %v790
          %v855 = vunpack.c.l.b16 %v791
          %v856 = vunpack.c.l.b16 %v792
          %v857 = vunpack.c.l.b16 %v793
          %v858 = vunpack.c.l.b16 %v794
          %v859 = vunpack.c.l.b16 %v795
          %v860 = vunpack.c.l.b16 %v796
          %v861 = vunpack.c.l.b16 %v797
          %v862 = vunpack.c.l.b16 %v798
          %v863 = vunpack.c.l.b16 %v799
          %v864 = vunpack.c.l.b16 %v800
          %v865 = vunpack.c.l.b16 %v801
          %v866 = vunpack.c.l.b16 %v802
          %v867 = vunpack.c.l.b16 %v803
          %v868 = vunpack.c.l.b16 %v804
          %v869 = vunpack.c.l.b16 %v805
          %v870 = vunpack.c.l.b16 %v806
          %v871 = vunpack.c.l.b16 %v807
          %v872 = vunpack.c.l.b16 %v808
          %v873 = vunpack.c.l.b16 %v809
          %v874 = vunpack.c.l.b16 %v810
          %v875 = vunpack.c.l.b16 %v811
          %v876 = vpack.c.b16 %v845, %v844
          %v877 = vpack.c.b16 %v847, %v846
          %v878 = vpack.c.b16 %v849, %v848
          %v879 = vpack.c.b16 %v851, %v850
          %v880 = vpack.c.b16 %v853, %v852
          %v881 = vpack.c.b16 %v855, %v854
          %v882 = vpack.c.b16 %v857, %v856
          %v883 = vpack.c.b16 %v859, %v858
          %v884 = vpack.c.b16 %v861, %v860
          %v885 = vpack.c.b16 %v863, %v862
          %v886 = vpack.c.b16 %v865, %v864
          %v887 = vpack.c.b16 %v867, %v866
          %v888 = vpack.c.b16 %v869, %v868
          %v889 = vpack.c.b16 %v871, %v870
          %v890 = vpack.c.b16 %v873, %v872
          %v891 = vpack.c.b16 %v875, %v874
          %908 = vmatprep.subr.bf16.mxu0 0
          %909 = vmatpush1.bf16.msra.mxu0 %v876
          %910 = vmatprep.subr.bf16.mxu0 0
          %911 = vmatpush1.bf16.msra.mxu0 %v877
          %912 = vmatprep.subr.bf16.mxu0 0
          %913 = vmatpush1.bf16.msra.mxu0 %v878
          %914 = vmatprep.subr.bf16.mxu0 0
          %915 = vmatpush1.bf16.msra.mxu0 %v879
          %916 = vmatprep.subr.bf16.mxu0 0
          %917 = vmatpush1.bf16.msra.mxu0 %v880
          %918 = vmatprep.subr.bf16.mxu0 0
          %919 = vmatpush1.bf16.msra.mxu0 %v881
          %920 = vmatprep.subr.bf16.mxu0 0
          %921 = vmatpush1.bf16.msra.mxu0 %v882
          %922 = vmatprep.subr.bf16.mxu0 0
          %923 = vmatpush1.bf16.msra.mxu0 %v883
          %924 = vmatprep.subr.bf16.mxu0 0
          %925 = vmatpush1.bf16.msra.mxu0 %v884
          %926 = vmatprep.subr.bf16.mxu0 0
          %927 = vmatpush1.bf16.msra.mxu0 %v885
          %928 = vmatprep.subr.bf16.mxu0 0
          %929 = vmatpush1.bf16.msra.mxu0 %v886
          %930 = vmatprep.subr.bf16.mxu0 0
          %931 = vmatpush1.bf16.msra.mxu0 %v887
          %932 = vmatprep.subr.bf16.mxu0 0
          %933 = vmatpush1.bf16.msra.mxu0 %v888
          %934 = vmatprep.subr.bf16.mxu0 0
          %935 = vmatpush1.bf16.msra.mxu0 %v889
          %936 = vmatprep.subr.bf16.mxu0 0
          %937 = vmatpush1.bf16.msra.mxu0 %v890
          %938 = vmatprep.subr.bf16.mxu0 0
          %939 = vmatpush1.bf16.msra.mxu0 %v891
          %940 = vmatprep.mubr.bf16.mxu0 %v724
          %941 = vmatmul.mubr.bf16.gmra.mrb[0].mxu0 %v723
          %v942 = vpop.f32.mrb[0].mxu0
          %v943 = vadd.f32 0.0, %v942
          %v944 = vpop.f32.mrb[0].mxu0
          %v945 = vpop.f32.mrb[0].mxu0
          %v946 = vadd.f32 0.0, %v945
          %v947 = vpop.f32.mrb[0].mxu0
          %948 = vmatprep.mubr.bf16.mxu0 %v726
          %949 = vmatmul.mubr.bf16.gmra.mrb[0].mxu0 %v725
          %v950 = vpop.f32.mrb[0].mxu0
          %v951 = vadd.f32 0.0, %v950
          %v952 = vpop.f32.mrb[0].mxu0
          %v953 = vpop.f32.mrb[0].mxu0
          %v954 = vadd.f32 0.0, %v953
          %v955 = vpop.f32.mrb[0].mxu0
          %956 = vmatprep.mubr.bf16.mxu0 %v728
          %957 = vmatmul.mubr.bf16.gmra.mrb[0].mxu0 %v727
          %v958 = vpop.f32.mrb[0].mxu0
          %v959 = vadd.f32 0.0, %v958
          %v960 = vpop.f32.mrb[0].mxu0
          %v961 = vpop.f32.mrb[0].mxu0
          %v962 = vadd.f32 0.0, %v961
          %v963 = vpop.f32.mrb[0].mxu0
          %964 = vmatprep.mubr.bf16.mxu0 %v730
          %965 = vmatmul.mubr.bf16.gmra.mrb[0].mxu0 %v729
          %v966 = vpop.f32.mrb[0].mxu0
          %v967 = vadd.f32 0.0, %v966
          %v968 = vpop.f32.mrb[0].mxu0
          %v969 = vpop.f32.mrb[0].mxu0
          %v970 = vadd.f32 0.0, %v969
          %v971 = vpop.f32.mrb[0].mxu0
          %972 = vmatprep.mubr.bf16.mxu0 %v732
          %973 = vmatmul.mubr.bf16.gmra.mrb[0].mxu0 %v731
          %v974 = vpop.f32.mrb[0].mxu0
          %v975 = vadd.f32 0.0, %v974
          %v976 = vpop.f32.mrb[0].mxu0
          %v977 = vpop.f32.mrb[0].mxu0
          %v978 = vadd.f32 0.0, %v977
          %v979 = vpop.f32.mrb[0].mxu0
          %980 = vmatprep.mubr.bf16.mxu0 %v734
          %981 = vmatmul.mubr.bf16.gmra.mrb[0].mxu0 %v733
          %v982 = vpop.f32.mrb[0].mxu0
          %v983 = vadd.f32 0.0, %v982
          %v984 = vpop.f32.mrb[0].mxu0
          %v985 = vpop.f32.mrb[0].mxu0
          %v986 = vadd.f32 0.0, %v985
          %v987 = vpop.f32.mrb[0].mxu0
          %988 = vmatprep.mubr.bf16.mxu0 %v736
          %989 = vmatmul.mubr.bf16.gmra.mrb[0].mxu0 %v735
          %v990 = vpop.f32.mrb[0].mxu0
          %v991 = vadd.f32 0.0, %v990
          %v992 = vpop.f32.mrb[0].mxu0
          %v993 = vpop.f32.mrb[0].mxu0
          %v994 = vadd.f32 0.0, %v993
          %v995 = vpop.f32.mrb[0].mxu0
          %996 = vmatprep.mubr.bf16.mxu0 %v738
          %997 = vmatmul.mubr.bf16.gmra.mrb[0].mxu0 %v737
          %v998 = vpop.f32.mrb[0].mxu0
          %v999 = vadd.f32 0.0, %v998
          %v1000 = vpop.f32.mrb[0].mxu0
          %v1001 = vpop.f32.mrb[0].mxu0
          %v1002 = vadd.f32 0.0, %v1001
          %v1003 = vpop.f32.mrb[0].mxu0
          %1004 = vdwg.mxu0
          %v1005 = vmul.f32 %v943, 0.088388346
          %v1006 = vmul.f32 %v946, 0.088388346
          %v1007 = vmul.f32 %v951, 0.088388346
          %v1008 = vmul.f32 %v954, 0.088388346
          %v1009 = vmul.f32 %v959, 0.088388346
          %v1010 = vmul.f32 %v962, 0.088388346
          %v1011 = vmul.f32 %v967, 0.088388346
          %v1012 = vmul.f32 %v970, 0.088388346
          %v1013 = vmul.f32 %v975, 0.088388346
          %v1014 = vmul.f32 %v978, 0.088388346
          %v1015 = vmul.f32 %v983, 0.088388346
          %v1016 = vmul.f32 %v986, 0.088388346
          %v1017 = vmul.f32 %v991, 0.088388346
          %v1018 = vmul.f32 %v994, 0.088388346
          %v1019 = vmul.f32 %v999, 0.088388346
          %v1020 = vmul.f32 %v1002, 0.088388346
          %v1021 = vpack.c.bf16 %v1006, %v1005
          %v1022 = vpack.c.bf16 %v1008, %v1007
          %v1023 = vpack.c.bf16 %v1010, %v1009
          %v1024 = vpack.c.bf16 %v1012, %v1011
          %v1025 = vpack.c.bf16 %v1014, %v1013
          %v1026 = vpack.c.bf16 %v1016, %v1015
          %v1027 = vpack.c.bf16 %v1018, %v1017
          %v1028 = vpack.c.bf16 %v1020, %v1019
          %s1029 = smul.u32 %s740, 16
          %s1030 = smul.addr %s1029, 4
          %s1031 = scalar_lea.vmem %s586, %s1030 [#allocation5]
          %v1032 = vld [vmem:[%s1031] sm:$0xf]
          %v1033 = vld [vmem:[%s1031 + $0x4] sm:$0xf]
          %v1034 = vld [vmem:[%s1031 + $0x8] sm:$0xf]
          %v1035 = vld [vmem:[%s1031 + $0xc] sm:$0xf]
          %v1036 = vld [vmem:[%s1031 + $0x10] sm:$0xf]
          %v1037 = vld [vmem:[%s1031 + $0x14] sm:$0xf]
          %v1038 = vld [vmem:[%s1031 + $0x18] sm:$0xf]
          %v1039 = vld [vmem:[%s1031 + $0x1c] sm:$0xf]
          %v1040 = vld [vmem:[%s1031 + $0x20] sm:$0xf]
          %v1041 = vld [vmem:[%s1031 + $0x24] sm:$0xf]
          %v1042 = vld [vmem:[%s1031 + $0x28] sm:$0xf]
          %v1043 = vld [vmem:[%s1031 + $0x2c] sm:$0xf]
          %v1044 = vld [vmem:[%s1031 + $0x30] sm:$0xf]
          %v1045 = vld [vmem:[%s1031 + $0x34] sm:$0xf]
          %v1046 = vld [vmem:[%s1031 + $0x38] sm:$0xf]
          %v1047 = vld [vmem:[%s1031 + $0x3c] sm:$0xf]
          %s1048 = smul.addr %s1029, 4
          %s1049 = scalar_lea.vmem %s595, %s1048 [#allocation7]
          %v1050 = vld [vmem:[%s1049] sm:$0xf]
          %v1051 = vld [vmem:[%s1049 + $0x4] sm:$0xf]
          %v1052 = vld [vmem:[%s1049 + $0x8] sm:$0xf]
          %v1053 = vld [vmem:[%s1049 + $0xc] sm:$0xf]
          %v1054 = vld [vmem:[%s1049 + $0x10] sm:$0xf]
          %v1055 = vld [vmem:[%s1049 + $0x14] sm:$0xf]
          %v1056 = vld [vmem:[%s1049 + $0x18] sm:$0xf]
          %v1057 = vld [vmem:[%s1049 + $0x1c] sm:$0xf]
          %v1058 = vld [vmem:[%s1049 + $0x20] sm:$0xf]
          %v1059 = vld [vmem:[%s1049 + $0x24] sm:$0xf]
          %v1060 = vld [vmem:[%s1049 + $0x28] sm:$0xf]
          %v1061 = vld [vmem:[%s1049 + $0x2c] sm:$0xf]
          %v1062 = vld [vmem:[%s1049 + $0x30] sm:$0xf]
          %v1063 = vld [vmem:[%s1049 + $0x34] sm:$0xf]
          %v1064 = vld [vmem:[%s1049 + $0x38] sm:$0xf]
          %v1065 = vld [vmem:[%s1049 + $0x3c] sm:$0xf]
          %v1082 = vunpack.c.l.b16 %v1032
          %v1083 = vunpack.c.l.b16 %v1033
          %v1084 = vunpack.c.l.b16 %v1034
          %v1085 = vunpack.c.l.b16 %v1035
          %v1086 = vunpack.c.l.b16 %v1036
          %v1087 = vunpack.c.l.b16 %v1037
          %v1088 = vunpack.c.l.b16 %v1038
          %v1089 = vunpack.c.l.b16 %v1039
          %v1090 = vunpack.c.l.b16 %v1040
          %v1091 = vunpack.c.l.b16 %v1041
          %v1092 = vunpack.c.l.b16 %v1042
          %v1093 = vunpack.c.l.b16 %v1043
          %v1094 = vunpack.c.l.b16 %v1044
          %v1095 = vunpack.c.l.b16 %v1045
          %v1096 = vunpack.c.l.b16 %v1046
          %v1097 = vunpack.c.l.b16 %v1047
          %v1098 = vpack.c.b16 %v1083, %v1082
          %v1099 = vpack.c.b16 %v1085, %v1084
          %v1100 = vpack.c.b16 %v1087, %v1086
          %v1101 = vpack.c.b16 %v1089, %v1088
          %v1102 = vpack.c.b16 %v1091, %v1090
          %v1103 = vpack.c.b16 %v1093, %v1092
          %v1104 = vpack.c.b16 %v1095, %v1094
          %v1105 = vpack.c.b16 %v1097, %v1096
          %1114 = vmatprep.subr.bf16.mxu0 0
          %1115 = vmatpush1.bf16.xpose.msra.mxu0 %v1098
          %1116 = vmatprep.subr.bf16.mxu0 0
          %1117 = vmatpush1.bf16.xpose.msra.mxu0 %v1099
          %1118 = vmatprep.subr.bf16.mxu0 0
          %1119 = vmatpush1.bf16.xpose.msra.mxu0 %v1100
          %1120 = vmatprep.subr.bf16.mxu0 0
          %1121 = vmatpush1.bf16.xpose.msra.mxu0 %v1101
          %1122 = vmatprep.subr.bf16.mxu0 0
          %1123 = vmatpush1.bf16.xpose.msra.mxu0 %v1102
          %1124 = vmatprep.subr.bf16.mxu0 0
          %1125 = vmatpush1.bf16.xpose.msra.mxu0 %v1103
          %1126 = vmatprep.subr.bf16.mxu0 0
          %1127 = vmatpush1.bf16.xpose.msra.mxu0 %v1104
          %1128 = vmatprep.subr.bf16.mxu0 0
          %1129 = vmatpush1.bf16.xpose.msra.mxu0 %v1105
          %1130 = vmatprep.subr.bf16.mxu0 0
          %1131 = vmatpush1.bf16.xpose.msra.mxu0 0
          %1132 = vmatprep.subr.bf16.mxu0 0
          %1133 = vmatpush1.bf16.xpose.msra.mxu0 0
          %1134 = vmatprep.subr.bf16.mxu0 0
          %1135 = vmatpush1.bf16.xpose.msra.mxu0 0
          %1136 = vmatprep.subr.bf16.mxu0 0
          %1137 = vmatpush1.bf16.xpose.msra.mxu0 0
          %1138 = vmatprep.subr.bf16.mxu0 0
          %1139 = vmatpush1.bf16.xpose.msra.mxu0 0
          %1140 = vmatprep.subr.bf16.mxu0 0
          %1141 = vmatpush1.bf16.xpose.msra.mxu0 0
          %1142 = vmatprep.subr.bf16.mxu0 0
          %1143 = vmatpush1.bf16.xpose.msra.mxu0 0
          %1144 = vmatprep.subr.bf16.mxu0 0
          %1145 = vmatpush1.bf16.xpose.msra.mxu0 0
          %1146 = vmatprep.mubr.bf16.mxu0 0
          %1147 = vmatmul.mubr.bf16.gmra.mrb[0].mxu0 %v1021
          %v1148 = vpop.f32.mrb[0].mxu0
          %v1149 = vadd.f32 0.0, %v1148
          %v1150 = vpop.f32.mrb[0].mxu0
          %v1151 = vpop.f32.mrb[0].mxu0
          %v1152 = vadd.f32 0.0, %v1151
          %v1153 = vpop.f32.mrb[0].mxu0
          %1154 = vmatprep.mubr.bf16.mxu0 0
          %1155 = vmatmul.mubr.bf16.gmra.mrb[0].mxu0 %v1022
          %v1156 = vpop.f32.mrb[0].mxu0
          %v1157 = vadd.f32 0.0, %v1156
          %v1158 = vpop.f32.mrb[0].mxu0
          %v1159 = vpop.f32.mrb[0].mxu0
          %v1160 = vadd.f32 0.0, %v1159
          %v1161 = vpop.f32.mrb[0].mxu0
          %1162 = vmatprep.mubr.bf16.mxu0 0
          %1163 = vmatmul.mubr.bf16.gmra.mrb[0].mxu0 %v1023
          %v1164 = vpop.f32.mrb[0].mxu0
          %v1165 = vadd.f32 0.0, %v1164
          %v1166 = vpop.f32.mrb[0].mxu0
          %v1167 = vpop.f32.mrb[0].mxu0
          %v1168 = vadd.f32 0.0, %v1167
          %v1169 = vpop.f32.mrb[0].mxu0
          %1170 = vmatprep.mubr.bf16.mxu0 0
          %1171 = vmatmul.mubr.bf16.gmra.mrb[0].mxu0 %v1024
          %v1172 = vpop.f32.mrb[0].mxu0
          %v1173 = vadd.f32 0.0, %v1172
          %v1174 = vpop.f32.mrb[0].mxu0
          %v1175 = vpop.f32.mrb[0].mxu0
          %v1176 = vadd.f32 0.0, %v1175
          %v1177 = vpop.f32.mrb[0].mxu0
          %1178 = vmatprep.mubr.bf16.mxu0 0
          %1179 = vmatmul.mubr.bf16.gmra.mrb[0].mxu0 %v1025
          %v1180 = vpop.f32.mrb[0].mxu0
          %v1181 = vadd.f32 0.0, %v1180
          %v1182 = vpop.f32.mrb[0].mxu0
          %v1183 = vpop.f32.mrb[0].mxu0
          %v1184 = vadd.f32 0.0, %v1183
          %v1185 = vpop.f32.mrb[0].mxu0
          %1186 = vmatprep.mubr.bf16.mxu0 0
          %1187 = vmatmul.mubr.bf16.gmra.mrb[0].mxu0 %v1026
          %v1188 = vpop.f32.mrb[0].mxu0
          %v1189 = vadd.f32 0.0, %v1188
          %v1190 = vpop.f32.mrb[0].mxu0
          %v1191 = vpop.f32.mrb[0].mxu0
          %v1192 = vadd.f32 0.0, %v1191
          %v1193 = vpop.f32.mrb[0].mxu0
          %1194 = vmatprep.mubr.bf16.mxu0 0
          %1195 = vmatmul.mubr.bf16.gmra.mrb[0].mxu0 %v1027
          %v1196 = vpop.f32.mrb[0].mxu0
          %v1197 = vadd.f32 0.0, %v1196
          %v1198 = vpop.f32.mrb[0].mxu0
          %v1199 = vpop.f32.mrb[0].mxu0
          %v1200 = vadd.f32 0.0, %v1199
          %v1201 = vpop.f32.mrb[0].mxu0
          %1202 = vmatprep.mubr.bf16.mxu0 0
          %1203 = vmatmul.mubr.bf16.gmra.mrb[0].mxu0 %v1028
          %v1204 = vpop.f32.mrb[0].mxu0
          %v1205 = vadd.f32 0.0, %v1204
          %v1206 = vpop.f32.mrb[0].mxu0
          %v1207 = vpop.f32.mrb[0].mxu0
          %v1208 = vadd.f32 0.0, %v1207
          %v1209 = vpop.f32.mrb[0].mxu0
          %1210 = vdwg.mxu0
          %1211 = vmax.xlane.f32.xlu0 %v1149
          %v1212 = vpop.xlane.xlu0 %1211
          %1213 = vmax.xlane.f32.xlu0 %v1152
          %v1214 = vpop.xlane.xlu0 %1213
          %1215 = vmax.xlane.f32.xlu0 %v1157
          %v1216 = vpop.xlane.xlu0 %1215
          %1217 = vmax.xlane.f32.xlu0 %v1160
          %v1218 = vpop.xlane.xlu0 %1217
          %1219 = vmax.xlane.f32.xlu0 %v1165
          %v1220 = vpop.xlane.xlu0 %1219
          %1221 = vmax.xlane.f32.xlu0 %v1168
          %v1222 = vpop.xlane.xlu0 %1221
          %1223 = vmax.xlane.f32.xlu0 %v1173
          %v1224 = vpop.xlane.xlu0 %1223
          %1225 = vmax.xlane.f32.xlu0 %v1176
          %v1226 = vpop.xlane.xlu0 %1225
          %1227 = vmax.xlane.f32.xlu0 %v1181
          %v1228 = vpop.xlane.xlu0 %1227
          %1229 = vmax.xlane.f32.xlu0 %v1184
          %v1230 = vpop.xlane.xlu0 %1229
          %1231 = vmax.xlane.f32.xlu0 %v1189
          %v1232 = vpop.xlane.xlu0 %1231
          %1233 = vmax.xlane.f32.xlu0 %v1192
          %v1234 = vpop.xlane.xlu0 %1233
          %1235 = vmax.xlane.f32.xlu0 %v1197
          %v1236 = vpop.xlane.xlu0 %1235
          %1237 = vmax.xlane.f32.xlu0 %v1200
          %v1238 = vpop.xlane.xlu0 %1237
          %1239 = vmax.xlane.f32.xlu0 %v1205
          %v1240 = vpop.xlane.xlu0 %1239
          %1241 = vmax.xlane.f32.xlu0 %v1208
          %v1242 = vpop.xlane.xlu0 %1241
          %v1243 = vsub.f32 %v1149, %v1212
          %v1244 = vsub.f32 %v1152, %v1214
          %v1245 = vsub.f32 %v1157, %v1216
          %v1246 = vsub.f32 %v1160, %v1218
          %v1247 = vsub.f32 %v1165, %v1220
          %v1248 = vsub.f32 %v1168, %v1222
          %v1249 = vsub.f32 %v1173, %v1224
          %v1250 = vsub.f32 %v1176, %v1226
          %v1251 = vsub.f32 %v1181, %v1228
          %v1252 = vsub.f32 %v1184, %v1230
          %v1253 = vsub.f32 %v1189, %v1232
          %v1254 = vsub.f32 %v1192, %v1234
          %v1255 = vsub.f32 %v1197, %v1236
          %v1256 = vsub.f32 %v1200, %v1238
          %v1257 = vsub.f32 %v1205, %v1240
          %v1258 = vsub.f32 %v1208, %v1242
          %v1259 = vmul.f32 %v1243, 1.442695
          %v1260 = vpow.pop %v1259
          %v1261 = vmul.f32 %v1244, 1.442695
          %v1262 = vpow.pop %v1261
          %v1263 = vmul.f32 %v1245, 1.442695
          %v1264 = vpow.pop %v1263
          %v1265 = vmul.f32 %v1246, 1.442695
          %v1266 = vpow.pop %v1265
          %v1267 = vmul.f32 %v1247, 1.442695
          %v1268 = vpow.pop %v1267
          %v1269 = vmul.f32 %v1248, 1.442695
          %v1270 = vpow.pop %v1269
          %v1271 = vmul.f32 %v1249, 1.442695
          %v1272 = vpow.pop %v1271
          %v1273 = vmul.f32 %v1250, 1.442695
          %v1274 = vpow.pop %v1273
          %v1275 = vmul.f32 %v1251, 1.442695
          %v1276 = vpow.pop %v1275
          %v1277 = vmul.f32 %v1252, 1.442695
          %v1278 = vpow.pop %v1277
          %v1279 = vmul.f32 %v1253, 1.442695
          %v1280 = vpow.pop %v1279
          %v1281 = vmul.f32 %v1254, 1.442695
          %v1282 = vpow.pop %v1281
          %v1283 = vmul.f32 %v1255, 1.442695
          %v1284 = vpow.pop %v1283
          %v1285 = vmul.f32 %v1256, 1.442695
          %v1286 = vpow.pop %v1285
          %v1287 = vmul.f32 %v1257, 1.442695
          %v1288 = vpow.pop %v1287
          %v1289 = vmul.f32 %v1258, 1.442695
          %v1290 = vpow.pop %v1289
          %1291 = vadd.xlane.f32.xlu0 %v1260
          %v1292 = vpop.xlane.xlu0 %1291
          %1293 = vadd.xlane.f32.xlu0 %v1262
          %v1294 = vpop.xlane.xlu0 %1293
          %1295 = vadd.xlane.f32.xlu0 %v1264
          %v1296 = vpop.xlane.xlu0 %1295
          %1297 = vadd.xlane.f32.xlu0 %v1266
          %v1298 = vpop.xlane.xlu0 %1297
          %1299 = vadd.xlane.f32.xlu0 %v1268
          %v1300 = vpop.xlane.xlu0 %1299
          %1301 = vadd.xlane.f32.xlu0 %v1270
          %v1302 = vpop.xlane.xlu0 %1301
          %1303 = vadd.xlane.f32.xlu0 %v1272
          %v1304 = vpop.xlane.xlu0 %1303
          %1305 = vadd.xlane.f32.xlu0 %v1274
          %v1306 = vpop.xlane.xlu0 %1305
          %1307 = vadd.xlane.f32.xlu0 %v1276
          %v1308 = vpop.xlane.xlu0 %1307
          %1309 = vadd.xlane.f32.xlu0 %v1278
          %v1310 = vpop.xlane.xlu0 %1309
          %1311 = vadd.xlane.f32.xlu0 %v1280
          %v1312 = vpop.xlane.xlu0 %1311
          %1313 = vadd.xlane.f32.xlu0 %v1282
          %v1314 = vpop.xlane.xlu0 %1313
          %1315 = vadd.xlane.f32.xlu0 %v1284
          %v1316 = vpop.xlane.xlu0 %1315
          %1317 = vadd.xlane.f32.xlu0 %v1286
          %v1318 = vpop.xlane.xlu0 %1317
          %1319 = vadd.xlane.f32.xlu0 %v1288
          %v1320 = vpop.xlane.xlu0 %1319
          %1321 = vadd.xlane.f32.xlu0 %v1290
          %v1322 = vpop.xlane.xlu0 %1321
          %v1323 = vpack.c.bf16 %v1262, %v1260
          %v1324 = vpack.c.bf16 %v1266, %v1264
          %v1325 = vpack.c.bf16 %v1270, %v1268
          %v1326 = vpack.c.bf16 %v1274, %v1272
          %v1327 = vpack.c.bf16 %v1278, %v1276
          %v1328 = vpack.c.bf16 %v1282, %v1280
          %v1329 = vpack.c.bf16 %v1286, %v1284
          %v1330 = vpack.c.bf16 %v1290, %v1288
          %v1347 = vunpack.c.l.b16 %v1050
          %v1348 = vunpack.c.l.b16 %v1051
          %v1349 = vunpack.c.l.b16 %v1052
          %v1350 = vunpack.c.l.b16 %v1053
          %v1351 = vunpack.c.l.b16 %v1054
          %v1352 = vunpack.c.l.b16 %v1055
          %v1353 = vunpack.c.l.b16 %v1056
          %v1354 = vunpack.c.l.b16 %v1057
          %v1355 = vunpack.c.l.b16 %v1058
          %v1356 = vunpack.c.l.b16 %v1059
          %v1357 = vunpack.c.l.b16 %v1060
          %v1358 = vunpack.c.l.b16 %v1061
          %v1359 = vunpack.c.l.b16 %v1062
          %v1360 = vunpack.c.l.b16 %v1063
          %v1361 = vunpack.c.l.b16 %v1064
          %v1362 = vunpack.c.l.b16 %v1065
          %v1363 = vpack.c.b16 %v1348, %v1347
          %v1364 = vpack.c.b16 %v1350, %v1349
          %v1365 = vpack.c.b16 %v1352, %v1351
          %v1366 = vpack.c.b16 %v1354, %v1353
          %v1367 = vpack.c.b16 %v1356, %v1355
          %v1368 = vpack.c.b16 %v1358, %v1357
          %v1369 = vpack.c.b16 %v1360, %v1359
          %v1370 = vpack.c.b16 %v1362, %v1361
          %1379 = vmatprep.subr.bf16.mxu0 0
          %1380 = vmatpush1.bf16.msra.mxu0 %v1363
          %1381 = vmatprep.subr.bf16.mxu0 0
          %1382 = vmatpush1.bf16.msra.mxu0 %v1364
          %1383 = vmatprep.subr.bf16.mxu0 0
          %1384 = vmatpush1.bf16.msra.mxu0 %v1365
          %1385 = vmatprep.subr.bf16.mxu0 0
          %1386 = vmatpush1.bf16.msra.mxu0 %v1366
          %1387 = vmatprep.subr.bf16.mxu0 0
          %1388 = vmatpush1.bf16.msra.mxu0 %v1367
          %1389 = vmatprep.subr.bf16.mxu0 0
          %1390 = vmatpush1.bf16.msra.mxu0 %v1368
          %1391 = vmatprep.subr.bf16.mxu0 0
          %1392 = vmatpush1.bf16.msra.mxu0 %v1369
          %1393 = vmatprep.subr.bf16.mxu0 0
          %1394 = vmatpush1.bf16.msra.mxu0 %v1370
          %1395 = vmatprep.subr.bf16.mxu0 0
          %1396 = vmatpush1.bf16.msra.mxu0 0
          %1397 = vmatprep.subr.bf16.mxu0 0
          %1398 = vmatpush1.bf16.msra.mxu0 0
          %1399 = vmatprep.subr.bf16.mxu0 0
          %1400 = vmatpush1.bf16.msra.mxu0 0
          %1401 = vmatprep.subr.bf16.mxu0 0
          %1402 = vmatpush1.bf16.msra.mxu0 0
          %1403 = vmatprep.subr.bf16.mxu0 0
          %1404 = vmatpush1.bf16.msra.mxu0 0
          %1405 = vmatprep.subr.bf16.mxu0 0
          %1406 = vmatpush1.bf16.msra.mxu0 0
          %1407 = vmatprep.subr.bf16.mxu0 0
          %1408 = vmatpush1.bf16.msra.mxu0 0
          %1409 = vmatprep.subr.bf16.mxu0 0
          %1410 = vmatpush1.bf16.msra.mxu0 0
          %1411 = vmatprep.mubr.bf16.mxu0 0
          %1412 = vmatmul.mubr.bf16.gmra.mrb[0].mxu0 %v1323
          %v1413 = vpop.f32.mrb[0].mxu0
          %v1414 = vadd.f32 0.0, %v1413
          %v1415 = vpop.f32.mrb[0].mxu0
          %v1416 = vpop.f32.mrb[0].mxu0
          %v1417 = vadd.f32 0.0, %v1416
          %v1418 = vpop.f32.mrb[0].mxu0
          %1419 = vmatprep.mubr.bf16.mxu0 0
          %1420 = vmatmul.mubr.bf16.gmra.mrb[0].mxu0 %v1324
          %v1421 = vpop.f32.mrb[0].mxu0
          %v1422 = vadd.f32 0.0, %v1421
          %v1423 = vpop.f32.mrb[0].mxu0
          %v1424 = vpop.f32.mrb[0].mxu0
          %v1425 = vadd.f32 0.0, %v1424
          %v1426 = vpop.f32.mrb[0].mxu0
          %1427 = vmatprep.mubr.bf16.mxu0 0
          %1428 = vmatmul.mubr.bf16.gmra.mrb[0].mxu0 %v1325
          %v1429 = vpop.f32.mrb[0].mxu0
          %v1430 = vadd.f32 0.0, %v1429
          %v1431 = vpop.f32.mrb[0].mxu0
          %v1432 = vpop.f32.mrb[0].mxu0
          %v1433 = vadd.f32 0.0, %v1432
          %v1434 = vpop.f32.mrb[0].mxu0
          %1435 = vmatprep.mubr.bf16.mxu0 0
          %1436 = vmatmul.mubr.bf16.gmra.mrb[0].mxu0 %v1326
          %v1437 = vpop.f32.mrb[0].mxu0
          %v1438 = vadd.f32 0.0, %v1437
          %v1439 = vpop.f32.mrb[0].mxu0
          %v1440 = vpop.f32.mrb[0].mxu0
          %v1441 = vadd.f32 0.0, %v1440
          %v1442 = vpop.f32.mrb[0].mxu0
          %1443 = vmatprep.mubr.bf16.mxu0 0
          %1444 = vmatmul.mubr.bf16.gmra.mrb[0].mxu0 %v1327
          %v1445 = vpop.f32.mrb[0].mxu0
          %v1446 = vadd.f32 0.0, %v1445
          %v1447 = vpop.f32.mrb[0].mxu0
          %v1448 = vpop.f32.mrb[0].mxu0
          %v1449 = vadd.f32 0.0, %v1448
          %v1450 = vpop.f32.mrb[0].mxu0
          %1451 = vmatprep.mubr.bf16.mxu0 0
          %1452 = vmatmul.mubr.bf16.gmra.mrb[0].mxu0 %v1328
          %v1453 = vpop.f32.mrb[0].mxu0
          %v1454 = vadd.f32 0.0, %v1453
          %v1455 = vpop.f32.mrb[0].mxu0
          %v1456 = vpop.f32.mrb[0].mxu0
          %v1457 = vadd.f32 0.0, %v1456
          %v1458 = vpop.f32.mrb[0].mxu0
          %1459 = vmatprep.mubr.bf16.mxu0 0
          %1460 = vmatmul.mubr.bf16.gmra.mrb[0].mxu0 %v1329
          %v1461 = vpop.f32.mrb[0].mxu0
          %v1462 = vadd.f32 0.0, %v1461
          %v1463 = vpop.f32.mrb[0].mxu0
          %v1464 = vpop.f32.mrb[0].mxu0
          %v1465 = vadd.f32 0.0, %v1464
          %v1466 = vpop.f32.mrb[0].mxu0
          %1467 = vmatprep.mubr.bf16.mxu0 0
          %1468 = vmatmul.mubr.bf16.gmra.mrb[0].mxu0 %v1330
          %v1469 = vpop.f32.mrb[0].mxu0
          %v1470 = vadd.f32 0.0, %v1469
          %v1471 = vpop.f32.mrb[0].mxu0
          %v1472 = vpop.f32.mrb[0].mxu0
          %v1473 = vadd.f32 0.0, %v1472
          %v1474 = vpop.f32.mrb[0].mxu0
          %1475 = vdwg.mxu0
          %v1476 = vrcp.pop %v1292
          %v1477 = vrcp.pop %v1294
          %v1478 = vrcp.pop %v1296
          %v1479 = vrcp.pop %v1298
          %v1480 = vrcp.pop %v1300
          %v1481 = vrcp.pop %v1302
          %v1482 = vrcp.pop %v1304
          %v1483 = vrcp.pop %v1306
          %v1484 = vrcp.pop %v1308
          %v1485 = vrcp.pop %v1310
          %v1486 = vrcp.pop %v1312
          %v1487 = vrcp.pop %v1314
          %v1488 = vrcp.pop %v1316
          %v1489 = vrcp.pop %v1318
          %v1490 = vrcp.pop %v1320
          %v1491 = vrcp.pop %v1322
          %v1492 = vmul.f32 %v1414, %v1476
          %v1493 = vmul.f32 %v1417, %v1477
          %v1494 = vmul.f32 %v1422, %v1478
          %v1495 = vmul.f32 %v1425, %v1479
          %v1496 = vmul.f32 %v1430, %v1480
          %v1497 = vmul.f32 %v1433, %v1481
          %v1498 = vmul.f32 %v1438, %v1482
          %v1499 = vmul.f32 %v1441, %v1483
          %v1500 = vmul.f32 %v1446, %v1484
          %v1501 = vmul.f32 %v1449, %v1485
          %v1502 = vmul.f32 %v1454, %v1486
          %v1503 = vmul.f32 %v1457, %v1487
          %v1504 = vmul.f32 %v1462, %v1488
          %v1505 = vmul.f32 %v1465, %v1489
          %v1506 = vmul.f32 %v1470, %v1490
          %v1507 = vmul.f32 %v1473, %v1491
          %v1508 = vpack.c.bf16 %v1493, %v1492
          %v1509 = vpack.c.bf16 %v1495, %v1494
          %v1510 = vpack.c.bf16 %v1497, %v1496
          %v1511 = vpack.c.bf16 %v1499, %v1498
          %v1512 = vpack.c.bf16 %v1501, %v1500
          %v1513 = vpack.c.bf16 %v1503, %v1502
          %v1514 = vpack.c.bf16 %v1505, %v1504
          %v1515 = vpack.c.bf16 %v1507, %v1506
          %s1516 = smul.addr %s777, 4
          %s1517 = scalar_lea.vmem [#allocation10], %s1516
          %v1518 = vld [vmem:[%s1517] sm:$0xff]
          %v1519 = vld [vmem:[%s1517 + $0x8] sm:$0xff]
          %v1520 = vld [vmem:[%s1517 + $0x10] sm:$0xff]
          %v1521 = vld [vmem:[%s1517 + $0x18] sm:$0xff]
          %v1522 = vld [vmem:[%s1517 + $0x20] sm:$0xff]
          %v1523 = vld [vmem:[%s1517 + $0x28] sm:$0xff]
          %v1524 = vld [vmem:[%s1517 + $0x30] sm:$0xff]
          %v1525 = vld [vmem:[%s1517 + $0x38] sm:$0xff]
          %v1526 = vld [vmem:[%s1517 + $0x40] sm:$0xff]
          %v1527 = vld [vmem:[%s1517 + $0x48] sm:$0xff]
          %v1528 = vld [vmem:[%s1517 + $0x50] sm:$0xff]
          %v1529 = vld [vmem:[%s1517 + $0x58] sm:$0xff]
          %v1530 = vld [vmem:[%s1517 + $0x60] sm:$0xff]
          %v1531 = vld [vmem:[%s1517 + $0x68] sm:$0xff]
          %v1532 = vld [vmem:[%s1517 + $0x70] sm:$0xff]
          %v1533 = vld [vmem:[%s1517 + $0x78] sm:$0xff]
          %v1550 = vunpack.c.l.b16 %v1518
          %v1551 = vunpack.c.h.b16 %v1518
          %v1552 = vunpack.c.l.b16 %v1519
          %v1553 = vunpack.c.h.b16 %v1519
          %v1554 = vunpack.c.l.b16 %v1520
          %v1555 = vunpack.c.h.b16 %v1520
          %v1556 = vunpack.c.l.b16 %v1521
          %v1557 = vunpack.c.h.b16 %v1521
          %v1558 = vunpack.c.l.b16 %v1522
          %v1559 = vunpack.c.h.b16 %v1522
          %v1560 = vunpack.c.l.b16 %v1523
          %v1561 = vunpack.c.h.b16 %v1523
          %v1562 = vunpack.c.l.b16 %v1524
          %v1563 = vunpack.c.h.b16 %v1524
          %v1564 = vunpack.c.l.b16 %v1525
          %v1565 = vunpack.c.h.b16 %v1525
          %v1566 = vunpack.c.l.b16 %v1526
          %v1567 = vunpack.c.h.b16 %v1526
          %v1568 = vunpack.c.l.b16 %v1527
          %v1569 = vunpack.c.h.b16 %v1527
          %v1570 = vunpack.c.l.b16 %v1528
          %v1571 = vunpack.c.h.b16 %v1528
          %v1572 = vunpack.c.l.b16 %v1529
          %v1573 = vunpack.c.h.b16 %v1529
          %v1574 = vunpack.c.l.b16 %v1530
          %v1575 = vunpack.c.h.b16 %v1530
          %v1576 = vunpack.c.l.b16 %v1531
          %v1577 = vunpack.c.h.b16 %v1531
          %v1578 = vunpack.c.l.b16 %v1532
          %v1579 = vunpack.c.h.b16 %v1532
          %v1580 = vunpack.c.l.b16 %v1533
          %v1581 = vunpack.c.h.b16 %v1533
          %v1582 = vpack.c.b16 %v1552, %v1550
          %v1583 = vpack.c.b16 %v1553, %v1551
          %v1584 = vpack.c.b16 %v1556, %v1554
          %v1585 = vpack.c.b16 %v1557, %v1555
          %v1586 = vpack.c.b16 %v1560, %v1558
          %v1587 = vpack.c.b16 %v1561, %v1559
          %v1588 = vpack.c.b16 %v1564, %v1562
          %v1589 = vpack.c.b16 %v1565, %v1563
          %v1590 = vpack.c.b16 %v1568, %v1566
          %v1591 = vpack.c.b16 %v1569, %v1567
          %v1592 = vpack.c.b16 %v1572, %v1570
          %v1593 = vpack.c.b16 %v1573, %v1571
          %v1594 = vpack.c.b16 %v1576, %v1574
          %v1595 = vpack.c.b16 %v1577, %v1575
          %v1596 = vpack.c.b16 %v1580, %v1578
          %v1597 = vpack.c.b16 %v1581, %v1579
          %1614 = vmatprep.subr.bf16.mxu0 %v1583
          %1615 = vmatpush1.bf16.msra.mxu0 %v1582
          %1616 = vmatprep.subr.bf16.mxu0 %v1585
          %1617 = vmatpush1.bf16.msra.mxu0 %v1584
          %1618 = vmatprep.subr.bf16.mxu0 %v1587
          %1619 = vmatpush1.bf16.msra.mxu0 %v1586
          %1620 = vmatprep.subr.bf16.mxu0 %v1589
          %1621 = vmatpush1.bf16.msra.mxu0 %v1588
          %1622 = vmatprep.subr.bf16.mxu0 %v1591
          %1623 = vmatpush1.bf16.msra.mxu0 %v1590
          %1624 = vmatprep.subr.bf16.mxu0 %v1593
          %1625 = vmatpush1.bf16.msra.mxu0 %v1592
          %1626 = vmatprep.subr.bf16.mxu0 %v1595
          %1627 = vmatpush1.bf16.msra.mxu0 %v1594
          %1628 = vmatprep.subr.bf16.mxu0 %v1597
          %1629 = vmatpush1.bf16.msra.mxu0 %v1596
          %1630 = vmatprep.subr.bf16.mxu0 0
          %1631 = vmatpush1.bf16.msra.mxu0 0
          %1632 = vmatprep.subr.bf16.mxu0 0
          %1633 = vmatpush1.bf16.msra.mxu0 0
          %1634 = vmatprep.subr.bf16.mxu0 0
          %1635 = vmatpush1.bf16.msra.mxu0 0
          %1636 = vmatprep.subr.bf16.mxu0 0
          %1637 = vmatpush1.bf16.msra.mxu0 0
          %1638 = vmatprep.subr.bf16.mxu0 0
          %1639 = vmatpush1.bf16.msra.mxu0 0
          %1640 = vmatprep.subr.bf16.mxu0 0
          %1641 = vmatpush1.bf16.msra.mxu0 0
          %1642 = vmatprep.subr.bf16.mxu0 0
          %1643 = vmatpush1.bf16.msra.mxu0 0
          %1644 = vmatprep.subr.bf16.mxu0 0
          %1645 = vmatpush1.bf16.msra.mxu0 0
          %1646 = vmatprep.mubr.bf16.mxu0 0
          %1647 = vmatmul.mubr.bf16.gmra.mrb[0].mxu0 %v1508
          %v1648 = vpop.f32.mrb[0].mxu0
          %v1649 = vadd.f32 0.0, %v1648
          %v1650 = vpop.f32.mrb[0].mxu0
          %v1651 = vadd.f32 0.0, %v1650
          %v1652 = vpop.f32.mrb[0].mxu0
          %v1653 = vadd.f32 0.0, %v1652
          %v1654 = vpop.f32.mrb[0].mxu0
          %v1655 = vadd.f32 0.0, %v1654
          %1656 = vmatprep.mubr.bf16.mxu0 0
          %1657 = vmatmul.mubr.bf16.gmra.mrb[0].mxu0 %v1509
          %v1658 = vpop.f32.mrb[0].mxu0
          %v1659 = vadd.f32 0.0, %v1658
          %v1660 = vpop.f32.mrb[0].mxu0
          %v1661 = vadd.f32 0.0, %v1660
          %v1662 = vpop.f32.mrb[0].mxu0
          %v1663 = vadd.f32 0.0, %v1662
          %v1664 = vpop.f32.mrb[0].mxu0
          %v1665 = vadd.f32 0.0, %v1664
          %1666 = vmatprep.mubr.bf16.mxu0 0
          %1667 = vmatmul.mubr.bf16.gmra.mrb[0].mxu0 %v1510
          %v1668 = vpop.f32.mrb[0].mxu0
          %v1669 = vadd.f32 0.0, %v1668
          %v1670 = vpop.f32.mrb[0].mxu0
          %v1671 = vadd.f32 0.0, %v1670
          %v1672 = vpop.f32.mrb[0].mxu0
          %v1673 = vadd.f32 0.0, %v1672
          %v1674 = vpop.f32.mrb[0].mxu0
          %v1675 = vadd.f32 0.0, %v1674
          %1676 = vmatprep.mubr.bf16.mxu0 0
          %1677 = vmatmul.mubr.bf16.gmra.mrb[0].mxu0 %v1511
          %v1678 = vpop.f32.mrb[0].mxu0
          %v1679 = vadd.f32 0.0, %v1678
          %v1680 = vpop.f32.mrb[0].mxu0
          %v1681 = vadd.f32 0.0, %v1680
          %v1682 = vpop.f32.mrb[0].mxu0
          %v1683 = vadd.f32 0.0, %v1682
          %v1684 = vpop.f32.mrb[0].mxu0
          %v1685 = vadd.f32 0.0, %v1684
          %1686 = vmatprep.mubr.bf16.mxu0 0
          %1687 = vmatmul.mubr.bf16.gmra.mrb[0].mxu0 %v1512
          %v1688 = vpop.f32.mrb[0].mxu0
          %v1689 = vadd.f32 0.0, %v1688
          %v1690 = vpop.f32.mrb[0].mxu0
          %v1691 = vadd.f32 0.0, %v1690
          %v1692 = vpop.f32.mrb[0].mxu0
          %v1693 = vadd.f32 0.0, %v1692
          %v1694 = vpop.f32.mrb[0].mxu0
          %v1695 = vadd.f32 0.0, %v1694
          %1696 = vmatprep.mubr.bf16.mxu0 0
          %1697 = vmatmul.mubr.bf16.gmra.mrb[0].mxu0 %v1513
          %v1698 = vpop.f32.mrb[0].mxu0
          %v1699 = vadd.f32 0.0, %v1698
          %v1700 = vpop.f32.mrb[0].mxu0
          %v1701 = vadd.f32 0.0, %v1700
          %v1702 = vpop.f32.mrb[0].mxu0
          %v1703 = vadd.f32 0.0, %v1702
          %v1704 = vpop.f32.mrb[0].mxu0
          %v1705 = vadd.f32 0.0, %v1704
          %1706 = vmatprep.mubr.bf16.mxu0 0
          %1707 = vmatmul.mubr.bf16.gmra.mrb[0].mxu0 %v1514
          %v1708 = vpop.f32.mrb[0].mxu0
          %v1709 = vadd.f32 0.0, %v1708
          %v1710 = vpop.f32.mrb[0].mxu0
          %v1711 = vadd.f32 0.0, %v1710
          %v1712 = vpop.f32.mrb[0].mxu0
          %v1713 = vadd.f32 0.0, %v1712
          %v1714 = vpop.f32.mrb[0].mxu0
          %v1715 = vadd.f32 0.0, %v1714
          %1716 = vmatprep.mubr.bf16.mxu0 0
          %1717 = vmatmul.mubr.bf16.gmra.mrb[0].mxu0 %v1515
          %v1718 = vpop.f32.mrb[0].mxu0
          %v1719 = vadd.f32 0.0, %v1718
          %v1720 = vpop.f32.mrb[0].mxu0
          %v1721 = vadd.f32 0.0, %v1720
          %v1722 = vpop.f32.mrb[0].mxu0
          %v1723 = vadd.f32 0.0, %v1722
          %v1724 = vpop.f32.mrb[0].mxu0
          %v1725 = vadd.f32 0.0, %v1724
          %1726 = vdwg.mxu0
          %v1727 = vadd.f32 %v745, %v1649
          %v1728 = vadd.f32 %v746, %v1651
          %v1729 = vadd.f32 %v747, %v1653
          %v1730 = vadd.f32 %v748, %v1655
          %v1731 = vadd.f32 %v749, %v1659
          %v1732 = vadd.f32 %v750, %v1661
          %v1733 = vadd.f32 %v751, %v1663
          %v1734 = vadd.f32 %v752, %v1665
          %v1735 = vadd.f32 %v753, %v1669
          %v1736 = vadd.f32 %v754, %v1671
          %v1737 = vadd.f32 %v755, %v1673
          %v1738 = vadd.f32 %v756, %v1675
          %v1739 = vadd.f32 %v757, %v1679
          %v1740 = vadd.f32 %v758, %v1681
          %v1741 = vadd.f32 %v759, %v1683
          %v1742 = vadd.f32 %v760, %v1685
          %v1743 = vadd.f32 %v761, %v1689
          %v1744 = vadd.f32 %v762, %v1691
          %v1745 = vadd.f32 %v763, %v1693
          %v1746 = vadd.f32 %v764, %v1695
          %v1747 = vadd.f32 %v765, %v1699
          %v1748 = vadd.f32 %v766, %v1701
          %v1749 = vadd.f32 %v767, %v1703
          %v1750 = vadd.f32 %v768, %v1705
          %v1751 = vadd.f32 %v769, %v1709
          %v1752 = vadd.f32 %v770, %v1711
          %v1753 = vadd.f32 %v771, %v1713
          %v1754 = vadd.f32 %v772, %v1715
          %v1755 = vadd.f32 %v773, %v1719
          %v1756 = vadd.f32 %v774, %v1721
          %v1757 = vadd.f32 %v775, %v1723
          %v1758 = vadd.f32 %v776, %v1725
        $region129: #{tpu_custom_call.1} parent=71 // loop_footer
          %s744 = sadd.s32 1, %s740
        $region130: #{tpu_custom_call.1} parent=71 // loop_footer_branch
          %739 = sbr.rel target = $region126
        $region131: #{tpu_custom_call.1} parent=71 // loop_exit
          _
        %v1759 = vadd.f32 %v691, %v745
        %v1760 = vadd.f32 %v692, %v746
        %v1761 = vadd.f32 %v693, %v747
        %v1762 = vadd.f32 %v694, %v748
        %v1763 = vadd.f32 %v695, %v749
        %v1764 = vadd.f32 %v696, %v750
        %v1765 = vadd.f32 %v697, %v751
        %v1766 = vadd.f32 %v698, %v752
        %v1767 = vadd.f32 %v699, %v753
        %v1768 = vadd.f32 %v700, %v754
        %v1769 = vadd.f32 %v701, %v755
        %v1770 = vadd.f32 %v702, %v756
        %v1771 = vadd.f32 %v703, %v757
        %v1772 = vadd.f32 %v704, %v758
        %v1773 = vadd.f32 %v705, %v759
        %v1774 = vadd.f32 %v706, %v760
        %v1775 = vadd.f32 %v707, %v761
        %v1776 = vadd.f32 %v708, %v762
        %v1777 = vadd.f32 %v709, %v763
        %v1778 = vadd.f32 %v710, %v764
        %v1779 = vadd.f32 %v711, %v765
        %v1780 = vadd.f32 %v712, %v766
        %v1781 = vadd.f32 %v713, %v767
        %v1782 = vadd.f32 %v714, %v768
        %v1783 = vadd.f32 %v715, %v769
        %v1784 = vadd.f32 %v716, %v770
        %v1785 = vadd.f32 %v717, %v771
        %v1786 = vadd.f32 %v718, %v772
        %v1787 = vadd.f32 %v719, %v773
        %v1788 = vadd.f32 %v720, %v774
        %v1789 = vadd.f32 %v721, %v775
        %v1790 = vadd.f32 %v722, %v776
        %v1791 = vld [vmem:[#allocation11] sm:$0x3]
        %v1792 = vld [vmem:[#allocation13] sm:$0x3]
        %v1793 = vadd.f32 %v1759, %v1760
        %1794 = vadd.xlane.f32.xlu0 %v1793
        %v1795 = vpop.xlane.xlu0 %1794
        %v1796 = vadd.f32 %v1761, %v1762
        %1797 = vadd.xlane.f32.xlu0 %v1796
        %v1798 = vpop.xlane.xlu0 %1797
        %v1799 = vadd.f32 %v1763, %v1764
        %1800 = vadd.xlane.f32.xlu0 %v1799
        %v1801 = vpop.xlane.xlu0 %1800
        %v1802 = vadd.f32 %v1765, %v1766
        %1803 = vadd.xlane.f32.xlu0 %v1802
        %v1804 = vpop.xlane.xlu0 %1803
        %v1805 = vadd.f32 %v1767, %v1768
        %1806 = vadd.xlane.f32.xlu0 %v1805
        %v1807 = vpop.xlane.xlu0 %1806
        %v1808 = vadd.f32 %v1769, %v1770
        %1809 = vadd.xlane.f32.xlu0 %v1808
        %v1810 = vpop.xlane.xlu0 %1809
        %v1811 = vadd.f32 %v1771, %v1772
        %1812 = vadd.xlane.f32.xlu0 %v1811
        %v1813 = vpop.xlane.xlu0 %1812
        %v1814 = vadd.f32 %v1773, %v1774
        %1815 = vadd.xlane.f32.xlu0 %v1814
        %v1816 = vpop.xlane.xlu0 %1815
        %v1817 = vadd.f32 %v1775, %v1776
        %1818 = vadd.xlane.f32.xlu0 %v1817
        %v1819 = vpop.xlane.xlu0 %1818
        %v1820 = vadd.f32 %v1777, %v1778
        %1821 = vadd.xlane.f32.xlu0 %v1820
        %v1822 = vpop.xlane.xlu0 %1821
        %v1823 = vadd.f32 %v1779, %v1780
        %1824 = vadd.xlane.f32.xlu0 %v1823
        %v1825 = vpop.xlane.xlu0 %1824
        %v1826 = vadd.f32 %v1781, %v1782
        %1827 = vadd.xlane.f32.xlu0 %v1826
        %v1828 = vpop.xlane.xlu0 %1827
        %v1829 = vadd.f32 %v1783, %v1784
        %1830 = vadd.xlane.f32.xlu0 %v1829
        %v1831 = vpop.xlane.xlu0 %1830
        %v1832 = vadd.f32 %v1785, %v1786
        %1833 = vadd.xlane.f32.xlu0 %v1832
        %v1834 = vpop.xlane.xlu0 %1833
        %v1835 = vadd.f32 %v1787, %v1788
        %1836 = vadd.xlane.f32.xlu0 %v1835
        %v1837 = vpop.xlane.xlu0 %1836
        %v1838 = vadd.f32 %v1789, %v1790
        %1839 = vadd.xlane.f32.xlu0 %v1838
        %v1840 = vpop.xlane.xlu0 %1839
        %v1841 = vrcp.pop 256.0
        %v1842 = vmul.f32 %v1795, %v1841
        %v1843 = vmul.f32 %v1798, %v1841
        %v1844 = vmul.f32 %v1801, %v1841
        %v1845 = vmul.f32 %v1804, %v1841
        %v1846 = vmul.f32 %v1807, %v1841
        %v1847 = vmul.f32 %v1810, %v1841
        %v1848 = vmul.f32 %v1813, %v1841
        %v1849 = vmul.f32 %v1816, %v1841
        %v1850 = vmul.f32 %v1819, %v1841
        %v1851 = vmul.f32 %v1822, %v1841
        %v1852 = vmul.f32 %v1825, %v1841
        %v1853 = vmul.f32 %v1828, %v1841
        %v1854 = vmul.f32 %v1831, %v1841
        %v1855 = vmul.f32 %v1834, %v1841
        %v1856 = vmul.f32 %v1837, %v1841
        %v1857 = vmul.f32 %v1840, %v1841
        %v1858 = vsub.f32 %v1759, %v1842
        %v1859 = vsub.f32 %v1760, %v1842
        %v1860 = vsub.f32 %v1761, %v1843
        %v1861 = vsub.f32 %v1762, %v1843
        %v1862 = vsub.f32 %v1763, %v1844
        %v1863 = vsub.f32 %v1764, %v1844
        %v1864 = vsub.f32 %v1765, %v1845
        %v1865 = vsub.f32 %v1766, %v1845
        %v1866 = vsub.f32 %v1767, %v1846
        %v1867 = vsub.f32 %v1768, %v1846
        %v1868 = vsub.f32 %v1769, %v1847
        %v1869 = vsub.f32 %v1770, %v1847
        %v1870 = vsub.f32 %v1771, %v1848
        %v1871 = vsub.f32 %v1772, %v1848
        %v1872 = vsub.f32 %v1773, %v1849
        %v1873 = vsub.f32 %v1774, %v1849
        %v1874 = vsub.f32 %v1775, %v1850
        %v1875 = vsub.f32 %v1776, %v1850
        %v1876 = vsub.f32 %v1777, %v1851
        %v1877 = vsub.f32 %v1778, %v1851
        %v1878 = vsub.f32 %v1779, %v1852
        %v1879 = vsub.f32 %v1780, %v1852
        %v1880 = vsub.f32 %v1781, %v1853
        %v1881 = vsub.f32 %v1782, %v1853
        %v1882 = vsub.f32 %v1783, %v1854
        %v1883 = vsub.f32 %v1784, %v1854
        %v1884 = vsub.f32 %v1785, %v1855
        %v1885 = vsub.f32 %v1786, %v1855
        %v1886 = vsub.f32 %v1787, %v1856
        %v1887 = vsub.f32 %v1788, %v1856
        %v1888 = vsub.f32 %v1789, %v1857
        %v1889 = vsub.f32 %v1790, %v1857
        %v1890 = vmul.f32 %v1858, %v1858
        %v1891 = vmul.f32 %v1859, %v1859
        %v1892 = vmul.f32 %v1860, %v1860
        %v1893 = vmul.f32 %v1861, %v1861
        %v1894 = vmul.f32 %v1862, %v1862
        %v1895 = vmul.f32 %v1863, %v1863
        %v1896 = vmul.f32 %v1864, %v1864
        %v1897 = vmul.f32 %v1865, %v1865
        %v1898 = vmul.f32 %v1866, %v1866
        %v1899 = vmul.f32 %v1867, %v1867
        %v1900 = vmul.f32 %v1868, %v1868
        %v1901 = vmul.f32 %v1869, %v1869
        %v1902 = vmul.f32 %v1870, %v1870
        %v1903 = vmul.f32 %v1871, %v1871
        %v1904 = vmul.f32 %v1872, %v1872
        %v1905 = vmul.f32 %v1873, %v1873
        %v1906 = vmul.f32 %v1874, %v1874
        %v1907 = vmul.f32 %v1875, %v1875
        %v1908 = vmul.f32 %v1876, %v1876
        %v1909 = vmul.f32 %v1877, %v1877
        %v1910 = vmul.f32 %v1878, %v1878
        %v1911 = vmul.f32 %v1879, %v1879
        %v1912 = vmul.f32 %v1880, %v1880
        %v1913 = vmul.f32 %v1881, %v1881
        %v1914 = vmul.f32 %v1882, %v1882
        %v1915 = vmul.f32 %v1883, %v1883
        %v1916 = vmul.f32 %v1884, %v1884
        %v1917 = vmul.f32 %v1885, %v1885
        %v1918 = vmul.f32 %v1886, %v1886
        %v1919 = vmul.f32 %v1887, %v1887
        %v1920 = vmul.f32 %v1888, %v1888
        %v1921 = vmul.f32 %v1889, %v1889
        %v1922 = vadd.f32 %v1890, %v1891
        %1923 = vadd.xlane.f32.xlu0 %v1922
        %v1924 = vpop.xlane.xlu0 %1923
        %v1925 = vadd.f32 %v1892, %v1893
        %1926 = vadd.xlane.f32.xlu0 %v1925
        %v1927 = vpop.xlane.xlu0 %1926
        %v1928 = vadd.f32 %v1894, %v1895
        %1929 = vadd.xlane.f32.xlu0 %v1928
        %v1930 = vpop.xlane.xlu0 %1929
        %v1931 = vadd.f32 %v1896, %v1897
        %1932 = vadd.xlane.f32.xlu0 %v1931
        %v1933 = vpop.xlane.xlu0 %1932
        %v1934 = vadd.f32 %v1898, %v1899
        %1935 = vadd.xlane.f32.xlu0 %v1934
        %v1936 = vpop.xlane.xlu0 %1935
        %v1937 = vadd.f32 %v1900, %v1901
        %1938 = vadd.xlane.f32.xlu0 %v1937
        %v1939 = vpop.xlane.xlu0 %1938
        %v1940 = vadd.f32 %v1902, %v1903
        %1941 = vadd.xlane.f32.xlu0 %v1940
        %v1942 = vpop.xlane.xlu0 %1941
        %v1943 = vadd.f32 %v1904, %v1905
        %1944 = vadd.xlane.f32.xlu0 %v1943
        %v1945 = vpop.xlane.xlu0 %1944
        %v1946 = vadd.f32 %v1906, %v1907
        %1947 = vadd.xlane.f32.xlu0 %v1946
        %v1948 = vpop.xlane.xlu0 %1947
        %v1949 = vadd.f32 %v1908, %v1909
        %1950 = vadd.xlane.f32.xlu0 %v1949
        %v1951 = vpop.xlane.xlu0 %1950
        %v1952 = vadd.f32 %v1910, %v1911
        %1953 = vadd.xlane.f32.xlu0 %v1952
        %v1954 = vpop.xlane.xlu0 %1953
        %v1955 = vadd.f32 %v1912, %v1913
        %1956 = vadd.xlane.f32.xlu0 %v1955
        %v1957 = vpop.xlane.xlu0 %1956
        %v1958 = vadd.f32 %v1914, %v1915
        %1959 = vadd.xlane.f32.xlu0 %v1958
        %v1960 = vpop.xlane.xlu0 %1959
        %v1961 = vadd.f32 %v1916, %v1917
        %1962 = vadd.xlane.f32.xlu0 %v1961
        %v1963 = vpop.xlane.xlu0 %1962
        %v1964 = vadd.f32 %v1918, %v1919
        %1965 = vadd.xlane.f32.xlu0 %v1964
        %v1966 = vpop.xlane.xlu0 %1965
        %v1967 = vadd.f32 %v1920, %v1921
        %1968 = vadd.xlane.f32.xlu0 %v1967
        %v1969 = vpop.xlane.xlu0 %1968
        %v1970 = vmul.f32 %v1924, %v1841
        %v1971 = vmul.f32 %v1927, %v1841
        %v1972 = vmul.f32 %v1930, %v1841
        %v1973 = vmul.f32 %v1933, %v1841
        %v1974 = vmul.f32 %v1936, %v1841
        %v1975 = vmul.f32 %v1939, %v1841
        %v1976 = vmul.f32 %v1942, %v1841
        %v1977 = vmul.f32 %v1945, %v1841
        %v1978 = vmul.f32 %v1948, %v1841
        %v1979 = vmul.f32 %v1951, %v1841
        %v1980 = vmul.f32 %v1954, %v1841
        %v1981 = vmul.f32 %v1957, %v1841
        %v1982 = vmul.f32 %v1960, %v1841
        %v1983 = vmul.f32 %v1963, %v1841
        %v1984 = vmul.f32 %v1966, %v1841
        %v1985 = vmul.f32 %v1969, %v1841
        %v1986 = vadd.f32 %v1970, 1e-05
        %v1987 = vadd.f32 %v1971, 1e-05
        %v1988 = vadd.f32 %v1972, 1e-05
        %v1989 = vadd.f32 %v1973, 1e-05
        %v1990 = vadd.f32 %v1974, 1e-05
        %v1991 = vadd.f32 %v1975, 1e-05
        %v1992 = vadd.f32 %v1976, 1e-05
        %v1993 = vadd.f32 %v1977, 1e-05
        %v1994 = vadd.f32 %v1978, 1e-05
        %v1995 = vadd.f32 %v1979, 1e-05
        %v1996 = vadd.f32 %v1980, 1e-05
        %v1997 = vadd.f32 %v1981, 1e-05
        %v1998 = vadd.f32 %v1982, 1e-05
        %v1999 = vadd.f32 %v1983, 1e-05
        %v2000 = vadd.f32 %v1984, 1e-05
        %v2001 = vadd.f32 %v1985, 1e-05
        %v2002 = vrsqrt.pop %v1986
        %v2003 = vrsqrt.pop %v1987
        %v2004 = vrsqrt.pop %v1988
        %v2005 = vrsqrt.pop %v1989
        %v2006 = vrsqrt.pop %v1990
        %v2007 = vrsqrt.pop %v1991
        %v2008 = vrsqrt.pop %v1992
        %v2009 = vrsqrt.pop %v1993
        %v2010 = vrsqrt.pop %v1994
        %v2011 = vrsqrt.pop %v1995
        %v2012 = vrsqrt.pop %v1996
        %v2013 = vrsqrt.pop %v1997
        %v2014 = vrsqrt.pop %v1998
        %v2015 = vrsqrt.pop %v1999
        %v2016 = vrsqrt.pop %v2000
        %v2017 = vrsqrt.pop %v2001
        %v2018 = vmul.f32 %v1858, %v2002
        %v2019 = vmul.f32 %v1859, %v2002
        %v2020 = vmul.f32 %v1860, %v2003
        %v2021 = vmul.f32 %v1861, %v2003
        %v2022 = vmul.f32 %v1862, %v2004
        %v2023 = vmul.f32 %v1863, %v2004
        %v2024 = vmul.f32 %v1864, %v2005
        %v2025 = vmul.f32 %v1865, %v2005
        %v2026 = vmul.f32 %v1866, %v2006
        %v2027 = vmul.f32 %v1867, %v2006
        %v2028 = vmul.f32 %v1868, %v2007
        %v2029 = vmul.f32 %v1869, %v2007
        %v2030 = vmul.f32 %v1870, %v2008
        %v2031 = vmul.f32 %v1871, %v2008
        %v2032 = vmul.f32 %v1872, %v2009
        %v2033 = vmul.f32 %v1873, %v2009
        %v2034 = vmul.f32 %v1874, %v2010
        %v2035 = vmul.f32 %v1875, %v2010
        %v2036 = vmul.f32 %v1876, %v2011
        %v2037 = vmul.f32 %v1877, %v2011
        %v2038 = vmul.f32 %v1878, %v2012
        %v2039 = vmul.f32 %v1879, %v2012
        %v2040 = vmul.f32 %v1880, %v2013
        %v2041 = vmul.f32 %v1881, %v2013
        %v2042 = vmul.f32 %v1882, %v2014
        %v2043 = vmul.f32 %v1883, %v2014
        %v2044 = vmul.f32 %v1884, %v2015
        %v2045 = vmul.f32 %v1885, %v2015
        %v2046 = vmul.f32 %v1886, %v2016
        %v2047 = vmul.f32 %v1887, %v2016
        %v2048 = vmul.f32 %v1888, %v2017
        %v2049 = vmul.f32 %v1889, %v2017
        %v2051 = vlaneseq
        %v2052 = vshrl.u32 %v2051, 7
        %v2053 = vsub.s32 0, %v2052
        %v2054 = vrot.slane %v1791, %v2053
        %v2055 = vlaneseq
        %v2056 = vshrl.u32 %v2055, 7
        %v2057 = vsub.s32 1, %v2056
        %v2058 = vrot.slane %v1791, %v2057
        %v2061 = vmul.f32 %v2018, %v2054
        %v2062 = vmul.f32 %v2019, %v2058
        %v2063 = vmul.f32 %v2020, %v2054
        %v2064 = vmul.f32 %v2021, %v2058
        %v2065 = vmul.f32 %v2022, %v2054
        %v2066 = vmul.f32 %v2023, %v2058
        %v2067 = vmul.f32 %v2024, %v2054
        %v2068 = vmul.f32 %v2025, %v2058
        %v2069 = vmul.f32 %v2026, %v2054
        %v2070 = vmul.f32 %v2027, %v2058
        %v2071 = vmul.f32 %v2028, %v2054
        %v2072 = vmul.f32 %v2029, %v2058
        %v2073 = vmul.f32 %v2030, %v2054
        %v2074 = vmul.f32 %v2031, %v2058
        %v2075 = vmul.f32 %v2032, %v2054
        %v2076 = vmul.f32 %v2033, %v2058
        %v2077 = vmul.f32 %v2034, %v2054
        %v2078 = vmul.f32 %v2035, %v2058
        %v2079 = vmul.f32 %v2036, %v2054
        %v2080 = vmul.f32 %v2037, %v2058
        %v2081 = vmul.f32 %v2038, %v2054
        %v2082 = vmul.f32 %v2039, %v2058
        %v2083 = vmul.f32 %v2040, %v2054
        %v2084 = vmul.f32 %v2041, %v2058
        %v2085 = vmul.f32 %v2042, %v2054
        %v2086 = vmul.f32 %v2043, %v2058
        %v2087 = vmul.f32 %v2044, %v2054
        %v2088 = vmul.f32 %v2045, %v2058
        %v2089 = vmul.f32 %v2046, %v2054
        %v2090 = vmul.f32 %v2047, %v2058
        %v2091 = vmul.f32 %v2048, %v2054
        %v2092 = vmul.f32 %v2049, %v2058
        %v2094 = vlaneseq
        %v2095 = vshrl.u32 %v2094, 7
        %v2096 = vsub.s32 0, %v2095
        %v2097 = vrot.slane %v1792, %v2096
        %v2098 = vlaneseq
        %v2099 = vshrl.u32 %v2098, 7
        %v2100 = vsub.s32 1, %v2099
        %v2101 = vrot.slane %v1792, %v2100
        %v2104 = vadd.f32 %v2061, %v2097
        %v2105 = vadd.f32 %v2062, %v2101
        %v2106 = vadd.f32 %v2063, %v2097
        %v2107 = vadd.f32 %v2064, %v2101
        %v2108 = vadd.f32 %v2065, %v2097
        %v2109 = vadd.f32 %v2066, %v2101
        %v2110 = vadd.f32 %v2067, %v2097
        %v2111 = vadd.f32 %v2068, %v2101
        %v2112 = vadd.f32 %v2069, %v2097
        %v2113 = vadd.f32 %v2070, %v2101
        %v2114 = vadd.f32 %v2071, %v2097
        %v2115 = vadd.f32 %v2072, %v2101
        %v2116 = vadd.f32 %v2073, %v2097
        %v2117 = vadd.f32 %v2074, %v2101
        %v2118 = vadd.f32 %v2075, %v2097
        %v2119 = vadd.f32 %v2076, %v2101
        %v2120 = vadd.f32 %v2077, %v2097
        %v2121 = vadd.f32 %v2078, %v2101
        %v2122 = vadd.f32 %v2079, %v2097
        %v2123 = vadd.f32 %v2080, %v2101
        %v2124 = vadd.f32 %v2081, %v2097
        %v2125 = vadd.f32 %v2082, %v2101
        %v2126 = vadd.f32 %v2083, %v2097
        %v2127 = vadd.f32 %v2084, %v2101
        %v2128 = vadd.f32 %v2085, %v2097
        %v2129 = vadd.f32 %v2086, %v2101
        %v2130 = vadd.f32 %v2087, %v2097
        %v2131 = vadd.f32 %v2088, %v2101
        %v2132 = vadd.f32 %v2089, %v2097
        %v2133 = vadd.f32 %v2090, %v2101
        %v2134 = vadd.f32 %v2091, %v2097
        %v2135 = vadd.f32 %v2092, %v2101
        %v2136 = vpack.c.bf16 %v2106, %v2104
        %v2137 = vpack.c.bf16 %v2107, %v2105
        %v2138 = vpack.c.bf16 %v2110, %v2108
        %v2139 = vpack.c.bf16 %v2111, %v2109
        %v2140 = vpack.c.bf16 %v2114, %v2112
        %v2141 = vpack.c.bf16 %v2115, %v2113
        %v2142 = vpack.c.bf16 %v2118, %v2116
        %v2143 = vpack.c.bf16 %v2119, %v2117
        %v2144 = vpack.c.bf16 %v2122, %v2120
        %v2145 = vpack.c.bf16 %v2123, %v2121
        %v2146 = vpack.c.bf16 %v2126, %v2124
        %v2147 = vpack.c.bf16 %v2127, %v2125
        %v2148 = vpack.c.bf16 %v2130, %v2128
        %v2149 = vpack.c.bf16 %v2131, %v2129
        %v2150 = vpack.c.bf16 %v2134, %v2132
        %v2151 = vpack.c.bf16 %v2135, %v2133
        %v2152 = vld [vmem:[#allocation14] sm:$0xff]
        %v2153 = vld [vmem:[#allocation14 + $0x8] sm:$0xff]
        %v2154 = vld [vmem:[#allocation14 + $0x10] sm:$0xff]
        %v2155 = vld [vmem:[#allocation14 + $0x18] sm:$0xff]
        %v2156 = vld [vmem:[#allocation14 + $0x20] sm:$0xff]
        %v2157 = vld [vmem:[#allocation14 + $0x28] sm:$0xff]
        %v2158 = vld [vmem:[#allocation14 + $0x30] sm:$0xff]
        %v2159 = vld [vmem:[#allocation14 + $0x38] sm:$0xff]
        %v2160 = vld [vmem:[#allocation14 + $0x40] sm:$0xff]
        %v2161 = vld [vmem:[#allocation14 + $0x48] sm:$0xff]
        %v2162 = vld [vmem:[#allocation14 + $0x50] sm:$0xff]
        %v2163 = vld [vmem:[#allocation14 + $0x58] sm:$0xff]
        %v2164 = vld [vmem:[#allocation14 + $0x60] sm:$0xff]
        %v2165 = vld [vmem:[#allocation14 + $0x68] sm:$0xff]
        %v2166 = vld [vmem:[#allocation14 + $0x70] sm:$0xff]
        %v2167 = vld [vmem:[#allocation14 + $0x78] sm:$0xff]
        %v2168 = vld [vmem:[#allocation14 + $0x80] sm:$0xff]
        %v2169 = vld [vmem:[#allocation14 + $0x88] sm:$0xff]
        %v2170 = vld [vmem:[#allocation14 + $0x90] sm:$0xff]
        %v2171 = vld [vmem:[#allocation14 + $0x98] sm:$0xff]
        %v2172 = vld [vmem:[#allocation14 + $0xa0] sm:$0xff]
        %v2173 = vld [vmem:[#allocation14 + $0xa8] sm:$0xff]
        %v2174 = vld [vmem:[#allocation14 + $0xb0] sm:$0xff]
        %v2175 = vld [vmem:[#allocation14 + $0xb8] sm:$0xff]
        %v2176 = vld [vmem:[#allocation14 + $0xc0] sm:$0xff]
        %v2177 = vld [vmem:[#allocation14 + $0xc8] sm:$0xff]
        %v2178 = vld [vmem:[#allocation14 + $0xd0] sm:$0xff]
        %v2179 = vld [vmem:[#allocation14 + $0xd8] sm:$0xff]
        %v2180 = vld [vmem:[#allocation14 + $0xe0] sm:$0xff]
        %v2181 = vld [vmem:[#allocation14 + $0xe8] sm:$0xff]
        %v2182 = vld [vmem:[#allocation14 + $0xf0] sm:$0xff]
        %v2183 = vld [vmem:[#allocation14 + $0xf8] sm:$0xff]
        %v2184 = vld [vmem:[#allocation14 + $0x100] sm:$0xff]
        %v2185 = vld [vmem:[#allocation14 + $0x108] sm:$0xff]
        %v2186 = vld [vmem:[#allocation14 + $0x110] sm:$0xff]
        %v2187 = vld [vmem:[#allocation14 + $0x118] sm:$0xff]
        %v2188 = vld [vmem:[#allocation14 + $0x120] sm:$0xff]
        %v2189 = vld [vmem:[#allocation14 + $0x128] sm:$0xff]
        %v2190 = vld [vmem:[#allocation14 + $0x130] sm:$0xff]
        %v2191 = vld [vmem:[#allocation14 + $0x138] sm:$0xff]
        %v2192 = vld [vmem:[#allocation14 + $0x140] sm:$0xff]
        %v2193 = vld [vmem:[#allocation14 + $0x148] sm:$0xff]
        %v2194 = vld [vmem:[#allocation14 + $0x150] sm:$0xff]
        %v2195 = vld [vmem:[#allocation14 + $0x158] sm:$0xff]
        %v2196 = vld [vmem:[#allocation14 + $0x160] sm:$0xff]
        %v2197 = vld [vmem:[#allocation14 + $0x168] sm:$0xff]
        %v2198 = vld [vmem:[#allocation14 + $0x170] sm:$0xff]
        %v2199 = vld [vmem:[#allocation14 + $0x178] sm:$0xff]
        %v2200 = vld [vmem:[#allocation14 + $0x180] sm:$0xff]
        %v2201 = vld [vmem:[#allocation14 + $0x188] sm:$0xff]
        %v2202 = vld [vmem:[#allocation14 + $0x190] sm:$0xff]
        %v2203 = vld [vmem:[#allocation14 + $0x198] sm:$0xff]
        %v2204 = vld [vmem:[#allocation14 + $0x1a0] sm:$0xff]
        %v2205 = vld [vmem:[#allocation14 + $0x1a8] sm:$0xff]
        %v2206 = vld [vmem:[#allocation14 + $0x1b0] sm:$0xff]
        %v2207 = vld [vmem:[#allocation14 + $0x1b8] sm:$0xff]
        %v2208 = vld [vmem:[#allocation14 + $0x1c0] sm:$0xff]
        %v2209 = vld [vmem:[#allocation14 + $0x1c8] sm:$0xff]
        %v2210 = vld [vmem:[#allocation14 + $0x1d0] sm:$0xff]
        %v2211 = vld [vmem:[#allocation14 + $0x1d8] sm:$0xff]
        %v2212 = vld [vmem:[#allocation14 + $0x1e0] sm:$0xff]
        %v2213 = vld [vmem:[#allocation14 + $0x1e8] sm:$0xff]
        %v2214 = vld [vmem:[#allocation14 + $0x1f0] sm:$0xff]
        %v2215 = vld [vmem:[#allocation14 + $0x1f8] sm:$0xff]
        %v2216 = vld [vmem:[#allocation16] sm:$0xf]
        %v2218 = vlaneseq
        %v2219 = vshrl.u32 %v2218, 7
        %v2220 = vsub.s32 0, %v2219
        %v2221 = vrot.slane %v2216, %v2220
        %v2222 = vlaneseq
        %v2223 = vshrl.u32 %v2222, 7
        %v2224 = vsub.s32 1, %v2223
        %v2225 = vrot.slane %v2216, %v2224
        %v2226 = vlaneseq
        %v2227 = vshrl.u32 %v2226, 7
        %v2228 = vsub.s32 2, %v2227
        %v2229 = vrot.slane %v2216, %v2228
        %v2230 = vlaneseq
        %v2231 = vshrl.u32 %v2230, 7
        %v2232 = vsub.s32 3, %v2231
        %v2233 = vrot.slane %v2216, %v2232
        %v2302 = vunpack.c.l.b16 %v2152
        %v2303 = vunpack.c.h.b16 %v2152
        %v2304 = vunpack.c.l.b16 %v2153
        %v2305 = vunpack.c.h.b16 %v2153
        %v2306 = vunpack.c.l.b16 %v2154
        %v2307 = vunpack.c.h.b16 %v2154
        %v2308 = vunpack.c.l.b16 %v2155
        %v2309 = vunpack.c.h.b16 %v2155
        %v2310 = vunpack.c.l.b16 %v2156
        %v2311 = vunpack.c.h.b16 %v2156
        %v2312 = vunpack.c.l.b16 %v2157
        %v2313 = vunpack.c.h.b16 %v2157
        %v2314 = vunpack.c.l.b16 %v2158
        %v2315 = vunpack.c.h.b16 %v2158
        %v2316 = vunpack.c.l.b16 %v2159
        %v2317 = vunpack.c.h.b16 %v2159
        %v2318 = vunpack.c.l.b16 %v2160
        %v2319 = vunpack.c.h.b16 %v2160
        %v2320 = vunpack.c.l.b16 %v2161
        %v2321 = vunpack.c.h.b16 %v2161
        %v2322 = vunpack.c.l.b16 %v2162
        %v2323 = vunpack.c.h.b16 %v2162
        %v2324 = vunpack.c.l.b16 %v2163
        %v2325 = vunpack.c.h.b16 %v2163
        %v2326 = vunpack.c.l.b16 %v2164
        %v2327 = vunpack.c.h.b16 %v2164
        %v2328 = vunpack.c.l.b16 %v2165
        %v2329 = vunpack.c.h.b16 %v2165
        %v2330 = vunpack.c.l.b16 %v2166
        %v2331 = vunpack.c.h.b16 %v2166
        %v2332 = vunpack.c.l.b16 %v2167
        %v2333 = vunpack.c.h.b16 %v2167
        %v2334 = vunpack.c.l.b16 %v2168
        %v2335 = vunpack.c.h.b16 %v2168
        %v2336 = vunpack.c.l.b16 %v2169
        %v2337 = vunpack.c.h.b16 %v2169
        %v2338 = vunpack.c.l.b16 %v2170
        %v2339 = vunpack.c.h.b16 %v2170
        %v2340 = vunpack.c.l.b16 %v2171
        %v2341 = vunpack.c.h.b16 %v2171
        %v2342 = vunpack.c.l.b16 %v2172
        %v2343 = vunpack.c.h.b16 %v2172
        %v2344 = vunpack.c.l.b16 %v2173
        %v2345 = vunpack.c.h.b16 %v2173
        %v2346 = vunpack.c.l.b16 %v2174
        %v2347 = vunpack.c.h.b16 %v2174
        %v2348 = vunpack.c.l.b16 %v2175
        %v2349 = vunpack.c.h.b16 %v2175
        %v2350 = vunpack.c.l.b16 %v2176
        %v2351 = vunpack.c.h.b16 %v2176
        %v2352 = vunpack.c.l.b16 %v2177
        %v2353 = vunpack.c.h.b16 %v2177
        %v2354 = vunpack.c.l.b16 %v2178
        %v2355 = vunpack.c.h.b16 %v2178
        %v2356 = vunpack.c.l.b16 %v2179
        %v2357 = vunpack.c.h.b16 %v2179
        %v2358 = vunpack.c.l.b16 %v2180
        %v2359 = vunpack.c.h.b16 %v2180
        %v2360 = vunpack.c.l.b16 %v2181
        %v2361 = vunpack.c.h.b16 %v2181
        %v2362 = vunpack.c.l.b16 %v2182
        %v2363 = vunpack.c.h.b16 %v2182
        %v2364 = vunpack.c.l.b16 %v2183
        %v2365 = vunpack.c.h.b16 %v2183
        %v2366 = vunpack.c.l.b16 %v2184
        %v2367 = vunpack.c.h.b16 %v2184
        %v2368 = vunpack.c.l.b16 %v2185
        %v2369 = vunpack.c.h.b16 %v2185
        %v2370 = vunpack.c.l.b16 %v2186
        %v2371 = vunpack.c.h.b16 %v2186
        %v2372 = vunpack.c.l.b16 %v2187
        %v2373 = vunpack.c.h.b16 %v2187
        %v2374 = vunpack.c.l.b16 %v2188
        %v2375 = vunpack.c.h.b16 %v2188
        %v2376 = vunpack.c.l.b16 %v2189
        %v2377 = vunpack.c.h.b16 %v2189
        %v2378 = vunpack.c.l.b16 %v2190
        %v2379 = vunpack.c.h.b16 %v2190
        %v2380 = vunpack.c.l.b16 %v2191
        %v2381 = vunpack.c.h.b16 %v2191
        %v2382 = vunpack.c.l.b16 %v2192
        %v2383 = vunpack.c.h.b16 %v2192
        %v2384 = vunpack.c.l.b16 %v2193
        %v2385 = vunpack.c.h.b16 %v2193
        %v2386 = vunpack.c.l.b16 %v2194
        %v2387 = vunpack.c.h.b16 %v2194
        %v2388 = vunpack.c.l.b16 %v2195
        %v2389 = vunpack.c.h.b16 %v2195
        %v2390 = vunpack.c.l.b16 %v2196
        %v2391 = vunpack.c.h.b16 %v2196
        %v2392 = vunpack.c.l.b16 %v2197
        %v2393 = vunpack.c.h.b16 %v2197
        %v2394 = vunpack.c.l.b16 %v2198
        %v2395 = vunpack.c.h.b16 %v2198
        %v2396 = vunpack.c.l.b16 %v2199
        %v2397 = vunpack.c.h.b16 %v2199
        %v2398 = vunpack.c.l.b16 %v2200
        %v2399 = vunpack.c.h.b16 %v2200
        %v2400 = vunpack.c.l.b16 %v2201
        %v2401 = vunpack.c.h.b16 %v2201
        %v2402 = vunpack.c.l.b16 %v2202
        %v2403 = vunpack.c.h.b16 %v2202
        %v2404 = vunpack.c.l.b16 %v2203
        %v2405 = vunpack.c.h.b16 %v2203
        %v2406 = vunpack.c.l.b16 %v2204
        %v2407 = vunpack.c.h.b16 %v2204
        %v2408 = vunpack.c.l.b16 %v2205
        %v2409 = vunpack.c.h.b16 %v2205
        %v2410 = vunpack.c.l.b16 %v2206
        %v2411 = vunpack.c.h.b16 %v2206
        %v2412 = vunpack.c.l.b16 %v2207
        %v2413 = vunpack.c.h.b16 %v2207
        %v2414 = vunpack.c.l.b16 %v2208
        %v2415 = vunpack.c.h.b16 %v2208
        %v2416 = vunpack.c.l.b16 %v2209
        %v2417 = vunpack.c.h.b16 %v2209
        %v2418 = vunpack.c.l.b16 %v2210
        %v2419 = vunpack.c.h.b16 %v2210
        %v2420 = vunpack.c.l.b16 %v2211
        %v2421 = vunpack.c.h.b16 %v2211
        %v2422 = vunpack.c.l.b16 %v2212
        %v2423 = vunpack.c.h.b16 %v2212
        %v2424 = vunpack.c.l.b16 %v2213
        %v2425 = vunpack.c.h.b16 %v2213
        %v2426 = vunpack.c.l.b16 %v2214
        %v2427 = vunpack.c.h.b16 %v2214
        %v2428 = vunpack.c.l.b16 %v2215
        %v2429 = vunpack.c.h.b16 %v2215
        %v2430 = vpack.c.b16 %v2306, %v2302
        %v2431 = vpack.c.b16 %v2307, %v2303
        %v2432 = vpack.c.b16 %v2308, %v2304
        %v2433 = vpack.c.b16 %v2309, %v2305
        %v2434 = vpack.c.b16 %v2314, %v2310
        %v2435 = vpack.c.b16 %v2315, %v2311
        %v2436 = vpack.c.b16 %v2316, %v2312
        %v2437 = vpack.c.b16 %v2317, %v2313
        %v2438 = vpack.c.b16 %v2322, %v2318
        %v2439 = vpack.c.b16 %v2323, %v2319
        %v2440 = vpack.c.b16 %v2324, %v2320
        %v2441 = vpack.c.b16 %v2325, %v2321
        %v2442 = vpack.c.b16 %v2330, %v2326
        %v2443 = vpack.c.b16 %v2331, %v2327
        %v2444 = vpack.c.b16 %v2332, %v2328
        %v2445 = vpack.c.b16 %v2333, %v2329
        %v2446 = vpack.c.b16 %v2338, %v2334
        %v2447 = vpack.c.b16 %v2339, %v2335
        %v2448 = vpack.c.b16 %v2340, %v2336
        %v2449 = vpack.c.b16 %v2341, %v2337
        %v2450 = vpack.c.b16 %v2346, %v2342
        %v2451 = vpack.c.b16 %v2347, %v2343
        %v2452 = vpack.c.b16 %v2348, %v2344
        %v2453 = vpack.c.b16 %v2349, %v2345
        %v2454 = vpack.c.b16 %v2354, %v2350
        %v2455 = vpack.c.b16 %v2355, %v2351
        %v2456 = vpack.c.b16 %v2356, %v2352
        %v2457 = vpack.c.b16 %v2357, %v2353
        %v2458 = vpack.c.b16 %v2362, %v2358
        %v2459 = vpack.c.b16 %v2363, %v2359
        %v2460 = vpack.c.b16 %v2364, %v2360
        %v2461 = vpack.c.b16 %v2365, %v2361
        %v2462 = vpack.c.b16 %v2370, %v2366
        %v2463 = vpack.c.b16 %v2371, %v2367
        %v2464 = vpack.c.b16 %v2372, %v2368
        %v2465 = vpack.c.b16 %v2373, %v2369
        %v2466 = vpack.c.b16 %v2378, %v2374
        %v2467 = vpack.c.b16 %v2379, %v2375
        %v2468 = vpack.c.b16 %v2380, %v2376
        %v2469 = vpack.c.b16 %v2381, %v2377
        %v2470 = vpack.c.b16 %v2386, %v2382
        %v2471 = vpack.c.b16 %v2387, %v2383
        %v2472 = vpack.c.b16 %v2388, %v2384
        %v2473 = vpack.c.b16 %v2389, %v2385
        %v2474 = vpack.c.b16 %v2394, %v2390
        %v2475 = vpack.c.b16 %v2395, %v2391
        %v2476 = vpack.c.b16 %v2396, %v2392
        %v2477 = vpack.c.b16 %v2397, %v2393
        %v2478 = vpack.c.b16 %v2402, %v2398
        %v2479 = vpack.c.b16 %v2403, %v2399
        %v2480 = vpack.c.b16 %v2404, %v2400
        %v2481 = vpack.c.b16 %v2405, %v2401
        %v2482 = vpack.c.b16 %v2410, %v2406
        %v2483 = vpack.c.b16 %v2411, %v2407
        %v2484 = vpack.c.b16 %v2412, %v2408
        %v2485 = vpack.c.b16 %v2413, %v2409
        %v2486 = vpack.c.b16 %v2418, %v2414
        %v2487 = vpack.c.b16 %v2419, %v2415
        %v2488 = vpack.c.b16 %v2420, %v2416
        %v2489 = vpack.c.b16 %v2421, %v2417
        %v2490 = vpack.c.b16 %v2426, %v2422
        %v2491 = vpack.c.b16 %v2427, %v2423
        %v2492 = vpack.c.b16 %v2428, %v2424
        %v2493 = vpack.c.b16 %v2429, %v2425
        %2558 = vmatprep.subr.bf16.mxu0 %v2431
        %2559 = vmatpush1.bf16.msra.mxu0 %v2430
        %2560 = vmatprep.subr.bf16.mxu0 %v2435
        %2561 = vmatpush1.bf16.msra.mxu0 %v2434
        %2562 = vmatprep.subr.bf16.mxu0 %v2439
        %2563 = vmatpush1.bf16.msra.mxu0 %v2438
        %2564 = vmatprep.subr.bf16.mxu0 %v2443
        %2565 = vmatpush1.bf16.msra.mxu0 %v2442
        %2566 = vmatprep.subr.bf16.mxu0 %v2447
        %2567 = vmatpush1.bf16.msra.mxu0 %v2446
        %2568 = vmatprep.subr.bf16.mxu0 %v2451
        %2569 = vmatpush1.bf16.msra.mxu0 %v2450
        %2570 = vmatprep.subr.bf16.mxu0 %v2455
        %2571 = vmatpush1.bf16.msra.mxu0 %v2454
        %2572 = vmatprep.subr.bf16.mxu0 %v2459
        %2573 = vmatpush1.bf16.msra.mxu0 %v2458
        %2574 = vmatprep.subr.bf16.mxu0 %v2463
        %2575 = vmatpush1.bf16.msra.mxu0 %v2462
        %2576 = vmatprep.subr.bf16.mxu0 %v2467
        %2577 = vmatpush1.bf16.msra.mxu0 %v2466
        %2578 = vmatprep.subr.bf16.mxu0 %v2471
        %2579 = vmatpush1.bf16.msra.mxu0 %v2470
        %2580 = vmatprep.subr.bf16.mxu0 %v2475
        %2581 = vmatpush1.bf16.msra.mxu0 %v2474
        %2582 = vmatprep.subr.bf16.mxu0 %v2479
        %2583 = vmatpush1.bf16.msra.mxu0 %v2478
        %2584 = vmatprep.subr.bf16.mxu0 %v2483
        %2585 = vmatpush1.bf16.msra.mxu0 %v2482
        %2586 = vmatprep.subr.bf16.mxu0 %v2487
        %2587 = vmatpush1.bf16.msra.mxu0 %v2486
        %2588 = vmatprep.subr.bf16.mxu0 %v2491
        %2589 = vmatpush1.bf16.msra.mxu0 %v2490
        %2590 = vmatprep.mubr.bf16.mxu0 %v2137
        %2591 = vmatmul.mubr.bf16.gmra.mrb[0].mxu0 %v2136
        %v2592 = vpop.f32.mrb[0].mxu0
        %v2593 = vadd.f32 %v2221, %v2592
        %v2594 = vpop.f32.mrb[0].mxu0
        %v2595 = vadd.f32 %v2225, %v2594
        %v2596 = vpop.f32.mrb[0].mxu0
        %v2597 = vadd.f32 %v2221, %v2596
        %v2598 = vpop.f32.mrb[0].mxu0
        %v2599 = vadd.f32 %v2225, %v2598
        %2600 = vmatprep.mubr.bf16.mxu0 %v2139
        %2601 = vmatmul.mubr.bf16.gmra.mrb[0].mxu0 %v2138
        %v2602 = vpop.f32.mrb[0].mxu0
        %v2603 = vadd.f32 %v2221, %v2602
        %v2604 = vpop.f32.mrb[0].mxu0
        %v2605 = vadd.f32 %v2225, %v2604
        %v2606 = vpop.f32.mrb[0].mxu0
        %v2607 = vadd.f32 %v2221, %v2606
        %v2608 = vpop.f32.mrb[0].mxu0
        %v2609 = vadd.f32 %v2225, %v2608
        %2610 = vmatprep.mubr.bf16.mxu0 %v2141
        %2611 = vmatmul.mubr.bf16.gmra.mrb[0].mxu0 %v2140
        %v2612 = vpop.f32.mrb[0].mxu0
        %v2613 = vadd.f32 %v2221, %v2612
        %v2614 = vpop.f32.mrb[0].mxu0
        %v2615 = vadd.f32 %v2225, %v2614
        %v2616 = vpop.f32.mrb[0].mxu0
        %v2617 = vadd.f32 %v2221, %v2616
        %v2618 = vpop.f32.mrb[0].mxu0
        %v2619 = vadd.f32 %v2225, %v2618
        %2620 = vmatprep.mubr.bf16.mxu0 %v2143
        %2621 = vmatmul.mubr.bf16.gmra.mrb[0].mxu0 %v2142
        %v2622 = vpop.f32.mrb[0].mxu0
        %v2623 = vadd.f32 %v2221, %v2622
        %v2624 = vpop.f32.mrb[0].mxu0
        %v2625 = vadd.f32 %v2225, %v2624
        %v2626 = vpop.f32.mrb[0].mxu0
        %v2627 = vadd.f32 %v2221, %v2626
        %v2628 = vpop.f32.mrb[0].mxu0
        %v2629 = vadd.f32 %v2225, %v2628
        %2630 = vmatprep.mubr.bf16.mxu0 %v2145
        %2631 = vmatmul.mubr.bf16.gmra.mrb[0].mxu0 %v2144
        %v2632 = vpop.f32.mrb[0].mxu0
        %v2633 = vadd.f32 %v2221, %v2632
        %v2634 = vpop.f32.mrb[0].mxu0
        %v2635 = vadd.f32 %v2225, %v2634
        %v2636 = vpop.f32.mrb[0].mxu0
        %v2637 = vadd.f32 %v2221, %v2636
        %v2638 = vpop.f32.mrb[0].mxu0
        %v2639 = vadd.f32 %v2225, %v2638
        %2640 = vmatprep.mubr.bf16.mxu0 %v2147
        %2641 = vmatmul.mubr.bf16.gmra.mrb[0].mxu0 %v2146
        %v2642 = vpop.f32.mrb[0].mxu0
        %v2643 = vadd.f32 %v2221, %v2642
        %v2644 = vpop.f32.mrb[0].mxu0
        %v2645 = vadd.f32 %v2225, %v2644
        %v2646 = vpop.f32.mrb[0].mxu0
        %v2647 = vadd.f32 %v2221, %v2646
        %v2648 = vpop.f32.mrb[0].mxu0
        %v2649 = vadd.f32 %v2225, %v2648
        %2650 = vmatprep.mubr.bf16.mxu0 %v2149
        %2651 = vmatmul.mubr.bf16.gmra.mrb[0].mxu0 %v2148
        %v2652 = vpop.f32.mrb[0].mxu0
        %v2653 = vadd.f32 %v2221, %v2652
        %v2654 = vpop.f32.mrb[0].mxu0
        %v2655 = vadd.f32 %v2225, %v2654
        %v2656 = vpop.f32.mrb[0].mxu0
        %v2657 = vadd.f32 %v2221, %v2656
        %v2658 = vpop.f32.mrb[0].mxu0
        %v2659 = vadd.f32 %v2225, %v2658
        %2660 = vmatprep.mubr.bf16.mxu0 %v2151
        %2661 = vmatmul.mubr.bf16.gmra.mrb[0].mxu0 %v2150
        %v2662 = vpop.f32.mrb[0].mxu0
        %v2663 = vadd.f32 %v2221, %v2662
        %v2664 = vpop.f32.mrb[0].mxu0
        %v2665 = vadd.f32 %v2225, %v2664
        %v2666 = vpop.f32.mrb[0].mxu0
        %v2667 = vadd.f32 %v2221, %v2666
        %v2668 = vpop.f32.mrb[0].mxu0
        %v2669 = vadd.f32 %v2225, %v2668
        %2670 = vdwg.mxu0
        %2671 = vmatprep.subr.bf16.mxu0 %v2433
        %2672 = vmatpush1.bf16.msra.mxu0 %v2432
        %2673 = vmatprep.subr.bf16.mxu0 %v2437
        %2674 = vmatpush1.bf16.msra.mxu0 %v2436
        %2675 = vmatprep.subr.bf16.mxu0 %v2441
        %2676 = vmatpush1.bf16.msra.mxu0 %v2440
        %2677 = vmatprep.subr.bf16.mxu0 %v2445
        %2678 = vmatpush1.bf16.msra.mxu0 %v2444
        %2679 = vmatprep.subr.bf16.mxu0 %v2449
        %2680 = vmatpush1.bf16.msra.mxu0 %v2448
        %2681 = vmatprep.subr.bf16.mxu0 %v2453
        %2682 = vmatpush1.bf16.msra.mxu0 %v2452
        %2683 = vmatprep.subr.bf16.mxu0 %v2457
        %2684 = vmatpush1.bf16.msra.mxu0 %v2456
        %2685 = vmatprep.subr.bf16.mxu0 %v2461
        %2686 = vmatpush1.bf16.msra.mxu0 %v2460
        %2687 = vmatprep.subr.bf16.mxu0 %v2465
        %2688 = vmatpush1.bf16.msra.mxu0 %v2464
        %2689 = vmatprep.subr.bf16.mxu0 %v2469
        %2690 = vmatpush1.bf16.msra.mxu0 %v2468
        %2691 = vmatprep.subr.bf16.mxu0 %v2473
        %2692 = vmatpush1.bf16.msra.mxu0 %v2472
        %2693 = vmatprep.subr.bf16.mxu0 %v2477
        %2694 = vmatpush1.bf16.msra.mxu0 %v2476
        %2695 = vmatprep.subr.bf16.mxu0 %v2481
        %2696 = vmatpush1.bf16.msra.mxu0 %v2480
        %2697 = vmatprep.subr.bf16.mxu0 %v2485
        %2698 = vmatpush1.bf16.msra.mxu0 %v2484
        %2699 = vmatprep.subr.bf16.mxu0 %v2489
        %2700 = vmatpush1.bf16.msra.mxu0 %v2488
        %2701 = vmatprep.subr.bf16.mxu0 %v2493
        %2702 = vmatpush1.bf16.msra.mxu0 %v2492
        %2703 = vmatprep.mubr.bf16.mxu0 %v2137
        %2704 = vmatmul.mubr.bf16.gmra.mrb[0].mxu0 %v2136
        %v2705 = vpop.f32.mrb[0].mxu0
        %v2706 = vadd.f32 %v2229, %v2705
        %v2707 = vpop.f32.mrb[0].mxu0
        %v2708 = vadd.f32 %v2233, %v2707
        %v2709 = vpop.f32.mrb[0].mxu0
        %v2710 = vadd.f32 %v2229, %v2709
        %v2711 = vpop.f32.mrb[0].mxu0
        %v2712 = vadd.f32 %v2233, %v2711
        %2713 = vmatprep.mubr.bf16.mxu0 %v2139
        %2714 = vmatmul.mubr.bf16.gmra.mrb[0].mxu0 %v2138
        %v2715 = vpop.f32.mrb[0].mxu0
        %v2716 = vadd.f32 %v2229, %v2715
        %v2717 = vpop.f32.mrb[0].mxu0
        %v2718 = vadd.f32 %v2233, %v2717
        %v2719 = vpop.f32.mrb[0].mxu0
        %v2720 = vadd.f32 %v2229, %v2719
        %v2721 = vpop.f32.mrb[0].mxu0
        %v2722 = vadd.f32 %v2233, %v2721
        %2723 = vmatprep.mubr.bf16.mxu0 %v2141
        %2724 = vmatmul.mubr.bf16.gmra.mrb[0].mxu0 %v2140
        %v2725 = vpop.f32.mrb[0].mxu0
        %v2726 = vadd.f32 %v2229, %v2725
        %v2727 = vpop.f32.mrb[0].mxu0
        %v2728 = vadd.f32 %v2233, %v2727
        %v2729 = vpop.f32.mrb[0].mxu0
        %v2730 = vadd.f32 %v2229, %v2729
        %v2731 = vpop.f32.mrb[0].mxu0
        %v2732 = vadd.f32 %v2233, %v2731
        %2733 = vmatprep.mubr.bf16.mxu0 %v2143
        %2734 = vmatmul.mubr.bf16.gmra.mrb[0].mxu0 %v2142
        %v2735 = vpop.f32.mrb[0].mxu0
        %v2736 = vadd.f32 %v2229, %v2735
        %v2737 = vpop.f32.mrb[0].mxu0
        %v2738 = vadd.f32 %v2233, %v2737
        %v2739 = vpop.f32.mrb[0].mxu0
        %v2740 = vadd.f32 %v2229, %v2739
        %v2741 = vpop.f32.mrb[0].mxu0
        %v2742 = vadd.f32 %v2233, %v2741
        %2743 = vmatprep.mubr.bf16.mxu0 %v2145
        %2744 = vmatmul.mubr.bf16.gmra.mrb[0].mxu0 %v2144
        %v2745 = vpop.f32.mrb[0].mxu0
        %v2746 = vadd.f32 %v2229, %v2745
        %v2747 = vpop.f32.mrb[0].mxu0
        %v2748 = vadd.f32 %v2233, %v2747
        %v2749 = vpop.f32.mrb[0].mxu0
        %v2750 = vadd.f32 %v2229, %v2749
        %v2751 = vpop.f32.mrb[0].mxu0
        %v2752 = vadd.f32 %v2233, %v2751
        %2753 = vmatprep.mubr.bf16.mxu0 %v2147
        %2754 = vmatmul.mubr.bf16.gmra.mrb[0].mxu0 %v2146
        %v2755 = vpop.f32.mrb[0].mxu0
        %v2756 = vadd.f32 %v2229, %v2755
        %v2757 = vpop.f32.mrb[0].mxu0
        %v2758 = vadd.f32 %v2233, %v2757
        %v2759 = vpop.f32.mrb[0].mxu0
        %v2760 = vadd.f32 %v2229, %v2759
        %v2761 = vpop.f32.mrb[0].mxu0
        %v2762 = vadd.f32 %v2233, %v2761
        %2763 = vmatprep.mubr.bf16.mxu0 %v2149
        %2764 = vmatmul.mubr.bf16.gmra.mrb[0].mxu0 %v2148
        %v2765 = vpop.f32.mrb[0].mxu0
        %v2766 = vadd.f32 %v2229, %v2765
        %v2767 = vpop.f32.mrb[0].mxu0
        %v2768 = vadd.f32 %v2233, %v2767
        %v2769 = vpop.f32.mrb[0].mxu0
        %v2770 = vadd.f32 %v2229, %v2769
        %v2771 = vpop.f32.mrb[0].mxu0
        %v2772 = vadd.f32 %v2233, %v2771
        %2773 = vmatprep.mubr.bf16.mxu0 %v2151
        %2774 = vmatmul.mubr.bf16.gmra.mrb[0].mxu0 %v2150
        %v2775 = vpop.f32.mrb[0].mxu0
        %v2776 = vadd.f32 %v2229, %v2775
        %v2777 = vpop.f32.mrb[0].mxu0
        %v2778 = vadd.f32 %v2233, %v2777
        %v2779 = vpop.f32.mrb[0].mxu0
        %v2780 = vadd.f32 %v2229, %v2779
        %v2781 = vpop.f32.mrb[0].mxu0
        %v2782 = vadd.f32 %v2233, %v2781
        %2783 = vdwg.mxu0
        %v2784 = vmax.f32 %v2593, 0.0
        %v2785 = vmax.f32 %v2595, 0.0
        %v2786 = vmax.f32 %v2706, 0.0
        %v2787 = vmax.f32 %v2708, 0.0
        %v2788 = vmax.f32 %v2597, 0.0
        %v2789 = vmax.f32 %v2599, 0.0
        %v2790 = vmax.f32 %v2710, 0.0
        %v2791 = vmax.f32 %v2712, 0.0
        %v2792 = vmax.f32 %v2603, 0.0
        %v2793 = vmax.f32 %v2605, 0.0
        %v2794 = vmax.f32 %v2716, 0.0
        %v2795 = vmax.f32 %v2718, 0.0
        %v2796 = vmax.f32 %v2607, 0.0
        %v2797 = vmax.f32 %v2609, 0.0
        %v2798 = vmax.f32 %v2720, 0.0
        %v2799 = vmax.f32 %v2722, 0.0
        %v2800 = vmax.f32 %v2613, 0.0
        %v2801 = vmax.f32 %v2615, 0.0
        %v2802 = vmax.f32 %v2726, 0.0
        %v2803 = vmax.f32 %v2728, 0.0
        %v2804 = vmax.f32 %v2617, 0.0
        %v2805 = vmax.f32 %v2619, 0.0
        %v2806 = vmax.f32 %v2730, 0.0
        %v2807 = vmax.f32 %v2732, 0.0
        %v2808 = vmax.f32 %v2623, 0.0
        %v2809 = vmax.f32 %v2625, 0.0
        %v2810 = vmax.f32 %v2736, 0.0
        %v2811 = vmax.f32 %v2738, 0.0
        %v2812 = vmax.f32 %v2627, 0.0
        %v2813 = vmax.f32 %v2629, 0.0
        %v2814 = vmax.f32 %v2740, 0.0
        %v2815 = vmax.f32 %v2742, 0.0
        %v2816 = vmax.f32 %v2633, 0.0
        %v2817 = vmax.f32 %v2635, 0.0
        %v2818 = vmax.f32 %v2746, 0.0
        %v2819 = vmax.f32 %v2748, 0.0
        %v2820 = vmax.f32 %v2637, 0.0
        %v2821 = vmax.f32 %v2639, 0.0
        %v2822 = vmax.f32 %v2750, 0.0
        %v2823 = vmax.f32 %v2752, 0.0
        %v2824 = vmax.f32 %v2643, 0.0
        %v2825 = vmax.f32 %v2645, 0.0
        %v2826 = vmax.f32 %v2756, 0.0
        %v2827 = vmax.f32 %v2758, 0.0
        %v2828 = vmax.f32 %v2647, 0.0
        %v2829 = vmax.f32 %v2649, 0.0
        %v2830 = vmax.f32 %v2760, 0.0
        %v2831 = vmax.f32 %v2762, 0.0
        %v2832 = vmax.f32 %v2653, 0.0
        %v2833 = vmax.f32 %v2655, 0.0
        %v2834 = vmax.f32 %v2766, 0.0
        %v2835 = vmax.f32 %v2768, 0.0
        %v2836 = vmax.f32 %v2657, 0.0
        %v2837 = vmax.f32 %v2659, 0.0
        %v2838 = vmax.f32 %v2770, 0.0
        %v2839 = vmax.f32 %v2772, 0.0
        %v2840 = vmax.f32 %v2663, 0.0
        %v2841 = vmax.f32 %v2665, 0.0
        %v2842 = vmax.f32 %v2776, 0.0
        %v2843 = vmax.f32 %v2778, 0.0
        %v2844 = vmax.f32 %v2667, 0.0
        %v2845 = vmax.f32 %v2669, 0.0
        %v2846 = vmax.f32 %v2780, 0.0
        %v2847 = vmax.f32 %v2782, 0.0
        %v2848 = vpack.c.bf16 %v2788, %v2784
        %v2849 = vpack.c.bf16 %v2789, %v2785
        %v2850 = vpack.c.bf16 %v2790, %v2786
        %v2851 = vpack.c.bf16 %v2791, %v2787
        %v2852 = vpack.c.bf16 %v2796, %v2792
        %v2853 = vpack.c.bf16 %v2797, %v2793
        %v2854 = vpack.c.bf16 %v2798, %v2794
        %v2855 = vpack.c.bf16 %v2799, %v2795
        %v2856 = vpack.c.bf16 %v2804, %v2800
        %v2857 = vpack.c.bf16 %v2805, %v2801
        %v2858 = vpack.c.bf16 %v2806, %v2802
        %v2859 = vpack.c.bf16 %v2807, %v2803
        %v2860 = vpack.c.bf16 %v2812, %v2808
        %v2861 = vpack.c.bf16 %v2813, %v2809
        %v2862 = vpack.c.bf16 %v2814, %v2810
        %v2863 = vpack.c.bf16 %v2815, %v2811
        %v2864 = vpack.c.bf16 %v2820, %v2816
        %v2865 = vpack.c.bf16 %v2821, %v2817
        %v2866 = vpack.c.bf16 %v2822, %v2818
        %v2867 = vpack.c.bf16 %v2823, %v2819
        %v2868 = vpack.c.bf16 %v2828, %v2824
        %v2869 = vpack.c.bf16 %v2829, %v2825
        %v2870 = vpack.c.bf16 %v2830, %v2826
        %v2871 = vpack.c.bf16 %v2831, %v2827
        %v2872 = vpack.c.bf16 %v2836, %v2832
        %v2873 = vpack.c.bf16 %v2837, %v2833
        %v2874 = vpack.c.bf16 %v2838, %v2834
        %v2875 = vpack.c.bf16 %v2839, %v2835
        %v2876 = vpack.c.bf16 %v2844, %v2840
        %v2877 = vpack.c.bf16 %v2845, %v2841
        %v2878 = vpack.c.bf16 %v2846, %v2842
        %v2879 = vpack.c.bf16 %v2847, %v2843
        %v2880 = vld [vmem:[#allocation17] sm:$0xff]
        %v2881 = vld [vmem:[#allocation17 + $0x8] sm:$0xff]
        %v2882 = vld [vmem:[#allocation17 + $0x10] sm:$0xff]
        %v2883 = vld [vmem:[#allocation17 + $0x18] sm:$0xff]
        %v2884 = vld [vmem:[#allocation17 + $0x20] sm:$0xff]
        %v2885 = vld [vmem:[#allocation17 + $0x28] sm:$0xff]
        %v2886 = vld [vmem:[#allocation17 + $0x30] sm:$0xff]
        %v2887 = vld [vmem:[#allocation17 + $0x38] sm:$0xff]
        %v2888 = vld [vmem:[#allocation17 + $0x40] sm:$0xff]
        %v2889 = vld [vmem:[#allocation17 + $0x48] sm:$0xff]
        %v2890 = vld [vmem:[#allocation17 + $0x50] sm:$0xff]
        %v2891 = vld [vmem:[#allocation17 + $0x58] sm:$0xff]
        %v2892 = vld [vmem:[#allocation17 + $0x60] sm:$0xff]
        %v2893 = vld [vmem:[#allocation17 + $0x68] sm:$0xff]
        %v2894 = vld [vmem:[#allocation17 + $0x70] sm:$0xff]
        %v2895 = vld [vmem:[#allocation17 + $0x78] sm:$0xff]
        %v2896 = vld [vmem:[#allocation17 + $0x80] sm:$0xff]
        %v2897 = vld [vmem:[#allocation17 + $0x88] sm:$0xff]
        %v2898 = vld [vmem:[#allocation17 + $0x90] sm:$0xff]
        %v2899 = vld [vmem:[#allocation17 + $0x98] sm:$0xff]
        %v2900 = vld [vmem:[#allocation17 + $0xa0] sm:$0xff]
        %v2901 = vld [vmem:[#allocation17 + $0xa8] sm:$0xff]
        %v2902 = vld [vmem:[#allocation17 + $0xb0] sm:$0xff]
        %v2903 = vld [vmem:[#allocation17 + $0xb8] sm:$0xff]
        %v2904 = vld [vmem:[#allocation17 + $0xc0] sm:$0xff]
        %v2905 = vld [vmem:[#allocation17 + $0xc8] sm:$0xff]
        %v2906 = vld [vmem:[#allocation17 + $0xd0] sm:$0xff]
        %v2907 = vld [vmem:[#allocation17 + $0xd8] sm:$0xff]
        %v2908 = vld [vmem:[#allocation17 + $0xe0] sm:$0xff]
        %v2909 = vld [vmem:[#allocation17 + $0xe8] sm:$0xff]
        %v2910 = vld [vmem:[#allocation17 + $0xf0] sm:$0xff]
        %v2911 = vld [vmem:[#allocation17 + $0xf8] sm:$0xff]
        %v2912 = vld [vmem:[#allocation17 + $0x100] sm:$0xff]
        %v2913 = vld [vmem:[#allocation17 + $0x108] sm:$0xff]
        %v2914 = vld [vmem:[#allocation17 + $0x110] sm:$0xff]
        %v2915 = vld [vmem:[#allocation17 + $0x118] sm:$0xff]
        %v2916 = vld [vmem:[#allocation17 + $0x120] sm:$0xff]
        %v2917 = vld [vmem:[#allocation17 + $0x128] sm:$0xff]
        %v2918 = vld [vmem:[#allocation17 + $0x130] sm:$0xff]
        %v2919 = vld [vmem:[#allocation17 + $0x138] sm:$0xff]
        %v2920 = vld [vmem:[#allocation17 + $0x140] sm:$0xff]
        %v2921 = vld [vmem:[#allocation17 + $0x148] sm:$0xff]
        %v2922 = vld [vmem:[#allocation17 + $0x150] sm:$0xff]
        %v2923 = vld [vmem:[#allocation17 + $0x158] sm:$0xff]
        %v2924 = vld [vmem:[#allocation17 + $0x160] sm:$0xff]
        %v2925 = vld [vmem:[#allocation17 + $0x168] sm:$0xff]
        %v2926 = vld [vmem:[#allocation17 + $0x170] sm:$0xff]
        %v2927 = vld [vmem:[#allocation17 + $0x178] sm:$0xff]
        %v2928 = vld [vmem:[#allocation17 + $0x180] sm:$0xff]
        %v2929 = vld [vmem:[#allocation17 + $0x188] sm:$0xff]
        %v2930 = vld [vmem:[#allocation17 + $0x190] sm:$0xff]
        %v2931 = vld [vmem:[#allocation17 + $0x198] sm:$0xff]
        %v2932 = vld [vmem:[#allocation17 + $0x1a0] sm:$0xff]
        %v2933 = vld [vmem:[#allocation17 + $0x1a8] sm:$0xff]
        %v2934 = vld [vmem:[#allocation17 + $0x1b0] sm:$0xff]
        %v2935 = vld [vmem:[#allocation17 + $0x1b8] sm:$0xff]
        %v2936 = vld [vmem:[#allocation17 + $0x1c0] sm:$0xff]
        %v2937 = vld [vmem:[#allocation17 + $0x1c8] sm:$0xff]
        %v2938 = vld [vmem:[#allocation17 + $0x1d0] sm:$0xff]
        %v2939 = vld [vmem:[#allocation17 + $0x1d8] sm:$0xff]
        %v2940 = vld [vmem:[#allocation17 + $0x1e0] sm:$0xff]
        %v2941 = vld [vmem:[#allocation17 + $0x1e8] sm:$0xff]
        %v2942 = vld [vmem:[#allocation17 + $0x1f0] sm:$0xff]
        %v2943 = vld [vmem:[#allocation17 + $0x1f8] sm:$0xff]
        %v2944 = vld [vmem:[#allocation19] sm:$0x3]
        %v2946 = vlaneseq
        %v2947 = vshrl.u32 %v2946, 7
        %v2948 = vsub.s32 0, %v2947
        %v2949 = vrot.slane %v2944, %v2948
        %v2950 = vlaneseq
        %v2951 = vshrl.u32 %v2950, 7
        %v2952 = vsub.s32 1, %v2951
        %v2953 = vrot.slane %v2944, %v2952
        %v3020 = vunpack.c.l.b16 %v2880
        %v3021 = vunpack.c.h.b16 %v2880
        %v3022 = vunpack.c.l.b16 %v2881
        %v3023 = vunpack.c.h.b16 %v2881
        %v3024 = vunpack.c.l.b16 %v2882
        %v3025 = vunpack.c.h.b16 %v2882
        %v3026 = vunpack.c.l.b16 %v2883
        %v3027 = vunpack.c.h.b16 %v2883
        %v3028 = vunpack.c.l.b16 %v2884
        %v3029 = vunpack.c.h.b16 %v2884
        %v3030 = vunpack.c.l.b16 %v2885
        %v3031 = vunpack.c.h.b16 %v2885
        %v3032 = vunpack.c.l.b16 %v2886
        %v3033 = vunpack.c.h.b16 %v2886
        %v3034 = vunpack.c.l.b16 %v2887
        %v3035 = vunpack.c.h.b16 %v2887
        %v3036 = vunpack.c.l.b16 %v2888
        %v3037 = vunpack.c.h.b16 %v2888
        %v3038 = vunpack.c.l.b16 %v2889
        %v3039 = vunpack.c.h.b16 %v2889
        %v3040 = vunpack.c.l.b16 %v2890
        %v3041 = vunpack.c.h.b16 %v2890
        %v3042 = vunpack.c.l.b16 %v2891
        %v3043 = vunpack.c.h.b16 %v2891
        %v3044 = vunpack.c.l.b16 %v2892
        %v3045 = vunpack.c.h.b16 %v2892
        %v3046 = vunpack.c.l.b16 %v2893
        %v3047 = vunpack.c.h.b16 %v2893
        %v3048 = vunpack.c.l.b16 %v2894
        %v3049 = vunpack.c.h.b16 %v2894
        %v3050 = vunpack.c.l.b16 %v2895
        %v3051 = vunpack.c.h.b16 %v2895
        %v3052 = vunpack.c.l.b16 %v2896
        %v3053 = vunpack.c.h.b16 %v2896
        %v3054 = vunpack.c.l.b16 %v2897
        %v3055 = vunpack.c.h.b16 %v2897
        %v3056 = vunpack.c.l.b16 %v2898
        %v3057 = vunpack.c.h.b16 %v2898
        %v3058 = vunpack.c.l.b16 %v2899
        %v3059 = vunpack.c.h.b16 %v2899
        %v3060 = vunpack.c.l.b16 %v2900
        %v3061 = vunpack.c.h.b16 %v2900
        %v3062 = vunpack.c.l.b16 %v2901
        %v3063 = vunpack.c.h.b16 %v2901
        %v3064 = vunpack.c.l.b16 %v2902
        %v3065 = vunpack.c.h.b16 %v2902
        %v3066 = vunpack.c.l.b16 %v2903
        %v3067 = vunpack.c.h.b16 %v2903
        %v3068 = vunpack.c.l.b16 %v2904
        %v3069 = vunpack.c.h.b16 %v2904
        %v3070 = vunpack.c.l.b16 %v2905
        %v3071 = vunpack.c.h.b16 %v2905
        %v3072 = vunpack.c.l.b16 %v2906
        %v3073 = vunpack.c.h.b16 %v2906
        %v3074 = vunpack.c.l.b16 %v2907
        %v3075 = vunpack.c.h.b16 %v2907
        %v3076 = vunpack.c.l.b16 %v2908
        %v3077 = vunpack.c.h.b16 %v2908
        %v3078 = vunpack.c.l.b16 %v2909
        %v3079 = vunpack.c.h.b16 %v2909
        %v3080 = vunpack.c.l.b16 %v2910
        %v3081 = vunpack.c.h.b16 %v2910
        %v3082 = vunpack.c.l.b16 %v2911
        %v3083 = vunpack.c.h.b16 %v2911
        %v3084 = vunpack.c.l.b16 %v2912
        %v3085 = vunpack.c.h.b16 %v2912
        %v3086 = vunpack.c.l.b16 %v2913
        %v3087 = vunpack.c.h.b16 %v2913
        %v3088 = vunpack.c.l.b16 %v2914
        %v3089 = vunpack.c.h.b16 %v2914
        %v3090 = vunpack.c.l.b16 %v2915
        %v3091 = vunpack.c.h.b16 %v2915
        %v3092 = vunpack.c.l.b16 %v2916
        %v3093 = vunpack.c.h.b16 %v2916
        %v3094 = vunpack.c.l.b16 %v2917
        %v3095 = vunpack.c.h.b16 %v2917
        %v3096 = vunpack.c.l.b16 %v2918
        %v3097 = vunpack.c.h.b16 %v2918
        %v3098 = vunpack.c.l.b16 %v2919
        %v3099 = vunpack.c.h.b16 %v2919
        %v3100 = vunpack.c.l.b16 %v2920
        %v3101 = vunpack.c.h.b16 %v2920
        %v3102 = vunpack.c.l.b16 %v2921
        %v3103 = vunpack.c.h.b16 %v2921
        %v3104 = vunpack.c.l.b16 %v2922
        %v3105 = vunpack.c.h.b16 %v2922
        %v3106 = vunpack.c.l.b16 %v2923
        %v3107 = vunpack.c.h.b16 %v2923
        %v3108 = vunpack.c.l.b16 %v2924
        %v3109 = vunpack.c.h.b16 %v2924
        %v3110 = vunpack.c.l.b16 %v2925
        %v3111 = vunpack.c.h.b16 %v2925
        %v3112 = vunpack.c.l.b16 %v2926
        %v3113 = vunpack.c.h.b16 %v2926
        %v3114 = vunpack.c.l.b16 %v2927
        %v3115 = vunpack.c.h.b16 %v2927
        %v3116 = vunpack.c.l.b16 %v2928
        %v3117 = vunpack.c.h.b16 %v2928
        %v3118 = vunpack.c.l.b16 %v2929
        %v3119 = vunpack.c.h.b16 %v2929
        %v3120 = vunpack.c.l.b16 %v2930
        %v3121 = vunpack.c.h.b16 %v2930
        %v3122 = vunpack.c.l.b16 %v2931
        %v3123 = vunpack.c.h.b16 %v2931
        %v3124 = vunpack.c.l.b16 %v2932
        %v3125 = vunpack.c.h.b16 %v2932
        %v3126 = vunpack.c.l.b16 %v2933
        %v3127 = vunpack.c.h.b16 %v2933
        %v3128 = vunpack.c.l.b16 %v2934
        %v3129 = vunpack.c.h.b16 %v2934
        %v3130 = vunpack.c.l.b16 %v2935
        %v3131 = vunpack.c.h.b16 %v2935
        %v3132 = vunpack.c.l.b16 %v2936
        %v3133 = vunpack.c.h.b16 %v2936
        %v3134 = vunpack.c.l.b16 %v2937
        %v3135 = vunpack.c.h.b16 %v2937
        %v3136 = vunpack.c.l.b16 %v2938
        %v3137 = vunpack.c.h.b16 %v2938
        %v3138 = vunpack.c.l.b16 %v2939
        %v3139 = vunpack.c.h.b16 %v2939
        %v3140 = vunpack.c.l.b16 %v2940
        %v3141 = vunpack.c.h.b16 %v2940
        %v3142 = vunpack.c.l.b16 %v2941
        %v3143 = vunpack.c.h.b16 %v2941
        %v3144 = vunpack.c.l.b16 %v2942
        %v3145 = vunpack.c.h.b16 %v2942
        %v3146 = vunpack.c.l.b16 %v2943
        %v3147 = vunpack.c.h.b16 %v2943
        %v3148 = vpack.c.b16 %v3022, %v3020
        %v3149 = vpack.c.b16 %v3023, %v3021
        %v3150 = vpack.c.b16 %v3026, %v3024
        %v3151 = vpack.c.b16 %v3027, %v3025
        %v3152 = vpack.c.b16 %v3030, %v3028
        %v3153 = vpack.c.b16 %v3031, %v3029
        %v3154 = vpack.c.b16 %v3034, %v3032
        %v3155 = vpack.c.b16 %v3035, %v3033
        %v3156 = vpack.c.b16 %v3038, %v3036
        %v3157 = vpack.c.b16 %v3039, %v3037
        %v3158 = vpack.c.b16 %v3042, %v3040
        %v3159 = vpack.c.b16 %v3043, %v3041
        %v3160 = vpack.c.b16 %v3046, %v3044
        %v3161 = vpack.c.b16 %v3047, %v3045
        %v3162 = vpack.c.b16 %v3050, %v3048
        %v3163 = vpack.c.b16 %v3051, %v3049
        %v3164 = vpack.c.b16 %v3054, %v3052
        %v3165 = vpack.c.b16 %v3055, %v3053
        %v3166 = vpack.c.b16 %v3058, %v3056
        %v3167 = vpack.c.b16 %v3059, %v3057
        %v3168 = vpack.c.b16 %v3062, %v3060
        %v3169 = vpack.c.b16 %v3063, %v3061
        %v3170 = vpack.c.b16 %v3066, %v3064
        %v3171 = vpack.c.b16 %v3067, %v3065
        %v3172 = vpack.c.b16 %v3070, %v3068
        %v3173 = vpack.c.b16 %v3071, %v3069
        %v3174 = vpack.c.b16 %v3074, %v3072
        %v3175 = vpack.c.b16 %v3075, %v3073
        %v3176 = vpack.c.b16 %v3078, %v3076
        %v3177 = vpack.c.b16 %v3079, %v3077
        %v3178 = vpack.c.b16 %v3082, %v3080
        %v3179 = vpack.c.b16 %v3083, %v3081
        %v3180 = vpack.c.b16 %v3086, %v3084
        %v3181 = vpack.c.b16 %v3087, %v3085
        %v3182 = vpack.c.b16 %v3090, %v3088
        %v3183 = vpack.c.b16 %v3091, %v3089
        %v3184 = vpack.c.b16 %v3094, %v3092
        %v3185 = vpack.c.b16 %v3095, %v3093
        %v3186 = vpack.c.b16 %v3098, %v3096
        %v3187 = vpack.c.b16 %v3099, %v3097
        %v3188 = vpack.c.b16 %v3102, %v3100
        %v3189 = vpack.c.b16 %v3103, %v3101
        %v3190 = vpack.c.b16 %v3106, %v3104
        %v3191 = vpack.c.b16 %v3107, %v3105
        %v3192 = vpack.c.b16 %v3110, %v3108
        %v3193 = vpack.c.b16 %v3111, %v3109
        %v3194 = vpack.c.b16 %v3114, %v3112
        %v3195 = vpack.c.b16 %v3115, %v3113
        %v3196 = vpack.c.b16 %v3118, %v3116
        %v3197 = vpack.c.b16 %v3119, %v3117
        %v3198 = vpack.c.b16 %v3122, %v3120
        %v3199 = vpack.c.b16 %v3123, %v3121
        %v3200 = vpack.c.b16 %v3126, %v3124
        %v3201 = vpack.c.b16 %v3127, %v3125
        %v3202 = vpack.c.b16 %v3130, %v3128
        %v3203 = vpack.c.b16 %v3131, %v3129
        %v3204 = vpack.c.b16 %v3134, %v3132
        %v3205 = vpack.c.b16 %v3135, %v3133
        %v3206 = vpack.c.b16 %v3138, %v3136
        %v3207 = vpack.c.b16 %v3139, %v3137
        %v3208 = vpack.c.b16 %v3142, %v3140
        %v3209 = vpack.c.b16 %v3143, %v3141
        %v3210 = vpack.c.b16 %v3146, %v3144
        %v3211 = vpack.c.b16 %v3147, %v3145
        %3276 = vmatprep.subr.bf16.mxu0 %v3149
        %3277 = vmatpush1.bf16.msra.mxu0 %v3148
        %3278 = vmatprep.subr.bf16.mxu0 %v3151
        %3279 = vmatpush1.bf16.msra.mxu0 %v3150
        %3280 = vmatprep.subr.bf16.mxu0 %v3153
        %3281 = vmatpush1.bf16.msra.mxu0 %v3152
        %3282 = vmatprep.subr.bf16.mxu0 %v3155
        %3283 = vmatpush1.bf16.msra.mxu0 %v3154
        %3284 = vmatprep.subr.bf16.mxu0 %v3157
        %3285 = vmatpush1.bf16.msra.mxu0 %v3156
        %3286 = vmatprep.subr.bf16.mxu0 %v3159
        %3287 = vmatpush1.bf16.msra.mxu0 %v3158
        %3288 = vmatprep.subr.bf16.mxu0 %v3161
        %3289 = vmatpush1.bf16.msra.mxu0 %v3160
        %3290 = vmatprep.subr.bf16.mxu0 %v3163
        %3291 = vmatpush1.bf16.msra.mxu0 %v3162
        %3292 = vmatprep.subr.bf16.mxu0 %v3165
        %3293 = vmatpush1.bf16.msra.mxu0 %v3164
        %3294 = vmatprep.subr.bf16.mxu0 %v3167
        %3295 = vmatpush1.bf16.msra.mxu0 %v3166
        %3296 = vmatprep.subr.bf16.mxu0 %v3169
        %3297 = vmatpush1.bf16.msra.mxu0 %v3168
        %3298 = vmatprep.subr.bf16.mxu0 %v3171
        %3299 = vmatpush1.bf16.msra.mxu0 %v3170
        %3300 = vmatprep.subr.bf16.mxu0 %v3173
        %3301 = vmatpush1.bf16.msra.mxu0 %v3172
        %3302 = vmatprep.subr.bf16.mxu0 %v3175
        %3303 = vmatpush1.bf16.msra.mxu0 %v3174
        %3304 = vmatprep.subr.bf16.mxu0 %v3177
        %3305 = vmatpush1.bf16.msra.mxu0 %v3176
        %3306 = vmatprep.subr.bf16.mxu0 %v3179
        %3307 = vmatpush1.bf16.msra.mxu0 %v3178
        %3308 = vmatprep.mubr.bf16.mxu0 %v2849
        %3309 = vmatmul.mubr.bf16.gmra.mrb[0].mxu0 %v2848
        %v3310 = vpop.f32.mrb[0].mxu0
        %v3311 = vadd.f32 %v2949, %v3310
        %v3312 = vpop.f32.mrb[0].mxu0
        %v3313 = vadd.f32 %v2953, %v3312
        %v3314 = vpop.f32.mrb[0].mxu0
        %v3315 = vadd.f32 %v2949, %v3314
        %v3316 = vpop.f32.mrb[0].mxu0
        %v3317 = vadd.f32 %v2953, %v3316
        %3318 = vmatprep.mubr.bf16.mxu0 %v2853
        %3319 = vmatmul.mubr.bf16.gmra.mrb[0].mxu0 %v2852
        %v3320 = vpop.f32.mrb[0].mxu0
        %v3321 = vadd.f32 %v2949, %v3320
        %v3322 = vpop.f32.mrb[0].mxu0
        %v3323 = vadd.f32 %v2953, %v3322
        %v3324 = vpop.f32.mrb[0].mxu0
        %v3325 = vadd.f32 %v2949, %v3324
        %v3326 = vpop.f32.mrb[0].mxu0
        %v3327 = vadd.f32 %v2953, %v3326
        %3328 = vmatprep.mubr.bf16.mxu0 %v2857
        %3329 = vmatmul.mubr.bf16.gmra.mrb[0].mxu0 %v2856
        %v3330 = vpop.f32.mrb[0].mxu0
        %v3331 = vadd.f32 %v2949, %v3330
        %v3332 = vpop.f32.mrb[0].mxu0
        %v3333 = vadd.f32 %v2953, %v3332
        %v3334 = vpop.f32.mrb[0].mxu0
        %v3335 = vadd.f32 %v2949, %v3334
        %v3336 = vpop.f32.mrb[0].mxu0
        %v3337 = vadd.f32 %v2953, %v3336
        %3338 = vmatprep.mubr.bf16.mxu0 %v2861
        %3339 = vmatmul.mubr.bf16.gmra.mrb[0].mxu0 %v2860
        %v3340 = vpop.f32.mrb[0].mxu0
        %v3341 = vadd.f32 %v2949, %v3340
        %v3342 = vpop.f32.mrb[0].mxu0
        %v3343 = vadd.f32 %v2953, %v3342
        %v3344 = vpop.f32.mrb[0].mxu0
        %v3345 = vadd.f32 %v2949, %v3344
        %v3346 = vpop.f32.mrb[0].mxu0
        %v3347 = vadd.f32 %v2953, %v3346
        %3348 = vmatprep.mubr.bf16.mxu0 %v2865
        %3349 = vmatmul.mubr.bf16.gmra.mrb[0].mxu0 %v2864
        %v3350 = vpop.f32.mrb[0].mxu0
        %v3351 = vadd.f32 %v2949, %v3350
        %v3352 = vpop.f32.mrb[0].mxu0
        %v3353 = vadd.f32 %v2953, %v3352
        %v3354 = vpop.f32.mrb[0].mxu0
        %v3355 = vadd.f32 %v2949, %v3354
        %v3356 = vpop.f32.mrb[0].mxu0
        %v3357 = vadd.f32 %v2953, %v3356
        %3358 = vmatprep.mubr.bf16.mxu0 %v2869
        %3359 = vmatmul.mubr.bf16.gmra.mrb[0].mxu0 %v2868
        %v3360 = vpop.f32.mrb[0].mxu0
        %v3361 = vadd.f32 %v2949, %v3360
        %v3362 = vpop.f32.mrb[0].mxu0
        %v3363 = vadd.f32 %v2953, %v3362
        %v3364 = vpop.f32.mrb[0].mxu0
        %v3365 = vadd.f32 %v2949, %v3364
        %v3366 = vpop.f32.mrb[0].mxu0
        %v3367 = vadd.f32 %v2953, %v3366
        %3368 = vmatprep.mubr.bf16.mxu0 %v2873
        %3369 = vmatmul.mubr.bf16.gmra.mrb[0].mxu0 %v2872
        %v3370 = vpop.f32.mrb[0].mxu0
        %v3371 = vadd.f32 %v2949, %v3370
        %v3372 = vpop.f32.mrb[0].mxu0
        %v3373 = vadd.f32 %v2953, %v3372
        %v3374 = vpop.f32.mrb[0].mxu0
        %v3375 = vadd.f32 %v2949, %v3374
        %v3376 = vpop.f32.mrb[0].mxu0
        %v3377 = vadd.f32 %v2953, %v3376
        %3378 = vmatprep.mubr.bf16.mxu0 %v2877
        %3379 = vmatmul.mubr.bf16.gmra.mrb[0].mxu0 %v2876
        %v3380 = vpop.f32.mrb[0].mxu0
        %v3381 = vadd.f32 %v2949, %v3380
        %v3382 = vpop.f32.mrb[0].mxu0
        %v3383 = vadd.f32 %v2953, %v3382
        %v3384 = vpop.f32.mrb[0].mxu0
        %v3385 = vadd.f32 %v2949, %v3384
        %v3386 = vpop.f32.mrb[0].mxu0
        %v3387 = vadd.f32 %v2953, %v3386
        %3388 = vdwg.mxu0
        %3389 = vmatprep.subr.bf16.mxu0 %v3181
        %3390 = vmatpush1.bf16.msra.mxu0 %v3180
        %3391 = vmatprep.subr.bf16.mxu0 %v3183
        %3392 = vmatpush1.bf16.msra.mxu0 %v3182
        %3393 = vmatprep.subr.bf16.mxu0 %v3185
        %3394 = vmatpush1.bf16.msra.mxu0 %v3184
        %3395 = vmatprep.subr.bf16.mxu0 %v3187
        %3396 = vmatpush1.bf16.msra.mxu0 %v3186
        %3397 = vmatprep.subr.bf16.mxu0 %v3189
        %3398 = vmatpush1.bf16.msra.mxu0 %v3188
        %3399 = vmatprep.subr.bf16.mxu0 %v3191
        %3400 = vmatpush1.bf16.msra.mxu0 %v3190
        %3401 = vmatprep.subr.bf16.mxu0 %v3193
        %3402 = vmatpush1.bf16.msra.mxu0 %v3192
        %3403 = vmatprep.subr.bf16.mxu0 %v3195
        %3404 = vmatpush1.bf16.msra.mxu0 %v3194
        %3405 = vmatprep.subr.bf16.mxu0 %v3197
        %3406 = vmatpush1.bf16.msra.mxu0 %v3196
        %3407 = vmatprep.subr.bf16.mxu0 %v3199
        %3408 = vmatpush1.bf16.msra.mxu0 %v3198
        %3409 = vmatprep.subr.bf16.mxu0 %v3201
        %3410 = vmatpush1.bf16.msra.mxu0 %v3200
        %3411 = vmatprep.subr.bf16.mxu0 %v3203
        %3412 = vmatpush1.bf16.msra.mxu0 %v3202
        %3413 = vmatprep.subr.bf16.mxu0 %v3205
        %3414 = vmatpush1.bf16.msra.mxu0 %v3204
        %3415 = vmatprep.subr.bf16.mxu0 %v3207
        %3416 = vmatpush1.bf16.msra.mxu0 %v3206
        %3417 = vmatprep.subr.bf16.mxu0 %v3209
        %3418 = vmatpush1.bf16.msra.mxu0 %v3208
        %3419 = vmatprep.subr.bf16.mxu0 %v3211
        %3420 = vmatpush1.bf16.msra.mxu0 %v3210
        %3421 = vmatprep.mubr.bf16.mxu0 %v2851
        %3422 = vmatmul.mubr.bf16.gmra.mrb[0].mxu0 %v2850
        %v3423 = vpop.f32.mrb[0].mxu0
        %v3424 = vadd.f32 %v3311, %v3423
        %v3425 = vpop.f32.mrb[0].mxu0
        %v3426 = vadd.f32 %v3313, %v3425
        %v3427 = vpop.f32.mrb[0].mxu0
        %v3428 = vadd.f32 %v3315, %v3427
        %v3429 = vpop.f32.mrb[0].mxu0
        %v3430 = vadd.f32 %v3317, %v3429
        %3431 = vmatprep.mubr.bf16.mxu0 %v2855
        %3432 = vmatmul.mubr.bf16.gmra.mrb[0].mxu0 %v2854
        %v3433 = vpop.f32.mrb[0].mxu0
        %v3434 = vadd.f32 %v3321, %v3433
        %v3435 = vpop.f32.mrb[0].mxu0
        %v3436 = vadd.f32 %v3323, %v3435
        %v3437 = vpop.f32.mrb[0].mxu0
        %v3438 = vadd.f32 %v3325, %v3437
        %v3439 = vpop.f32.mrb[0].mxu0
        %v3440 = vadd.f32 %v3327, %v3439
        %3441 = vmatprep.mubr.bf16.mxu0 %v2859
        %3442 = vmatmul.mubr.bf16.gmra.mrb[0].mxu0 %v2858
        %v3443 = vpop.f32.mrb[0].mxu0
        %v3444 = vadd.f32 %v3331, %v3443
        %v3445 = vpop.f32.mrb[0].mxu0
        %v3446 = vadd.f32 %v3333, %v3445
        %v3447 = vpop.f32.mrb[0].mxu0
        %v3448 = vadd.f32 %v3335, %v3447
        %v3449 = vpop.f32.mrb[0].mxu0
        %v3450 = vadd.f32 %v3337, %v3449
        %3451 = vmatprep.mubr.bf16.mxu0 %v2863
        %3452 = vmatmul.mubr.bf16.gmra.mrb[0].mxu0 %v2862
        %v3453 = vpop.f32.mrb[0].mxu0
        %v3454 = vadd.f32 %v3341, %v3453
        %v3455 = vpop.f32.mrb[0].mxu0
        %v3456 = vadd.f32 %v3343, %v3455
        %v3457 = vpop.f32.mrb[0].mxu0
        %v3458 = vadd.f32 %v3345, %v3457
        %v3459 = vpop.f32.mrb[0].mxu0
        %v3460 = vadd.f32 %v3347, %v3459
        %3461 = vmatprep.mubr.bf16.mxu0 %v2867
        %3462 = vmatmul.mubr.bf16.gmra.mrb[0].mxu0 %v2866
        %v3463 = vpop.f32.mrb[0].mxu0
        %v3464 = vadd.f32 %v3351, %v3463
        %v3465 = vpop.f32.mrb[0].mxu0
        %v3466 = vadd.f32 %v3353, %v3465
        %v3467 = vpop.f32.mrb[0].mxu0
        %v3468 = vadd.f32 %v3355, %v3467
        %v3469 = vpop.f32.mrb[0].mxu0
        %v3470 = vadd.f32 %v3357, %v3469
        %3471 = vmatprep.mubr.bf16.mxu0 %v2871
        %3472 = vmatmul.mubr.bf16.gmra.mrb[0].mxu0 %v2870
        %v3473 = vpop.f32.mrb[0].mxu0
        %v3474 = vadd.f32 %v3361, %v3473
        %v3475 = vpop.f32.mrb[0].mxu0
        %v3476 = vadd.f32 %v3363, %v3475
        %v3477 = vpop.f32.mrb[0].mxu0
        %v3478 = vadd.f32 %v3365, %v3477
        %v3479 = vpop.f32.mrb[0].mxu0
        %v3480 = vadd.f32 %v3367, %v3479
        %3481 = vmatprep.mubr.bf16.mxu0 %v2875
        %3482 = vmatmul.mubr.bf16.gmra.mrb[0].mxu0 %v2874
        %v3483 = vpop.f32.mrb[0].mxu0
        %v3484 = vadd.f32 %v3371, %v3483
        %v3485 = vpop.f32.mrb[0].mxu0
        %v3486 = vadd.f32 %v3373, %v3485
        %v3487 = vpop.f32.mrb[0].mxu0
        %v3488 = vadd.f32 %v3375, %v3487
        %v3489 = vpop.f32.mrb[0].mxu0
        %v3490 = vadd.f32 %v3377, %v3489
        %3491 = vmatprep.mubr.bf16.mxu0 %v2879
        %3492 = vmatmul.mubr.bf16.gmra.mrb[0].mxu0 %v2878
        %v3493 = vpop.f32.mrb[0].mxu0
        %v3494 = vadd.f32 %v3381, %v3493
        %v3495 = vpop.f32.mrb[0].mxu0
        %v3496 = vadd.f32 %v3383, %v3495
        %v3497 = vpop.f32.mrb[0].mxu0
        %v3498 = vadd.f32 %v3385, %v3497
        %v3499 = vpop.f32.mrb[0].mxu0
        %v3500 = vadd.f32 %v3387, %v3499
        %3501 = vdwg.mxu0
        %v3502 = vadd.f32 %v2104, %v3424
        %v3503 = vadd.f32 %v2105, %v3426
        %v3504 = vadd.f32 %v2106, %v3428
        %v3505 = vadd.f32 %v2107, %v3430
        %v3506 = vadd.f32 %v2108, %v3434
        %v3507 = vadd.f32 %v2109, %v3436
        %v3508 = vadd.f32 %v2110, %v3438
        %v3509 = vadd.f32 %v2111, %v3440
        %v3510 = vadd.f32 %v2112, %v3444
        %v3511 = vadd.f32 %v2113, %v3446
        %v3512 = vadd.f32 %v2114, %v3448
        %v3513 = vadd.f32 %v2115, %v3450
        %v3514 = vadd.f32 %v2116, %v3454
        %v3515 = vadd.f32 %v2117, %v3456
        %v3516 = vadd.f32 %v2118, %v3458
        %v3517 = vadd.f32 %v2119, %v3460
        %v3518 = vadd.f32 %v2120, %v3464
        %v3519 = vadd.f32 %v2121, %v3466
        %v3520 = vadd.f32 %v2122, %v3468
        %v3521 = vadd.f32 %v2123, %v3470
        %v3522 = vadd.f32 %v2124, %v3474
        %v3523 = vadd.f32 %v2125, %v3476
        %v3524 = vadd.f32 %v2126, %v3478
        %v3525 = vadd.f32 %v2127, %v3480
        %v3526 = vadd.f32 %v2128, %v3484
        %v3527 = vadd.f32 %v2129, %v3486
        %v3528 = vadd.f32 %v2130, %v3488
        %v3529 = vadd.f32 %v2131, %v3490
        %v3530 = vadd.f32 %v2132, %v3494
        %v3531 = vadd.f32 %v2133, %v3496
        %v3532 = vadd.f32 %v2134, %v3498
        %v3533 = vadd.f32 %v2135, %v3500
        %v3534 = vld [vmem:[#allocation20] sm:$0x3]
        %v3535 = vld [vmem:[#allocation22] sm:$0x3]
        %v3536 = vadd.f32 %v3502, %v3503
        %3537 = vadd.xlane.f32.xlu0 %v3536
        %v3538 = vpop.xlane.xlu0 %3537
        %v3539 = vadd.f32 %v3504, %v3505
        %3540 = vadd.xlane.f32.xlu0 %v3539
        %v3541 = vpop.xlane.xlu0 %3540
        %v3542 = vadd.f32 %v3506, %v3507
        %3543 = vadd.xlane.f32.xlu0 %v3542
        %v3544 = vpop.xlane.xlu0 %3543
        %v3545 = vadd.f32 %v3508, %v3509
        %3546 = vadd.xlane.f32.xlu0 %v3545
        %v3547 = vpop.xlane.xlu0 %3546
        %v3548 = vadd.f32 %v3510, %v3511
        %3549 = vadd.xlane.f32.xlu0 %v3548
        %v3550 = vpop.xlane.xlu0 %3549
        %v3551 = vadd.f32 %v3512, %v3513
        %3552 = vadd.xlane.f32.xlu0 %v3551
        %v3553 = vpop.xlane.xlu0 %3552
        %v3554 = vadd.f32 %v3514, %v3515
        %3555 = vadd.xlane.f32.xlu0 %v3554
        %v3556 = vpop.xlane.xlu0 %3555
        %v3557 = vadd.f32 %v3516, %v3517
        %3558 = vadd.xlane.f32.xlu0 %v3557
        %v3559 = vpop.xlane.xlu0 %3558
        %v3560 = vadd.f32 %v3518, %v3519
        %3561 = vadd.xlane.f32.xlu0 %v3560
        %v3562 = vpop.xlane.xlu0 %3561
        %v3563 = vadd.f32 %v3520, %v3521
        %3564 = vadd.xlane.f32.xlu0 %v3563
        %v3565 = vpop.xlane.xlu0 %3564
        %v3566 = vadd.f32 %v3522, %v3523
        %3567 = vadd.xlane.f32.xlu0 %v3566
        %v3568 = vpop.xlane.xlu0 %3567
        %v3569 = vadd.f32 %v3524, %v3525
        %3570 = vadd.xlane.f32.xlu0 %v3569
        %v3571 = vpop.xlane.xlu0 %3570
        %v3572 = vadd.f32 %v3526, %v3527
        %3573 = vadd.xlane.f32.xlu0 %v3572
        %v3574 = vpop.xlane.xlu0 %3573
        %v3575 = vadd.f32 %v3528, %v3529
        %3576 = vadd.xlane.f32.xlu0 %v3575
        %v3577 = vpop.xlane.xlu0 %3576
        %v3578 = vadd.f32 %v3530, %v3531
        %3579 = vadd.xlane.f32.xlu0 %v3578
        %v3580 = vpop.xlane.xlu0 %3579
        %v3581 = vadd.f32 %v3532, %v3533
        %3582 = vadd.xlane.f32.xlu0 %v3581
        %v3583 = vpop.xlane.xlu0 %3582
        %v3584 = vmul.f32 %v3538, %v1841
        %v3585 = vmul.f32 %v3541, %v1841
        %v3586 = vmul.f32 %v3544, %v1841
        %v3587 = vmul.f32 %v3547, %v1841
        %v3588 = vmul.f32 %v3550, %v1841
        %v3589 = vmul.f32 %v3553, %v1841
        %v3590 = vmul.f32 %v3556, %v1841
        %v3591 = vmul.f32 %v3559, %v1841
        %v3592 = vmul.f32 %v3562, %v1841
        %v3593 = vmul.f32 %v3565, %v1841
        %v3594 = vmul.f32 %v3568, %v1841
        %v3595 = vmul.f32 %v3571, %v1841
        %v3596 = vmul.f32 %v3574, %v1841
        %v3597 = vmul.f32 %v3577, %v1841
        %v3598 = vmul.f32 %v3580, %v1841
        %v3599 = vmul.f32 %v3583, %v1841
        %v3600 = vsub.f32 %v3502, %v3584
        %v3601 = vsub.f32 %v3503, %v3584
        %v3602 = vsub.f32 %v3504, %v3585
        %v3603 = vsub.f32 %v3505, %v3585
        %v3604 = vsub.f32 %v3506, %v3586
        %v3605 = vsub.f32 %v3507, %v3586
        %v3606 = vsub.f32 %v3508, %v3587
        %v3607 = vsub.f32 %v3509, %v3587
        %v3608 = vsub.f32 %v3510, %v3588
        %v3609 = vsub.f32 %v3511, %v3588
        %v3610 = vsub.f32 %v3512, %v3589
        %v3611 = vsub.f32 %v3513, %v3589
        %v3612 = vsub.f32 %v3514, %v3590
        %v3613 = vsub.f32 %v3515, %v3590
        %v3614 = vsub.f32 %v3516, %v3591
        %v3615 = vsub.f32 %v3517, %v3591
        %v3616 = vsub.f32 %v3518, %v3592
        %v3617 = vsub.f32 %v3519, %v3592
        %v3618 = vsub.f32 %v3520, %v3593
        %v3619 = vsub.f32 %v3521, %v3593
        %v3620 = vsub.f32 %v3522, %v3594
        %v3621 = vsub.f32 %v3523, %v3594
        %v3622 = vsub.f32 %v3524, %v3595
        %v3623 = vsub.f32 %v3525, %v3595
        %v3624 = vsub.f32 %v3526, %v3596
        %v3625 = vsub.f32 %v3527, %v3596
        %v3626 = vsub.f32 %v3528, %v3597
        %v3627 = vsub.f32 %v3529, %v3597
        %v3628 = vsub.f32 %v3530, %v3598
        %v3629 = vsub.f32 %v3531, %v3598
        %v3630 = vsub.f32 %v3532, %v3599
        %v3631 = vsub.f32 %v3533, %v3599
        %v3632 = vmul.f32 %v3600, %v3600
        %v3633 = vmul.f32 %v3601, %v3601
        %v3634 = vmul.f32 %v3602, %v3602
        %v3635 = vmul.f32 %v3603, %v3603
        %v3636 = vmul.f32 %v3604, %v3604
        %v3637 = vmul.f32 %v3605, %v3605
        %v3638 = vmul.f32 %v3606, %v3606
        %v3639 = vmul.f32 %v3607, %v3607
        %v3640 = vmul.f32 %v3608, %v3608
        %v3641 = vmul.f32 %v3609, %v3609
        %v3642 = vmul.f32 %v3610, %v3610
        %v3643 = vmul.f32 %v3611, %v3611
        %v3644 = vmul.f32 %v3612, %v3612
        %v3645 = vmul.f32 %v3613, %v3613
        %v3646 = vmul.f32 %v3614, %v3614
        %v3647 = vmul.f32 %v3615, %v3615
        %v3648 = vmul.f32 %v3616, %v3616
        %v3649 = vmul.f32 %v3617, %v3617
        %v3650 = vmul.f32 %v3618, %v3618
        %v3651 = vmul.f32 %v3619, %v3619
        %v3652 = vmul.f32 %v3620, %v3620
        %v3653 = vmul.f32 %v3621, %v3621
        %v3654 = vmul.f32 %v3622, %v3622
        %v3655 = vmul.f32 %v3623, %v3623
        %v3656 = vmul.f32 %v3624, %v3624
        %v3657 = vmul.f32 %v3625, %v3625
        %v3658 = vmul.f32 %v3626, %v3626
        %v3659 = vmul.f32 %v3627, %v3627
        %v3660 = vmul.f32 %v3628, %v3628
        %v3661 = vmul.f32 %v3629, %v3629
        %v3662 = vmul.f32 %v3630, %v3630
        %v3663 = vmul.f32 %v3631, %v3631
        %v3664 = vadd.f32 %v3632, %v3633
        %3665 = vadd.xlane.f32.xlu0 %v3664
        %v3666 = vpop.xlane.xlu0 %3665
        %v3667 = vadd.f32 %v3634, %v3635
        %3668 = vadd.xlane.f32.xlu0 %v3667
        %v3669 = vpop.xlane.xlu0 %3668
        %v3670 = vadd.f32 %v3636, %v3637
        %3671 = vadd.xlane.f32.xlu0 %v3670
        %v3672 = vpop.xlane.xlu0 %3671
        %v3673 = vadd.f32 %v3638, %v3639
        %3674 = vadd.xlane.f32.xlu0 %v3673
        %v3675 = vpop.xlane.xlu0 %3674
        %v3676 = vadd.f32 %v3640, %v3641
        %3677 = vadd.xlane.f32.xlu0 %v3676
        %v3678 = vpop.xlane.xlu0 %3677
        %v3679 = vadd.f32 %v3642, %v3643
        %3680 = vadd.xlane.f32.xlu0 %v3679
        %v3681 = vpop.xlane.xlu0 %3680
        %v3682 = vadd.f32 %v3644, %v3645
        %3683 = vadd.xlane.f32.xlu0 %v3682
        %v3684 = vpop.xlane.xlu0 %3683
        %v3685 = vadd.f32 %v3646, %v3647
        %3686 = vadd.xlane.f32.xlu0 %v3685
        %v3687 = vpop.xlane.xlu0 %3686
        %v3688 = vadd.f32 %v3648, %v3649
        %3689 = vadd.xlane.f32.xlu0 %v3688
        %v3690 = vpop.xlane.xlu0 %3689
        %v3691 = vadd.f32 %v3650, %v3651
        %3692 = vadd.xlane.f32.xlu0 %v3691
        %v3693 = vpop.xlane.xlu0 %3692
        %v3694 = vadd.f32 %v3652, %v3653
        %3695 = vadd.xlane.f32.xlu0 %v3694
        %v3696 = vpop.xlane.xlu0 %3695
        %v3697 = vadd.f32 %v3654, %v3655
        %3698 = vadd.xlane.f32.xlu0 %v3697
        %v3699 = vpop.xlane.xlu0 %3698
        %v3700 = vadd.f32 %v3656, %v3657
        %3701 = vadd.xlane.f32.xlu0 %v3700
        %v3702 = vpop.xlane.xlu0 %3701
        %v3703 = vadd.f32 %v3658, %v3659
        %3704 = vadd.xlane.f32.xlu0 %v3703
        %v3705 = vpop.xlane.xlu0 %3704
        %v3706 = vadd.f32 %v3660, %v3661
        %3707 = vadd.xlane.f32.xlu0 %v3706
        %v3708 = vpop.xlane.xlu0 %3707
        %v3709 = vadd.f32 %v3662, %v3663
        %3710 = vadd.xlane.f32.xlu0 %v3709
        %v3711 = vpop.xlane.xlu0 %3710
        %v3712 = vmul.f32 %v3666, %v1841
        %v3713 = vmul.f32 %v3669, %v1841
        %v3714 = vmul.f32 %v3672, %v1841
        %v3715 = vmul.f32 %v3675, %v1841
        %v3716 = vmul.f32 %v3678, %v1841
        %v3717 = vmul.f32 %v3681, %v1841
        %v3718 = vmul.f32 %v3684, %v1841
        %v3719 = vmul.f32 %v3687, %v1841
        %v3720 = vmul.f32 %v3690, %v1841
        %v3721 = vmul.f32 %v3693, %v1841
        %v3722 = vmul.f32 %v3696, %v1841
        %v3723 = vmul.f32 %v3699, %v1841
        %v3724 = vmul.f32 %v3702, %v1841
        %v3725 = vmul.f32 %v3705, %v1841
        %v3726 = vmul.f32 %v3708, %v1841
        %v3727 = vmul.f32 %v3711, %v1841
        %v3728 = vadd.f32 %v3712, 1e-05
        %v3729 = vadd.f32 %v3713, 1e-05
        %v3730 = vadd.f32 %v3714, 1e-05
        %v3731 = vadd.f32 %v3715, 1e-05
        %v3732 = vadd.f32 %v3716, 1e-05
        %v3733 = vadd.f32 %v3717, 1e-05
        %v3734 = vadd.f32 %v3718, 1e-05
        %v3735 = vadd.f32 %v3719, 1e-05
        %v3736 = vadd.f32 %v3720, 1e-05
        %v3737 = vadd.f32 %v3721, 1e-05
        %v3738 = vadd.f32 %v3722, 1e-05
        %v3739 = vadd.f32 %v3723, 1e-05
        %v3740 = vadd.f32 %v3724, 1e-05
        %v3741 = vadd.f32 %v3725, 1e-05
        %v3742 = vadd.f32 %v3726, 1e-05
        %v3743 = vadd.f32 %v3727, 1e-05
        %v3744 = vrsqrt.pop %v3728
        %v3745 = vrsqrt.pop %v3729
        %v3746 = vrsqrt.pop %v3730
        %v3747 = vrsqrt.pop %v3731
        %v3748 = vrsqrt.pop %v3732
        %v3749 = vrsqrt.pop %v3733
        %v3750 = vrsqrt.pop %v3734
        %v3751 = vrsqrt.pop %v3735
        %v3752 = vrsqrt.pop %v3736
        %v3753 = vrsqrt.pop %v3737
        %v3754 = vrsqrt.pop %v3738
        %v3755 = vrsqrt.pop %v3739
        %v3756 = vrsqrt.pop %v3740
        %v3757 = vrsqrt.pop %v3741
        %v3758 = vrsqrt.pop %v3742
        %v3759 = vrsqrt.pop %v3743
        %v3760 = vmul.f32 %v3600, %v3744
        %v3761 = vmul.f32 %v3601, %v3744
        %v3762 = vmul.f32 %v3602, %v3745
        %v3763 = vmul.f32 %v3603, %v3745
        %v3764 = vmul.f32 %v3604, %v3746
        %v3765 = vmul.f32 %v3605, %v3746
        %v3766 = vmul.f32 %v3606, %v3747
        %v3767 = vmul.f32 %v3607, %v3747
        %v3768 = vmul.f32 %v3608, %v3748
        %v3769 = vmul.f32 %v3609, %v3748
        %v3770 = vmul.f32 %v3610, %v3749
        %v3771 = vmul.f32 %v3611, %v3749
        %v3772 = vmul.f32 %v3612, %v3750
        %v3773 = vmul.f32 %v3613, %v3750
        %v3774 = vmul.f32 %v3614, %v3751
        %v3775 = vmul.f32 %v3615, %v3751
        %v3776 = vmul.f32 %v3616, %v3752
        %v3777 = vmul.f32 %v3617, %v3752
        %v3778 = vmul.f32 %v3618, %v3753
        %v3779 = vmul.f32 %v3619, %v3753
        %v3780 = vmul.f32 %v3620, %v3754
        %v3781 = vmul.f32 %v3621, %v3754
        %v3782 = vmul.f32 %v3622, %v3755
        %v3783 = vmul.f32 %v3623, %v3755
        %v3784 = vmul.f32 %v3624, %v3756
        %v3785 = vmul.f32 %v3625, %v3756
        %v3786 = vmul.f32 %v3626, %v3757
        %v3787 = vmul.f32 %v3627, %v3757
        %v3788 = vmul.f32 %v3628, %v3758
        %v3789 = vmul.f32 %v3629, %v3758
        %v3790 = vmul.f32 %v3630, %v3759
        %v3791 = vmul.f32 %v3631, %v3759
        %v3793 = vlaneseq
        %v3794 = vshrl.u32 %v3793, 7
        %v3795 = vsub.s32 0, %v3794
        %v3796 = vrot.slane %v3534, %v3795
        %v3797 = vlaneseq
        %v3798 = vshrl.u32 %v3797, 7
        %v3799 = vsub.s32 1, %v3798
        %v3800 = vrot.slane %v3534, %v3799
        %v3803 = vmul.f32 %v3760, %v3796
        %v3804 = vmul.f32 %v3761, %v3800
        %v3805 = vmul.f32 %v3762, %v3796
        %v3806 = vmul.f32 %v3763, %v3800
        %v3807 = vmul.f32 %v3764, %v3796
        %v3808 = vmul.f32 %v3765, %v3800
        %v3809 = vmul.f32 %v3766, %v3796
        %v3810 = vmul.f32 %v3767, %v3800
        %v3811 = vmul.f32 %v3768, %v3796
        %v3812 = vmul.f32 %v3769, %v3800
        %v3813 = vmul.f32 %v3770, %v3796
        %v3814 = vmul.f32 %v3771, %v3800
        %v3815 = vmul.f32 %v3772, %v3796
        %v3816 = vmul.f32 %v3773, %v3800
        %v3817 = vmul.f32 %v3774, %v3796
        %v3818 = vmul.f32 %v3775, %v3800
        %v3819 = vmul.f32 %v3776, %v3796
        %v3820 = vmul.f32 %v3777, %v3800
        %v3821 = vmul.f32 %v3778, %v3796
        %v3822 = vmul.f32 %v3779, %v3800
        %v3823 = vmul.f32 %v3780, %v3796
        %v3824 = vmul.f32 %v3781, %v3800
        %v3825 = vmul.f32 %v3782, %v3796
        %v3826 = vmul.f32 %v3783, %v3800
        %v3827 = vmul.f32 %v3784, %v3796
        %v3828 = vmul.f32 %v3785, %v3800
        %v3829 = vmul.f32 %v3786, %v3796
        %v3830 = vmul.f32 %v3787, %v3800
        %v3831 = vmul.f32 %v3788, %v3796
        %v3832 = vmul.f32 %v3789, %v3800
        %v3833 = vmul.f32 %v3790, %v3796
        %v3834 = vmul.f32 %v3791, %v3800
        %v3836 = vlaneseq
        %v3837 = vshrl.u32 %v3836, 7
        %v3838 = vsub.s32 0, %v3837
        %v3839 = vrot.slane %v3535, %v3838
        %v3840 = vlaneseq
        %v3841 = vshrl.u32 %v3840, 7
        %v3842 = vsub.s32 1, %v3841
        %v3843 = vrot.slane %v3535, %v3842
        %v3846 = vadd.f32 %v3803, %v3839
        %v3847 = vadd.f32 %v3804, %v3843
        %v3848 = vadd.f32 %v3805, %v3839
        %v3849 = vadd.f32 %v3806, %v3843
        %v3850 = vadd.f32 %v3807, %v3839
        %v3851 = vadd.f32 %v3808, %v3843
        %v3852 = vadd.f32 %v3809, %v3839
        %v3853 = vadd.f32 %v3810, %v3843
        %v3854 = vadd.f32 %v3811, %v3839
        %v3855 = vadd.f32 %v3812, %v3843
        %v3856 = vadd.f32 %v3813, %v3839
        %v3857 = vadd.f32 %v3814, %v3843
        %v3858 = vadd.f32 %v3815, %v3839
        %v3859 = vadd.f32 %v3816, %v3843
        %v3860 = vadd.f32 %v3817, %v3839
        %v3861 = vadd.f32 %v3818, %v3843
        %v3862 = vadd.f32 %v3819, %v3839
        %v3863 = vadd.f32 %v3820, %v3843
        %v3864 = vadd.f32 %v3821, %v3839
        %v3865 = vadd.f32 %v3822, %v3843
        %v3866 = vadd.f32 %v3823, %v3839
        %v3867 = vadd.f32 %v3824, %v3843
        %v3868 = vadd.f32 %v3825, %v3839
        %v3869 = vadd.f32 %v3826, %v3843
        %v3870 = vadd.f32 %v3827, %v3839
        %v3871 = vadd.f32 %v3828, %v3843
        %v3872 = vadd.f32 %v3829, %v3839
        %v3873 = vadd.f32 %v3830, %v3843
        %v3874 = vadd.f32 %v3831, %v3839
        %v3875 = vadd.f32 %v3832, %v3843
        %v3876 = vadd.f32 %v3833, %v3839
        %v3877 = vadd.f32 %v3834, %v3843
        %3878 = vst [vmem:[%s687] sm:$0xff] %v3846
        %3879 = vst [vmem:[%s687 + $0x8] sm:$0xff] %v3847
        %3880 = vst [vmem:[%s687 + $0x10] sm:$0xff] %v3848
        %3881 = vst [vmem:[%s687 + $0x18] sm:$0xff] %v3849
        %3882 = vst [vmem:[%s687 + $0x20] sm:$0xff] %v3850
        %3883 = vst [vmem:[%s687 + $0x28] sm:$0xff] %v3851
        %3884 = vst [vmem:[%s687 + $0x30] sm:$0xff] %v3852
        %3885 = vst [vmem:[%s687 + $0x38] sm:$0xff] %v3853
        %3886 = vst [vmem:[%s687 + $0x40] sm:$0xff] %v3854
        %3887 = vst [vmem:[%s687 + $0x48] sm:$0xff] %v3855
        %3888 = vst [vmem:[%s687 + $0x50] sm:$0xff] %v3856
        %3889 = vst [vmem:[%s687 + $0x58] sm:$0xff] %v3857
        %3890 = vst [vmem:[%s687 + $0x60] sm:$0xff] %v3858
        %3891 = vst [vmem:[%s687 + $0x68] sm:$0xff] %v3859
        %3892 = vst [vmem:[%s687 + $0x70] sm:$0xff] %v3860
        %3893 = vst [vmem:[%s687 + $0x78] sm:$0xff] %v3861
        %3894 = vst [vmem:[%s687 + $0x80] sm:$0xff] %v3862
        %3895 = vst [vmem:[%s687 + $0x88] sm:$0xff] %v3863
        %3896 = vst [vmem:[%s687 + $0x90] sm:$0xff] %v3864
        %3897 = vst [vmem:[%s687 + $0x98] sm:$0xff] %v3865
        %3898 = vst [vmem:[%s687 + $0xa0] sm:$0xff] %v3866
        %3899 = vst [vmem:[%s687 + $0xa8] sm:$0xff] %v3867
        %3900 = vst [vmem:[%s687 + $0xb0] sm:$0xff] %v3868
        %3901 = vst [vmem:[%s687 + $0xb8] sm:$0xff] %v3869
        %3902 = vst [vmem:[%s687 + $0xc0] sm:$0xff] %v3870
        %3903 = vst [vmem:[%s687 + $0xc8] sm:$0xff] %v3871
        %3904 = vst [vmem:[%s687 + $0xd0] sm:$0xff] %v3872
        %3905 = vst [vmem:[%s687 + $0xd8] sm:$0xff] %v3873
        %3906 = vst [vmem:[%s687 + $0xe0] sm:$0xff] %v3874
        %3907 = vst [vmem:[%s687 + $0xe8] sm:$0xff] %v3875
        %3908 = vst [vmem:[%s687 + $0xf0] sm:$0xff] %v3876
        %3909 = vst [vmem:[%s687 + $0xf8] sm:$0xff] %v3877
        %s3910 = sand.u32 %s350, 1
        %s3911 = scalar_lea.sflag [#allocation4], %s3910
        %s3912 = sand.u32 %s350, 1
        %s3913 = smul.addr %s3912, 256
        %s3914 = scalar_lea.vmem [#allocation23], %s3913
        // Predicated region
        $region132: #{tpu_custom_call.1} parent=71 // pred_check
          %p3915 = pneg %p360
        $region133: #{tpu_custom_call.1} parent=71 // pred_check_branch
          %3917 = sbr.rel (%p3915) target = $region135
        $region134: #{tpu_custom_call.1} parent=71 // pred_region
          %s3918 = smul.u32 16, %s43
          %s3920 = ssub.s32 4096, 4096
          %3921 = vsyncadd %s3911, %s3920
          %s3922 = smul.addr %s3918, 2
          %s3923 = smul.addr %s42, 32
          %s3924 = sadd.s32 %s3922, %s3923
          %s3925 = smul.addr %s3924, 128
          %s3926 = scalar_lea.hbm %s13, %s3925
          %s3927 = sshll.u32 %s3914, 4
          %s3928 = int_to_ptr.vmem [resolvable:$true] %s3927
          %3933 = dma.vmem_to_hbm [thread:$0]  %s3928, 4096, %s3926, %s3911, 256, 256, 16
        $region135: #{tpu_custom_call.1} parent=71 // pred_fallthru
          _
      $region72: #{tpu_custom_call.1} parent=5 // pred_fallthru
        _
      %p3934 = scmp.le.s32.totalorder 2, %s33
      // Predicated region
      $region136: #{tpu_custom_call.1} parent=5 // pred_check
        %p3935 = pneg %p3934
      $region137: #{tpu_custom_call.1} parent=5 // pred_check_branch
        %3937 = sbr.rel (%p3935) target = $region139
      $region138: #{tpu_custom_call.1} parent=5 // pred_region
        %s3938 = ssub.s32 %s33, 2
        // Predicated region
        $region140: #{tpu_custom_call.1} parent=138 // pred_check
          %p3939 = pneg %p366
        $region141: #{tpu_custom_call.1} parent=138 // pred_check_branch
          %3941 = sbr.rel (%p3939) target = $region143
        $region142: #{tpu_custom_call.1} parent=138 // pred_region
          %s3942 = sand.u32 %s351, 1
          %s3943 = scalar_lea.sflag [#allocation4], %s3942
          %s3944 = sand.u32 %s351, 1
          %s3945 = smul.addr %s3944, 256
          %s3946 = scalar_lea.vmem [#allocation23], %s3945
          %3947 = dma.done %s3943, 4096
        $region143: #{tpu_custom_call.1} parent=138 // pred_fallthru
          _
      $region139: #{tpu_custom_call.1} parent=5 // pred_fallthru
        _
    $region6: #{tpu_custom_call.1} parent=1 // loop_footer
      %s37 = sadd.s32 1, %s33
    $region7: #{tpu_custom_call.1} parent=1 // loop_footer_branch
      %32 = sbr.rel target = $region3
    $region8: #{tpu_custom_call.1} parent=1 // loop_exit
      _
    %3948 = vsyncpa [#allocation3], 1
    %s3949 = scalar_lea.sflag [#allocation3], 1
    %3950 = vsyncpa %s3949, 1
    %3951 = vsyncpa [#allocation6], 1
    %s3952 = scalar_lea.sflag [#allocation6], 1
    %3953 = vsyncpa %s3952, 1
    %3954 = vsyncpa [#allocation9], 1
    %3955 = vsyncpa [#allocation12], 1
    %3956 = vsyncpa [#allocation15], 1
    %3957 = vsyncpa [#allocation18], 1
    %3958 = vsyncpa [#allocation21], 1
    %3959 = vsyncpa [#allocation4], 1
    %s3960 = scalar_lea.sflag [#allocation4], 1
    %3961 = vsyncpa %s3960, 1

</llo_original>
